<compile_context>
chip_gen: v6e
topology: v6e:2x2x1
jax: 0.10.0
libtpu: 0.0.40
codegen_flags: <defaults>
</compile_context>

<pallas_src>
import numpy as np

import jax
import jax.numpy as jnp
from jax.experimental import pallas as pl
from jax.experimental.pallas import tpu as pltpu


# -----------------------------------------------------------------------------
# Geometry
# -----------------------------------------------------------------------------
def _geom(B, H, W):
    assert H % 4 == 0 and W % 4 == 0, "two 2x2 max-pools require H, W % 4 == 0"
    g = dict(B=B, H=H, W=W)
    g["H2"], g["W2"] = H // 2, W // 2              # after pool1
    g["H3"], g["W3"] = H // 4, W // 4              # after pool2
    g["Hp2"], g["Wp2"] = g["H2"] + 2, g["W2"] + 2  # conv2 zero-padded grid
    g["Hp3"], g["Wp3"] = g["H3"] + 2, g["W3"] + 2  # conv3 zero-padded grid
    g["N2"] = B * g["Hp2"] * g["Wp2"]              # flat padded rows, conv2
    g["N3"] = B * g["Hp3"] * g["Wp3"]              # flat padded rows, conv3
    g["G2"] = g["Wp2"] + 1                         # guard rows so every 3x3 tap
    g["G3"] = g["Wp3"] + 1                         #   shift is an in-bounds slice
    g["Q1"] = B * g["H2"] * g["W2"]                # pool1 output positions
    return g


# -----------------------------------------------------------------------------
# AdaptiveAvgPool2d((4,4)) as a small f32 selection/averaging matrix.
# Output rows ordered p*B + b (p = i4*4 + j4) so each spatial position is a
# contiguous [B, C] slab for the flatten repack.
# -----------------------------------------------------------------------------
def _adaptive_select(B, Hs, Ws, Hp, Wp, out_hw):
    S = np.zeros((out_hw * out_hw * B, B * Hp * Wp), np.float32)
    for i4 in range(out_hw):
        i0 = (i4 * Hs) // out_hw
        i1 = ((i4 + 1) * Hs + out_hw - 1) // out_hw
        for j4 in range(out_hw):
            j0 = (j4 * Ws) // out_hw
            j1 = ((j4 + 1) * Ws + out_hw - 1) // out_hw
            wgt = 1.0 / ((i1 - i0) * (j1 - j0))
            p = i4 * out_hw + j4
            for b in range(B):
                for i in range(i0, i1):
                    for j in range(j0, j1):
                        S[p * B + b, b * Hp * Wp + (i + 1) * Wp + (j + 1)] = wgt
    return S


# -----------------------------------------------------------------------------
# Quantum-circuit constants (all-real RY + CNOT-ring statevector simulation)
# -----------------------------------------------------------------------------
def _ry(theta):
    c, s = np.cos(theta / 2.0), np.sin(theta / 2.0)
    return np.array([[c, -s], [s, c]], dtype=np.float32)


def _cnot(control, target, n=4):
    dim = 2 ** n
    U = np.zeros((dim, dim), dtype=np.float32)
    for k in range(dim):
        k2 = k ^ (1 << target) if (k >> control) & 1 else k
        U[k2, k] = 1.0
    return U


def build_variational_unitary(var_angles):
    """var_angles: np [depth, 4] -> 16x16 real unitary (RY layer + CNOT ring)^depth."""
    ring = _cnot(3, 0) @ _cnot(2, 3) @ _cnot(1, 2) @ _cnot(0, 1)
    U = np.eye(16, dtype=np.float32)
    for l in range(var_angles.shape[0]):
        layer = _ry(var_angles[l, 0])            # qubit 0 = lowest bit
        for q in range(1, 4):
            layer = np.kron(_ry(var_angles[l, q]), layer)
        U = ring @ layer @ U
    return U


# -----------------------------------------------------------------------------
# Parameter / constant construction
# -----------------------------------------------------------------------------
def init_params(B=2, C_in=3, H=16, W=16, n_qubits=4, n_classes=10, quantum_depth=2):
    g = _geom(B, H, W)
    key = jax.random.PRNGKey(42)
    ks = jax.random.split(key, 9)

    def lin_t(k, fan_in, fan_out):
        # torch nn.Linear weight [out, in], stored transposed as [in, out]
        return np.asarray(jax.random.normal(k, (fan_in, fan_out), jnp.float32)) / np.sqrt(fan_in)

    def conv_taps(k, cout, cin):
        # torch nn.Conv2d weight [cout, cin, 3, 3] -> rows ordered (ki*3+kj)*cin + c
        w = np.asarray(jax.random.normal(k, (cout, cin, 3, 3), jnp.float32)) / np.sqrt(cin * 9)
        return w.transpose(2, 3, 1, 0).reshape(9 * cin, cout)

    p = {}
    # Conv weights stored bf16 (MXU-native; operands were cast to bf16 in-kernel anyway).
    p["w1c"] = jnp.asarray(conv_taps(ks[0], 16, C_in), jnp.bfloat16)   # [9*C_in, 16]
    p["b1c"] = jnp.zeros((1, 16), jnp.float32)
    p["w2c"] = jnp.asarray(conv_taps(ks[1], 32, 16), jnp.bfloat16)     # [144, 32]
    p["b2c"] = jnp.zeros((1, 32), jnp.float32)
    p["w3c"] = jnp.asarray(conv_taps(ks[2], 64, 32), jnp.bfloat16)     # [288, 64]
    p["b3c"] = jnp.zeros((1, 64), jnp.float32)

    # Adaptive-avg-pool selection matrix (f32: averaging weights need not be bf16-exact).
    p["sel3"] = jnp.asarray(_adaptive_select(B, g["H3"], g["W3"], g["Hp3"], g["Wp3"], 4))

    # HybridModel classical layers: 1024 -> 256 -> 64 -> n_qubits angles.
    n_feat = 64 * 4 * 4
    w1 = lin_t(ks[3], n_feat, 256)          # torch rows in NCHW-flatten order c*16 + p
    # Fold torch's NCHW .view() flatten permutation: reorder rows to p*64 + c.
    p["w1r"] = jnp.asarray(w1.reshape(64, 16, 256).transpose(1, 0, 2).reshape(n_feat, 256),
                           jnp.bfloat16)
    p["b1m"] = jnp.zeros((1, 256), jnp.float32)
    p["w2m"] = jnp.asarray(lin_t(ks[4], 256, 64), jnp.bfloat16)
    p["b2m"] = jnp.zeros((1, 64), jnp.float32)
    p["w3m"] = jnp.asarray(lin_t(ks[5], 64, n_qubits))
    p["b3m"] = jnp.zeros((1, n_qubits), jnp.float32)

    # Fixed depth-2 variational circuit -> precompute U^T, Z-sign table, bit-0 mask.
    var_angles = np.asarray(jax.random.uniform(ks[6], (quantum_depth, n_qubits),
                                               jnp.float32, 0.0, 2.0 * np.pi))
    p["ut"] = jnp.asarray(build_variational_unitary(var_angles).T)     # [16, 16]
    dim = 2 ** n_qubits
    zs = np.zeros((dim, n_qubits), np.float32)
    m0 = np.zeros((n_qubits, dim), np.float32)
    for k in range(dim):
        for q in range(n_qubits):
            bit = (k >> q) & 1
            zs[k, q] = 1.0 - 2.0 * bit
            m0[q, k] = 1.0 - bit
    p["zs"] = jnp.asarray(zs)                                          # [16, n_qubits]
    p["mask0"] = jnp.asarray(m0)                                       # [n_qubits, 16]

    # Quantum readout (n_qubits -> 1) folded with classifier Linear(1, n_classes).
    wq = lin_t(ks[7], n_qubits, 1); bq = np.zeros((1, 1), np.float32)
    wc = lin_t(ks[8], 1, n_classes); bc = np.zeros((1, n_classes), np.float32)
    p["wqc"] = jnp.asarray(wq @ wc)                                    # [n_qubits, n_classes]
    p["bqc"] = jnp.asarray(bq @ wc + bc)                               # [1, n_classes]
    return p


# -----------------------------------------------------------------------------
# Fused forward pass (single pallas_call)
# -----------------------------------------------------------------------------
def hybrid_vision_forward(x, params):
    """x: [B, 3, H, W] NCHW float32 -> logits [B, n_classes]."""
    B, C, H, W = x.shape
    g = _geom(B, H, W)
    H2, W2, H3, W3 = g["H2"], g["W2"], g["H3"], g["W3"]
    Hp2, Wp2, Hp3, Wp3 = g["Hp2"], g["Wp2"], g["Hp3"], g["Wp3"]
    N2, N3, G2, G3, Q1 = g["N2"], g["N3"], g["G2"], g["G3"], g["Q1"]
    n_classes = params["wqc"].shape[1]
    n_qubits = params["zs"].shape[1]
    P, C3 = 16, 64                                   # 4x4 pooled positions, conv3 channels
    n_feat = P * C3

    # ---- host-side (XLA) conv1 im2col: tiny (~9*C*B*H*W bf16 bytes), pure data layout ----
    # Rows ordered k*Q1 + ((b*H2 + i2)*W2 + j2) with k = 2x2 pool-window element index,
    # so MaxPool #1 in the kernel is a max over 4 contiguous row blocks (no gathers).
    xpad = jnp.pad(jnp.transpose(x, (0, 2, 3, 1)), ((0, 0), (1, 1), (1, 1), (0, 0)))
    patches = jnp.concatenate(
        [xpad[:, ki:ki + H, kj:kj + W, :] for ki in range(3) for kj in range(3)], axis=-1)
    xcol = patches.reshape(B, H2, 2, W2, 2, 9 * C)
    xcol = jnp.transpose(xcol, (2, 4, 0, 1, 3, 5)).reshape(4 * Q1, 9 * C).astype(jnp.bfloat16)

    def kernel(xcol_ref, w1c_ref, b1c_ref, w2c_ref, b2c_ref, w3c_ref, b3c_ref,
               sel3_ref, w1r_hbm, b1m_ref, w2m_ref, b2m_ref, w3m_ref, b3m_ref,
               mask0_ref, ut_ref, zs_ref, wqc_ref, bqc_ref,
               o_ref,
               o1_s, p2g_s, o2_s, p3g_s, g_s, w1r_vmem, w1r_sem):
        f32, bf16 = jnp.float32, jnp.bfloat16
        taps = [(ki, kj) for ki in range(3) for kj in range(3)]

        # Start the late-use 512 KiB MLP-layer-1 weight DMA; it overlaps the whole
        # conv block and is only waited on right before its matmul.
        w1r_cp = pltpu.make_async_copy(w1r_hbm, w1r_vmem, w1r_sem)
        w1r_cp.start()

        # Zero the padded conv-input scratches once: the zero-padding ring must be
        # exact zeros; guard rows only feed conv outputs that are never selected.
        p2g_s[...] = jnp.zeros_like(p2g_s)
        p3g_s[...] = jnp.zeros_like(p3g_s)

        def conv3x3_relu(src_ref, guard, n_rows, wp, w_ref, b_ref, cin):
            """3x3/pad=1 conv as 9 accumulated tap matmuls on a flat zero-padded NHWC
            row layout (bf16 MXU operands, f32 accumulation, fused bias + ReLU)."""
            acc = None
            for t, (ki, kj) in enumerate(taps):
                shift = (ki - 1) * wp + (kj - 1)
                lhs = src_ref[pl.ds(guard + shift, n_rows), :].astype(bf16)
                prt = jnp.dot(lhs, w_ref[pl.ds(t * cin, cin), :],
                              preferred_element_type=f32)
                acc = prt if acc is None else acc + prt
            return jnp.maximum(acc + b_ref[...], 0.0)

        # ------------------- conv1 (single im2col matmul) + pool1 -------------------
        o1_s[...] = jnp.maximum(
            jnp.dot(xcol_ref[...], w1c_ref[...], preferred_element_type=f32)
            + b1c_ref[...], 0.0)                                            # [4*Q1, 16]
        pool1 = jnp.maximum(
            jnp.maximum(o1_s[pl.ds(0 * Q1, Q1), :], o1_s[pl.ds(1 * Q1, Q1), :]),
            jnp.maximum(o1_s[pl.ds(2 * Q1, Q1), :], o1_s[pl.ds(3 * Q1, Q1), :]))  # [Q1, 16]
        # Scatter pooled rows (b, i2, j2) into conv2's zero-padded grid interior.
        for b in range(B):
            for i2 in range(H2):
                src = (b * H2 + i2) * W2
                dst = G2 + b * Hp2 * Wp2 + (i2 + 1) * Wp2 + 1
                p2g_s[pl.ds(dst, W2), :] = pool1[src:src + W2, :]

        # ------------------------------ conv2 + pool2 -------------------------------
        o2_s[...] = conv3x3_relu(p2g_s, G2, N2, Wp2, w2c_ref, b2c_ref, 16)  # [N2, 32]
        for b in range(B):
            for i3 in range(H3):
                r0 = b * Hp2 * Wp2 + (2 * i3 + 1) * Wp2 + 1     # col 1 of padded row 2i3+1
                m = jnp.maximum(o2_s[pl.ds(r0, W2), :],
                                o2_s[pl.ds(r0 + Wp2, W2), :])               # [W2, 32]
                dst = G3 + b * Hp3 * Wp3 + (i3 + 1) * Wp3 + 1
                for j3 in range(W3):
                    p3g_s[pl.ds(dst + j3, 1), :] = jnp.maximum(
                        m[2 * j3:2 * j3 + 1, :], m[2 * j3 + 1:2 * j3 + 2, :])

        # ----------------------- conv3 + adaptive avg-pool --------------------------
        o3 = conv3x3_relu(p3g_s, G3, N3, Wp3, w3c_ref, b3c_ref, 32)         # [N3, 64]
        gsel = jnp.dot(sel3_ref[...], o3, preferred_element_type=f32)       # [P*B, 64]
        # Assemble the flattened feature slab [B, P*64]; torch's NCHW flatten is folded
        # into w1r's row order, so only this (p, b) -> (b, p) repack remains.
        for p_i in range(P):
            g_s[:, pl.ds(p_i * C3, C3)] = gsel[p_i * B:(p_i + 1) * B, :]

        # ------------------ MLP 1024 -> 256 -> 64 -> n_qubits angles ----------------
        w1r_cp.wait()
        h1 = jnp.maximum(
            jnp.dot(g_s[...].astype(bf16), w1r_vmem[...], preferred_element_type=f32)
            + b1m_ref[...], 0.0)                                            # [B, 256]
        h2 = jnp.maximum(
            jnp.dot(h1.astype(bf16), w2m_ref[...], preferred_element_type=f32)
            + b2m_ref[...], 0.0)                                            # [B, 64]
        ang = jnp.dot(h2, w3m_ref[...], preferred_element_type=f32) + b3m_ref[...]  # [B, nq]

        # --- 4-qubit angle encoding + fixed variational circuit (all-real statevector) ---
        half = 0.5 * ang
        cc, ss = jnp.cos(half), jnp.sin(half)
        dd = cc - ss
        m0 = mask0_ref[...]                                                 # [nq, 16]
        psi = None
        for q in range(n_qubits):
            # amplitude factor: cos(a/2) where bit_q = 0, sin(a/2) where bit_q = 1
            fq = ss[:, q:q + 1] + dd[:, q:q + 1] * m0[q:q + 1, :]           # [B, 16]
            psi = fq if psi is None else psi * fq
        psi = jnp.dot(psi, ut_ref[...], preferred_element_type=f32)         # apply U
        expz = jnp.dot(psi * psi, zs_ref[...], preferred_element_type=f32)  # <Z_q>
        # folded (n_qubits -> 1) readout and Linear(1, n_classes) classifier
        o_ref[...] = (jnp.dot(expz, wqc_ref[...], preferred_element_type=f32)
                      + bqc_ref[...]).astype(o_ref.dtype)

    args = (xcol, params["w1c"], params["b1c"], params["w2c"], params["b2c"],
            params["w3c"], params["b3c"], params["sel3"], params["w1r"],
            params["b1m"], params["w2m"], params["b2m"], params["w3m"],
            params["b3m"], params["mask0"], params["ut"], params["zs"],
            params["wqc"], params["bqc"])
    in_specs = [pl.BlockSpec(a.shape, lambda i: (0, 0)) for a in args]
    in_specs[8] = pl.BlockSpec(memory_space=pl.ANY)     # w1r: manual, overlapped DMA

    return pl.pallas_call(
        kernel,
        out_shape=jax.ShapeDtypeStruct((B, n_classes), jnp.float32),
        grid=(1,),
        in_specs=in_specs,
        out_specs=pl.BlockSpec((B, n_classes), lambda i: (0, 0)),
        scratch_shapes=[
            pltpu.VMEM((4 * Q1, 16), jnp.float32),        # conv1 output (pool-window-major rows)
            pltpu.VMEM((N2 + 2 * G2, 16), jnp.float32),   # conv2 padded + guarded input
            pltpu.VMEM((N2, 32), jnp.float32),            # conv2 output
            pltpu.VMEM((N3 + 2 * G3, 32), jnp.float32),   # conv3 padded + guarded input
            pltpu.VMEM((B, n_feat), jnp.float32),         # flattened features [B, 1024]
            pltpu.VMEM((n_feat, 256), jnp.bfloat16),      # w1r landing buffer (manual DMA)
            pltpu.SemaphoreType.DMA,                      # w1r DMA completion semaphore
        ],
        compiler_params=pltpu.CompilerParams(dimension_semantics=("arbitrary",)),
    )(*args)


if __name__ == "__main__":
    B, C, H, W = 2, 3, 16, 16
    x = jax.random.normal(jax.random.PRNGKey(0), (B, C, H, W), jnp.float32)  # NCHW like torch
    params = init_params(B=B, C_in=C, H=H, W=W)
    fwd = jax.jit(hybrid_vision_forward)
    logits = jax.block_until_ready(fwd(x, params))
    assert logits.shape == (B, 10), logits.shape
    assert bool(jnp.all(jnp.isfinite(logits)))
    print("KERNEL_OK")
</pallas_src>

<mosaic_0001>
module attributes {stable_mosaic.version = 11 : i64} {
  func.func @kernel(%arg0: i32, %arg1: memref<512x27xbf16, #tpu.memory_space<vmem>>, %arg2: memref<27x16xbf16, #tpu.memory_space<vmem>>, %arg3: memref<1x16xf32, #tpu.memory_space<vmem>>, %arg4: memref<144x32xbf16, #tpu.memory_space<vmem>>, %arg5: memref<1x32xf32, #tpu.memory_space<vmem>>, %arg6: memref<288x64xbf16, #tpu.memory_space<vmem>>, %arg7: memref<1x64xf32, #tpu.memory_space<vmem>>, %arg8: memref<32x72xf32, #tpu.memory_space<vmem>>, %arg9: memref<1024x256xbf16, #tpu.memory_space<any>>, %arg10: memref<1x256xf32, #tpu.memory_space<vmem>>, %arg11: memref<256x64xbf16, #tpu.memory_space<vmem>>, %arg12: memref<1x64xf32, #tpu.memory_space<vmem>>, %arg13: memref<64x4xf32, #tpu.memory_space<vmem>>, %arg14: memref<1x4xf32, #tpu.memory_space<vmem>>, %arg15: memref<4x16xf32, #tpu.memory_space<vmem>>, %arg16: memref<16x16xf32, #tpu.memory_space<vmem>>, %arg17: memref<16x4xf32, #tpu.memory_space<vmem>>, %arg18: memref<4x10xf32, #tpu.memory_space<vmem>>, %arg19: memref<1x10xf32, #tpu.memory_space<vmem>>, %arg20: memref<2x10xf32, #tpu.memory_space<vmem>>, %arg21: memref<512x16xf32, #tpu.memory_space<vmem>>, %arg22: memref<222x16xf32, #tpu.memory_space<vmem>>, %arg23: memref<200x32xf32, #tpu.memory_space<vmem>>, %arg24: memref<86x32xf32, #tpu.memory_space<vmem>>, %arg25: memref<2x1024xf32, #tpu.memory_space<vmem>>, %arg26: memref<1024x256xbf16, #tpu.memory_space<vmem>>, %arg27: memref<!tpu.dma_semaphore, #tpu.memory_space<semaphore_mem>>) attributes {dimension_semantics = [#tpu.dimension_semantics<arbitrary>], iteration_bounds = array<i64: 1>, scalar_prefetch = 0 : i64, scratch_operands = 7 : i64, tpu.core_type = #tpu.core_type<tc>, window_params = [{pipeline_mode = #tpu.pipeline_mode<synchronous>, transform_indices = @transform_0, window_bounds = array<i64: 512, 27>}, {pipeline_mode = #tpu.pipeline_mode<synchronous>, transform_indices = @transform_1, window_bounds = array<i64: 27, 16>}, {pipeline_mode = #tpu.pipeline_mode<synchronous>, transform_indices = @transform_2, window_bounds = array<i64: 1, 16>}, {pipeline_mode = #tpu.pipeline_mode<synchronous>, transform_indices = @transform_3, window_bounds = array<i64: 144, 32>}, {pipeline_mode = #tpu.pipeline_mode<synchronous>, transform_indices = @transform_4, window_bounds = array<i64: 1, 32>}, {pipeline_mode = #tpu.pipeline_mode<synchronous>, transform_indices = @transform_5, window_bounds = array<i64: 288, 64>}, {pipeline_mode = #tpu.pipeline_mode<synchronous>, transform_indices = @transform_6, window_bounds = array<i64: 1, 64>}, {pipeline_mode = #tpu.pipeline_mode<synchronous>, transform_indices = @transform_7, window_bounds = array<i64: 32, 72>}, {}, {pipeline_mode = #tpu.pipeline_mode<synchronous>, transform_indices = @transform_9, window_bounds = array<i64: 1, 256>}, {pipeline_mode = #tpu.pipeline_mode<synchronous>, transform_indices = @transform_10, window_bounds = array<i64: 256, 64>}, {pipeline_mode = #tpu.pipeline_mode<synchronous>, transform_indices = @transform_11, window_bounds = array<i64: 1, 64>}, {pipeline_mode = #tpu.pipeline_mode<synchronous>, transform_indices = @transform_12, window_bounds = array<i64: 64, 4>}, {pipeline_mode = #tpu.pipeline_mode<synchronous>, transform_indices = @transform_13, window_bounds = array<i64: 1, 4>}, {pipeline_mode = #tpu.pipeline_mode<synchronous>, transform_indices = @transform_14, window_bounds = array<i64: 4, 16>}, {pipeline_mode = #tpu.pipeline_mode<synchronous>, transform_indices = @transform_15, window_bounds = array<i64: 16, 16>}, {pipeline_mode = #tpu.pipeline_mode<synchronous>, transform_indices = @transform_16, window_bounds = array<i64: 16, 4>}, {pipeline_mode = #tpu.pipeline_mode<synchronous>, transform_indices = @transform_17, window_bounds = array<i64: 4, 10>}, {pipeline_mode = #tpu.pipeline_mode<synchronous>, transform_indices = @transform_18, window_bounds = array<i64: 1, 10>}, {pipeline_mode = #tpu.pipeline_mode<synchronous>, transform_indices = @transform_19, window_bounds = array<i64: 2, 10>}]} {
    tpu.enqueue_dma source(%arg9 : memref<1024x256xbf16, #tpu.memory_space<any>>) target(%arg26 : memref<1024x256xbf16, #tpu.memory_space<vmem>>) target_semaphore(%arg27 : memref<!tpu.dma_semaphore, #tpu.memory_space<semaphore_mem>>)
    %cst = arith.constant 0.000000e+00 : f32
    %0 = vector.broadcast %cst : f32 to vector<222x16xf32>
    %c0 = arith.constant 0 : index
    %c0_0 = arith.constant 0 : index
    %1 = vector.load %arg22[%c0, %c0_0] : memref<222x16xf32, #tpu.memory_space<vmem>>, vector<222x16xf32>
    tpu.vector_store %arg22[%c0, %c0_0], %0 {strides = array<i32>} : memref<222x16xf32, #tpu.memory_space<vmem>>, vector<222x16xf32>,
    %cst_1 = arith.constant 0.000000e+00 : f32
    %2 = vector.broadcast %cst_1 : f32 to vector<86x32xf32>
    %c0_2 = arith.constant 0 : index
    %c0_3 = arith.constant 0 : index
    %3 = vector.load %arg24[%c0_2, %c0_3] : memref<86x32xf32, #tpu.memory_space<vmem>>, vector<86x32xf32>
    tpu.vector_store %arg24[%c0_2, %c0_3], %2 {strides = array<i32>} : memref<86x32xf32, #tpu.memory_space<vmem>>, vector<86x32xf32>,
    %c0_4 = arith.constant 0 : index
    %c0_5 = arith.constant 0 : index
    %4 = vector.load %arg1[%c0_4, %c0_5] : memref<512x27xbf16, #tpu.memory_space<vmem>>, vector<512x27xbf16>
    %c0_6 = arith.constant 0 : index
    %c0_7 = arith.constant 0 : index
    %5 = vector.load %arg2[%c0_6, %c0_7] : memref<27x16xbf16, #tpu.memory_space<vmem>>, vector<27x16xbf16>
    %cst_8 = arith.constant dense<0.000000e+00> : vector<512x16xf32>
    %6 = tpu.matmul %4, %5, %cst_8 {dimension_numbers = #tpu.dot_dimension_numbers<[1], [0], [0], [1], [0, 0, 1, 1], [], []>} : vector<512x27xbf16>, vector<27x16xbf16>, vector<512x16xf32> -> vector<512x16xf32>
    %c0_9 = arith.constant 0 : index
    %c0_10 = arith.constant 0 : index
    %7 = vector.load %arg3[%c0_9, %c0_10] : memref<1x16xf32, #tpu.memory_space<vmem>>, vector<1x16xf32>
    %8 = vector.broadcast %7 : vector<1x16xf32> to vector<512x16xf32>
    %9 = arith.addf %6, %8 : vector<512x16xf32>
    %cst_11 = arith.constant 0.000000e+00 : f32
    %10 = vector.broadcast %cst_11 : f32 to vector<512x16xf32>
    %11 = arith.maximumf %9, %10 : vector<512x16xf32>
    %c0_12 = arith.constant 0 : index
    %c0_13 = arith.constant 0 : index
    %12 = vector.load %arg21[%c0_12, %c0_13] : memref<512x16xf32, #tpu.memory_space<vmem>>, vector<512x16xf32>
    tpu.vector_store %arg21[%c0_12, %c0_13], %11 {strides = array<i32>} : memref<512x16xf32, #tpu.memory_space<vmem>>, vector<512x16xf32>,
    %c0_14 = arith.constant 0 : index
    %c0_15 = arith.constant 0 : index
    %13 = vector.load %arg21[%c0_14, %c0_15] : memref<512x16xf32, #tpu.memory_space<vmem>>, vector<128x16xf32>
    %c128 = arith.constant 128 : index
    %c0_16 = arith.constant 0 : index
    %14 = vector.load %arg21[%c128, %c0_16] : memref<512x16xf32, #tpu.memory_space<vmem>>, vector<128x16xf32>
    %15 = arith.maximumf %13, %14 : vector<128x16xf32>
    %c256 = arith.constant 256 : index
    %c0_17 = arith.constant 0 : index
    %16 = vector.load %arg21[%c256, %c0_17] : memref<512x16xf32, #tpu.memory_space<vmem>>, vector<128x16xf32>
    %c384 = arith.constant 384 : index
    %c0_18 = arith.constant 0 : index
    %17 = vector.load %arg21[%c384, %c0_18] : memref<512x16xf32, #tpu.memory_space<vmem>>, vector<128x16xf32>
    %18 = arith.maximumf %16, %17 : vector<128x16xf32>
    %19 = arith.maximumf %15, %18 : vector<128x16xf32>
    %20 = vector.extract_strided_slice %19 {offsets = [0, 0], sizes = [8, 16], strides = [1, 1]} : vector<128x16xf32> to vector<8x16xf32>
    %c22 = arith.constant 22 : index
    %c0_19 = arith.constant 0 : index
    %21 = vector.load %arg22[%c22, %c0_19] : memref<222x16xf32, #tpu.memory_space<vmem>>, vector<8x16xf32>
    tpu.vector_store %arg22[%c22, %c0_19], %20 {strides = array<i32>} : memref<222x16xf32, #tpu.memory_space<vmem>>, vector<8x16xf32>,
    %22 = vector.extract_strided_slice %19 {offsets = [8, 0], sizes = [8, 16], strides = [1, 1]} : vector<128x16xf32> to vector<8x16xf32>
    %c32 = arith.constant 32 : index
    %c0_20 = arith.constant 0 : index
    %23 = vector.load %arg22[%c32, %c0_20] : memref<222x16xf32, #tpu.memory_space<vmem>>, vector<8x16xf32>
    tpu.vector_store %arg22[%c32, %c0_20], %22 {strides = array<i32>} : memref<222x16xf32, #tpu.memory_space<vmem>>, vector<8x16xf32>,
    %24 = vector.extract_strided_slice %19 {offsets = [16, 0], sizes = [8, 16], strides = [1, 1]} : vector<128x16xf32> to vector<8x16xf32>
    %c42 = arith.constant 42 : index
    %c0_21 = arith.constant 0 : index
    %25 = vector.load %arg22[%c42, %c0_21] : memref<222x16xf32, #tpu.memory_space<vmem>>, vector<8x16xf32>
    tpu.vector_store %arg22[%c42, %c0_21], %24 {strides = array<i32>} : memref<222x16xf32, #tpu.memory_space<vmem>>, vector<8x16xf32>,
    %26 = vector.extract_strided_slice %19 {offsets = [24, 0], sizes = [8, 16], strides = [1, 1]} : vector<128x16xf32> to vector<8x16xf32>
    %c52 = arith.constant 52 : index
    %c0_22 = arith.constant 0 : index
    %27 = vector.load %arg22[%c52, %c0_22] : memref<222x16xf32, #tpu.memory_space<vmem>>, vector<8x16xf32>
    tpu.vector_store %arg22[%c52, %c0_22], %26 {strides = array<i32>} : memref<222x16xf32, #tpu.memory_space<vmem>>, vector<8x16xf32>,
    %28 = vector.extract_strided_slice %19 {offsets = [32, 0], sizes = [8, 16], strides = [1, 1]} : vector<128x16xf32> to vector<8x16xf32>
    %c62 = arith.constant 62 : index
    %c0_23 = arith.constant 0 : index
    %29 = vector.load %arg22[%c62, %c0_23] : memref<222x16xf32, #tpu.memory_space<vmem>>, vector<8x16xf32>
    tpu.vector_store %arg22[%c62, %c0_23], %28 {strides = array<i32>} : memref<222x16xf32, #tpu.memory_space<vmem>>, vector<8x16xf32>,
    %30 = vector.extract_strided_slice %19 {offsets = [40, 0], sizes = [8, 16], strides = [1, 1]} : vector<128x16xf32> to vector<8x16xf32>
    %c72 = arith.constant 72 : index
    %c0_24 = arith.constant 0 : index
    %31 = vector.load %arg22[%c72, %c0_24] : memref<222x16xf32, #tpu.memory_space<vmem>>, vector<8x16xf32>
    tpu.vector_store %arg22[%c72, %c0_24], %30 {strides = array<i32>} : memref<222x16xf32, #tpu.memory_space<vmem>>, vector<8x16xf32>,
    %32 = vector.extract_strided_slice %19 {offsets = [48, 0], sizes = [8, 16], strides = [1, 1]} : vector<128x16xf32> to vector<8x16xf32>
    %c82 = arith.constant 82 : index
    %c0_25 = arith.constant 0 : index
    %33 = vector.load %arg22[%c82, %c0_25] : memref<222x16xf32, #tpu.memory_space<vmem>>, vector<8x16xf32>
    tpu.vector_store %arg22[%c82, %c0_25], %32 {strides = array<i32>} : memref<222x16xf32, #tpu.memory_space<vmem>>, vector<8x16xf32>,
    %34 = vector.extract_strided_slice %19 {offsets = [56, 0], sizes = [8, 16], strides = [1, 1]} : vector<128x16xf32> to vector<8x16xf32>
    %c92 = arith.constant 92 : index
    %c0_26 = arith.constant 0 : index
    %35 = vector.load %arg22[%c92, %c0_26] : memref<222x16xf32, #tpu.memory_space<vmem>>, vector<8x16xf32>
    tpu.vector_store %arg22[%c92, %c0_26], %34 {strides = array<i32>} : memref<222x16xf32, #tpu.memory_space<vmem>>, vector<8x16xf32>,
    %36 = vector.extract_strided_slice %19 {offsets = [64, 0], sizes = [8, 16], strides = [1, 1]} : vector<128x16xf32> to vector<8x16xf32>
    %c122 = arith.constant 122 : index
    %c0_27 = arith.constant 0 : index
    %37 = vector.load %arg22[%c122, %c0_27] : memref<222x16xf32, #tpu.memory_space<vmem>>, vector<8x16xf32>
    tpu.vector_store %arg22[%c122, %c0_27], %36 {strides = array<i32>} : memref<222x16xf32, #tpu.memory_space<vmem>>, vector<8x16xf32>,
    %38 = vector.extract_strided_slice %19 {offsets = [72, 0], sizes = [8, 16], strides = [1, 1]} : vector<128x16xf32> to vector<8x16xf32>
    %c132 = arith.constant 132 : index
    %c0_28 = arith.constant 0 : index
    %39 = vector.load %arg22[%c132, %c0_28] : memref<222x16xf32, #tpu.memory_space<vmem>>, vector<8x16xf32>
    tpu.vector_store %arg22[%c132, %c0_28], %38 {strides = array<i32>} : memref<222x16xf32, #tpu.memory_space<vmem>>, vector<8x16xf32>,
    %40 = vector.extract_strided_slice %19 {offsets = [80, 0], sizes = [8, 16], strides = [1, 1]} : vector<128x16xf32> to vector<8x16xf32>
    %c142 = arith.constant 142 : index
    %c0_29 = arith.constant 0 : index
    %41 = vector.load %arg22[%c142, %c0_29] : memref<222x16xf32, #tpu.memory_space<vmem>>, vector<8x16xf32>
    tpu.vector_store %arg22[%c142, %c0_29], %40 {strides = array<i32>} : memref<222x16xf32, #tpu.memory_space<vmem>>, vector<8x16xf32>,
    %42 = vector.extract_strided_slice %19 {offsets = [88, 0], sizes = [8, 16], strides = [1, 1]} : vector<128x16xf32> to vector<8x16xf32>
    %c152 = arith.constant 152 : index
    %c0_30 = arith.constant 0 : index
    %43 = vector.load %arg22[%c152, %c0_30] : memref<222x16xf32, #tpu.memory_space<vmem>>, vector<8x16xf32>
    tpu.vector_store %arg22[%c152, %c0_30], %42 {strides = array<i32>} : memref<222x16xf32, #tpu.memory_space<vmem>>, vector<8x16xf32>,
    %44 = vector.extract_strided_slice %19 {offsets = [96, 0], sizes = [8, 16], strides = [1, 1]} : vector<128x16xf32> to vector<8x16xf32>
    %c162 = arith.constant 162 : index
    %c0_31 = arith.constant 0 : index
    %45 = vector.load %arg22[%c162, %c0_31] : memref<222x16xf32, #tpu.memory_space<vmem>>, vector<8x16xf32>
    tpu.vector_store %arg22[%c162, %c0_31], %44 {strides = array<i32>} : memref<222x16xf32, #tpu.memory_space<vmem>>, vector<8x16xf32>,
    %46 = vector.extract_strided_slice %19 {offsets = [104, 0], sizes = [8, 16], strides = [1, 1]} : vector<128x16xf32> to vector<8x16xf32>
    %c172 = arith.constant 172 : index
    %c0_32 = arith.constant 0 : index
    %47 = vector.load %arg22[%c172, %c0_32] : memref<222x16xf32, #tpu.memory_space<vmem>>, vector<8x16xf32>
    tpu.vector_store %arg22[%c172, %c0_32], %46 {strides = array<i32>} : memref<222x16xf32, #tpu.memory_space<vmem>>, vector<8x16xf32>,
    %48 = vector.extract_strided_slice %19 {offsets = [112, 0], sizes = [8, 16], strides = [1, 1]} : vector<128x16xf32> to vector<8x16xf32>
    %c182 = arith.constant 182 : index
    %c0_33 = arith.constant 0 : index
    %49 = vector.load %arg22[%c182, %c0_33] : memref<222x16xf32, #tpu.memory_space<vmem>>, vector<8x16xf32>
    tpu.vector_store %arg22[%c182, %c0_33], %48 {strides = array<i32>} : memref<222x16xf32, #tpu.memory_space<vmem>>, vector<8x16xf32>,
    %50 = vector.extract_strided_slice %19 {offsets = [120, 0], sizes = [8, 16], strides = [1, 1]} : vector<128x16xf32> to vector<8x16xf32>
    %c192 = arith.constant 192 : index
    %c0_34 = arith.constant 0 : index
    %51 = vector.load %arg22[%c192, %c0_34] : memref<222x16xf32, #tpu.memory_space<vmem>>, vector<8x16xf32>
    tpu.vector_store %arg22[%c192, %c0_34], %50 {strides = array<i32>} : memref<222x16xf32, #tpu.memory_space<vmem>>, vector<8x16xf32>,
    %c0_35 = arith.constant 0 : index
    %c0_36 = arith.constant 0 : index
    %52 = vector.load %arg22[%c0_35, %c0_36] : memref<222x16xf32, #tpu.memory_space<vmem>>, vector<200x16xf32>
    %53 = arith.truncf %52 : vector<200x16xf32> to vector<200x16xbf16>
    %c0_37 = arith.constant 0 : index
    %c0_38 = arith.constant 0 : index
    %54 = vector.load %arg4[%c0_37, %c0_38] : memref<144x32xbf16, #tpu.memory_space<vmem>>, vector<16x32xbf16>
    %cst_39 = arith.constant dense<0.000000e+00> : vector<200x32xf32>
    %55 = tpu.matmul %53, %54, %cst_39 {dimension_numbers = #tpu.dot_dimension_numbers<[1], [0], [0], [1], [0, 0, 1, 1], [], []>} : vector<200x16xbf16>, vector<16x32xbf16>, vector<200x32xf32> -> vector<200x32xf32>
    %c1 = arith.constant 1 : index
    %c0_40 = arith.constant 0 : index
    %56 = vector.load %arg22[%c1, %c0_40] : memref<222x16xf32, #tpu.memory_space<vmem>>, vector<200x16xf32>
    %57 = arith.truncf %56 : vector<200x16xf32> to vector<200x16xbf16>
    %c16 = arith.constant 16 : index
    %c0_41 = arith.constant 0 : index
    %58 = vector.load %arg4[%c16, %c0_41] : memref<144x32xbf16, #tpu.memory_space<vmem>>, vector<16x32xbf16>
    %cst_42 = arith.constant dense<0.000000e+00> : vector<200x32xf32>
    %59 = tpu.matmul %57, %58, %cst_42 {dimension_numbers = #tpu.dot_dimension_numbers<[1], [0], [0], [1], [0, 0, 1, 1], [], []>} : vector<200x16xbf16>, vector<16x32xbf16>, vector<200x32xf32> -> vector<200x32xf32>
    %60 = arith.addf %55, %59 : vector<200x32xf32>
    %c2 = arith.constant 2 : index
    %c0_43 = arith.constant 0 : index
    %61 = vector.load %arg22[%c2, %c0_43] : memref<222x16xf32, #tpu.memory_space<vmem>>, vector<200x16xf32>
    %62 = arith.truncf %61 : vector<200x16xf32> to vector<200x16xbf16>
    %c32_44 = arith.constant 32 : index
    %c0_45 = arith.constant 0 : index
    %63 = vector.load %arg4[%c32_44, %c0_45] : memref<144x32xbf16, #tpu.memory_space<vmem>>, vector<16x32xbf16>
    %cst_46 = arith.constant dense<0.000000e+00> : vector<200x32xf32>
    %64 = tpu.matmul %62, %63, %cst_46 {dimension_numbers = #tpu.dot_dimension_numbers<[1], [0], [0], [1], [0, 0, 1, 1], [], []>} : vector<200x16xbf16>, vector<16x32xbf16>, vector<200x32xf32> -> vector<200x32xf32>
    %65 = arith.addf %60, %64 : vector<200x32xf32>
    %c10 = arith.constant 10 : index
    %c0_47 = arith.constant 0 : index
    %66 = vector.load %arg22[%c10, %c0_47] : memref<222x16xf32, #tpu.memory_space<vmem>>, vector<200x16xf32>
    %67 = arith.truncf %66 : vector<200x16xf32> to vector<200x16xbf16>
    %c48 = arith.constant 48 : index
    %c0_48 = arith.constant 0 : index
    %68 = vector.load %arg4[%c48, %c0_48] : memref<144x32xbf16, #tpu.memory_space<vmem>>, vector<16x32xbf16>
    %cst_49 = arith.constant dense<0.000000e+00> : vector<200x32xf32>
    %69 = tpu.matmul %67, %68, %cst_49 {dimension_numbers = #tpu.dot_dimension_numbers<[1], [0], [0], [1], [0, 0, 1, 1], [], []>} : vector<200x16xbf16>, vector<16x32xbf16>, vector<200x32xf32> -> vector<200x32xf32>
    %70 = arith.addf %65, %69 : vector<200x32xf32>
    %c11 = arith.constant 11 : index
    %c0_50 = arith.constant 0 : index
    %71 = vector.load %arg22[%c11, %c0_50] : memref<222x16xf32, #tpu.memory_space<vmem>>, vector<200x16xf32>
    %72 = arith.truncf %71 : vector<200x16xf32> to vector<200x16xbf16>
    %c64 = arith.constant 64 : index
    %c0_51 = arith.constant 0 : index
    %73 = vector.load %arg4[%c64, %c0_51] : memref<144x32xbf16, #tpu.memory_space<vmem>>, vector<16x32xbf16>
    %cst_52 = arith.constant dense<0.000000e+00> : vector<200x32xf32>
    %74 = tpu.matmul %72, %73, %cst_52 {dimension_numbers = #tpu.dot_dimension_numbers<[1], [0], [0], [1], [0, 0, 1, 1], [], []>} : vector<200x16xbf16>, vector<16x32xbf16>, vector<200x32xf32> -> vector<200x32xf32>
    %75 = arith.addf %70, %74 : vector<200x32xf32>
    %c12 = arith.constant 12 : index
    %c0_53 = arith.constant 0 : index
    %76 = vector.load %arg22[%c12, %c0_53] : memref<222x16xf32, #tpu.memory_space<vmem>>, vector<200x16xf32>
    %77 = arith.truncf %76 : vector<200x16xf32> to vector<200x16xbf16>
    %c80 = arith.constant 80 : index
    %c0_54 = arith.constant 0 : index
    %78 = vector.load %arg4[%c80, %c0_54] : memref<144x32xbf16, #tpu.memory_space<vmem>>, vector<16x32xbf16>
    %cst_55 = arith.constant dense<0.000000e+00> : vector<200x32xf32>
    %79 = tpu.matmul %77, %78, %cst_55 {dimension_numbers = #tpu.dot_dimension_numbers<[1], [0], [0], [1], [0, 0, 1, 1], [], []>} : vector<200x16xbf16>, vector<16x32xbf16>, vector<200x32xf32> -> vector<200x32xf32>
    %80 = arith.addf %75, %79 : vector<200x32xf32>
    %c20 = arith.constant 20 : index
    %c0_56 = arith.constant 0 : index
    %81 = vector.load %arg22[%c20, %c0_56] : memref<222x16xf32, #tpu.memory_space<vmem>>, vector<200x16xf32>
    %82 = arith.truncf %81 : vector<200x16xf32> to vector<200x16xbf16>
    %c96 = arith.constant 96 : index
    %c0_57 = arith.constant 0 : index
    %83 = vector.load %arg4[%c96, %c0_57] : memref<144x32xbf16, #tpu.memory_space<vmem>>, vector<16x32xbf16>
    %cst_58 = arith.constant dense<0.000000e+00> : vector<200x32xf32>
    %84 = tpu.matmul %82, %83, %cst_58 {dimension_numbers = #tpu.dot_dimension_numbers<[1], [0], [0], [1], [0, 0, 1, 1], [], []>} : vector<200x16xbf16>, vector<16x32xbf16>, vector<200x32xf32> -> vector<200x32xf32>
    %85 = arith.addf %80, %84 : vector<200x32xf32>
    %c21 = arith.constant 21 : index
    %c0_59 = arith.constant 0 : index
    %86 = vector.load %arg22[%c21, %c0_59] : memref<222x16xf32, #tpu.memory_space<vmem>>, vector<200x16xf32>
    %87 = arith.truncf %86 : vector<200x16xf32> to vector<200x16xbf16>
    %c112 = arith.constant 112 : index
    %c0_60 = arith.constant 0 : index
    %88 = vector.load %arg4[%c112, %c0_60] : memref<144x32xbf16, #tpu.memory_space<vmem>>, vector<16x32xbf16>
    %cst_61 = arith.constant dense<0.000000e+00> : vector<200x32xf32>
    %89 = tpu.matmul %87, %88, %cst_61 {dimension_numbers = #tpu.dot_dimension_numbers<[1], [0], [0], [1], [0, 0, 1, 1], [], []>} : vector<200x16xbf16>, vector<16x32xbf16>, vector<200x32xf32> -> vector<200x32xf32>
    %90 = arith.addf %85, %89 : vector<200x32xf32>
    %c22_62 = arith.constant 22 : index
    %c0_63 = arith.constant 0 : index
    %91 = vector.load %arg22[%c22_62, %c0_63] : memref<222x16xf32, #tpu.memory_space<vmem>>, vector<200x16xf32>
    %92 = arith.truncf %91 : vector<200x16xf32> to vector<200x16xbf16>
    %c128_64 = arith.constant 128 : index
    %c0_65 = arith.constant 0 : index
    %93 = vector.load %arg4[%c128_64, %c0_65] : memref<144x32xbf16, #tpu.memory_space<vmem>>, vector<16x32xbf16>
    %cst_66 = arith.constant dense<0.000000e+00> : vector<200x32xf32>
    %94 = tpu.matmul %92, %93, %cst_66 {dimension_numbers = #tpu.dot_dimension_numbers<[1], [0], [0], [1], [0, 0, 1, 1], [], []>} : vector<200x16xbf16>, vector<16x32xbf16>, vector<200x32xf32> -> vector<200x32xf32>
    %95 = arith.addf %90, %94 : vector<200x32xf32>
    %c0_67 = arith.constant 0 : index
    %c0_68 = arith.constant 0 : index
    %96 = vector.load %arg5[%c0_67, %c0_68] : memref<1x32xf32, #tpu.memory_space<vmem>>, vector<1x32xf32>
    %97 = vector.broadcast %96 : vector<1x32xf32> to vector<200x32xf32>
    %98 = arith.addf %95, %97 : vector<200x32xf32>
    %cst_69 = arith.constant 0.000000e+00 : f32
    %99 = vector.broadcast %cst_69 : f32 to vector<200x32xf32>
    %100 = arith.maximumf %98, %99 : vector<200x32xf32>
    %c0_70 = arith.constant 0 : index
    %c0_71 = arith.constant 0 : index
    %101 = vector.load %arg23[%c0_70, %c0_71] : memref<200x32xf32, #tpu.memory_space<vmem>>, vector<200x32xf32>
    tpu.vector_store %arg23[%c0_70, %c0_71], %100 {strides = array<i32>} : memref<200x32xf32, #tpu.memory_space<vmem>>, vector<200x32xf32>,
    %c11_72 = arith.constant 11 : index
    %c0_73 = arith.constant 0 : index
    %102 = vector.load %arg23[%c11_72, %c0_73] : memref<200x32xf32, #tpu.memory_space<vmem>>, vector<8x32xf32>
    %c21_74 = arith.constant 21 : index
    %c0_75 = arith.constant 0 : index
    %103 = vector.load %arg23[%c21_74, %c0_75] : memref<200x32xf32, #tpu.memory_space<vmem>>, vector<8x32xf32>
    %104 = arith.maximumf %102, %103 : vector<8x32xf32>
    %105 = vector.extract_strided_slice %104 {offsets = [0, 0], sizes = [1, 32], strides = [1, 1]} : vector<8x32xf32> to vector<1x32xf32>
    %106 = vector.extract_strided_slice %104 {offsets = [1, 0], sizes = [1, 32], strides = [1, 1]} : vector<8x32xf32> to vector<1x32xf32>
    %107 = arith.maximumf %105, %106 : vector<1x32xf32>
    %c14 = arith.constant 14 : index
    %c0_76 = arith.constant 0 : index
    %108 = vector.load %arg24[%c14, %c0_76] : memref<86x32xf32, #tpu.memory_space<vmem>>, vector<1x32xf32>
    tpu.vector_store %arg24[%c14, %c0_76], %107 {strides = array<i32>} : memref<86x32xf32, #tpu.memory_space<vmem>>, vector<1x32xf32>,
    %109 = vector.extract_strided_slice %104 {offsets = [2, 0], sizes = [1, 32], strides = [1, 1]} : vector<8x32xf32> to vector<1x32xf32>
    %110 = vector.extract_strided_slice %104 {offsets = [3, 0], sizes = [1, 32], strides = [1, 1]} : vector<8x32xf32> to vector<1x32xf32>
    %111 = arith.maximumf %109, %110 : vector<1x32xf32>
    %c15 = arith.constant 15 : index
    %c0_77 = arith.constant 0 : index
    %112 = vector.load %arg24[%c15, %c0_77] : memref<86x32xf32, #tpu.memory_space<vmem>>, vector<1x32xf32>
    tpu.vector_store %arg24[%c15, %c0_77], %111 {strides = array<i32>} : memref<86x32xf32, #tpu.memory_space<vmem>>, vector<1x32xf32>,
    %113 = vector.extract_strided_slice %104 {offsets = [4, 0], sizes = [1, 32], strides = [1, 1]} : vector<8x32xf32> to vector<1x32xf32>
    %114 = vector.extract_strided_slice %104 {offsets = [5, 0], sizes = [1, 32], strides = [1, 1]} : vector<8x32xf32> to vector<1x32xf32>
    %115 = arith.maximumf %113, %114 : vector<1x32xf32>
    %c16_78 = arith.constant 16 : index
    %c0_79 = arith.constant 0 : index
    %116 = vector.load %arg24[%c16_78, %c0_79] : memref<86x32xf32, #tpu.memory_space<vmem>>, vector<1x32xf32>
    tpu.vector_store %arg24[%c16_78, %c0_79], %115 {strides = array<i32>} : memref<86x32xf32, #tpu.memory_space<vmem>>, vector<1x32xf32>,
    %117 = vector.extract_strided_slice %104 {offsets = [6, 0], sizes = [1, 32], strides = [1, 1]} : vector<8x32xf32> to vector<1x32xf32>
    %118 = vector.extract_strided_slice %104 {offsets = [7, 0], sizes = [1, 32], strides = [1, 1]} : vector<8x32xf32> to vector<1x32xf32>
    %119 = arith.maximumf %117, %118 : vector<1x32xf32>
    %c17 = arith.constant 17 : index
    %c0_80 = arith.constant 0 : index
    %120 = vector.load %arg24[%c17, %c0_80] : memref<86x32xf32, #tpu.memory_space<vmem>>, vector<1x32xf32>
    tpu.vector_store %arg24[%c17, %c0_80], %119 {strides = array<i32>} : memref<86x32xf32, #tpu.memory_space<vmem>>, vector<1x32xf32>,
    %c31 = arith.constant 31 : index
    %c0_81 = arith.constant 0 : index
    %121 = vector.load %arg23[%c31, %c0_81] : memref<200x32xf32, #tpu.memory_space<vmem>>, vector<8x32xf32>
    %c41 = arith.constant 41 : index
    %c0_82 = arith.constant 0 : index
    %122 = vector.load %arg23[%c41, %c0_82] : memref<200x32xf32, #tpu.memory_space<vmem>>, vector<8x32xf32>
    %123 = arith.maximumf %121, %122 : vector<8x32xf32>
    %124 = vector.extract_strided_slice %123 {offsets = [0, 0], sizes = [1, 32], strides = [1, 1]} : vector<8x32xf32> to vector<1x32xf32>
    %125 = vector.extract_strided_slice %123 {offsets = [1, 0], sizes = [1, 32], strides = [1, 1]} : vector<8x32xf32> to vector<1x32xf32>
    %126 = arith.maximumf %124, %125 : vector<1x32xf32>
    %c20_83 = arith.constant 20 : index
    %c0_84 = arith.constant 0 : index
    %127 = vector.load %arg24[%c20_83, %c0_84] : memref<86x32xf32, #tpu.memory_space<vmem>>, vector<1x32xf32>
    tpu.vector_store %arg24[%c20_83, %c0_84], %126 {strides = array<i32>} : memref<86x32xf32, #tpu.memory_space<vmem>>, vector<1x32xf32>,
    %128 = vector.extract_strided_slice %123 {offsets = [2, 0], sizes = [1, 32], strides = [1, 1]} : vector<8x32xf32> to vector<1x32xf32>
    %129 = vector.extract_strided_slice %123 {offsets = [3, 0], sizes = [1, 32], strides = [1, 1]} : vector<8x32xf32> to vector<1x32xf32>
    %130 = arith.maximumf %128, %129 : vector<1x32xf32>
    %c21_85 = arith.constant 21 : index
    %c0_86 = arith.constant 0 : index
    %131 = vector.load %arg24[%c21_85, %c0_86] : memref<86x32xf32, #tpu.memory_space<vmem>>, vector<1x32xf32>
    tpu.vector_store %arg24[%c21_85, %c0_86], %130 {strides = array<i32>} : memref<86x32xf32, #tpu.memory_space<vmem>>, vector<1x32xf32>,
    %132 = vector.extract_strided_slice %123 {offsets = [4, 0], sizes = [1, 32], strides = [1, 1]} : vector<8x32xf32> to vector<1x32xf32>
    %133 = vector.extract_strided_slice %123 {offsets = [5, 0], sizes = [1, 32], strides = [1, 1]} : vector<8x32xf32> to vector<1x32xf32>
    %134 = arith.maximumf %132, %133 : vector<1x32xf32>
    %c22_87 = arith.constant 22 : index
    %c0_88 = arith.constant 0 : index
    %135 = vector.load %arg24[%c22_87, %c0_88] : memref<86x32xf32, #tpu.memory_space<vmem>>, vector<1x32xf32>
    tpu.vector_store %arg24[%c22_87, %c0_88], %134 {strides = array<i32>} : memref<86x32xf32, #tpu.memory_space<vmem>>, vector<1x32xf32>,
    %136 = vector.extract_strided_slice %123 {offsets = [6, 0], sizes = [1, 32], strides = [1, 1]} : vector<8x32xf32> to vector<1x32xf32>
    %137 = vector.extract_strided_slice %123 {offsets = [7, 0], sizes = [1, 32], strides = [1, 1]} : vector<8x32xf32> to vector<1x32xf32>
    %138 = arith.maximumf %136, %137 : vector<1x32xf32>
    %c23 = arith.constant 23 : index
    %c0_89 = arith.constant 0 : index
    %139 = vector.load %arg24[%c23, %c0_89] : memref<86x32xf32, #tpu.memory_space<vmem>>, vector<1x32xf32>
    tpu.vector_store %arg24[%c23, %c0_89], %138 {strides = array<i32>} : memref<86x32xf32, #tpu.memory_space<vmem>>, vector<1x32xf32>,
    %c51 = arith.constant 51 : index
    %c0_90 = arith.constant 0 : index
    %140 = vector.load %arg23[%c51, %c0_90] : memref<200x32xf32, #tpu.memory_space<vmem>>, vector<8x32xf32>
    %c61 = arith.constant 61 : index
    %c0_91 = arith.constant 0 : index
    %141 = vector.load %arg23[%c61, %c0_91] : memref<200x32xf32, #tpu.memory_space<vmem>>, vector<8x32xf32>
    %142 = arith.maximumf %140, %141 : vector<8x32xf32>
    %143 = vector.extract_strided_slice %142 {offsets = [0, 0], sizes = [1, 32], strides = [1, 1]} : vector<8x32xf32> to vector<1x32xf32>
    %144 = vector.extract_strided_slice %142 {offsets = [1, 0], sizes = [1, 32], strides = [1, 1]} : vector<8x32xf32> to vector<1x32xf32>
    %145 = arith.maximumf %143, %144 : vector<1x32xf32>
    %c26 = arith.constant 26 : index
    %c0_92 = arith.constant 0 : index
    %146 = vector.load %arg24[%c26, %c0_92] : memref<86x32xf32, #tpu.memory_space<vmem>>, vector<1x32xf32>
    tpu.vector_store %arg24[%c26, %c0_92], %145 {strides = array<i32>} : memref<86x32xf32, #tpu.memory_space<vmem>>, vector<1x32xf32>,
    %147 = vector.extract_strided_slice %142 {offsets = [2, 0], sizes = [1, 32], strides = [1, 1]} : vector<8x32xf32> to vector<1x32xf32>
    %148 = vector.extract_strided_slice %142 {offsets = [3, 0], sizes = [1, 32], strides = [1, 1]} : vector<8x32xf32> to vector<1x32xf32>
    %149 = arith.maximumf %147, %148 : vector<1x32xf32>
    %c27 = arith.constant 27 : index
    %c0_93 = arith.constant 0 : index
    %150 = vector.load %arg24[%c27, %c0_93] : memref<86x32xf32, #tpu.memory_space<vmem>>, vector<1x32xf32>
    tpu.vector_store %arg24[%c27, %c0_93], %149 {strides = array<i32>} : memref<86x32xf32, #tpu.memory_space<vmem>>, vector<1x32xf32>,
    %151 = vector.extract_strided_slice %142 {offsets = [4, 0], sizes = [1, 32], strides = [1, 1]} : vector<8x32xf32> to vector<1x32xf32>
    %152 = vector.extract_strided_slice %142 {offsets = [5, 0], sizes = [1, 32], strides = [1, 1]} : vector<8x32xf32> to vector<1x32xf32>
    %153 = arith.maximumf %151, %152 : vector<1x32xf32>
    %c28 = arith.constant 28 : index
    %c0_94 = arith.constant 0 : index
    %154 = vector.load %arg24[%c28, %c0_94] : memref<86x32xf32, #tpu.memory_space<vmem>>, vector<1x32xf32>
    tpu.vector_store %arg24[%c28, %c0_94], %153 {strides = array<i32>} : memref<86x32xf32, #tpu.memory_space<vmem>>, vector<1x32xf32>,
    %155 = vector.extract_strided_slice %142 {offsets = [6, 0], sizes = [1, 32], strides = [1, 1]} : vector<8x32xf32> to vector<1x32xf32>
    %156 = vector.extract_strided_slice %142 {offsets = [7, 0], sizes = [1, 32], strides = [1, 1]} : vector<8x32xf32> to vector<1x32xf32>
    %157 = arith.maximumf %155, %156 : vector<1x32xf32>
    %c29 = arith.constant 29 : index
    %c0_95 = arith.constant 0 : index
    %158 = vector.load %arg24[%c29, %c0_95] : memref<86x32xf32, #tpu.memory_space<vmem>>, vector<1x32xf32>
    tpu.vector_store %arg24[%c29, %c0_95], %157 {strides = array<i32>} : memref<86x32xf32, #tpu.memory_space<vmem>>, vector<1x32xf32>,
    %c71 = arith.constant 71 : index
    %c0_96 = arith.constant 0 : index
    %159 = vector.load %arg23[%c71, %c0_96] : memref<200x32xf32, #tpu.memory_space<vmem>>, vector<8x32xf32>
    %c81 = arith.constant 81 : index
    %c0_97 = arith.constant 0 : index
    %160 = vector.load %arg23[%c81, %c0_97] : memref<200x32xf32, #tpu.memory_space<vmem>>, vector<8x32xf32>
    %161 = arith.maximumf %159, %160 : vector<8x32xf32>
    %162 = vector.extract_strided_slice %161 {offsets = [0, 0], sizes = [1, 32], strides = [1, 1]} : vector<8x32xf32> to vector<1x32xf32>
    %163 = vector.extract_strided_slice %161 {offsets = [1, 0], sizes = [1, 32], strides = [1, 1]} : vector<8x32xf32> to vector<1x32xf32>
    %164 = arith.maximumf %162, %163 : vector<1x32xf32>
    %c32_98 = arith.constant 32 : index
    %c0_99 = arith.constant 0 : index
    %165 = vector.load %arg24[%c32_98, %c0_99] : memref<86x32xf32, #tpu.memory_space<vmem>>, vector<1x32xf32>
    tpu.vector_store %arg24[%c32_98, %c0_99], %164 {strides = array<i32>} : memref<86x32xf32, #tpu.memory_space<vmem>>, vector<1x32xf32>,
    %166 = vector.extract_strided_slice %161 {offsets = [2, 0], sizes = [1, 32], strides = [1, 1]} : vector<8x32xf32> to vector<1x32xf32>
    %167 = vector.extract_strided_slice %161 {offsets = [3, 0], sizes = [1, 32], strides = [1, 1]} : vector<8x32xf32> to vector<1x32xf32>
    %168 = arith.maximumf %166, %167 : vector<1x32xf32>
    %c33 = arith.constant 33 : index
    %c0_100 = arith.constant 0 : index
    %169 = vector.load %arg24[%c33, %c0_100] : memref<86x32xf32, #tpu.memory_space<vmem>>, vector<1x32xf32>
    tpu.vector_store %arg24[%c33, %c0_100], %168 {strides = array<i32>} : memref<86x32xf32, #tpu.memory_space<vmem>>, vector<1x32xf32>,
    %170 = vector.extract_strided_slice %161 {offsets = [4, 0], sizes = [1, 32], strides = [1, 1]} : vector<8x32xf32> to vector<1x32xf32>
    %171 = vector.extract_strided_slice %161 {offsets = [5, 0], sizes = [1, 32], strides = [1, 1]} : vector<8x32xf32> to vector<1x32xf32>
    %172 = arith.maximumf %170, %171 : vector<1x32xf32>
    %c34 = arith.constant 34 : index
    %c0_101 = arith.constant 0 : index
    %173 = vector.load %arg24[%c34, %c0_101] : memref<86x32xf32, #tpu.memory_space<vmem>>, vector<1x32xf32>
    tpu.vector_store %arg24[%c34, %c0_101], %172 {strides = array<i32>} : memref<86x32xf32, #tpu.memory_space<vmem>>, vector<1x32xf32>,
    %174 = vector.extract_strided_slice %161 {offsets = [6, 0], sizes = [1, 32], strides = [1, 1]} : vector<8x32xf32> to vector<1x32xf32>
    %175 = vector.extract_strided_slice %161 {offsets = [7, 0], sizes = [1, 32], strides = [1, 1]} : vector<8x32xf32> to vector<1x32xf32>
    %176 = arith.maximumf %174, %175 : vector<1x32xf32>
    %c35 = arith.constant 35 : index
    %c0_102 = arith.constant 0 : index
    %177 = vector.load %arg24[%c35, %c0_102] : memref<86x32xf32, #tpu.memory_space<vmem>>, vector<1x32xf32>
    tpu.vector_store %arg24[%c35, %c0_102], %176 {strides = array<i32>} : memref<86x32xf32, #tpu.memory_space<vmem>>, vector<1x32xf32>,
    %c111 = arith.constant 111 : index
    %c0_103 = arith.constant 0 : index
    %178 = vector.load %arg23[%c111, %c0_103] : memref<200x32xf32, #tpu.memory_space<vmem>>, vector<8x32xf32>
    %c121 = arith.constant 121 : index
    %c0_104 = arith.constant 0 : index
    %179 = vector.load %arg23[%c121, %c0_104] : memref<200x32xf32, #tpu.memory_space<vmem>>, vector<8x32xf32>
    %180 = arith.maximumf %178, %179 : vector<8x32xf32>
    %181 = vector.extract_strided_slice %180 {offsets = [0, 0], sizes = [1, 32], strides = [1, 1]} : vector<8x32xf32> to vector<1x32xf32>
    %182 = vector.extract_strided_slice %180 {offsets = [1, 0], sizes = [1, 32], strides = [1, 1]} : vector<8x32xf32> to vector<1x32xf32>
    %183 = arith.maximumf %181, %182 : vector<1x32xf32>
    %c50 = arith.constant 50 : index
    %c0_105 = arith.constant 0 : index
    %184 = vector.load %arg24[%c50, %c0_105] : memref<86x32xf32, #tpu.memory_space<vmem>>, vector<1x32xf32>
    tpu.vector_store %arg24[%c50, %c0_105], %183 {strides = array<i32>} : memref<86x32xf32, #tpu.memory_space<vmem>>, vector<1x32xf32>,
    %185 = vector.extract_strided_slice %180 {offsets = [2, 0], sizes = [1, 32], strides = [1, 1]} : vector<8x32xf32> to vector<1x32xf32>
    %186 = vector.extract_strided_slice %180 {offsets = [3, 0], sizes = [1, 32], strides = [1, 1]} : vector<8x32xf32> to vector<1x32xf32>
    %187 = arith.maximumf %185, %186 : vector<1x32xf32>
    %c51_106 = arith.constant 51 : index
    %c0_107 = arith.constant 0 : index
    %188 = vector.load %arg24[%c51_106, %c0_107] : memref<86x32xf32, #tpu.memory_space<vmem>>, vector<1x32xf32>
    tpu.vector_store %arg24[%c51_106, %c0_107], %187 {strides = array<i32>} : memref<86x32xf32, #tpu.memory_space<vmem>>, vector<1x32xf32>,
    %189 = vector.extract_strided_slice %180 {offsets = [4, 0], sizes = [1, 32], strides = [1, 1]} : vector<8x32xf32> to vector<1x32xf32>
    %190 = vector.extract_strided_slice %180 {offsets = [5, 0], sizes = [1, 32], strides = [1, 1]} : vector<8x32xf32> to vector<1x32xf32>
    %191 = arith.maximumf %189, %190 : vector<1x32xf32>
    %c52_108 = arith.constant 52 : index
    %c0_109 = arith.constant 0 : index
    %192 = vector.load %arg24[%c52_108, %c0_109] : memref<86x32xf32, #tpu.memory_space<vmem>>, vector<1x32xf32>
    tpu.vector_store %arg24[%c52_108, %c0_109], %191 {strides = array<i32>} : memref<86x32xf32, #tpu.memory_space<vmem>>, vector<1x32xf32>,
    %193 = vector.extract_strided_slice %180 {offsets = [6, 0], sizes = [1, 32], strides = [1, 1]} : vector<8x32xf32> to vector<1x32xf32>
    %194 = vector.extract_strided_slice %180 {offsets = [7, 0], sizes = [1, 32], strides = [1, 1]} : vector<8x32xf32> to vector<1x32xf32>
    %195 = arith.maximumf %193, %194 : vector<1x32xf32>
    %c53 = arith.constant 53 : index
    %c0_110 = arith.constant 0 : index
    %196 = vector.load %arg24[%c53, %c0_110] : memref<86x32xf32, #tpu.memory_space<vmem>>, vector<1x32xf32>
    tpu.vector_store %arg24[%c53, %c0_110], %195 {strides = array<i32>} : memref<86x32xf32, #tpu.memory_space<vmem>>, vector<1x32xf32>,
    %c131 = arith.constant 131 : index
    %c0_111 = arith.constant 0 : index
    %197 = vector.load %arg23[%c131, %c0_111] : memref<200x32xf32, #tpu.memory_space<vmem>>, vector<8x32xf32>
    %c141 = arith.constant 141 : index
    %c0_112 = arith.constant 0 : index
    %198 = vector.load %arg23[%c141, %c0_112] : memref<200x32xf32, #tpu.memory_space<vmem>>, vector<8x32xf32>
    %199 = arith.maximumf %197, %198 : vector<8x32xf32>
    %200 = vector.extract_strided_slice %199 {offsets = [0, 0], sizes = [1, 32], strides = [1, 1]} : vector<8x32xf32> to vector<1x32xf32>
    %201 = vector.extract_strided_slice %199 {offsets = [1, 0], sizes = [1, 32], strides = [1, 1]} : vector<8x32xf32> to vector<1x32xf32>
    %202 = arith.maximumf %200, %201 : vector<1x32xf32>
    %c56 = arith.constant 56 : index
    %c0_113 = arith.constant 0 : index
    %203 = vector.load %arg24[%c56, %c0_113] : memref<86x32xf32, #tpu.memory_space<vmem>>, vector<1x32xf32>
    tpu.vector_store %arg24[%c56, %c0_113], %202 {strides = array<i32>} : memref<86x32xf32, #tpu.memory_space<vmem>>, vector<1x32xf32>,
    %204 = vector.extract_strided_slice %199 {offsets = [2, 0], sizes = [1, 32], strides = [1, 1]} : vector<8x32xf32> to vector<1x32xf32>
    %205 = vector.extract_strided_slice %199 {offsets = [3, 0], sizes = [1, 32], strides = [1, 1]} : vector<8x32xf32> to vector<1x32xf32>
    %206 = arith.maximumf %204, %205 : vector<1x32xf32>
    %c57 = arith.constant 57 : index
    %c0_114 = arith.constant 0 : index
    %207 = vector.load %arg24[%c57, %c0_114] : memref<86x32xf32, #tpu.memory_space<vmem>>, vector<1x32xf32>
    tpu.vector_store %arg24[%c57, %c0_114], %206 {strides = array<i32>} : memref<86x32xf32, #tpu.memory_space<vmem>>, vector<1x32xf32>,
    %208 = vector.extract_strided_slice %199 {offsets = [4, 0], sizes = [1, 32], strides = [1, 1]} : vector<8x32xf32> to vector<1x32xf32>
    %209 = vector.extract_strided_slice %199 {offsets = [5, 0], sizes = [1, 32], strides = [1, 1]} : vector<8x32xf32> to vector<1x32xf32>
    %210 = arith.maximumf %208, %209 : vector<1x32xf32>
    %c58 = arith.constant 58 : index
    %c0_115 = arith.constant 0 : index
    %211 = vector.load %arg24[%c58, %c0_115] : memref<86x32xf32, #tpu.memory_space<vmem>>, vector<1x32xf32>
    tpu.vector_store %arg24[%c58, %c0_115], %210 {strides = array<i32>} : memref<86x32xf32, #tpu.memory_space<vmem>>, vector<1x32xf32>,
    %212 = vector.extract_strided_slice %199 {offsets = [6, 0], sizes = [1, 32], strides = [1, 1]} : vector<8x32xf32> to vector<1x32xf32>
    %213 = vector.extract_strided_slice %199 {offsets = [7, 0], sizes = [1, 32], strides = [1, 1]} : vector<8x32xf32> to vector<1x32xf32>
    %214 = arith.maximumf %212, %213 : vector<1x32xf32>
    %c59 = arith.constant 59 : index
    %c0_116 = arith.constant 0 : index
    %215 = vector.load %arg24[%c59, %c0_116] : memref<86x32xf32, #tpu.memory_space<vmem>>, vector<1x32xf32>
    tpu.vector_store %arg24[%c59, %c0_116], %214 {strides = array<i32>} : memref<86x32xf32, #tpu.memory_space<vmem>>, vector<1x32xf32>,
    %c151 = arith.constant 151 : index
    %c0_117 = arith.constant 0 : index
    %216 = vector.load %arg23[%c151, %c0_117] : memref<200x32xf32, #tpu.memory_space<vmem>>, vector<8x32xf32>
    %c161 = arith.constant 161 : index
    %c0_118 = arith.constant 0 : index
    %217 = vector.load %arg23[%c161, %c0_118] : memref<200x32xf32, #tpu.memory_space<vmem>>, vector<8x32xf32>
    %218 = arith.maximumf %216, %217 : vector<8x32xf32>
    %219 = vector.extract_strided_slice %218 {offsets = [0, 0], sizes = [1, 32], strides = [1, 1]} : vector<8x32xf32> to vector<1x32xf32>
    %220 = vector.extract_strided_slice %218 {offsets = [1, 0], sizes = [1, 32], strides = [1, 1]} : vector<8x32xf32> to vector<1x32xf32>
    %221 = arith.maximumf %219, %220 : vector<1x32xf32>
    %c62_119 = arith.constant 62 : index
    %c0_120 = arith.constant 0 : index
    %222 = vector.load %arg24[%c62_119, %c0_120] : memref<86x32xf32, #tpu.memory_space<vmem>>, vector<1x32xf32>
    tpu.vector_store %arg24[%c62_119, %c0_120], %221 {strides = array<i32>} : memref<86x32xf32, #tpu.memory_space<vmem>>, vector<1x32xf32>,
    %223 = vector.extract_strided_slice %218 {offsets = [2, 0], sizes = [1, 32], strides = [1, 1]} : vector<8x32xf32> to vector<1x32xf32>
    %224 = vector.extract_strided_slice %218 {offsets = [3, 0], sizes = [1, 32], strides = [1, 1]} : vector<8x32xf32> to vector<1x32xf32>
    %225 = arith.maximumf %223, %224 : vector<1x32xf32>
    %c63 = arith.constant 63 : index
    %c0_121 = arith.constant 0 : index
    %226 = vector.load %arg24[%c63, %c0_121] : memref<86x32xf32, #tpu.memory_space<vmem>>, vector<1x32xf32>
    tpu.vector_store %arg24[%c63, %c0_121], %225 {strides = array<i32>} : memref<86x32xf32, #tpu.memory_space<vmem>>, vector<1x32xf32>,
    %227 = vector.extract_strided_slice %218 {offsets = [4, 0], sizes = [1, 32], strides = [1, 1]} : vector<8x32xf32> to vector<1x32xf32>
    %228 = vector.extract_strided_slice %218 {offsets = [5, 0], sizes = [1, 32], strides = [1, 1]} : vector<8x32xf32> to vector<1x32xf32>
    %229 = arith.maximumf %227, %228 : vector<1x32xf32>
    %c64_122 = arith.constant 64 : index
    %c0_123 = arith.constant 0 : index
    %230 = vector.load %arg24[%c64_122, %c0_123] : memref<86x32xf32, #tpu.memory_space<vmem>>, vector<1x32xf32>
    tpu.vector_store %arg24[%c64_122, %c0_123], %229 {strides = array<i32>} : memref<86x32xf32, #tpu.memory_space<vmem>>, vector<1x32xf32>,
    %231 = vector.extract_strided_slice %218 {offsets = [6, 0], sizes = [1, 32], strides = [1, 1]} : vector<8x32xf32> to vector<1x32xf32>
    %232 = vector.extract_strided_slice %218 {offsets = [7, 0], sizes = [1, 32], strides = [1, 1]} : vector<8x32xf32> to vector<1x32xf32>
    %233 = arith.maximumf %231, %232 : vector<1x32xf32>
    %c65 = arith.constant 65 : index
    %c0_124 = arith.constant 0 : index
    %234 = vector.load %arg24[%c65, %c0_124] : memref<86x32xf32, #tpu.memory_space<vmem>>, vector<1x32xf32>
    tpu.vector_store %arg24[%c65, %c0_124], %233 {strides = array<i32>} : memref<86x32xf32, #tpu.memory_space<vmem>>, vector<1x32xf32>,
    %c171 = arith.constant 171 : index
    %c0_125 = arith.constant 0 : index
    %235 = vector.load %arg23[%c171, %c0_125] : memref<200x32xf32, #tpu.memory_space<vmem>>, vector<8x32xf32>
    %c181 = arith.constant 181 : index
    %c0_126 = arith.constant 0 : index
    %236 = vector.load %arg23[%c181, %c0_126] : memref<200x32xf32, #tpu.memory_space<vmem>>, vector<8x32xf32>
    %237 = arith.maximumf %235, %236 : vector<8x32xf32>
    %238 = vector.extract_strided_slice %237 {offsets = [0, 0], sizes = [1, 32], strides = [1, 1]} : vector<8x32xf32> to vector<1x32xf32>
    %239 = vector.extract_strided_slice %237 {offsets = [1, 0], sizes = [1, 32], strides = [1, 1]} : vector<8x32xf32> to vector<1x32xf32>
    %240 = arith.maximumf %238, %239 : vector<1x32xf32>
    %c68 = arith.constant 68 : index
    %c0_127 = arith.constant 0 : index
    %241 = vector.load %arg24[%c68, %c0_127] : memref<86x32xf32, #tpu.memory_space<vmem>>, vector<1x32xf32>
    tpu.vector_store %arg24[%c68, %c0_127], %240 {strides = array<i32>} : memref<86x32xf32, #tpu.memory_space<vmem>>, vector<1x32xf32>,
    %242 = vector.extract_strided_slice %237 {offsets = [2, 0], sizes = [1, 32], strides = [1, 1]} : vector<8x32xf32> to vector<1x32xf32>
    %243 = vector.extract_strided_slice %237 {offsets = [3, 0], sizes = [1, 32], strides = [1, 1]} : vector<8x32xf32> to vector<1x32xf32>
    %244 = arith.maximumf %242, %243 : vector<1x32xf32>
    %c69 = arith.constant 69 : index
    %c0_128 = arith.constant 0 : index
    %245 = vector.load %arg24[%c69, %c0_128] : memref<86x32xf32, #tpu.memory_space<vmem>>, vector<1x32xf32>
    tpu.vector_store %arg24[%c69, %c0_128], %244 {strides = array<i32>} : memref<86x32xf32, #tpu.memory_space<vmem>>, vector<1x32xf32>,
    %246 = vector.extract_strided_slice %237 {offsets = [4, 0], sizes = [1, 32], strides = [1, 1]} : vector<8x32xf32> to vector<1x32xf32>
    %247 = vector.extract_strided_slice %237 {offsets = [5, 0], sizes = [1, 32], strides = [1, 1]} : vector<8x32xf32> to vector<1x32xf32>
    %248 = arith.maximumf %246, %247 : vector<1x32xf32>
    %c70 = arith.constant 70 : index
    %c0_129 = arith.constant 0 : index
    %249 = vector.load %arg24[%c70, %c0_129] : memref<86x32xf32, #tpu.memory_space<vmem>>, vector<1x32xf32>
    tpu.vector_store %arg24[%c70, %c0_129], %248 {strides = array<i32>} : memref<86x32xf32, #tpu.memory_space<vmem>>, vector<1x32xf32>,
    %250 = vector.extract_strided_slice %237 {offsets = [6, 0], sizes = [1, 32], strides = [1, 1]} : vector<8x32xf32> to vector<1x32xf32>
    %251 = vector.extract_strided_slice %237 {offsets = [7, 0], sizes = [1, 32], strides = [1, 1]} : vector<8x32xf32> to vector<1x32xf32>
    %252 = arith.maximumf %250, %251 : vector<1x32xf32>
    %c71_130 = arith.constant 71 : index
    %c0_131 = arith.constant 0 : index
    %253 = vector.load %arg24[%c71_130, %c0_131] : memref<86x32xf32, #tpu.memory_space<vmem>>, vector<1x32xf32>
    tpu.vector_store %arg24[%c71_130, %c0_131], %252 {strides = array<i32>} : memref<86x32xf32, #tpu.memory_space<vmem>>, vector<1x32xf32>,
    %c0_132 = arith.constant 0 : index
    %c0_133 = arith.constant 0 : index
    %254 = vector.load %arg24[%c0_132, %c0_133] : memref<86x32xf32, #tpu.memory_space<vmem>>, vector<72x32xf32>
    %255 = arith.truncf %254 : vector<72x32xf32> to vector<72x32xbf16>
    %c0_134 = arith.constant 0 : index
    %c0_135 = arith.constant 0 : index
    %256 = vector.load %arg6[%c0_134, %c0_135] : memref<288x64xbf16, #tpu.memory_space<vmem>>, vector<32x64xbf16>
    %cst_136 = arith.constant dense<0.000000e+00> : vector<72x64xf32>
    %257 = tpu.matmul %255, %256, %cst_136 {dimension_numbers = #tpu.dot_dimension_numbers<[1], [0], [0], [1], [0, 0, 1, 1], [], []>} : vector<72x32xbf16>, vector<32x64xbf16>, vector<72x64xf32> -> vector<72x64xf32>
    %c1_137 = arith.constant 1 : index
    %c0_138 = arith.constant 0 : index
    %258 = vector.load %arg24[%c1_137, %c0_138] : memref<86x32xf32, #tpu.memory_space<vmem>>, vector<72x32xf32>
    %259 = arith.truncf %258 : vector<72x32xf32> to vector<72x32xbf16>
    %c32_139 = arith.constant 32 : index
    %c0_140 = arith.constant 0 : index
    %260 = vector.load %arg6[%c32_139, %c0_140] : memref<288x64xbf16, #tpu.memory_space<vmem>>, vector<32x64xbf16>
    %cst_141 = arith.constant dense<0.000000e+00> : vector<72x64xf32>
    %261 = tpu.matmul %259, %260, %cst_141 {dimension_numbers = #tpu.dot_dimension_numbers<[1], [0], [0], [1], [0, 0, 1, 1], [], []>} : vector<72x32xbf16>, vector<32x64xbf16>, vector<72x64xf32> -> vector<72x64xf32>
    %262 = arith.addf %257, %261 : vector<72x64xf32>
    %c2_142 = arith.constant 2 : index
    %c0_143 = arith.constant 0 : index
    %263 = vector.load %arg24[%c2_142, %c0_143] : memref<86x32xf32, #tpu.memory_space<vmem>>, vector<72x32xf32>
    %264 = arith.truncf %263 : vector<72x32xf32> to vector<72x32xbf16>
    %c64_144 = arith.constant 64 : index
    %c0_145 = arith.constant 0 : index
    %265 = vector.load %arg6[%c64_144, %c0_145] : memref<288x64xbf16, #tpu.memory_space<vmem>>, vector<32x64xbf16>
    %cst_146 = arith.constant dense<0.000000e+00> : vector<72x64xf32>
    %266 = tpu.matmul %264, %265, %cst_146 {dimension_numbers = #tpu.dot_dimension_numbers<[1], [0], [0], [1], [0, 0, 1, 1], [], []>} : vector<72x32xbf16>, vector<32x64xbf16>, vector<72x64xf32> -> vector<72x64xf32>
    %267 = arith.addf %262, %266 : vector<72x64xf32>
    %c6 = arith.constant 6 : index
    %c0_147 = arith.constant 0 : index
    %268 = vector.load %arg24[%c6, %c0_147] : memref<86x32xf32, #tpu.memory_space<vmem>>, vector<72x32xf32>
    %269 = arith.truncf %268 : vector<72x32xf32> to vector<72x32xbf16>
    %c96_148 = arith.constant 96 : index
    %c0_149 = arith.constant 0 : index
    %270 = vector.load %arg6[%c96_148, %c0_149] : memref<288x64xbf16, #tpu.memory_space<vmem>>, vector<32x64xbf16>
    %cst_150 = arith.constant dense<0.000000e+00> : vector<72x64xf32>
    %271 = tpu.matmul %269, %270, %cst_150 {dimension_numbers = #tpu.dot_dimension_numbers<[1], [0], [0], [1], [0, 0, 1, 1], [], []>} : vector<72x32xbf16>, vector<32x64xbf16>, vector<72x64xf32> -> vector<72x64xf32>
    %272 = arith.addf %267, %271 : vector<72x64xf32>
    %c7 = arith.constant 7 : index
    %c0_151 = arith.constant 0 : index
    %273 = vector.load %arg24[%c7, %c0_151] : memref<86x32xf32, #tpu.memory_space<vmem>>, vector<72x32xf32>
    %274 = arith.truncf %273 : vector<72x32xf32> to vector<72x32xbf16>
    %c128_152 = arith.constant 128 : index
    %c0_153 = arith.constant 0 : index
    %275 = vector.load %arg6[%c128_152, %c0_153] : memref<288x64xbf16, #tpu.memory_space<vmem>>, vector<32x64xbf16>
    %cst_154 = arith.constant dense<0.000000e+00> : vector<72x64xf32>
    %276 = tpu.matmul %274, %275, %cst_154 {dimension_numbers = #tpu.dot_dimension_numbers<[1], [0], [0], [1], [0, 0, 1, 1], [], []>} : vector<72x32xbf16>, vector<32x64xbf16>, vector<72x64xf32> -> vector<72x64xf32>
    %277 = arith.addf %272, %276 : vector<72x64xf32>
    %c8 = arith.constant 8 : index
    %c0_155 = arith.constant 0 : index
    %278 = vector.load %arg24[%c8, %c0_155] : memref<86x32xf32, #tpu.memory_space<vmem>>, vector<72x32xf32>
    %279 = arith.truncf %278 : vector<72x32xf32> to vector<72x32xbf16>
    %c160 = arith.constant 160 : index
    %c0_156 = arith.constant 0 : index
    %280 = vector.load %arg6[%c160, %c0_156] : memref<288x64xbf16, #tpu.memory_space<vmem>>, vector<32x64xbf16>
    %cst_157 = arith.constant dense<0.000000e+00> : vector<72x64xf32>
    %281 = tpu.matmul %279, %280, %cst_157 {dimension_numbers = #tpu.dot_dimension_numbers<[1], [0], [0], [1], [0, 0, 1, 1], [], []>} : vector<72x32xbf16>, vector<32x64xbf16>, vector<72x64xf32> -> vector<72x64xf32>
    %282 = arith.addf %277, %281 : vector<72x64xf32>
    %c12_158 = arith.constant 12 : index
    %c0_159 = arith.constant 0 : index
    %283 = vector.load %arg24[%c12_158, %c0_159] : memref<86x32xf32, #tpu.memory_space<vmem>>, vector<72x32xf32>
    %284 = arith.truncf %283 : vector<72x32xf32> to vector<72x32xbf16>
    %c192_160 = arith.constant 192 : index
    %c0_161 = arith.constant 0 : index
    %285 = vector.load %arg6[%c192_160, %c0_161] : memref<288x64xbf16, #tpu.memory_space<vmem>>, vector<32x64xbf16>
    %cst_162 = arith.constant dense<0.000000e+00> : vector<72x64xf32>
    %286 = tpu.matmul %284, %285, %cst_162 {dimension_numbers = #tpu.dot_dimension_numbers<[1], [0], [0], [1], [0, 0, 1, 1], [], []>} : vector<72x32xbf16>, vector<32x64xbf16>, vector<72x64xf32> -> vector<72x64xf32>
    %287 = arith.addf %282, %286 : vector<72x64xf32>
    %c13 = arith.constant 13 : index
    %c0_163 = arith.constant 0 : index
    %288 = vector.load %arg24[%c13, %c0_163] : memref<86x32xf32, #tpu.memory_space<vmem>>, vector<72x32xf32>
    %289 = arith.truncf %288 : vector<72x32xf32> to vector<72x32xbf16>
    %c224 = arith.constant 224 : index
    %c0_164 = arith.constant 0 : index
    %290 = vector.load %arg6[%c224, %c0_164] : memref<288x64xbf16, #tpu.memory_space<vmem>>, vector<32x64xbf16>
    %cst_165 = arith.constant dense<0.000000e+00> : vector<72x64xf32>
    %291 = tpu.matmul %289, %290, %cst_165 {dimension_numbers = #tpu.dot_dimension_numbers<[1], [0], [0], [1], [0, 0, 1, 1], [], []>} : vector<72x32xbf16>, vector<32x64xbf16>, vector<72x64xf32> -> vector<72x64xf32>
    %292 = arith.addf %287, %291 : vector<72x64xf32>
    %c14_166 = arith.constant 14 : index
    %c0_167 = arith.constant 0 : index
    %293 = vector.load %arg24[%c14_166, %c0_167] : memref<86x32xf32, #tpu.memory_space<vmem>>, vector<72x32xf32>
    %294 = arith.truncf %293 : vector<72x32xf32> to vector<72x32xbf16>
    %c256_168 = arith.constant 256 : index
    %c0_169 = arith.constant 0 : index
    %295 = vector.load %arg6[%c256_168, %c0_169] : memref<288x64xbf16, #tpu.memory_space<vmem>>, vector<32x64xbf16>
    %cst_170 = arith.constant dense<0.000000e+00> : vector<72x64xf32>
    %296 = tpu.matmul %294, %295, %cst_170 {dimension_numbers = #tpu.dot_dimension_numbers<[1], [0], [0], [1], [0, 0, 1, 1], [], []>} : vector<72x32xbf16>, vector<32x64xbf16>, vector<72x64xf32> -> vector<72x64xf32>
    %297 = arith.addf %292, %296 : vector<72x64xf32>
    %c0_171 = arith.constant 0 : index
    %c0_172 = arith.constant 0 : index
    %298 = vector.load %arg7[%c0_171, %c0_172] : memref<1x64xf32, #tpu.memory_space<vmem>>, vector<1x64xf32>
    %299 = vector.broadcast %298 : vector<1x64xf32> to vector<72x64xf32>
    %300 = arith.addf %297, %299 : vector<72x64xf32>
    %cst_173 = arith.constant 0.000000e+00 : f32
    %301 = vector.broadcast %cst_173 : f32 to vector<72x64xf32>
    %302 = arith.maximumf %300, %301 : vector<72x64xf32>
    %c0_174 = arith.constant 0 : index
    %c0_175 = arith.constant 0 : index
    %303 = vector.load %arg8[%c0_174, %c0_175] : memref<32x72xf32, #tpu.memory_space<vmem>>, vector<32x72xf32>
    %cst_176 = arith.constant dense<0.000000e+00> : vector<32x64xf32>
    %304 = tpu.matmul %303, %302, %cst_176 {dimension_numbers = #tpu.dot_dimension_numbers<[1], [0], [0], [1], [0, 0, 1, 1], [], []>} : vector<32x72xf32>, vector<72x64xf32>, vector<32x64xf32> -> vector<32x64xf32>
    %305 = vector.extract_strided_slice %304 {offsets = [0, 0], sizes = [2, 64], strides = [1, 1]} : vector<32x64xf32> to vector<2x64xf32>
    %c0_177 = arith.constant 0 : index
    %c0_178 = arith.constant 0 : index
    %306 = vector.load %arg25[%c0_177, %c0_178] : memref<2x1024xf32, #tpu.memory_space<vmem>>, vector<2x64xf32>
    tpu.vector_store %arg25[%c0_177, %c0_178], %305 {strides = array<i32>} : memref<2x1024xf32, #tpu.memory_space<vmem>>, vector<2x64xf32>,
    %307 = vector.extract_strided_slice %304 {offsets = [2, 0], sizes = [2, 64], strides = [1, 1]} : vector<32x64xf32> to vector<2x64xf32>
    %c0_179 = arith.constant 0 : index
    %c64_180 = arith.constant 64 : index
    %308 = vector.load %arg25[%c0_179, %c64_180] : memref<2x1024xf32, #tpu.memory_space<vmem>>, vector<2x64xf32>
    tpu.vector_store %arg25[%c0_179, %c64_180], %307 {strides = array<i32>} : memref<2x1024xf32, #tpu.memory_space<vmem>>, vector<2x64xf32>,
    %309 = vector.extract_strided_slice %304 {offsets = [4, 0], sizes = [2, 64], strides = [1, 1]} : vector<32x64xf32> to vector<2x64xf32>
    %c0_181 = arith.constant 0 : index
    %c128_182 = arith.constant 128 : index
    %310 = vector.load %arg25[%c0_181, %c128_182] : memref<2x1024xf32, #tpu.memory_space<vmem>>, vector<2x64xf32>
    tpu.vector_store %arg25[%c0_181, %c128_182], %309 {strides = array<i32>} : memref<2x1024xf32, #tpu.memory_space<vmem>>, vector<2x64xf32>,
    %311 = vector.extract_strided_slice %304 {offsets = [6, 0], sizes = [2, 64], strides = [1, 1]} : vector<32x64xf32> to vector<2x64xf32>
    %c0_183 = arith.constant 0 : index
    %c192_184 = arith.constant 192 : index
    %312 = vector.load %arg25[%c0_183, %c192_184] : memref<2x1024xf32, #tpu.memory_space<vmem>>, vector<2x64xf32>
    tpu.vector_store %arg25[%c0_183, %c192_184], %311 {strides = array<i32>} : memref<2x1024xf32, #tpu.memory_space<vmem>>, vector<2x64xf32>,
    %313 = vector.extract_strided_slice %304 {offsets = [8, 0], sizes = [2, 64], strides = [1, 1]} : vector<32x64xf32> to vector<2x64xf32>
    %c0_185 = arith.constant 0 : index
    %c256_186 = arith.constant 256 : index
    %314 = vector.load %arg25[%c0_185, %c256_186] : memref<2x1024xf32, #tpu.memory_space<vmem>>, vector<2x64xf32>
    tpu.vector_store %arg25[%c0_185, %c256_186], %313 {strides = array<i32>} : memref<2x1024xf32, #tpu.memory_space<vmem>>, vector<2x64xf32>,
    %315 = vector.extract_strided_slice %304 {offsets = [10, 0], sizes = [2, 64], strides = [1, 1]} : vector<32x64xf32> to vector<2x64xf32>
    %c0_187 = arith.constant 0 : index
    %c320 = arith.constant 320 : index
    %316 = vector.load %arg25[%c0_187, %c320] : memref<2x1024xf32, #tpu.memory_space<vmem>>, vector<2x64xf32>
    tpu.vector_store %arg25[%c0_187, %c320], %315 {strides = array<i32>} : memref<2x1024xf32, #tpu.memory_space<vmem>>, vector<2x64xf32>,
    %317 = vector.extract_strided_slice %304 {offsets = [12, 0], sizes = [2, 64], strides = [1, 1]} : vector<32x64xf32> to vector<2x64xf32>
    %c0_188 = arith.constant 0 : index
    %c384_189 = arith.constant 384 : index
    %318 = vector.load %arg25[%c0_188, %c384_189] : memref<2x1024xf32, #tpu.memory_space<vmem>>, vector<2x64xf32>
    tpu.vector_store %arg25[%c0_188, %c384_189], %317 {strides = array<i32>} : memref<2x1024xf32, #tpu.memory_space<vmem>>, vector<2x64xf32>,
    %319 = vector.extract_strided_slice %304 {offsets = [14, 0], sizes = [2, 64], strides = [1, 1]} : vector<32x64xf32> to vector<2x64xf32>
    %c0_190 = arith.constant 0 : index
    %c448 = arith.constant 448 : index
    %320 = vector.load %arg25[%c0_190, %c448] : memref<2x1024xf32, #tpu.memory_space<vmem>>, vector<2x64xf32>
    tpu.vector_store %arg25[%c0_190, %c448], %319 {strides = array<i32>} : memref<2x1024xf32, #tpu.memory_space<vmem>>, vector<2x64xf32>,
    %321 = vector.extract_strided_slice %304 {offsets = [16, 0], sizes = [2, 64], strides = [1, 1]} : vector<32x64xf32> to vector<2x64xf32>
    %c0_191 = arith.constant 0 : index
    %c512 = arith.constant 512 : index
    %322 = vector.load %arg25[%c0_191, %c512] : memref<2x1024xf32, #tpu.memory_space<vmem>>, vector<2x64xf32>
    tpu.vector_store %arg25[%c0_191, %c512], %321 {strides = array<i32>} : memref<2x1024xf32, #tpu.memory_space<vmem>>, vector<2x64xf32>,
    %323 = vector.extract_strided_slice %304 {offsets = [18, 0], sizes = [2, 64], strides = [1, 1]} : vector<32x64xf32> to vector<2x64xf32>
    %c0_192 = arith.constant 0 : index
    %c576 = arith.constant 576 : index
    %324 = vector.load %arg25[%c0_192, %c576] : memref<2x1024xf32, #tpu.memory_space<vmem>>, vector<2x64xf32>
    tpu.vector_store %arg25[%c0_192, %c576], %323 {strides = array<i32>} : memref<2x1024xf32, #tpu.memory_space<vmem>>, vector<2x64xf32>,
    %325 = vector.extract_strided_slice %304 {offsets = [20, 0], sizes = [2, 64], strides = [1, 1]} : vector<32x64xf32> to vector<2x64xf32>
    %c0_193 = arith.constant 0 : index
    %c640 = arith.constant 640 : index
    %326 = vector.load %arg25[%c0_193, %c640] : memref<2x1024xf32, #tpu.memory_space<vmem>>, vector<2x64xf32>
    tpu.vector_store %arg25[%c0_193, %c640], %325 {strides = array<i32>} : memref<2x1024xf32, #tpu.memory_space<vmem>>, vector<2x64xf32>,
    %327 = vector.extract_strided_slice %304 {offsets = [22, 0], sizes = [2, 64], strides = [1, 1]} : vector<32x64xf32> to vector<2x64xf32>
    %c0_194 = arith.constant 0 : index
    %c704 = arith.constant 704 : index
    %328 = vector.load %arg25[%c0_194, %c704] : memref<2x1024xf32, #tpu.memory_space<vmem>>, vector<2x64xf32>
    tpu.vector_store %arg25[%c0_194, %c704], %327 {strides = array<i32>} : memref<2x1024xf32, #tpu.memory_space<vmem>>, vector<2x64xf32>,
    %329 = vector.extract_strided_slice %304 {offsets = [24, 0], sizes = [2, 64], strides = [1, 1]} : vector<32x64xf32> to vector<2x64xf32>
    %c0_195 = arith.constant 0 : index
    %c768 = arith.constant 768 : index
    %330 = vector.load %arg25[%c0_195, %c768] : memref<2x1024xf32, #tpu.memory_space<vmem>>, vector<2x64xf32>
    tpu.vector_store %arg25[%c0_195, %c768], %329 {strides = array<i32>} : memref<2x1024xf32, #tpu.memory_space<vmem>>, vector<2x64xf32>,
    %331 = vector.extract_strided_slice %304 {offsets = [26, 0], sizes = [2, 64], strides = [1, 1]} : vector<32x64xf32> to vector<2x64xf32>
    %c0_196 = arith.constant 0 : index
    %c832 = arith.constant 832 : index
    %332 = vector.load %arg25[%c0_196, %c832] : memref<2x1024xf32, #tpu.memory_space<vmem>>, vector<2x64xf32>
    tpu.vector_store %arg25[%c0_196, %c832], %331 {strides = array<i32>} : memref<2x1024xf32, #tpu.memory_space<vmem>>, vector<2x64xf32>,
    %333 = vector.extract_strided_slice %304 {offsets = [28, 0], sizes = [2, 64], strides = [1, 1]} : vector<32x64xf32> to vector<2x64xf32>
    %c0_197 = arith.constant 0 : index
    %c896 = arith.constant 896 : index
    %334 = vector.load %arg25[%c0_197, %c896] : memref<2x1024xf32, #tpu.memory_space<vmem>>, vector<2x64xf32>
    tpu.vector_store %arg25[%c0_197, %c896], %333 {strides = array<i32>} : memref<2x1024xf32, #tpu.memory_space<vmem>>, vector<2x64xf32>,
    %335 = vector.extract_strided_slice %304 {offsets = [30, 0], sizes = [2, 64], strides = [1, 1]} : vector<32x64xf32> to vector<2x64xf32>
    %c0_198 = arith.constant 0 : index
    %c960 = arith.constant 960 : index
    %336 = vector.load %arg25[%c0_198, %c960] : memref<2x1024xf32, #tpu.memory_space<vmem>>, vector<2x64xf32>
    tpu.vector_store %arg25[%c0_198, %c960], %335 {strides = array<i32>} : memref<2x1024xf32, #tpu.memory_space<vmem>>, vector<2x64xf32>,
    tpu.wait_dma2 semaphore(%arg27 : memref<!tpu.dma_semaphore, #tpu.memory_space<semaphore_mem>>) src(%arg9 : memref<1024x256xbf16, #tpu.memory_space<any>>) dst(%arg26 : memref<1024x256xbf16, #tpu.memory_space<vmem>>)
    %c0_199 = arith.constant 0 : index
    %c0_200 = arith.constant 0 : index
    %337 = vector.load %arg25[%c0_199, %c0_200] : memref<2x1024xf32, #tpu.memory_space<vmem>>, vector<2x1024xf32>
    %338 = arith.truncf %337 : vector<2x1024xf32> to vector<2x1024xbf16>
    %c0_201 = arith.constant 0 : index
    %c0_202 = arith.constant 0 : index
    %339 = vector.load %arg26[%c0_201, %c0_202] : memref<1024x256xbf16, #tpu.memory_space<vmem>>, vector<1024x256xbf16>
    %cst_203 = arith.constant dense<0.000000e+00> : vector<2x256xf32>
    %340 = tpu.matmul %338, %339, %cst_203 {dimension_numbers = #tpu.dot_dimension_numbers<[1], [0], [0], [1], [0, 0, 1, 1], [], []>} : vector<2x1024xbf16>, vector<1024x256xbf16>, vector<2x256xf32> -> vector<2x256xf32>
    %c0_204 = arith.constant 0 : index
    %c0_205 = arith.constant 0 : index
    %341 = vector.load %arg10[%c0_204, %c0_205] : memref<1x256xf32, #tpu.memory_space<vmem>>, vector<1x256xf32>
    %342 = vector.broadcast %341 : vector<1x256xf32> to vector<2x256xf32>
    %343 = arith.addf %340, %342 : vector<2x256xf32>
    %cst_206 = arith.constant 0.000000e+00 : f32
    %344 = vector.broadcast %cst_206 : f32 to vector<2x256xf32>
    %345 = arith.maximumf %343, %344 : vector<2x256xf32>
    %346 = arith.truncf %345 : vector<2x256xf32> to vector<2x256xbf16>
    %c0_207 = arith.constant 0 : index
    %c0_208 = arith.constant 0 : index
    %347 = vector.load %arg11[%c0_207, %c0_208] : memref<256x64xbf16, #tpu.memory_space<vmem>>, vector<256x64xbf16>
    %cst_209 = arith.constant dense<0.000000e+00> : vector<2x64xf32>
    %348 = tpu.matmul %346, %347, %cst_209 {dimension_numbers = #tpu.dot_dimension_numbers<[1], [0], [0], [1], [0, 0, 1, 1], [], []>} : vector<2x256xbf16>, vector<256x64xbf16>, vector<2x64xf32> -> vector<2x64xf32>
    %c0_210 = arith.constant 0 : index
    %c0_211 = arith.constant 0 : index
    %349 = vector.load %arg12[%c0_210, %c0_211] : memref<1x64xf32, #tpu.memory_space<vmem>>, vector<1x64xf32>
    %350 = vector.broadcast %349 : vector<1x64xf32> to vector<2x64xf32>
    %351 = arith.addf %348, %350 : vector<2x64xf32>
    %cst_212 = arith.constant 0.000000e+00 : f32
    %352 = vector.broadcast %cst_212 : f32 to vector<2x64xf32>
    %353 = arith.maximumf %351, %352 : vector<2x64xf32>
    %c0_213 = arith.constant 0 : index
    %c0_214 = arith.constant 0 : index
    %354 = vector.load %arg13[%c0_213, %c0_214] : memref<64x4xf32, #tpu.memory_space<vmem>>, vector<64x4xf32>
    %cst_215 = arith.constant dense<0.000000e+00> : vector<2x4xf32>
    %355 = tpu.matmul %353, %354, %cst_215 {dimension_numbers = #tpu.dot_dimension_numbers<[1], [0], [0], [1], [0, 0, 1, 1], [], []>} : vector<2x64xf32>, vector<64x4xf32>, vector<2x4xf32> -> vector<2x4xf32>
    %c0_216 = arith.constant 0 : index
    %c0_217 = arith.constant 0 : index
    %356 = vector.load %arg14[%c0_216, %c0_217] : memref<1x4xf32, #tpu.memory_space<vmem>>, vector<1x4xf32>
    %357 = vector.broadcast %356 : vector<1x4xf32> to vector<2x4xf32>
    %358 = arith.addf %355, %357 : vector<2x4xf32>
    %cst_218 = arith.constant 5.000000e-01 : f32
    %359 = vector.broadcast %cst_218 : f32 to vector<2x4xf32>
    %360 = arith.mulf %359, %358 : vector<2x4xf32>
    %361 = math.cos %360 : vector<2x4xf32>
    %362 = math.sin %360 : vector<2x4xf32>
    %363 = arith.subf %361, %362 : vector<2x4xf32>
    %c0_219 = arith.constant 0 : index
    %c0_220 = arith.constant 0 : index
    %364 = vector.load %arg15[%c0_219, %c0_220] : memref<4x16xf32, #tpu.memory_space<vmem>>, vector<4x16xf32>
    %365 = vector.extract_strided_slice %362 {offsets = [0, 0], sizes = [2, 1], strides = [1, 1]} : vector<2x4xf32> to vector<2x1xf32>
    %366 = vector.extract_strided_slice %363 {offsets = [0, 0], sizes = [2, 1], strides = [1, 1]} : vector<2x4xf32> to vector<2x1xf32>
    %367 = vector.extract_strided_slice %364 {offsets = [0, 0], sizes = [1, 16], strides = [1, 1]} : vector<4x16xf32> to vector<1x16xf32>
    %368 = vector.broadcast %366 : vector<2x1xf32> to vector<2x16xf32>
    %369 = vector.broadcast %367 : vector<1x16xf32> to vector<2x16xf32>
    %370 = arith.mulf %368, %369 : vector<2x16xf32>
    %371 = vector.broadcast %365 : vector<2x1xf32> to vector<2x16xf32>
    %372 = arith.addf %371, %370 : vector<2x16xf32>
    %373 = vector.extract_strided_slice %362 {offsets = [0, 1], sizes = [2, 1], strides = [1, 1]} : vector<2x4xf32> to vector<2x1xf32>
    %374 = vector.extract_strided_slice %363 {offsets = [0, 1], sizes = [2, 1], strides = [1, 1]} : vector<2x4xf32> to vector<2x1xf32>
    %375 = vector.extract_strided_slice %364 {offsets = [1, 0], sizes = [1, 16], strides = [1, 1]} : vector<4x16xf32> to vector<1x16xf32>
    %376 = vector.broadcast %374 : vector<2x1xf32> to vector<2x16xf32>
    %377 = vector.broadcast %375 : vector<1x16xf32> to vector<2x16xf32>
    %378 = arith.mulf %376, %377 : vector<2x16xf32>
    %379 = vector.broadcast %373 : vector<2x1xf32> to vector<2x16xf32>
    %380 = arith.addf %379, %378 : vector<2x16xf32>
    %381 = arith.mulf %372, %380 : vector<2x16xf32>
    %382 = vector.extract_strided_slice %362 {offsets = [0, 2], sizes = [2, 1], strides = [1, 1]} : vector<2x4xf32> to vector<2x1xf32>
    %383 = vector.extract_strided_slice %363 {offsets = [0, 2], sizes = [2, 1], strides = [1, 1]} : vector<2x4xf32> to vector<2x1xf32>
    %384 = vector.extract_strided_slice %364 {offsets = [2, 0], sizes = [1, 16], strides = [1, 1]} : vector<4x16xf32> to vector<1x16xf32>
    %385 = vector.broadcast %383 : vector<2x1xf32> to vector<2x16xf32>
    %386 = vector.broadcast %384 : vector<1x16xf32> to vector<2x16xf32>
    %387 = arith.mulf %385, %386 : vector<2x16xf32>
    %388 = vector.broadcast %382 : vector<2x1xf32> to vector<2x16xf32>
    %389 = arith.addf %388, %387 : vector<2x16xf32>
    %390 = arith.mulf %381, %389 : vector<2x16xf32>
    %391 = vector.extract_strided_slice %362 {offsets = [0, 3], sizes = [2, 1], strides = [1, 1]} : vector<2x4xf32> to vector<2x1xf32>
    %392 = vector.extract_strided_slice %363 {offsets = [0, 3], sizes = [2, 1], strides = [1, 1]} : vector<2x4xf32> to vector<2x1xf32>
    %393 = vector.extract_strided_slice %364 {offsets = [3, 0], sizes = [1, 16], strides = [1, 1]} : vector<4x16xf32> to vector<1x16xf32>
    %394 = vector.broadcast %392 : vector<2x1xf32> to vector<2x16xf32>
    %395 = vector.broadcast %393 : vector<1x16xf32> to vector<2x16xf32>
    %396 = arith.mulf %394, %395 : vector<2x16xf32>
    %397 = vector.broadcast %391 : vector<2x1xf32> to vector<2x16xf32>
    %398 = arith.addf %397, %396 : vector<2x16xf32>
    %399 = arith.mulf %390, %398 : vector<2x16xf32>
    %c0_221 = arith.constant 0 : index
    %c0_222 = arith.constant 0 : index
    %400 = vector.load %arg16[%c0_221, %c0_222] : memref<16x16xf32, #tpu.memory_space<vmem>>, vector<16x16xf32>
    %cst_223 = arith.constant dense<0.000000e+00> : vector<2x16xf32>
    %401 = tpu.matmul %399, %400, %cst_223 {dimension_numbers = #tpu.dot_dimension_numbers<[1], [0], [0], [1], [0, 0, 1, 1], [], []>} : vector<2x16xf32>, vector<16x16xf32>, vector<2x16xf32> -> vector<2x16xf32>
    %402 = arith.mulf %401, %401 : vector<2x16xf32>
    %c0_224 = arith.constant 0 : index
    %c0_225 = arith.constant 0 : index
    %403 = vector.load %arg17[%c0_224, %c0_225] : memref<16x4xf32, #tpu.memory_space<vmem>>, vector<16x4xf32>
    %cst_226 = arith.constant dense<0.000000e+00> : vector<2x4xf32>
    %404 = tpu.matmul %402, %403, %cst_226 {dimension_numbers = #tpu.dot_dimension_numbers<[1], [0], [0], [1], [0, 0, 1, 1], [], []>} : vector<2x16xf32>, vector<16x4xf32>, vector<2x4xf32> -> vector<2x4xf32>
    %c0_227 = arith.constant 0 : index
    %c0_228 = arith.constant 0 : index
    %405 = vector.load %arg18[%c0_227, %c0_228] : memref<4x10xf32, #tpu.memory_space<vmem>>, vector<4x10xf32>
    %cst_229 = arith.constant dense<0.000000e+00> : vector<2x10xf32>
    %406 = tpu.matmul %404, %405, %cst_229 {dimension_numbers = #tpu.dot_dimension_numbers<[1], [0], [0], [1], [0, 0, 1, 1], [], []>} : vector<2x4xf32>, vector<4x10xf32>, vector<2x10xf32> -> vector<2x10xf32>
    %c0_230 = arith.constant 0 : index
    %c0_231 = arith.constant 0 : index
    %407 = vector.load %arg19[%c0_230, %c0_231] : memref<1x10xf32, #tpu.memory_space<vmem>>, vector<1x10xf32>
    %408 = vector.broadcast %407 : vector<1x10xf32> to vector<2x10xf32>
    %409 = arith.addf %406, %408 : vector<2x10xf32>
    %c0_232 = arith.constant 0 : index
    %c0_233 = arith.constant 0 : index
    %410 = vector.load %arg20[%c0_232, %c0_233] : memref<2x10xf32, #tpu.memory_space<vmem>>, vector<2x10xf32>
    tpu.vector_store %arg20[%c0_232, %c0_233], %409 {strides = array<i32>} : memref<2x10xf32, #tpu.memory_space<vmem>>, vector<2x10xf32>,
    return
  }
  func.func @transform_0(%arg0: i32) -> (i32, i32) {
    %c0_i32 = arith.constant 0 : i32
    %c0_i32_0 = arith.constant 0 : i32
    %c0_i32_1 = arith.constant 0 : i32
    return %c0_i32, %c0_i32_0 : i32, i32
  }
  func.func @transform_1(%arg0: i32) -> (i32, i32) {
    %c0_i32 = arith.constant 0 : i32
    %c0_i32_0 = arith.constant 0 : i32
    %c0_i32_1 = arith.constant 0 : i32
    return %c0_i32, %c0_i32_0 : i32, i32
  }
  func.func @transform_2(%arg0: i32) -> (i32, i32) {
    %c0_i32 = arith.constant 0 : i32
    %c0_i32_0 = arith.constant 0 : i32
    %c0_i32_1 = arith.constant 0 : i32
    return %c0_i32, %c0_i32_0 : i32, i32
  }
  func.func @transform_3(%arg0: i32) -> (i32, i32) {
    %c0_i32 = arith.constant 0 : i32
    %c0_i32_0 = arith.constant 0 : i32
    %c0_i32_1 = arith.constant 0 : i32
    return %c0_i32, %c0_i32_0 : i32, i32
  }
  func.func @transform_4(%arg0: i32) -> (i32, i32) {
    %c0_i32 = arith.constant 0 : i32
    %c0_i32_0 = arith.constant 0 : i32
    %c0_i32_1 = arith.constant 0 : i32
    return %c0_i32, %c0_i32_0 : i32, i32
  }
  func.func @transform_5(%arg0: i32) -> (i32, i32) {
    %c0_i32 = arith.constant 0 : i32
    %c0_i32_0 = arith.constant 0 : i32
    %c0_i32_1 = arith.constant 0 : i32
    return %c0_i32, %c0_i32_0 : i32, i32
  }
  func.func @transform_6(%arg0: i32) -> (i32, i32) {
    %c0_i32 = arith.constant 0 : i32
    %c0_i32_0 = arith.constant 0 : i32
    %c0_i32_1 = arith.constant 0 : i32
    return %c0_i32, %c0_i32_0 : i32, i32
  }
  func.func @transform_7(%arg0: i32) -> (i32, i32) {
    %c0_i32 = arith.constant 0 : i32
    %c0_i32_0 = arith.constant 0 : i32
    %c0_i32_1 = arith.constant 0 : i32
    return %c0_i32, %c0_i32_0 : i32, i32
  }
  func.func @transform_9(%arg0: i32) -> (i32, i32) {
    %c0_i32 = arith.constant 0 : i32
    %c0_i32_0 = arith.constant 0 : i32
    %c0_i32_1 = arith.constant 0 : i32
    return %c0_i32, %c0_i32_0 : i32, i32
  }
  func.func @transform_10(%arg0: i32) -> (i32, i32) {
    %c0_i32 = arith.constant 0 : i32
    %c0_i32_0 = arith.constant 0 : i32
    %c0_i32_1 = arith.constant 0 : i32
    return %c0_i32, %c0_i32_0 : i32, i32
  }
  func.func @transform_11(%arg0: i32) -> (i32, i32) {
    %c0_i32 = arith.constant 0 : i32
    %c0_i32_0 = arith.constant 0 : i32
    %c0_i32_1 = arith.constant 0 : i32
    return %c0_i32, %c0_i32_0 : i32, i32
  }
  func.func @transform_12(%arg0: i32) -> (i32, i32) {
    %c0_i32 = arith.constant 0 : i32
    %c0_i32_0 = arith.constant 0 : i32
    %c0_i32_1 = arith.constant 0 : i32
    return %c0_i32, %c0_i32_0 : i32, i32
  }
  func.func @transform_13(%arg0: i32) -> (i32, i32) {
    %c0_i32 = arith.constant 0 : i32
    %c0_i32_0 = arith.constant 0 : i32
    %c0_i32_1 = arith.constant 0 : i32
    return %c0_i32, %c0_i32_0 : i32, i32
  }
  func.func @transform_14(%arg0: i32) -> (i32, i32) {
    %c0_i32 = arith.constant 0 : i32
    %c0_i32_0 = arith.constant 0 : i32
    %c0_i32_1 = arith.constant 0 : i32
    return %c0_i32, %c0_i32_0 : i32, i32
  }
  func.func @transform_15(%arg0: i32) -> (i32, i32) {
    %c0_i32 = arith.constant 0 : i32
    %c0_i32_0 = arith.constant 0 : i32
    %c0_i32_1 = arith.constant 0 : i32
    return %c0_i32, %c0_i32_0 : i32, i32
  }
  func.func @transform_16(%arg0: i32) -> (i32, i32) {
    %c0_i32 = arith.constant 0 : i32
    %c0_i32_0 = arith.constant 0 : i32
    %c0_i32_1 = arith.constant 0 : i32
    return %c0_i32, %c0_i32_0 : i32, i32
  }
  func.func @transform_17(%arg0: i32) -> (i32, i32) {
    %c0_i32 = arith.constant 0 : i32
    %c0_i32_0 = arith.constant 0 : i32
    %c0_i32_1 = arith.constant 0 : i32
    return %c0_i32, %c0_i32_0 : i32, i32
  }
  func.func @transform_18(%arg0: i32) -> (i32, i32) {
    %c0_i32 = arith.constant 0 : i32
    %c0_i32_0 = arith.constant 0 : i32
    %c0_i32_1 = arith.constant 0 : i32
    return %c0_i32, %c0_i32_0 : i32, i32
  }
  func.func @transform_19(%arg0: i32) -> (i32, i32) {
    %c0_i32 = arith.constant 0 : i32
    %c0_i32_0 = arith.constant 0 : i32
    %c0_i32_1 = arith.constant 0 : i32
    return %c0_i32, %c0_i32_0 : i32, i32
  }
}

</mosaic_0001>

<llo_original>
// kernel: hybrid_vision_forward.1
$region0: #{hybrid_vision_forward.1}
  #allocation0 [shape = 'u32[]', space=smem, size = 0x4, offset = 0x4, fixed_abs, tag = 'smem constant byte address 0x4 - core index']
  #allocation1 [shape = 'u32[144,128]{1,0:T(1,128)}', space=vmem, size = 0x12000, scoped, tag = 'internal scratch']
  #allocation2 [shape = 'f32[512,16]{1,0:T(8,128)}', space=vmem, size = 0x40000, scoped, tag = 'scratch operand']
  #allocation3 [shape = 'f32[222,16]{1,0:T(8,128)}', space=vmem, size = 0x1c000, scoped, tag = 'scratch operand']
  #allocation4 [shape = 'f32[200,32]{1,0:T(8,128)}', space=vmem, size = 0x19000, scoped, tag = 'scratch operand']
  #allocation5 [shape = 'f32[86,32]{1,0:T(8,128)}', space=vmem, size = 0xb000, scoped, tag = 'scratch operand']
  #allocation6 [shape = 'f32[2,1024]{1,0:T(2,128)}', space=vmem, size = 0x2000, scoped, tag = 'scratch operand']
  #allocation7 [shape = 'bf16[1024,256]{1,0:T(8,128)(2,1)}', space=vmem, size = 0x80000, scoped, tag = 'scratch operand']
  #allocation8 [shape = 's32[1]{0}', space=sflag, size = 0x4, scoped, tag = 'scratch operand']
  #allocation11 [shape = 's32[]', space=sflag, size = 0x4, offset = 0, fixed_abs, tag = 'sflag constant byte address 0x0 - dummy sync flag']
  %s0 = inlined_call_operand.vmem [shape: bf16[512,27], index: 0, kind: input, shape index: {}]
  %s1 = inlined_call_operand.vmem [shape: bf16[27,16], index: 1, kind: input, shape index: {}]
  %s2 = inlined_call_operand.vmem [shape: f32[1,16], index: 2, kind: input, shape index: {}]
  %s3 = inlined_call_operand.vmem [shape: bf16[144,32], index: 3, kind: input, shape index: {}]
  %s4 = inlined_call_operand.vmem [shape: f32[1,32], index: 4, kind: input, shape index: {}]
  %s5 = inlined_call_operand.vmem [shape: bf16[288,64], index: 5, kind: input, shape index: {}]
  %s6 = inlined_call_operand.vmem [shape: f32[1,64], index: 6, kind: input, shape index: {}]
  %s7 = inlined_call_operand.vmem [shape: f32[32,72], index: 7, kind: input, shape index: {}]
  %s8 = inlined_call_operand.vmem [shape: bf16[1024,256], index: 8, kind: input, shape index: {}]
  %s9 = inlined_call_operand.vmem [shape: f32[1,256], index: 9, kind: input, shape index: {}]
  %s10 = inlined_call_operand.vmem [shape: bf16[256,64], index: 10, kind: input, shape index: {}]
  %s11 = inlined_call_operand.vmem [shape: f32[1,64], index: 11, kind: input, shape index: {}]
  %s12 = inlined_call_operand.vmem [shape: f32[64,4], index: 12, kind: input, shape index: {}]
  %s13 = inlined_call_operand.vmem [shape: f32[1,4], index: 13, kind: input, shape index: {}]
  %s14 = inlined_call_operand.vmem [shape: f32[4,16], index: 14, kind: input, shape index: {}]
  %s15 = inlined_call_operand.vmem [shape: f32[16,16], index: 15, kind: input, shape index: {}]
  %s16 = inlined_call_operand.vmem [shape: f32[16,4], index: 16, kind: input, shape index: {}]
  %s17 = inlined_call_operand.vmem [shape: f32[4,10], index: 17, kind: input, shape index: {}]
  %s18 = inlined_call_operand.vmem [shape: f32[1,10], index: 18, kind: input, shape index: {}]
  %s19 = inlined_call_operand.hbm [shape: f32[2,10], index: 19, kind: output, shape index: {}]
  %s20 = sld [smem:[#allocation0]]
  $region116: #{hybrid_vision_forward.1} parent=0
    _
  %s22 = ssub.s32 1, %s20
  %s23 = scalar_select 0, %s22, %s20
  $region1: #{hybrid_vision_forward.1} parent=0
    #allocation9 [shape = 'u8[1024]{0}', space=vmem, size = 0x400, scoped, tag = 'output window, operand 0, single buffered']
    #allocation10 [shape = 's32[1]{0}', space=sflag, size = 0x4, scoped, tag = 'scoped memory for hybrid_vision_forward.1']
    %24 = vsyncpa [#allocation10], 0
    // Predicated region
    $region2: #{hybrid_vision_forward.1} parent=1 // pred_check
      _
    $region3: #{hybrid_vision_forward.1} parent=1 // pred_check_branch
      %26 = sbr.rel (0) target = $region5
    $region4: #{hybrid_vision_forward.1} parent=1 // pred_region
      _
    $region5: #{hybrid_vision_forward.1} parent=1 // pred_fallthru
      _
    // Predicated region
    $region6: #{hybrid_vision_forward.1} parent=1 // pred_check
      _
    $region7: #{hybrid_vision_forward.1} parent=1 // pred_check_branch
      %28 = sbr.rel (0) target = $region9
    $region8: #{hybrid_vision_forward.1} parent=1 // pred_region
      _
    $region9: #{hybrid_vision_forward.1} parent=1 // pred_fallthru
      _
    // Predicated region
    $region10: #{hybrid_vision_forward.1} parent=1 // pred_check
      _
    $region11: #{hybrid_vision_forward.1} parent=1 // pred_check_branch
      %30 = sbr.rel (0) target = $region13
    $region12: #{hybrid_vision_forward.1} parent=1 // pred_region
      _
    $region13: #{hybrid_vision_forward.1} parent=1 // pred_fallthru
      _
    // Predicated region
    $region14: #{hybrid_vision_forward.1} parent=1 // pred_check
      _
    $region15: #{hybrid_vision_forward.1} parent=1 // pred_check_branch
      %32 = sbr.rel (0) target = $region17
    $region16: #{hybrid_vision_forward.1} parent=1 // pred_region
      _
    $region17: #{hybrid_vision_forward.1} parent=1 // pred_fallthru
      _
    // Predicated region
    $region18: #{hybrid_vision_forward.1} parent=1 // pred_check
      _
    $region19: #{hybrid_vision_forward.1} parent=1 // pred_check_branch
      %34 = sbr.rel (0) target = $region21
    $region20: #{hybrid_vision_forward.1} parent=1 // pred_region
      _
    $region21: #{hybrid_vision_forward.1} parent=1 // pred_fallthru
      _
    // Predicated region
    $region22: #{hybrid_vision_forward.1} parent=1 // pred_check
      _
    $region23: #{hybrid_vision_forward.1} parent=1 // pred_check_branch
      %36 = sbr.rel (0) target = $region25
    $region24: #{hybrid_vision_forward.1} parent=1 // pred_region
      _
    $region25: #{hybrid_vision_forward.1} parent=1 // pred_fallthru
      _
    // Predicated region
    $region26: #{hybrid_vision_forward.1} parent=1 // pred_check
      _
    $region27: #{hybrid_vision_forward.1} parent=1 // pred_check_branch
      %38 = sbr.rel (0) target = $region29
    $region28: #{hybrid_vision_forward.1} parent=1 // pred_region
      _
    $region29: #{hybrid_vision_forward.1} parent=1 // pred_fallthru
      _
    // Predicated region
    $region30: #{hybrid_vision_forward.1} parent=1 // pred_check
      _
    $region31: #{hybrid_vision_forward.1} parent=1 // pred_check_branch
      %40 = sbr.rel (0) target = $region33
    $region32: #{hybrid_vision_forward.1} parent=1 // pred_region
      _
    $region33: #{hybrid_vision_forward.1} parent=1 // pred_fallthru
      _
    // Predicated region
    $region34: #{hybrid_vision_forward.1} parent=1 // pred_check
      _
    $region35: #{hybrid_vision_forward.1} parent=1 // pred_check_branch
      %42 = sbr.rel (0) target = $region37
    $region36: #{hybrid_vision_forward.1} parent=1 // pred_region
      _
    $region37: #{hybrid_vision_forward.1} parent=1 // pred_fallthru
      _
    // Predicated region
    $region38: #{hybrid_vision_forward.1} parent=1 // pred_check
      _
    $region39: #{hybrid_vision_forward.1} parent=1 // pred_check_branch
      %44 = sbr.rel (0) target = $region41
    $region40: #{hybrid_vision_forward.1} parent=1 // pred_region
      _
    $region41: #{hybrid_vision_forward.1} parent=1 // pred_fallthru
      _
    // Predicated region
    $region42: #{hybrid_vision_forward.1} parent=1 // pred_check
      _
    $region43: #{hybrid_vision_forward.1} parent=1 // pred_check_branch
      %46 = sbr.rel (0) target = $region45
    $region44: #{hybrid_vision_forward.1} parent=1 // pred_region
      _
    $region45: #{hybrid_vision_forward.1} parent=1 // pred_fallthru
      _
    // Predicated region
    $region46: #{hybrid_vision_forward.1} parent=1 // pred_check
      _
    $region47: #{hybrid_vision_forward.1} parent=1 // pred_check_branch
      %48 = sbr.rel (0) target = $region49
    $region48: #{hybrid_vision_forward.1} parent=1 // pred_region
      _
    $region49: #{hybrid_vision_forward.1} parent=1 // pred_fallthru
      _
    // Predicated region
    $region50: #{hybrid_vision_forward.1} parent=1 // pred_check
      _
    $region51: #{hybrid_vision_forward.1} parent=1 // pred_check_branch
      %50 = sbr.rel (0) target = $region53
    $region52: #{hybrid_vision_forward.1} parent=1 // pred_region
      _
    $region53: #{hybrid_vision_forward.1} parent=1 // pred_fallthru
      _
    // Predicated region
    $region54: #{hybrid_vision_forward.1} parent=1 // pred_check
      _
    $region55: #{hybrid_vision_forward.1} parent=1 // pred_check_branch
      %52 = sbr.rel (0) target = $region57
    $region56: #{hybrid_vision_forward.1} parent=1 // pred_region
      _
    $region57: #{hybrid_vision_forward.1} parent=1 // pred_fallthru
      _
    // Predicated region
    $region58: #{hybrid_vision_forward.1} parent=1 // pred_check
      _
    $region59: #{hybrid_vision_forward.1} parent=1 // pred_check_branch
      %54 = sbr.rel (0) target = $region61
    $region60: #{hybrid_vision_forward.1} parent=1 // pred_region
      _
    $region61: #{hybrid_vision_forward.1} parent=1 // pred_fallthru
      _
    // Predicated region
    $region62: #{hybrid_vision_forward.1} parent=1 // pred_check
      _
    $region63: #{hybrid_vision_forward.1} parent=1 // pred_check_branch
      %56 = sbr.rel (0) target = $region65
    $region64: #{hybrid_vision_forward.1} parent=1 // pred_region
      _
    $region65: #{hybrid_vision_forward.1} parent=1 // pred_fallthru
      _
    // Predicated region
    $region66: #{hybrid_vision_forward.1} parent=1 // pred_check
      _
    $region67: #{hybrid_vision_forward.1} parent=1 // pred_check_branch
      %58 = sbr.rel (0) target = $region69
    $region68: #{hybrid_vision_forward.1} parent=1 // pred_region
      _
    $region69: #{hybrid_vision_forward.1} parent=1 // pred_fallthru
      _
    // Predicated region
    $region70: #{hybrid_vision_forward.1} parent=1 // pred_check
      _
    $region71: #{hybrid_vision_forward.1} parent=1 // pred_check_branch
      %60 = sbr.rel (0) target = $region73
    $region72: #{hybrid_vision_forward.1} parent=1 // pred_region
      _
    $region73: #{hybrid_vision_forward.1} parent=1 // pred_fallthru
      _
    %p63 = scmp.lt.u32.totalorder 1024, 8
    %p64 = pneg %p63
    // Predicated region
    $region74: #{hybrid_vision_forward.1} parent=1 // pred_check
      _
    $region75: #{hybrid_vision_forward.1} parent=1 // pred_check_branch
      %66 = sbr.rel (%p63) target = $region77
    $region76: #{hybrid_vision_forward.1} parent=1 // pred_region
      %s82 = sand.u32 1024, 7
      %p83 = scmp.eq.s32.totalorder %s82, 0
      // Predicated region
      $region89: #{hybrid_vision_forward.1} parent=76 // pred_check
        %p84 = pneg %p83
      $region90: #{hybrid_vision_forward.1} parent=76 // pred_check_branch
        %86 = sbr.rel (%p84) target = $region92
      $region91: #{hybrid_vision_forward.1} parent=76 // pred_region
        loop: start=0, step=1, limit=1
        $region93: #{hybrid_vision_forward.1} parent=91 // loop_pre_header
          _
        $region94: #{hybrid_vision_forward.1} parent=91 // loop_header
          %s88 = sphi 0, %s92
          %p89 = scmp.ge.s32.totalorder %s88, 1
          %s93 = sphi %s8, %s8
          %s94 = sphi [#allocation7], [#allocation7]
        $region95: #{hybrid_vision_forward.1} parent=91 // loop_header_branch
          %91 = sbr.rel (%p89) target = $region99
        $region96: #{hybrid_vision_forward.1} parent=91 // loop_body
          %v95 = vld [vmem:[%s93] sm:$0xff]
          %96 = vst [vmem:[%s94] sm:$0xff] %v95
          %v97 = vld [vmem:[%s93 + $0x8] sm:$0xff]
          %98 = vst [vmem:[%s94 + $0x8] sm:$0xff] %v97
          %v99 = vld [vmem:[%s93 + $0x10] sm:$0xff]
          %100 = vst [vmem:[%s94 + $0x10] sm:$0xff] %v99
          %v101 = vld [vmem:[%s93 + $0x18] sm:$0xff]
          %102 = vst [vmem:[%s94 + $0x18] sm:$0xff] %v101
          %v103 = vld [vmem:[%s93 + $0x20] sm:$0xff]
          %104 = vst [vmem:[%s94 + $0x20] sm:$0xff] %v103
          %v105 = vld [vmem:[%s93 + $0x28] sm:$0xff]
          %106 = vst [vmem:[%s94 + $0x28] sm:$0xff] %v105
          %v107 = vld [vmem:[%s93 + $0x30] sm:$0xff]
          %108 = vst [vmem:[%s94 + $0x30] sm:$0xff] %v107
          %v109 = vld [vmem:[%s93 + $0x38] sm:$0xff]
          %110 = vst [vmem:[%s94 + $0x38] sm:$0xff] %v109
          %v111 = vld [vmem:[%s93 + $0x40] sm:$0xff]
          %112 = vst [vmem:[%s94 + $0x40] sm:$0xff] %v111
          %v113 = vld [vmem:[%s93 + $0x48] sm:$0xff]
          %114 = vst [vmem:[%s94 + $0x48] sm:$0xff] %v113
          %v115 = vld [vmem:[%s93 + $0x50] sm:$0xff]
          %116 = vst [vmem:[%s94 + $0x50] sm:$0xff] %v115
          %v117 = vld [vmem:[%s93 + $0x58] sm:$0xff]
          %118 = vst [vmem:[%s94 + $0x58] sm:$0xff] %v117
          %v119 = vld [vmem:[%s93 + $0x60] sm:$0xff]
          %120 = vst [vmem:[%s94 + $0x60] sm:$0xff] %v119
          %v121 = vld [vmem:[%s93 + $0x68] sm:$0xff]
          %122 = vst [vmem:[%s94 + $0x68] sm:$0xff] %v121
          %v123 = vld [vmem:[%s93 + $0x70] sm:$0xff]
          %124 = vst [vmem:[%s94 + $0x70] sm:$0xff] %v123
          %v125 = vld [vmem:[%s93 + $0x78] sm:$0xff]
          %126 = vst [vmem:[%s94 + $0x78] sm:$0xff] %v125
          %v127 = vld [vmem:[%s93 + $0x80] sm:$0xff]
          %128 = vst [vmem:[%s94 + $0x80] sm:$0xff] %v127
          %v129 = vld [vmem:[%s93 + $0x88] sm:$0xff]
          %130 = vst [vmem:[%s94 + $0x88] sm:$0xff] %v129
          %v131 = vld [vmem:[%s93 + $0x90] sm:$0xff]
          %132 = vst [vmem:[%s94 + $0x90] sm:$0xff] %v131
          %v133 = vld [vmem:[%s93 + $0x98] sm:$0xff]
          %134 = vst [vmem:[%s94 + $0x98] sm:$0xff] %v133
          %v135 = vld [vmem:[%s93 + $0xa0] sm:$0xff]
          %136 = vst [vmem:[%s94 + $0xa0] sm:$0xff] %v135
          %v137 = vld [vmem:[%s93 + $0xa8] sm:$0xff]
          %138 = vst [vmem:[%s94 + $0xa8] sm:$0xff] %v137
          %v139 = vld [vmem:[%s93 + $0xb0] sm:$0xff]
          %140 = vst [vmem:[%s94 + $0xb0] sm:$0xff] %v139
          %v141 = vld [vmem:[%s93 + $0xb8] sm:$0xff]
          %142 = vst [vmem:[%s94 + $0xb8] sm:$0xff] %v141
          %v143 = vld [vmem:[%s93 + $0xc0] sm:$0xff]
          %144 = vst [vmem:[%s94 + $0xc0] sm:$0xff] %v143
          %v145 = vld [vmem:[%s93 + $0xc8] sm:$0xff]
          %146 = vst [vmem:[%s94 + $0xc8] sm:$0xff] %v145
          %v147 = vld [vmem:[%s93 + $0xd0] sm:$0xff]
          %148 = vst [vmem:[%s94 + $0xd0] sm:$0xff] %v147
          %v149 = vld [vmem:[%s93 + $0xd8] sm:$0xff]
          %150 = vst [vmem:[%s94 + $0xd8] sm:$0xff] %v149
          %v151 = vld [vmem:[%s93 + $0xe0] sm:$0xff]
          %152 = vst [vmem:[%s94 + $0xe0] sm:$0xff] %v151
          %v153 = vld [vmem:[%s93 + $0xe8] sm:$0xff]
          %154 = vst [vmem:[%s94 + $0xe8] sm:$0xff] %v153
          %v155 = vld [vmem:[%s93 + $0xf0] sm:$0xff]
          %156 = vst [vmem:[%s94 + $0xf0] sm:$0xff] %v155
          %v157 = vld [vmem:[%s93 + $0xf8] sm:$0xff]
          %158 = vst [vmem:[%s94 + $0xf8] sm:$0xff] %v157
          %v159 = vld [vmem:[%s93 + $0x100] sm:$0xff]
          %160 = vst [vmem:[%s94 + $0x100] sm:$0xff] %v159
          %v161 = vld [vmem:[%s93 + $0x108] sm:$0xff]
          %162 = vst [vmem:[%s94 + $0x108] sm:$0xff] %v161
          %v163 = vld [vmem:[%s93 + $0x110] sm:$0xff]
          %164 = vst [vmem:[%s94 + $0x110] sm:$0xff] %v163
          %v165 = vld [vmem:[%s93 + $0x118] sm:$0xff]
          %166 = vst [vmem:[%s94 + $0x118] sm:$0xff] %v165
          %v167 = vld [vmem:[%s93 + $0x120] sm:$0xff]
          %168 = vst [vmem:[%s94 + $0x120] sm:$0xff] %v167
          %v169 = vld [vmem:[%s93 + $0x128] sm:$0xff]
          %170 = vst [vmem:[%s94 + $0x128] sm:$0xff] %v169
          %v171 = vld [vmem:[%s93 + $0x130] sm:$0xff]
          %172 = vst [vmem:[%s94 + $0x130] sm:$0xff] %v171
          %v173 = vld [vmem:[%s93 + $0x138] sm:$0xff]
          %174 = vst [vmem:[%s94 + $0x138] sm:$0xff] %v173
          %v175 = vld [vmem:[%s93 + $0x140] sm:$0xff]
          %176 = vst [vmem:[%s94 + $0x140] sm:$0xff] %v175
          %v177 = vld [vmem:[%s93 + $0x148] sm:$0xff]
          %178 = vst [vmem:[%s94 + $0x148] sm:$0xff] %v177
          %v179 = vld [vmem:[%s93 + $0x150] sm:$0xff]
          %180 = vst [vmem:[%s94 + $0x150] sm:$0xff] %v179
          %v181 = vld [vmem:[%s93 + $0x158] sm:$0xff]
          %182 = vst [vmem:[%s94 + $0x158] sm:$0xff] %v181
          %v183 = vld [vmem:[%s93 + $0x160] sm:$0xff]
          %184 = vst [vmem:[%s94 + $0x160] sm:$0xff] %v183
          %v185 = vld [vmem:[%s93 + $0x168] sm:$0xff]
          %186 = vst [vmem:[%s94 + $0x168] sm:$0xff] %v185
          %v187 = vld [vmem:[%s93 + $0x170] sm:$0xff]
          %188 = vst [vmem:[%s94 + $0x170] sm:$0xff] %v187
          %v189 = vld [vmem:[%s93 + $0x178] sm:$0xff]
          %190 = vst [vmem:[%s94 + $0x178] sm:$0xff] %v189
          %v191 = vld [vmem:[%s93 + $0x180] sm:$0xff]
          %192 = vst [vmem:[%s94 + $0x180] sm:$0xff] %v191
          %v193 = vld [vmem:[%s93 + $0x188] sm:$0xff]
          %194 = vst [vmem:[%s94 + $0x188] sm:$0xff] %v193
          %v195 = vld [vmem:[%s93 + $0x190] sm:$0xff]
          %196 = vst [vmem:[%s94 + $0x190] sm:$0xff] %v195
          %v197 = vld [vmem:[%s93 + $0x198] sm:$0xff]
          %198 = vst [vmem:[%s94 + $0x198] sm:$0xff] %v197
          %v199 = vld [vmem:[%s93 + $0x1a0] sm:$0xff]
          %200 = vst [vmem:[%s94 + $0x1a0] sm:$0xff] %v199
          %v201 = vld [vmem:[%s93 + $0x1a8] sm:$0xff]
          %202 = vst [vmem:[%s94 + $0x1a8] sm:$0xff] %v201
          %v203 = vld [vmem:[%s93 + $0x1b0] sm:$0xff]
          %204 = vst [vmem:[%s94 + $0x1b0] sm:$0xff] %v203
          %v205 = vld [vmem:[%s93 + $0x1b8] sm:$0xff]
          %206 = vst [vmem:[%s94 + $0x1b8] sm:$0xff] %v205
          %v207 = vld [vmem:[%s93 + $0x1c0] sm:$0xff]
          %208 = vst [vmem:[%s94 + $0x1c0] sm:$0xff] %v207
          %v209 = vld [vmem:[%s93 + $0x1c8] sm:$0xff]
          %210 = vst [vmem:[%s94 + $0x1c8] sm:$0xff] %v209
          %v211 = vld [vmem:[%s93 + $0x1d0] sm:$0xff]
          %212 = vst [vmem:[%s94 + $0x1d0] sm:$0xff] %v211
          %v213 = vld [vmem:[%s93 + $0x1d8] sm:$0xff]
          %214 = vst [vmem:[%s94 + $0x1d8] sm:$0xff] %v213
          %v215 = vld [vmem:[%s93 + $0x1e0] sm:$0xff]
          %216 = vst [vmem:[%s94 + $0x1e0] sm:$0xff] %v215
          %v217 = vld [vmem:[%s93 + $0x1e8] sm:$0xff]
          %218 = vst [vmem:[%s94 + $0x1e8] sm:$0xff] %v217
          %v219 = vld [vmem:[%s93 + $0x1f0] sm:$0xff]
          %220 = vst [vmem:[%s94 + $0x1f0] sm:$0xff] %v219
          %v221 = vld [vmem:[%s93 + $0x1f8] sm:$0xff]
          %222 = vst [vmem:[%s94 + $0x1f8] sm:$0xff] %v221
          %v223 = vld [vmem:[%s93 + $0x200] sm:$0xff]
          %224 = vst [vmem:[%s94 + $0x200] sm:$0xff] %v223
          %v225 = vld [vmem:[%s93 + $0x208] sm:$0xff]
          %226 = vst [vmem:[%s94 + $0x208] sm:$0xff] %v225
          %v227 = vld [vmem:[%s93 + $0x210] sm:$0xff]
          %228 = vst [vmem:[%s94 + $0x210] sm:$0xff] %v227
          %v229 = vld [vmem:[%s93 + $0x218] sm:$0xff]
          %230 = vst [vmem:[%s94 + $0x218] sm:$0xff] %v229
          %v231 = vld [vmem:[%s93 + $0x220] sm:$0xff]
          %232 = vst [vmem:[%s94 + $0x220] sm:$0xff] %v231
          %v233 = vld [vmem:[%s93 + $0x228] sm:$0xff]
          %234 = vst [vmem:[%s94 + $0x228] sm:$0xff] %v233
          %v235 = vld [vmem:[%s93 + $0x230] sm:$0xff]
          %236 = vst [vmem:[%s94 + $0x230] sm:$0xff] %v235
          %v237 = vld [vmem:[%s93 + $0x238] sm:$0xff]
          %238 = vst [vmem:[%s94 + $0x238] sm:$0xff] %v237
          %v239 = vld [vmem:[%s93 + $0x240] sm:$0xff]
          %240 = vst [vmem:[%s94 + $0x240] sm:$0xff] %v239
          %v241 = vld [vmem:[%s93 + $0x248] sm:$0xff]
          %242 = vst [vmem:[%s94 + $0x248] sm:$0xff] %v241
          %v243 = vld [vmem:[%s93 + $0x250] sm:$0xff]
          %244 = vst [vmem:[%s94 + $0x250] sm:$0xff] %v243
          %v245 = vld [vmem:[%s93 + $0x258] sm:$0xff]
          %246 = vst [vmem:[%s94 + $0x258] sm:$0xff] %v245
          %v247 = vld [vmem:[%s93 + $0x260] sm:$0xff]
          %248 = vst [vmem:[%s94 + $0x260] sm:$0xff] %v247
          %v249 = vld [vmem:[%s93 + $0x268] sm:$0xff]
          %250 = vst [vmem:[%s94 + $0x268] sm:$0xff] %v249
          %v251 = vld [vmem:[%s93 + $0x270] sm:$0xff]
          %252 = vst [vmem:[%s94 + $0x270] sm:$0xff] %v251
          %v253 = vld [vmem:[%s93 + $0x278] sm:$0xff]
          %254 = vst [vmem:[%s94 + $0x278] sm:$0xff] %v253
          %v255 = vld [vmem:[%s93 + $0x280] sm:$0xff]
          %256 = vst [vmem:[%s94 + $0x280] sm:$0xff] %v255
          %v257 = vld [vmem:[%s93 + $0x288] sm:$0xff]
          %258 = vst [vmem:[%s94 + $0x288] sm:$0xff] %v257
          %v259 = vld [vmem:[%s93 + $0x290] sm:$0xff]
          %260 = vst [vmem:[%s94 + $0x290] sm:$0xff] %v259
          %v261 = vld [vmem:[%s93 + $0x298] sm:$0xff]
          %262 = vst [vmem:[%s94 + $0x298] sm:$0xff] %v261
          %v263 = vld [vmem:[%s93 + $0x2a0] sm:$0xff]
          %264 = vst [vmem:[%s94 + $0x2a0] sm:$0xff] %v263
          %v265 = vld [vmem:[%s93 + $0x2a8] sm:$0xff]
          %266 = vst [vmem:[%s94 + $0x2a8] sm:$0xff] %v265
          %v267 = vld [vmem:[%s93 + $0x2b0] sm:$0xff]
          %268 = vst [vmem:[%s94 + $0x2b0] sm:$0xff] %v267
          %v269 = vld [vmem:[%s93 + $0x2b8] sm:$0xff]
          %270 = vst [vmem:[%s94 + $0x2b8] sm:$0xff] %v269
          %v271 = vld [vmem:[%s93 + $0x2c0] sm:$0xff]
          %272 = vst [vmem:[%s94 + $0x2c0] sm:$0xff] %v271
          %v273 = vld [vmem:[%s93 + $0x2c8] sm:$0xff]
          %274 = vst [vmem:[%s94 + $0x2c8] sm:$0xff] %v273
          %v275 = vld [vmem:[%s93 + $0x2d0] sm:$0xff]
          %276 = vst [vmem:[%s94 + $0x2d0] sm:$0xff] %v275
          %v277 = vld [vmem:[%s93 + $0x2d8] sm:$0xff]
          %278 = vst [vmem:[%s94 + $0x2d8] sm:$0xff] %v277
          %v279 = vld [vmem:[%s93 + $0x2e0] sm:$0xff]
          %280 = vst [vmem:[%s94 + $0x2e0] sm:$0xff] %v279
          %v281 = vld [vmem:[%s93 + $0x2e8] sm:$0xff]
          %282 = vst [vmem:[%s94 + $0x2e8] sm:$0xff] %v281
          %v283 = vld [vmem:[%s93 + $0x2f0] sm:$0xff]
          %284 = vst [vmem:[%s94 + $0x2f0] sm:$0xff] %v283
          %v285 = vld [vmem:[%s93 + $0x2f8] sm:$0xff]
          %286 = vst [vmem:[%s94 + $0x2f8] sm:$0xff] %v285
          %v287 = vld [vmem:[%s93 + $0x300] sm:$0xff]
          %288 = vst [vmem:[%s94 + $0x300] sm:$0xff] %v287
          %v289 = vld [vmem:[%s93 + $0x308] sm:$0xff]
          %290 = vst [vmem:[%s94 + $0x308] sm:$0xff] %v289
          %v291 = vld [vmem:[%s93 + $0x310] sm:$0xff]
          %292 = vst [vmem:[%s94 + $0x310] sm:$0xff] %v291
          %v293 = vld [vmem:[%s93 + $0x318] sm:$0xff]
          %294 = vst [vmem:[%s94 + $0x318] sm:$0xff] %v293
          %v295 = vld [vmem:[%s93 + $0x320] sm:$0xff]
          %296 = vst [vmem:[%s94 + $0x320] sm:$0xff] %v295
          %v297 = vld [vmem:[%s93 + $0x328] sm:$0xff]
          %298 = vst [vmem:[%s94 + $0x328] sm:$0xff] %v297
          %v299 = vld [vmem:[%s93 + $0x330] sm:$0xff]
          %300 = vst [vmem:[%s94 + $0x330] sm:$0xff] %v299
          %v301 = vld [vmem:[%s93 + $0x338] sm:$0xff]
          %302 = vst [vmem:[%s94 + $0x338] sm:$0xff] %v301
          %v303 = vld [vmem:[%s93 + $0x340] sm:$0xff]
          %304 = vst [vmem:[%s94 + $0x340] sm:$0xff] %v303
          %v305 = vld [vmem:[%s93 + $0x348] sm:$0xff]
          %306 = vst [vmem:[%s94 + $0x348] sm:$0xff] %v305
          %v307 = vld [vmem:[%s93 + $0x350] sm:$0xff]
          %308 = vst [vmem:[%s94 + $0x350] sm:$0xff] %v307
          %v309 = vld [vmem:[%s93 + $0x358] sm:$0xff]
          %310 = vst [vmem:[%s94 + $0x358] sm:$0xff] %v309
          %v311 = vld [vmem:[%s93 + $0x360] sm:$0xff]
          %312 = vst [vmem:[%s94 + $0x360] sm:$0xff] %v311
          %v313 = vld [vmem:[%s93 + $0x368] sm:$0xff]
          %314 = vst [vmem:[%s94 + $0x368] sm:$0xff] %v313
          %v315 = vld [vmem:[%s93 + $0x370] sm:$0xff]
          %316 = vst [vmem:[%s94 + $0x370] sm:$0xff] %v315
          %v317 = vld [vmem:[%s93 + $0x378] sm:$0xff]
          %318 = vst [vmem:[%s94 + $0x378] sm:$0xff] %v317
          %v319 = vld [vmem:[%s93 + $0x380] sm:$0xff]
          %320 = vst [vmem:[%s94 + $0x380] sm:$0xff] %v319
          %v321 = vld [vmem:[%s93 + $0x388] sm:$0xff]
          %322 = vst [vmem:[%s94 + $0x388] sm:$0xff] %v321
          %v323 = vld [vmem:[%s93 + $0x390] sm:$0xff]
          %324 = vst [vmem:[%s94 + $0x390] sm:$0xff] %v323
          %v325 = vld [vmem:[%s93 + $0x398] sm:$0xff]
          %326 = vst [vmem:[%s94 + $0x398] sm:$0xff] %v325
          %v327 = vld [vmem:[%s93 + $0x3a0] sm:$0xff]
          %328 = vst [vmem:[%s94 + $0x3a0] sm:$0xff] %v327
          %v329 = vld [vmem:[%s93 + $0x3a8] sm:$0xff]
          %330 = vst [vmem:[%s94 + $0x3a8] sm:$0xff] %v329
          %v331 = vld [vmem:[%s93 + $0x3b0] sm:$0xff]
          %332 = vst [vmem:[%s94 + $0x3b0] sm:$0xff] %v331
          %v333 = vld [vmem:[%s93 + $0x3b8] sm:$0xff]
          %334 = vst [vmem:[%s94 + $0x3b8] sm:$0xff] %v333
          %v335 = vld [vmem:[%s93 + $0x3c0] sm:$0xff]
          %336 = vst [vmem:[%s94 + $0x3c0] sm:$0xff] %v335
          %v337 = vld [vmem:[%s93 + $0x3c8] sm:$0xff]
          %338 = vst [vmem:[%s94 + $0x3c8] sm:$0xff] %v337
          %v339 = vld [vmem:[%s93 + $0x3d0] sm:$0xff]
          %340 = vst [vmem:[%s94 + $0x3d0] sm:$0xff] %v339
          %v341 = vld [vmem:[%s93 + $0x3d8] sm:$0xff]
          %342 = vst [vmem:[%s94 + $0x3d8] sm:$0xff] %v341
          %v343 = vld [vmem:[%s93 + $0x3e0] sm:$0xff]
          %344 = vst [vmem:[%s94 + $0x3e0] sm:$0xff] %v343
          %v345 = vld [vmem:[%s93 + $0x3e8] sm:$0xff]
          %346 = vst [vmem:[%s94 + $0x3e8] sm:$0xff] %v345
          %v347 = vld [vmem:[%s93 + $0x3f0] sm:$0xff]
          %348 = vst [vmem:[%s94 + $0x3f0] sm:$0xff] %v347
          %v349 = vld [vmem:[%s93 + $0x3f8] sm:$0xff]
          %350 = vst [vmem:[%s94 + $0x3f8] sm:$0xff] %v349
        $region97: #{hybrid_vision_forward.1} parent=91 // loop_footer
          %s92 = sadd.s32 1, %s88
        $region98: #{hybrid_vision_forward.1} parent=91 // loop_footer_branch
          %87 = sbr.rel target = $region94
        $region99: #{hybrid_vision_forward.1} parent=91 // loop_exit
          _
      $region92: #{hybrid_vision_forward.1} parent=76 // pred_fallthru
        _
      %p351 = pneg %p83
      // Predicated region
      $region100: #{hybrid_vision_forward.1} parent=76 // pred_check
        _
      $region101: #{hybrid_vision_forward.1} parent=76 // pred_check_branch
        %353 = sbr.rel (%p83) target = $region103
      $region102: #{hybrid_vision_forward.1} parent=76 // pred_region
        %s354 = sand.u32 1024, 7
      $region103: #{hybrid_vision_forward.1} parent=76 // pred_fallthru
        _
    $region77: #{hybrid_vision_forward.1} parent=1 // pred_fallthru
      _
    // Predicated region
    $region78: #{hybrid_vision_forward.1} parent=1 // pred_check
      %p67 = pneg %p63
    $region79: #{hybrid_vision_forward.1} parent=1 // pred_check_branch
      %69 = sbr.rel (%p67) target = $region81
    $region80: #{hybrid_vision_forward.1} parent=1 // pred_region
      %s70 = sshll.u32 1, 1024
      %s71 = ssub.s32 %s70, 1
      loop: start=0, step=1, limit=1
      $region82: #{hybrid_vision_forward.1} parent=80 // loop_pre_header
        _
      $region83: #{hybrid_vision_forward.1} parent=80 // loop_header
        %s73 = sphi 0, %s77
        %p74 = scmp.ge.s32.totalorder %s73, 1
        %s78 = sphi %s8, %s8
        %s79 = sphi [#allocation7], [#allocation7]
      $region84: #{hybrid_vision_forward.1} parent=80 // loop_header_branch
        %76 = sbr.rel (%p74) target = $region88
      $region85: #{hybrid_vision_forward.1} parent=80 // loop_body
        %v80 = vld [vmem:[%s78] sm:%s71]
        %81 = vst [vmem:[%s79] sm:%s71] %v80
      $region86: #{hybrid_vision_forward.1} parent=80 // loop_footer
        %s77 = sadd.s32 1, %s73
      $region87: #{hybrid_vision_forward.1} parent=80 // loop_footer_branch
        %72 = sbr.rel target = $region83
      $region88: #{hybrid_vision_forward.1} parent=80 // loop_exit
        _
    $region81: #{hybrid_vision_forward.1} parent=1 // pred_fallthru
      _
    // Predicated region
    $region104: #{hybrid_vision_forward.1} parent=1 // pred_check
      _
    $region105: #{hybrid_vision_forward.1} parent=1 // pred_check_branch
      %357 = sbr.rel (0) target = $region107
    $region106: #{hybrid_vision_forward.1} parent=1 // pred_region
      %358 = vsyncadd [#allocation8], 16384
    $region107: #{hybrid_vision_forward.1} parent=1 // pred_fallthru
      _
    %vm359 = vcmask 130048
    %360 = vst.msk [vmem:[#allocation3] sm:$0xff] %vm359, 0.0
    %361 = vst.msk [vmem:[#allocation3 + $0x8] sm:$0xff] %vm359, 0.0
    %362 = vst.msk [vmem:[#allocation3 + $0x10] sm:$0xff] %vm359, 0.0
    %363 = vst.msk [vmem:[#allocation3 + $0x18] sm:$0xff] %vm359, 0.0
    %364 = vst.msk [vmem:[#allocation3 + $0x20] sm:$0xff] %vm359, 0.0
    %365 = vst.msk [vmem:[#allocation3 + $0x28] sm:$0xff] %vm359, 0.0
    %366 = vst.msk [vmem:[#allocation3 + $0x30] sm:$0xff] %vm359, 0.0
    %367 = vst.msk [vmem:[#allocation3 + $0x38] sm:$0xff] %vm359, 0.0
    %368 = vst.msk [vmem:[#allocation3 + $0x40] sm:$0xff] %vm359, 0.0
    %369 = vst.msk [vmem:[#allocation3 + $0x48] sm:$0xff] %vm359, 0.0
    %370 = vst.msk [vmem:[#allocation3 + $0x50] sm:$0xff] %vm359, 0.0
    %371 = vst.msk [vmem:[#allocation3 + $0x58] sm:$0xff] %vm359, 0.0
    %372 = vst.msk [vmem:[#allocation3 + $0x60] sm:$0xff] %vm359, 0.0
    %373 = vst.msk [vmem:[#allocation3 + $0x68] sm:$0xff] %vm359, 0.0
    %374 = vst.msk [vmem:[#allocation3 + $0x70] sm:$0xff] %vm359, 0.0
    %375 = vst.msk [vmem:[#allocation3 + $0x78] sm:$0xff] %vm359, 0.0
    %376 = vst.msk [vmem:[#allocation3 + $0x80] sm:$0xff] %vm359, 0.0
    %377 = vst.msk [vmem:[#allocation3 + $0x88] sm:$0xff] %vm359, 0.0
    %378 = vst.msk [vmem:[#allocation3 + $0x90] sm:$0xff] %vm359, 0.0
    %379 = vst.msk [vmem:[#allocation3 + $0x98] sm:$0xff] %vm359, 0.0
    %380 = vst.msk [vmem:[#allocation3 + $0xa0] sm:$0xff] %vm359, 0.0
    %381 = vst.msk [vmem:[#allocation3 + $0xa8] sm:$0xff] %vm359, 0.0
    %382 = vst.msk [vmem:[#allocation3 + $0xb0] sm:$0xff] %vm359, 0.0
    %383 = vst.msk [vmem:[#allocation3 + $0xb8] sm:$0xff] %vm359, 0.0
    %384 = vst.msk [vmem:[#allocation3 + $0xc0] sm:$0xff] %vm359, 0.0
    %385 = vst.msk [vmem:[#allocation3 + $0xc8] sm:$0xff] %vm359, 0.0
    %386 = vst.msk [vmem:[#allocation3 + $0xd0] sm:$0xff] %vm359, 0.0
    %vm387 = vcmask 128000
    %388 = vst.msk [vmem:[#allocation3 + $0xd8] sm:$0x3f] %vm387, 0.0
    %vm389 = vcmask 261120
    %390 = vst.msk [vmem:[#allocation5] sm:$0xff] %vm389, 0.0
    %391 = vst.msk [vmem:[#allocation5 + $0x8] sm:$0xff] %vm389, 0.0
    %392 = vst.msk [vmem:[#allocation5 + $0x10] sm:$0xff] %vm389, 0.0
    %393 = vst.msk [vmem:[#allocation5 + $0x18] sm:$0xff] %vm389, 0.0
    %394 = vst.msk [vmem:[#allocation5 + $0x20] sm:$0xff] %vm389, 0.0
    %395 = vst.msk [vmem:[#allocation5 + $0x28] sm:$0xff] %vm389, 0.0
    %396 = vst.msk [vmem:[#allocation5 + $0x30] sm:$0xff] %vm389, 0.0
    %397 = vst.msk [vmem:[#allocation5 + $0x38] sm:$0xff] %vm389, 0.0
    %398 = vst.msk [vmem:[#allocation5 + $0x40] sm:$0xff] %vm389, 0.0
    %399 = vst.msk [vmem:[#allocation5 + $0x48] sm:$0xff] %vm389, 0.0
    %vm400 = vcmask 259072
    %401 = vst.msk [vmem:[#allocation5 + $0x50] sm:$0x3f] %vm400, 0.0
    %v402 = vld [vmem:[%s0] sm:$0xf]
    %v403 = vld [vmem:[%s0 + $0x4] sm:$0xf]
    %v404 = vld [vmem:[%s0 + $0x8] sm:$0xf]
    %v405 = vld [vmem:[%s0 + $0xc] sm:$0xf]
    %v406 = vld [vmem:[%s0 + $0x10] sm:$0xf]
    %v407 = vld [vmem:[%s0 + $0x14] sm:$0xf]
    %v408 = vld [vmem:[%s0 + $0x18] sm:$0xf]
    %v409 = vld [vmem:[%s0 + $0x1c] sm:$0xf]
    %v410 = vld [vmem:[%s0 + $0x20] sm:$0xf]
    %v411 = vld [vmem:[%s0 + $0x24] sm:$0xf]
    %v412 = vld [vmem:[%s0 + $0x28] sm:$0xf]
    %v413 = vld [vmem:[%s0 + $0x2c] sm:$0xf]
    %v414 = vld [vmem:[%s0 + $0x30] sm:$0xf]
    %v415 = vld [vmem:[%s0 + $0x34] sm:$0xf]
    %v416 = vld [vmem:[%s0 + $0x38] sm:$0xf]
    %v417 = vld [vmem:[%s0 + $0x3c] sm:$0xf]
    %v418 = vld [vmem:[%s0 + $0x40] sm:$0xf]
    %v419 = vld [vmem:[%s0 + $0x44] sm:$0xf]
    %v420 = vld [vmem:[%s0 + $0x48] sm:$0xf]
    %v421 = vld [vmem:[%s0 + $0x4c] sm:$0xf]
    %v422 = vld [vmem:[%s0 + $0x50] sm:$0xf]
    %v423 = vld [vmem:[%s0 + $0x54] sm:$0xf]
    %v424 = vld [vmem:[%s0 + $0x58] sm:$0xf]
    %v425 = vld [vmem:[%s0 + $0x5c] sm:$0xf]
    %v426 = vld [vmem:[%s0 + $0x60] sm:$0xf]
    %v427 = vld [vmem:[%s0 + $0x64] sm:$0xf]
    %v428 = vld [vmem:[%s0 + $0x68] sm:$0xf]
    %v429 = vld [vmem:[%s0 + $0x6c] sm:$0xf]
    %v430 = vld [vmem:[%s0 + $0x70] sm:$0xf]
    %v431 = vld [vmem:[%s0 + $0x74] sm:$0xf]
    %v432 = vld [vmem:[%s0 + $0x78] sm:$0xf]
    %v433 = vld [vmem:[%s0 + $0x7c] sm:$0xf]
    %v434 = vld [vmem:[%s0 + $0x80] sm:$0xf]
    %v435 = vld [vmem:[%s0 + $0x84] sm:$0xf]
    %v436 = vld [vmem:[%s0 + $0x88] sm:$0xf]
    %v437 = vld [vmem:[%s0 + $0x8c] sm:$0xf]
    %v438 = vld [vmem:[%s0 + $0x90] sm:$0xf]
    %v439 = vld [vmem:[%s0 + $0x94] sm:$0xf]
    %v440 = vld [vmem:[%s0 + $0x98] sm:$0xf]
    %v441 = vld [vmem:[%s0 + $0x9c] sm:$0xf]
    %v442 = vld [vmem:[%s0 + $0xa0] sm:$0xf]
    %v443 = vld [vmem:[%s0 + $0xa4] sm:$0xf]
    %v444 = vld [vmem:[%s0 + $0xa8] sm:$0xf]
    %v445 = vld [vmem:[%s0 + $0xac] sm:$0xf]
    %v446 = vld [vmem:[%s0 + $0xb0] sm:$0xf]
    %v447 = vld [vmem:[%s0 + $0xb4] sm:$0xf]
    %v448 = vld [vmem:[%s0 + $0xb8] sm:$0xf]
    %v449 = vld [vmem:[%s0 + $0xbc] sm:$0xf]
    %v450 = vld [vmem:[%s0 + $0xc0] sm:$0xf]
    %v451 = vld [vmem:[%s0 + $0xc4] sm:$0xf]
    %v452 = vld [vmem:[%s0 + $0xc8] sm:$0xf]
    %v453 = vld [vmem:[%s0 + $0xcc] sm:$0xf]
    %v454 = vld [vmem:[%s0 + $0xd0] sm:$0xf]
    %v455 = vld [vmem:[%s0 + $0xd4] sm:$0xf]
    %v456 = vld [vmem:[%s0 + $0xd8] sm:$0xf]
    %v457 = vld [vmem:[%s0 + $0xdc] sm:$0xf]
    %v458 = vld [vmem:[%s0 + $0xe0] sm:$0xf]
    %v459 = vld [vmem:[%s0 + $0xe4] sm:$0xf]
    %v460 = vld [vmem:[%s0 + $0xe8] sm:$0xf]
    %v461 = vld [vmem:[%s0 + $0xec] sm:$0xf]
    %v462 = vld [vmem:[%s0 + $0xf0] sm:$0xf]
    %v463 = vld [vmem:[%s0 + $0xf4] sm:$0xf]
    %v464 = vld [vmem:[%s0 + $0xf8] sm:$0xf]
    %v465 = vld [vmem:[%s0 + $0xfc] sm:$0xf]
    %v466 = vld [vmem:[%s1] sm:$0xf]
    %v467 = vld [vmem:[%s1 + $0x4] sm:$0xf]
    %v468 = vld [vmem:[%s1 + $0x8] sm:$0xf]
    %v469 = vld [vmem:[%s1 + $0xc] sm:$0x3]
    %v470 = vld [vmem:[%s2] sm:$0x1]
    %v472 = vlaneseq
    %v473 = vshrl.u32 %v472, 7
    %v474 = vsub.s32 0, %v473
    %v475 = vrot.slane %v470, %v474
    %v541 = vunpack.c.l.b16 %v402
    %v542 = vunpack.c.l.b16 %v403
    %v543 = vunpack.c.l.b16 %v404
    %v544 = vunpack.c.l.b16 %v405
    %v545 = vunpack.c.l.b16 %v406
    %v546 = vunpack.c.l.b16 %v407
    %v547 = vunpack.c.l.b16 %v408
    %v548 = vunpack.c.l.b16 %v409
    %v549 = vunpack.c.l.b16 %v410
    %v550 = vunpack.c.l.b16 %v411
    %v551 = vunpack.c.l.b16 %v412
    %v552 = vunpack.c.l.b16 %v413
    %v553 = vunpack.c.l.b16 %v414
    %v554 = vunpack.c.l.b16 %v415
    %v555 = vunpack.c.l.b16 %v416
    %v556 = vunpack.c.l.b16 %v417
    %v557 = vunpack.c.l.b16 %v418
    %v558 = vunpack.c.l.b16 %v419
    %v559 = vunpack.c.l.b16 %v420
    %v560 = vunpack.c.l.b16 %v421
    %v561 = vunpack.c.l.b16 %v422
    %v562 = vunpack.c.l.b16 %v423
    %v563 = vunpack.c.l.b16 %v424
    %v564 = vunpack.c.l.b16 %v425
    %v565 = vunpack.c.l.b16 %v426
    %v566 = vunpack.c.l.b16 %v427
    %v567 = vunpack.c.l.b16 %v428
    %v568 = vunpack.c.l.b16 %v429
    %v569 = vunpack.c.l.b16 %v430
    %v570 = vunpack.c.l.b16 %v431
    %v571 = vunpack.c.l.b16 %v432
    %v572 = vunpack.c.l.b16 %v433
    %v573 = vunpack.c.l.b16 %v434
    %v574 = vunpack.c.l.b16 %v435
    %v575 = vunpack.c.l.b16 %v436
    %v576 = vunpack.c.l.b16 %v437
    %v577 = vunpack.c.l.b16 %v438
    %v578 = vunpack.c.l.b16 %v439
    %v579 = vunpack.c.l.b16 %v440
    %v580 = vunpack.c.l.b16 %v441
    %v581 = vunpack.c.l.b16 %v442
    %v582 = vunpack.c.l.b16 %v443
    %v583 = vunpack.c.l.b16 %v444
    %v584 = vunpack.c.l.b16 %v445
    %v585 = vunpack.c.l.b16 %v446
    %v586 = vunpack.c.l.b16 %v447
    %v587 = vunpack.c.l.b16 %v448
    %v588 = vunpack.c.l.b16 %v449
    %v589 = vunpack.c.l.b16 %v450
    %v590 = vunpack.c.l.b16 %v451
    %v591 = vunpack.c.l.b16 %v452
    %v592 = vunpack.c.l.b16 %v453
    %v593 = vunpack.c.l.b16 %v454
    %v594 = vunpack.c.l.b16 %v455
    %v595 = vunpack.c.l.b16 %v456
    %v596 = vunpack.c.l.b16 %v457
    %v597 = vunpack.c.l.b16 %v458
    %v598 = vunpack.c.l.b16 %v459
    %v599 = vunpack.c.l.b16 %v460
    %v600 = vunpack.c.l.b16 %v461
    %v601 = vunpack.c.l.b16 %v462
    %v602 = vunpack.c.l.b16 %v463
    %v603 = vunpack.c.l.b16 %v464
    %v604 = vunpack.c.l.b16 %v465
    %v605 = vpack.c.b16 %v542, %v541
    %v606 = vpack.c.b16 %v544, %v543
    %v607 = vpack.c.b16 %v546, %v545
    %v608 = vpack.c.b16 %v548, %v547
    %v609 = vpack.c.b16 %v550, %v549
    %v610 = vpack.c.b16 %v552, %v551
    %v611 = vpack.c.b16 %v554, %v553
    %v612 = vpack.c.b16 %v556, %v555
    %v613 = vpack.c.b16 %v558, %v557
    %v614 = vpack.c.b16 %v560, %v559
    %v615 = vpack.c.b16 %v562, %v561
    %v616 = vpack.c.b16 %v564, %v563
    %v617 = vpack.c.b16 %v566, %v565
    %v618 = vpack.c.b16 %v568, %v567
    %v619 = vpack.c.b16 %v570, %v569
    %v620 = vpack.c.b16 %v572, %v571
    %v621 = vpack.c.b16 %v574, %v573
    %v622 = vpack.c.b16 %v576, %v575
    %v623 = vpack.c.b16 %v578, %v577
    %v624 = vpack.c.b16 %v580, %v579
    %v625 = vpack.c.b16 %v582, %v581
    %v626 = vpack.c.b16 %v584, %v583
    %v627 = vpack.c.b16 %v586, %v585
    %v628 = vpack.c.b16 %v588, %v587
    %v629 = vpack.c.b16 %v590, %v589
    %v630 = vpack.c.b16 %v592, %v591
    %v631 = vpack.c.b16 %v594, %v593
    %v632 = vpack.c.b16 %v596, %v595
    %v633 = vpack.c.b16 %v598, %v597
    %v634 = vpack.c.b16 %v600, %v599
    %v635 = vpack.c.b16 %v602, %v601
    %v636 = vpack.c.b16 %v604, %v603
    %v641 = vunpack.c.l.b16 %v466
    %v642 = vunpack.c.l.b16 %v467
    %v643 = vunpack.c.l.b16 %v468
    %v644 = vunpack.c.l.b16 %v469
    %v645 = vpack.c.b16 %v642, %v641
    %v646 = vpack.c.b16 %v644, %v643
    %vm648 = vcmask 220160
    %v650 = vsel %vm648, %v605, 0
    %v653 = vsel %vm648, %v606, 0
    %v656 = vsel %vm648, %v607, 0
    %v659 = vsel %vm648, %v608, 0
    %v662 = vsel %vm648, %v609, 0
    %v665 = vsel %vm648, %v610, 0
    %v668 = vsel %vm648, %v611, 0
    %v671 = vsel %vm648, %v612, 0
    %v674 = vsel %vm648, %v613, 0
    %v677 = vsel %vm648, %v614, 0
    %v680 = vsel %vm648, %v615, 0
    %v683 = vsel %vm648, %v616, 0
    %v686 = vsel %vm648, %v617, 0
    %v689 = vsel %vm648, %v618, 0
    %v692 = vsel %vm648, %v619, 0
    %v695 = vsel %vm648, %v620, 0
    %v698 = vsel %vm648, %v621, 0
    %v701 = vsel %vm648, %v622, 0
    %v704 = vsel %vm648, %v623, 0
    %v707 = vsel %vm648, %v624, 0
    %v710 = vsel %vm648, %v625, 0
    %v713 = vsel %vm648, %v626, 0
    %v716 = vsel %vm648, %v627, 0
    %v719 = vsel %vm648, %v628, 0
    %v722 = vsel %vm648, %v629, 0
    %v725 = vsel %vm648, %v630, 0
    %v728 = vsel %vm648, %v631, 0
    %v731 = vsel %vm648, %v632, 0
    %v734 = vsel %vm648, %v633, 0
    %v737 = vsel %vm648, %v634, 0
    %v740 = vsel %vm648, %v635, 0
    %v743 = vsel %vm648, %v636, 0
    %vm745 = vcmask 1044480
    %vm746 = vcmask 1045504
    %v747 = vsel %vm745, 4294967295, 65535
    %v748 = vsel %vm746, %v747, 0
    %v750 = vand.u32 %v646, %v748
    %752 = vmatprep.subr.bf16.mxu0 0
    %753 = vmatpush1.bf16.msra.mxu0 0
    %754 = vmatprep.subr.bf16.mxu0 0
    %755 = vmatpush1.bf16.msra.mxu0 0
    %756 = vmatprep.subr.bf16.mxu0 0
    %757 = vmatpush1.bf16.msra.mxu0 0
    %758 = vmatprep.subr.bf16.mxu0 0
    %759 = vmatpush1.bf16.msra.mxu0 0
    %760 = vmatprep.subr.bf16.mxu0 0
    %761 = vmatpush1.bf16.msra.mxu0 0
    %762 = vmatprep.subr.bf16.mxu0 0
    %763 = vmatpush1.bf16.msra.mxu0 0
    %764 = vmatprep.subr.bf16.mxu0 0
    %765 = vmatpush1.bf16.msra.mxu0 %v750
    %766 = vmatprep.subr.bf16.mxu0 0
    %767 = vmatpush1.bf16.msra.mxu0 %v645
    %768 = vmatprep.subr.bf16.mxu0 0
    %769 = vmatpush2.bf16.msra.mxu0 0
    %770 = vmatprep.subr.bf16.mxu0 0
    %771 = vmatpush2.bf16.msra.mxu0 0
    %772 = vmatprep.subr.bf16.mxu0 0
    %773 = vmatpush2.bf16.msra.mxu0 0
    %774 = vmatprep.subr.bf16.mxu0 0
    %775 = vmatpush2.bf16.msra.mxu0 0
    %776 = vmatprep.subr.bf16.mxu0 0
    %777 = vmatpush2.bf16.msra.mxu0 0
    %778 = vmatprep.subr.bf16.mxu0 0
    %779 = vmatpush2.bf16.msra.mxu0 0
    %780 = vmatprep.subr.bf16.mxu0 0
    %781 = vmatpush2.bf16.msra.mxu0 0
    %782 = vmatprep.subr.bf16.mxu0 0
    %783 = vmatpush2.bf16.msra.mxu0 0
    %784 = vmatprep.mubr.bf16.mxu0 0
    %785 = vmatmul.mubr.bf16.gmra.mxu0 %v650
    %v786 = vpop.f32.mrf.mxu0
    %v787 = vadd.f32 %v475, %v786
    %v788 = vpop.f32.mrf.mxu0
    %v789 = vpop.f32.mrf.mxu0
    %v790 = vadd.f32 %v475, %v789
    %v791 = vpop.f32.mrf.mxu0
    %792 = vmatprep.mubr.bf16.mxu0 0
    %793 = vmatmul.mubr.bf16.gmra.mxu0 %v653
    %v794 = vpop.f32.mrf.mxu0
    %v795 = vadd.f32 %v475, %v794
    %v796 = vpop.f32.mrf.mxu0
    %v797 = vpop.f32.mrf.mxu0
    %v798 = vadd.f32 %v475, %v797
    %v799 = vpop.f32.mrf.mxu0
    %800 = vmatprep.mubr.bf16.mxu0 0
    %801 = vmatmul.mubr.bf16.gmra.mxu0 %v656
    %v802 = vpop.f32.mrf.mxu0
    %v803 = vadd.f32 %v475, %v802
    %v804 = vpop.f32.mrf.mxu0
    %v805 = vpop.f32.mrf.mxu0
    %v806 = vadd.f32 %v475, %v805
    %v807 = vpop.f32.mrf.mxu0
    %808 = vmatprep.mubr.bf16.mxu0 0
    %809 = vmatmul.mubr.bf16.gmra.mxu0 %v659
    %v810 = vpop.f32.mrf.mxu0
    %v811 = vadd.f32 %v475, %v810
    %v812 = vpop.f32.mrf.mxu0
    %v813 = vpop.f32.mrf.mxu0
    %v814 = vadd.f32 %v475, %v813
    %v815 = vpop.f32.mrf.mxu0
    %816 = vmatprep.mubr.bf16.mxu0 0
    %817 = vmatmul.mubr.bf16.gmra.mxu0 %v662
    %v818 = vpop.f32.mrf.mxu0
    %v819 = vadd.f32 %v475, %v818
    %v820 = vpop.f32.mrf.mxu0
    %v821 = vpop.f32.mrf.mxu0
    %v822 = vadd.f32 %v475, %v821
    %v823 = vpop.f32.mrf.mxu0
    %824 = vmatprep.mubr.bf16.mxu0 0
    %825 = vmatmul.mubr.bf16.gmra.mxu0 %v665
    %v826 = vpop.f32.mrf.mxu0
    %v827 = vadd.f32 %v475, %v826
    %v828 = vpop.f32.mrf.mxu0
    %v829 = vpop.f32.mrf.mxu0
    %v830 = vadd.f32 %v475, %v829
    %v831 = vpop.f32.mrf.mxu0
    %832 = vmatprep.mubr.bf16.mxu0 0
    %833 = vmatmul.mubr.bf16.gmra.mxu0 %v668
    %v834 = vpop.f32.mrf.mxu0
    %v835 = vadd.f32 %v475, %v834
    %v836 = vpop.f32.mrf.mxu0
    %v837 = vpop.f32.mrf.mxu0
    %v838 = vadd.f32 %v475, %v837
    %v839 = vpop.f32.mrf.mxu0
    %840 = vmatprep.mubr.bf16.mxu0 0
    %841 = vmatmul.mubr.bf16.gmra.mxu0 %v671
    %v842 = vpop.f32.mrf.mxu0
    %v843 = vadd.f32 %v475, %v842
    %v844 = vpop.f32.mrf.mxu0
    %v845 = vpop.f32.mrf.mxu0
    %v846 = vadd.f32 %v475, %v845
    %v847 = vpop.f32.mrf.mxu0
    %848 = vmatprep.mubr.bf16.mxu0 0
    %849 = vmatmul.mubr.bf16.gmra.mxu0 %v674
    %v850 = vpop.f32.mrf.mxu0
    %v851 = vadd.f32 %v475, %v850
    %v852 = vpop.f32.mrf.mxu0
    %v853 = vpop.f32.mrf.mxu0
    %v854 = vadd.f32 %v475, %v853
    %v855 = vpop.f32.mrf.mxu0
    %856 = vmatprep.mubr.bf16.mxu0 0
    %857 = vmatmul.mubr.bf16.gmra.mxu0 %v677
    %v858 = vpop.f32.mrf.mxu0
    %v859 = vadd.f32 %v475, %v858
    %v860 = vpop.f32.mrf.mxu0
    %v861 = vpop.f32.mrf.mxu0
    %v862 = vadd.f32 %v475, %v861
    %v863 = vpop.f32.mrf.mxu0
    %864 = vmatprep.mubr.bf16.mxu0 0
    %865 = vmatmul.mubr.bf16.gmra.mxu0 %v680
    %v866 = vpop.f32.mrf.mxu0
    %v867 = vadd.f32 %v475, %v866
    %v868 = vpop.f32.mrf.mxu0
    %v869 = vpop.f32.mrf.mxu0
    %v870 = vadd.f32 %v475, %v869
    %v871 = vpop.f32.mrf.mxu0
    %872 = vmatprep.mubr.bf16.mxu0 0
    %873 = vmatmul.mubr.bf16.gmra.mxu0 %v683
    %v874 = vpop.f32.mrf.mxu0
    %v875 = vadd.f32 %v475, %v874
    %v876 = vpop.f32.mrf.mxu0
    %v877 = vpop.f32.mrf.mxu0
    %v878 = vadd.f32 %v475, %v877
    %v879 = vpop.f32.mrf.mxu0
    %880 = vmatprep.mubr.bf16.mxu0 0
    %881 = vmatmul.mubr.bf16.gmra.mxu0 %v686
    %v882 = vpop.f32.mrf.mxu0
    %v883 = vadd.f32 %v475, %v882
    %v884 = vpop.f32.mrf.mxu0
    %v885 = vpop.f32.mrf.mxu0
    %v886 = vadd.f32 %v475, %v885
    %v887 = vpop.f32.mrf.mxu0
    %888 = vmatprep.mubr.bf16.mxu0 0
    %889 = vmatmul.mubr.bf16.gmra.mxu0 %v689
    %v890 = vpop.f32.mrf.mxu0
    %v891 = vadd.f32 %v475, %v890
    %v892 = vpop.f32.mrf.mxu0
    %v893 = vpop.f32.mrf.mxu0
    %v894 = vadd.f32 %v475, %v893
    %v895 = vpop.f32.mrf.mxu0
    %896 = vmatprep.mubr.bf16.mxu0 0
    %897 = vmatmul.mubr.bf16.gmra.mxu0 %v692
    %v898 = vpop.f32.mrf.mxu0
    %v899 = vadd.f32 %v475, %v898
    %v900 = vpop.f32.mrf.mxu0
    %v901 = vpop.f32.mrf.mxu0
    %v902 = vadd.f32 %v475, %v901
    %v903 = vpop.f32.mrf.mxu0
    %904 = vmatprep.mubr.bf16.mxu0 0
    %905 = vmatmul.mubr.bf16.gmra.mxu0 %v695
    %v906 = vpop.f32.mrf.mxu0
    %v907 = vadd.f32 %v475, %v906
    %v908 = vpop.f32.mrf.mxu0
    %v909 = vpop.f32.mrf.mxu0
    %v910 = vadd.f32 %v475, %v909
    %v911 = vpop.f32.mrf.mxu0
    %912 = vmatprep.mubr.bf16.mxu0 0
    %913 = vmatmul.mubr.bf16.gmra.mxu0 %v698
    %v914 = vpop.f32.mrf.mxu0
    %v915 = vadd.f32 %v475, %v914
    %v916 = vpop.f32.mrf.mxu0
    %v917 = vpop.f32.mrf.mxu0
    %v918 = vadd.f32 %v475, %v917
    %v919 = vpop.f32.mrf.mxu0
    %920 = vmatprep.mubr.bf16.mxu0 0
    %921 = vmatmul.mubr.bf16.gmra.mxu0 %v701
    %v922 = vpop.f32.mrf.mxu0
    %v923 = vadd.f32 %v475, %v922
    %v924 = vpop.f32.mrf.mxu0
    %v925 = vpop.f32.mrf.mxu0
    %v926 = vadd.f32 %v475, %v925
    %v927 = vpop.f32.mrf.mxu0
    %928 = vmatprep.mubr.bf16.mxu0 0
    %929 = vmatmul.mubr.bf16.gmra.mxu0 %v704
    %v930 = vpop.f32.mrf.mxu0
    %v931 = vadd.f32 %v475, %v930
    %v932 = vpop.f32.mrf.mxu0
    %v933 = vpop.f32.mrf.mxu0
    %v934 = vadd.f32 %v475, %v933
    %v935 = vpop.f32.mrf.mxu0
    %936 = vmatprep.mubr.bf16.mxu0 0
    %937 = vmatmul.mubr.bf16.gmra.mxu0 %v707
    %v938 = vpop.f32.mrf.mxu0
    %v939 = vadd.f32 %v475, %v938
    %v940 = vpop.f32.mrf.mxu0
    %v941 = vpop.f32.mrf.mxu0
    %v942 = vadd.f32 %v475, %v941
    %v943 = vpop.f32.mrf.mxu0
    %944 = vmatprep.mubr.bf16.mxu0 0
    %945 = vmatmul.mubr.bf16.gmra.mxu0 %v710
    %v946 = vpop.f32.mrf.mxu0
    %v947 = vadd.f32 %v475, %v946
    %v948 = vpop.f32.mrf.mxu0
    %v949 = vpop.f32.mrf.mxu0
    %v950 = vadd.f32 %v475, %v949
    %v951 = vpop.f32.mrf.mxu0
    %952 = vmatprep.mubr.bf16.mxu0 0
    %953 = vmatmul.mubr.bf16.gmra.mxu0 %v713
    %v954 = vpop.f32.mrf.mxu0
    %v955 = vadd.f32 %v475, %v954
    %v956 = vpop.f32.mrf.mxu0
    %v957 = vpop.f32.mrf.mxu0
    %v958 = vadd.f32 %v475, %v957
    %v959 = vpop.f32.mrf.mxu0
    %960 = vmatprep.mubr.bf16.mxu0 0
    %961 = vmatmul.mubr.bf16.gmra.mxu0 %v716
    %v962 = vpop.f32.mrf.mxu0
    %v963 = vadd.f32 %v475, %v962
    %v964 = vpop.f32.mrf.mxu0
    %v965 = vpop.f32.mrf.mxu0
    %v966 = vadd.f32 %v475, %v965
    %v967 = vpop.f32.mrf.mxu0
    %968 = vmatprep.mubr.bf16.mxu0 0
    %969 = vmatmul.mubr.bf16.gmra.mxu0 %v719
    %v970 = vpop.f32.mrf.mxu0
    %v971 = vadd.f32 %v475, %v970
    %v972 = vpop.f32.mrf.mxu0
    %v973 = vpop.f32.mrf.mxu0
    %v974 = vadd.f32 %v475, %v973
    %v975 = vpop.f32.mrf.mxu0
    %976 = vmatprep.mubr.bf16.mxu0 0
    %977 = vmatmul.mubr.bf16.gmra.mxu0 %v722
    %v978 = vpop.f32.mrf.mxu0
    %v979 = vadd.f32 %v475, %v978
    %v980 = vpop.f32.mrf.mxu0
    %v981 = vpop.f32.mrf.mxu0
    %v982 = vadd.f32 %v475, %v981
    %v983 = vpop.f32.mrf.mxu0
    %984 = vmatprep.mubr.bf16.mxu0 0
    %985 = vmatmul.mubr.bf16.gmra.mxu0 %v725
    %v986 = vpop.f32.mrf.mxu0
    %v987 = vadd.f32 %v475, %v986
    %v988 = vpop.f32.mrf.mxu0
    %v989 = vpop.f32.mrf.mxu0
    %v990 = vadd.f32 %v475, %v989
    %v991 = vpop.f32.mrf.mxu0
    %992 = vmatprep.mubr.bf16.mxu0 0
    %993 = vmatmul.mubr.bf16.gmra.mxu0 %v728
    %v994 = vpop.f32.mrf.mxu0
    %v995 = vadd.f32 %v475, %v994
    %v996 = vpop.f32.mrf.mxu0
    %v997 = vpop.f32.mrf.mxu0
    %v998 = vadd.f32 %v475, %v997
    %v999 = vpop.f32.mrf.mxu0
    %1000 = vmatprep.mubr.bf16.mxu0 0
    %1001 = vmatmul.mubr.bf16.gmra.mxu0 %v731
    %v1002 = vpop.f32.mrf.mxu0
    %v1003 = vadd.f32 %v475, %v1002
    %v1004 = vpop.f32.mrf.mxu0
    %v1005 = vpop.f32.mrf.mxu0
    %v1006 = vadd.f32 %v475, %v1005
    %v1007 = vpop.f32.mrf.mxu0
    %1008 = vmatprep.mubr.bf16.mxu0 0
    %1009 = vmatmul.mubr.bf16.gmra.mxu0 %v734
    %v1010 = vpop.f32.mrf.mxu0
    %v1011 = vadd.f32 %v475, %v1010
    %v1012 = vpop.f32.mrf.mxu0
    %v1013 = vpop.f32.mrf.mxu0
    %v1014 = vadd.f32 %v475, %v1013
    %v1015 = vpop.f32.mrf.mxu0
    %1016 = vmatprep.mubr.bf16.mxu0 0
    %1017 = vmatmul.mubr.bf16.gmra.mxu0 %v737
    %v1018 = vpop.f32.mrf.mxu0
    %v1019 = vadd.f32 %v475, %v1018
    %v1020 = vpop.f32.mrf.mxu0
    %v1021 = vpop.f32.mrf.mxu0
    %v1022 = vadd.f32 %v475, %v1021
    %v1023 = vpop.f32.mrf.mxu0
    %1024 = vmatprep.mubr.bf16.mxu0 0
    %1025 = vmatmul.mubr.bf16.gmra.mxu0 %v740
    %v1026 = vpop.f32.mrf.mxu0
    %v1027 = vadd.f32 %v475, %v1026
    %v1028 = vpop.f32.mrf.mxu0
    %v1029 = vpop.f32.mrf.mxu0
    %v1030 = vadd.f32 %v475, %v1029
    %v1031 = vpop.f32.mrf.mxu0
    %1032 = vmatprep.mubr.bf16.mxu0 0
    %1033 = vmatmul.mubr.bf16.gmra.mxu0 %v743
    %v1034 = vpop.f32.mrf.mxu0
    %v1035 = vadd.f32 %v475, %v1034
    %v1036 = vpop.f32.mrf.mxu0
    %v1037 = vpop.f32.mrf.mxu0
    %v1038 = vadd.f32 %v475, %v1037
    %v1039 = vpop.f32.mrf.mxu0
    %1040 = vdwg.mxu0
    %v1041 = vmax.f32 %v787, 0.0
    %v1042 = vmax.f32 %v790, 0.0
    %v1043 = vmax.f32 %v795, 0.0
    %v1044 = vmax.f32 %v798, 0.0
    %v1045 = vmax.f32 %v803, 0.0
    %v1046 = vmax.f32 %v806, 0.0
    %v1047 = vmax.f32 %v811, 0.0
    %v1048 = vmax.f32 %v814, 0.0
    %v1049 = vmax.f32 %v819, 0.0
    %v1050 = vmax.f32 %v822, 0.0
    %v1051 = vmax.f32 %v827, 0.0
    %v1052 = vmax.f32 %v830, 0.0
    %v1053 = vmax.f32 %v835, 0.0
    %v1054 = vmax.f32 %v838, 0.0
    %v1055 = vmax.f32 %v843, 0.0
    %v1056 = vmax.f32 %v846, 0.0
    %v1057 = vmax.f32 %v851, 0.0
    %v1058 = vmax.f32 %v854, 0.0
    %v1059 = vmax.f32 %v859, 0.0
    %v1060 = vmax.f32 %v862, 0.0
    %v1061 = vmax.f32 %v867, 0.0
    %v1062 = vmax.f32 %v870, 0.0
    %v1063 = vmax.f32 %v875, 0.0
    %v1064 = vmax.f32 %v878, 0.0
    %v1065 = vmax.f32 %v883, 0.0
    %v1066 = vmax.f32 %v886, 0.0
    %v1067 = vmax.f32 %v891, 0.0
    %v1068 = vmax.f32 %v894, 0.0
    %v1069 = vmax.f32 %v899, 0.0
    %v1070 = vmax.f32 %v902, 0.0
    %v1071 = vmax.f32 %v907, 0.0
    %v1072 = vmax.f32 %v910, 0.0
    %v1073 = vmax.f32 %v915, 0.0
    %v1074 = vmax.f32 %v918, 0.0
    %v1075 = vmax.f32 %v923, 0.0
    %v1076 = vmax.f32 %v926, 0.0
    %v1077 = vmax.f32 %v931, 0.0
    %v1078 = vmax.f32 %v934, 0.0
    %v1079 = vmax.f32 %v939, 0.0
    %v1080 = vmax.f32 %v942, 0.0
    %v1081 = vmax.f32 %v947, 0.0
    %v1082 = vmax.f32 %v950, 0.0
    %v1083 = vmax.f32 %v955, 0.0
    %v1084 = vmax.f32 %v958, 0.0
    %v1085 = vmax.f32 %v963, 0.0
    %v1086 = vmax.f32 %v966, 0.0
    %v1087 = vmax.f32 %v971, 0.0
    %v1088 = vmax.f32 %v974, 0.0
    %v1089 = vmax.f32 %v979, 0.0
    %v1090 = vmax.f32 %v982, 0.0
    %v1091 = vmax.f32 %v987, 0.0
    %v1092 = vmax.f32 %v990, 0.0
    %v1093 = vmax.f32 %v995, 0.0
    %v1094 = vmax.f32 %v998, 0.0
    %v1095 = vmax.f32 %v1003, 0.0
    %v1096 = vmax.f32 %v1006, 0.0
    %v1097 = vmax.f32 %v1011, 0.0
    %v1098 = vmax.f32 %v1014, 0.0
    %v1099 = vmax.f32 %v1019, 0.0
    %v1100 = vmax.f32 %v1022, 0.0
    %v1101 = vmax.f32 %v1027, 0.0
    %v1102 = vmax.f32 %v1030, 0.0
    %v1103 = vmax.f32 %v1035, 0.0
    %v1104 = vmax.f32 %v1038, 0.0
    %1105 = vst.msk [vmem:[#allocation2] sm:$0xff] %vm359, %v1041
    %1106 = vst.msk [vmem:[#allocation2 + $0x8] sm:$0xff] %vm359, %v1042
    %1107 = vst.msk [vmem:[#allocation2 + $0x10] sm:$0xff] %vm359, %v1043
    %1108 = vst.msk [vmem:[#allocation2 + $0x18] sm:$0xff] %vm359, %v1044
    %1109 = vst.msk [vmem:[#allocation2 + $0x20] sm:$0xff] %vm359, %v1045
    %1110 = vst.msk [vmem:[#allocation2 + $0x28] sm:$0xff] %vm359, %v1046
    %1111 = vst.msk [vmem:[#allocation2 + $0x30] sm:$0xff] %vm359, %v1047
    %1112 = vst.msk [vmem:[#allocation2 + $0x38] sm:$0xff] %vm359, %v1048
    %1113 = vst.msk [vmem:[#allocation2 + $0x40] sm:$0xff] %vm359, %v1049
    %1114 = vst.msk [vmem:[#allocation2 + $0x48] sm:$0xff] %vm359, %v1050
    %1115 = vst.msk [vmem:[#allocation2 + $0x50] sm:$0xff] %vm359, %v1051
    %1116 = vst.msk [vmem:[#allocation2 + $0x58] sm:$0xff] %vm359, %v1052
    %1117 = vst.msk [vmem:[#allocation2 + $0x60] sm:$0xff] %vm359, %v1053
    %1118 = vst.msk [vmem:[#allocation2 + $0x68] sm:$0xff] %vm359, %v1054
    %1119 = vst.msk [vmem:[#allocation2 + $0x70] sm:$0xff] %vm359, %v1055
    %1120 = vst.msk [vmem:[#allocation2 + $0x78] sm:$0xff] %vm359, %v1056
    %1121 = vst.msk [vmem:[#allocation2 + $0x80] sm:$0xff] %vm359, %v1057
    %1122 = vst.msk [vmem:[#allocation2 + $0x88] sm:$0xff] %vm359, %v1058
    %1123 = vst.msk [vmem:[#allocation2 + $0x90] sm:$0xff] %vm359, %v1059
    %1124 = vst.msk [vmem:[#allocation2 + $0x98] sm:$0xff] %vm359, %v1060
    %1125 = vst.msk [vmem:[#allocation2 + $0xa0] sm:$0xff] %vm359, %v1061
    %1126 = vst.msk [vmem:[#allocation2 + $0xa8] sm:$0xff] %vm359, %v1062
    %1127 = vst.msk [vmem:[#allocation2 + $0xb0] sm:$0xff] %vm359, %v1063
    %1128 = vst.msk [vmem:[#allocation2 + $0xb8] sm:$0xff] %vm359, %v1064
    %1129 = vst.msk [vmem:[#allocation2 + $0xc0] sm:$0xff] %vm359, %v1065
    %1130 = vst.msk [vmem:[#allocation2 + $0xc8] sm:$0xff] %vm359, %v1066
    %1131 = vst.msk [vmem:[#allocation2 + $0xd0] sm:$0xff] %vm359, %v1067
    %1132 = vst.msk [vmem:[#allocation2 + $0xd8] sm:$0xff] %vm359, %v1068
    %1133 = vst.msk [vmem:[#allocation2 + $0xe0] sm:$0xff] %vm359, %v1069
    %1134 = vst.msk [vmem:[#allocation2 + $0xe8] sm:$0xff] %vm359, %v1070
    %1135 = vst.msk [vmem:[#allocation2 + $0xf0] sm:$0xff] %vm359, %v1071
    %1136 = vst.msk [vmem:[#allocation2 + $0xf8] sm:$0xff] %vm359, %v1072
    %1137 = vst.msk [vmem:[#allocation2 + $0x100] sm:$0xff] %vm359, %v1073
    %1138 = vst.msk [vmem:[#allocation2 + $0x108] sm:$0xff] %vm359, %v1074
    %1139 = vst.msk [vmem:[#allocation2 + $0x110] sm:$0xff] %vm359, %v1075
    %1140 = vst.msk [vmem:[#allocation2 + $0x118] sm:$0xff] %vm359, %v1076
    %1141 = vst.msk [vmem:[#allocation2 + $0x120] sm:$0xff] %vm359, %v1077
    %1142 = vst.msk [vmem:[#allocation2 + $0x128] sm:$0xff] %vm359, %v1078
    %1143 = vst.msk [vmem:[#allocation2 + $0x130] sm:$0xff] %vm359, %v1079
    %1144 = vst.msk [vmem:[#allocation2 + $0x138] sm:$0xff] %vm359, %v1080
    %1145 = vst.msk [vmem:[#allocation2 + $0x140] sm:$0xff] %vm359, %v1081
    %1146 = vst.msk [vmem:[#allocation2 + $0x148] sm:$0xff] %vm359, %v1082
    %1147 = vst.msk [vmem:[#allocation2 + $0x150] sm:$0xff] %vm359, %v1083
    %1148 = vst.msk [vmem:[#allocation2 + $0x158] sm:$0xff] %vm359, %v1084
    %1149 = vst.msk [vmem:[#allocation2 + $0x160] sm:$0xff] %vm359, %v1085
    %1150 = vst.msk [vmem:[#allocation2 + $0x168] sm:$0xff] %vm359, %v1086
    %1151 = vst.msk [vmem:[#allocation2 + $0x170] sm:$0xff] %vm359, %v1087
    %1152 = vst.msk [vmem:[#allocation2 + $0x178] sm:$0xff] %vm359, %v1088
    %1153 = vst.msk [vmem:[#allocation2 + $0x180] sm:$0xff] %vm359, %v1089
    %1154 = vst.msk [vmem:[#allocation2 + $0x188] sm:$0xff] %vm359, %v1090
    %1155 = vst.msk [vmem:[#allocation2 + $0x190] sm:$0xff] %vm359, %v1091
    %1156 = vst.msk [vmem:[#allocation2 + $0x198] sm:$0xff] %vm359, %v1092
    %1157 = vst.msk [vmem:[#allocation2 + $0x1a0] sm:$0xff] %vm359, %v1093
    %1158 = vst.msk [vmem:[#allocation2 + $0x1a8] sm:$0xff] %vm359, %v1094
    %1159 = vst.msk [vmem:[#allocation2 + $0x1b0] sm:$0xff] %vm359, %v1095
    %1160 = vst.msk [vmem:[#allocation2 + $0x1b8] sm:$0xff] %vm359, %v1096
    %1161 = vst.msk [vmem:[#allocation2 + $0x1c0] sm:$0xff] %vm359, %v1097
    %1162 = vst.msk [vmem:[#allocation2 + $0x1c8] sm:$0xff] %vm359, %v1098
    %1163 = vst.msk [vmem:[#allocation2 + $0x1d0] sm:$0xff] %vm359, %v1099
    %1164 = vst.msk [vmem:[#allocation2 + $0x1d8] sm:$0xff] %vm359, %v1100
    %1165 = vst.msk [vmem:[#allocation2 + $0x1e0] sm:$0xff] %vm359, %v1101
    %1166 = vst.msk [vmem:[#allocation2 + $0x1e8] sm:$0xff] %vm359, %v1102
    %1167 = vst.msk [vmem:[#allocation2 + $0x1f0] sm:$0xff] %vm359, %v1103
    %1168 = vst.msk [vmem:[#allocation2 + $0x1f8] sm:$0xff] %vm359, %v1104
    %v1169 = vld [vmem:[#allocation2] sm:$0xff]
    %v1170 = vld [vmem:[#allocation2 + $0x8] sm:$0xff]
    %v1171 = vld [vmem:[#allocation2 + $0x10] sm:$0xff]
    %v1172 = vld [vmem:[#allocation2 + $0x18] sm:$0xff]
    %v1173 = vld [vmem:[#allocation2 + $0x20] sm:$0xff]
    %v1174 = vld [vmem:[#allocation2 + $0x28] sm:$0xff]
    %v1175 = vld [vmem:[#allocation2 + $0x30] sm:$0xff]
    %v1176 = vld [vmem:[#allocation2 + $0x38] sm:$0xff]
    %v1177 = vld [vmem:[#allocation2 + $0x40] sm:$0xff]
    %v1178 = vld [vmem:[#allocation2 + $0x48] sm:$0xff]
    %v1179 = vld [vmem:[#allocation2 + $0x50] sm:$0xff]
    %v1180 = vld [vmem:[#allocation2 + $0x58] sm:$0xff]
    %v1181 = vld [vmem:[#allocation2 + $0x60] sm:$0xff]
    %v1182 = vld [vmem:[#allocation2 + $0x68] sm:$0xff]
    %v1183 = vld [vmem:[#allocation2 + $0x70] sm:$0xff]
    %v1184 = vld [vmem:[#allocation2 + $0x78] sm:$0xff]
    %v1185 = vld [vmem:[#allocation2 + $0x80] sm:$0xff]
    %v1186 = vld [vmem:[#allocation2 + $0x88] sm:$0xff]
    %v1187 = vld [vmem:[#allocation2 + $0x90] sm:$0xff]
    %v1188 = vld [vmem:[#allocation2 + $0x98] sm:$0xff]
    %v1189 = vld [vmem:[#allocation2 + $0xa0] sm:$0xff]
    %v1190 = vld [vmem:[#allocation2 + $0xa8] sm:$0xff]
    %v1191 = vld [vmem:[#allocation2 + $0xb0] sm:$0xff]
    %v1192 = vld [vmem:[#allocation2 + $0xb8] sm:$0xff]
    %v1193 = vld [vmem:[#allocation2 + $0xc0] sm:$0xff]
    %v1194 = vld [vmem:[#allocation2 + $0xc8] sm:$0xff]
    %v1195 = vld [vmem:[#allocation2 + $0xd0] sm:$0xff]
    %v1196 = vld [vmem:[#allocation2 + $0xd8] sm:$0xff]
    %v1197 = vld [vmem:[#allocation2 + $0xe0] sm:$0xff]
    %v1198 = vld [vmem:[#allocation2 + $0xe8] sm:$0xff]
    %v1199 = vld [vmem:[#allocation2 + $0xf0] sm:$0xff]
    %v1200 = vld [vmem:[#allocation2 + $0xf8] sm:$0xff]
    %v1201 = vmax.f32 %v1169, %v1185
    %v1202 = vmax.f32 %v1170, %v1186
    %v1203 = vmax.f32 %v1171, %v1187
    %v1204 = vmax.f32 %v1172, %v1188
    %v1205 = vmax.f32 %v1173, %v1189
    %v1206 = vmax.f32 %v1174, %v1190
    %v1207 = vmax.f32 %v1175, %v1191
    %v1208 = vmax.f32 %v1176, %v1192
    %v1209 = vmax.f32 %v1177, %v1193
    %v1210 = vmax.f32 %v1178, %v1194
    %v1211 = vmax.f32 %v1179, %v1195
    %v1212 = vmax.f32 %v1180, %v1196
    %v1213 = vmax.f32 %v1181, %v1197
    %v1214 = vmax.f32 %v1182, %v1198
    %v1215 = vmax.f32 %v1183, %v1199
    %v1216 = vmax.f32 %v1184, %v1200
    %v1217 = vld [vmem:[#allocation2 + $0x100] sm:$0xff]
    %v1218 = vld [vmem:[#allocation2 + $0x108] sm:$0xff]
    %v1219 = vld [vmem:[#allocation2 + $0x110] sm:$0xff]
    %v1220 = vld [vmem:[#allocation2 + $0x118] sm:$0xff]
    %v1221 = vld [vmem:[#allocation2 + $0x120] sm:$0xff]
    %v1222 = vld [vmem:[#allocation2 + $0x128] sm:$0xff]
    %v1223 = vld [vmem:[#allocation2 + $0x130] sm:$0xff]
    %v1224 = vld [vmem:[#allocation2 + $0x138] sm:$0xff]
    %v1225 = vld [vmem:[#allocation2 + $0x140] sm:$0xff]
    %v1226 = vld [vmem:[#allocation2 + $0x148] sm:$0xff]
    %v1227 = vld [vmem:[#allocation2 + $0x150] sm:$0xff]
    %v1228 = vld [vmem:[#allocation2 + $0x158] sm:$0xff]
    %v1229 = vld [vmem:[#allocation2 + $0x160] sm:$0xff]
    %v1230 = vld [vmem:[#allocation2 + $0x168] sm:$0xff]
    %v1231 = vld [vmem:[#allocation2 + $0x170] sm:$0xff]
    %v1232 = vld [vmem:[#allocation2 + $0x178] sm:$0xff]
    %v1233 = vld [vmem:[#allocation2 + $0x180] sm:$0xff]
    %v1234 = vld [vmem:[#allocation2 + $0x188] sm:$0xff]
    %v1235 = vld [vmem:[#allocation2 + $0x190] sm:$0xff]
    %v1236 = vld [vmem:[#allocation2 + $0x198] sm:$0xff]
    %v1237 = vld [vmem:[#allocation2 + $0x1a0] sm:$0xff]
    %v1238 = vld [vmem:[#allocation2 + $0x1a8] sm:$0xff]
    %v1239 = vld [vmem:[#allocation2 + $0x1b0] sm:$0xff]
    %v1240 = vld [vmem:[#allocation2 + $0x1b8] sm:$0xff]
    %v1241 = vld [vmem:[#allocation2 + $0x1c0] sm:$0xff]
    %v1242 = vld [vmem:[#allocation2 + $0x1c8] sm:$0xff]
    %v1243 = vld [vmem:[#allocation2 + $0x1d0] sm:$0xff]
    %v1244 = vld [vmem:[#allocation2 + $0x1d8] sm:$0xff]
    %v1245 = vld [vmem:[#allocation2 + $0x1e0] sm:$0xff]
    %v1246 = vld [vmem:[#allocation2 + $0x1e8] sm:$0xff]
    %v1247 = vld [vmem:[#allocation2 + $0x1f0] sm:$0xff]
    %v1248 = vld [vmem:[#allocation2 + $0x1f8] sm:$0xff]
    %v1249 = vmax.f32 %v1217, %v1233
    %v1250 = vmax.f32 %v1218, %v1234
    %v1251 = vmax.f32 %v1219, %v1235
    %v1252 = vmax.f32 %v1220, %v1236
    %v1253 = vmax.f32 %v1221, %v1237
    %v1254 = vmax.f32 %v1222, %v1238
    %v1255 = vmax.f32 %v1223, %v1239
    %v1256 = vmax.f32 %v1224, %v1240
    %v1257 = vmax.f32 %v1225, %v1241
    %v1258 = vmax.f32 %v1226, %v1242
    %v1259 = vmax.f32 %v1227, %v1243
    %v1260 = vmax.f32 %v1228, %v1244
    %v1261 = vmax.f32 %v1229, %v1245
    %v1262 = vmax.f32 %v1230, %v1246
    %v1263 = vmax.f32 %v1231, %v1247
    %v1264 = vmax.f32 %v1232, %v1248
    %v1265 = vmax.f32 %v1201, %v1249
    %v1266 = vmax.f32 %v1202, %v1250
    %v1267 = vmax.f32 %v1203, %v1251
    %v1268 = vmax.f32 %v1204, %v1252
    %v1269 = vmax.f32 %v1205, %v1253
    %v1270 = vmax.f32 %v1206, %v1254
    %v1271 = vmax.f32 %v1207, %v1255
    %v1272 = vmax.f32 %v1208, %v1256
    %v1273 = vmax.f32 %v1209, %v1257
    %v1274 = vmax.f32 %v1210, %v1258
    %v1275 = vmax.f32 %v1211, %v1259
    %v1276 = vmax.f32 %v1212, %v1260
    %v1277 = vmax.f32 %v1213, %v1261
    %v1278 = vmax.f32 %v1214, %v1262
    %v1279 = vmax.f32 %v1215, %v1263
    %v1280 = vmax.f32 %v1216, %v1264
    %1281 = vst.msk [vmem:[#allocation3 + $0x16] sm:$0xff] %vm359, %v1265
    %1282 = vst.msk [vmem:[#allocation3 + $0x20] sm:$0xff] %vm359, %v1266
    %1283 = vst.msk [vmem:[#allocation3 + $0x2a] sm:$0xff] %vm359, %v1267
    %1284 = vst.msk [vmem:[#allocation3 + $0x34] sm:$0xff] %vm359, %v1268
    %1285 = vst.msk [vmem:[#allocation3 + $0x3e] sm:$0xff] %vm359, %v1269
    %1286 = vst.msk [vmem:[#allocation3 + $0x48] sm:$0xff] %vm359, %v1270
    %1287 = vst.msk [vmem:[#allocation3 + $0x52] sm:$0xff] %vm359, %v1271
    %1288 = vst.msk [vmem:[#allocation3 + $0x5c] sm:$0xff] %vm359, %v1272
    %1289 = vst.msk [vmem:[#allocation3 + $0x7a] sm:$0xff] %vm359, %v1273
    %1290 = vst.msk [vmem:[#allocation3 + $0x84] sm:$0xff] %vm359, %v1274
    %1291 = vst.msk [vmem:[#allocation3 + $0x8e] sm:$0xff] %vm359, %v1275
    %1292 = vst.msk [vmem:[#allocation3 + $0x98] sm:$0xff] %vm359, %v1276
    %1293 = vst.msk [vmem:[#allocation3 + $0xa2] sm:$0xff] %vm359, %v1277
    %1294 = vst.msk [vmem:[#allocation3 + $0xac] sm:$0xff] %vm359, %v1278
    %1295 = vst.msk [vmem:[#allocation3 + $0xb6] sm:$0xff] %vm359, %v1279
    %1296 = vst.msk [vmem:[#allocation3 + $0xc0] sm:$0xff] %vm359, %v1280
    %v1297 = vld [vmem:[#allocation3] sm:$0xff]
    %v1298 = vld [vmem:[#allocation3 + $0x8] sm:$0xff]
    %v1299 = vld [vmem:[#allocation3 + $0x10] sm:$0xff]
    %v1300 = vld [vmem:[#allocation3 + $0x18] sm:$0xff]
    %v1301 = vld [vmem:[#allocation3 + $0x20] sm:$0xff]
    %v1302 = vld [vmem:[#allocation3 + $0x28] sm:$0xff]
    %v1303 = vld [vmem:[#allocation3 + $0x30] sm:$0xff]
    %v1304 = vld [vmem:[#allocation3 + $0x38] sm:$0xff]
    %v1305 = vld [vmem:[#allocation3 + $0x40] sm:$0xff]
    %v1306 = vld [vmem:[#allocation3 + $0x48] sm:$0xff]
    %v1307 = vld [vmem:[#allocation3 + $0x50] sm:$0xff]
    %v1308 = vld [vmem:[#allocation3 + $0x58] sm:$0xff]
    %v1309 = vld [vmem:[#allocation3 + $0x60] sm:$0xff]
    %v1310 = vld [vmem:[#allocation3 + $0x68] sm:$0xff]
    %v1311 = vld [vmem:[#allocation3 + $0x70] sm:$0xff]
    %v1312 = vld [vmem:[#allocation3 + $0x78] sm:$0xff]
    %v1313 = vld [vmem:[#allocation3 + $0x80] sm:$0xff]
    %v1314 = vld [vmem:[#allocation3 + $0x88] sm:$0xff]
    %v1315 = vld [vmem:[#allocation3 + $0x90] sm:$0xff]
    %v1316 = vld [vmem:[#allocation3 + $0x98] sm:$0xff]
    %v1317 = vld [vmem:[#allocation3 + $0xa0] sm:$0xff]
    %v1318 = vld [vmem:[#allocation3 + $0xa8] sm:$0xff]
    %v1319 = vld [vmem:[#allocation3 + $0xb0] sm:$0xff]
    %v1320 = vld [vmem:[#allocation3 + $0xb8] sm:$0xff]
    %v1321 = vld [vmem:[#allocation3 + $0xc0] sm:$0xff]
    %v1322 = vpack.c.bf16 %v1298, %v1297
    %v1323 = vpack.c.bf16 %v1300, %v1299
    %v1324 = vpack.c.bf16 %v1302, %v1301
    %v1325 = vpack.c.bf16 %v1304, %v1303
    %v1326 = vpack.c.bf16 %v1306, %v1305
    %v1327 = vpack.c.bf16 %v1308, %v1307
    %v1328 = vpack.c.bf16 %v1310, %v1309
    %v1329 = vpack.c.bf16 %v1312, %v1311
    %v1330 = vpack.c.bf16 %v1314, %v1313
    %v1331 = vpack.c.bf16 %v1316, %v1315
    %v1332 = vpack.c.bf16 %v1318, %v1317
    %v1333 = vpack.c.bf16 %v1320, %v1319
    %v1334 = vpack.c.bf16 %v1321, %v1321
    %v1335 = vld [vmem:[%s3] sm:$0xf]
    %v1336 = vld [vmem:[%s3 + $0x4] sm:$0xf]
    %v1337 = vld [vmem:[#allocation3 + $0x1] sm:$0xff]
    %v1338 = vld [vmem:[#allocation3 + $0x9] sm:$0xff]
    %v1339 = vld [vmem:[#allocation3 + $0x11] sm:$0xff]
    %v1340 = vld [vmem:[#allocation3 + $0x19] sm:$0xff]
    %v1341 = vld [vmem:[#allocation3 + $0x21] sm:$0xff]
    %v1342 = vld [vmem:[#allocation3 + $0x29] sm:$0xff]
    %v1343 = vld [vmem:[#allocation3 + $0x31] sm:$0xff]
    %v1344 = vld [vmem:[#allocation3 + $0x39] sm:$0xff]
    %v1345 = vld [vmem:[#allocation3 + $0x41] sm:$0xff]
    %v1346 = vld [vmem:[#allocation3 + $0x49] sm:$0xff]
    %v1347 = vld [vmem:[#allocation3 + $0x51] sm:$0xff]
    %v1348 = vld [vmem:[#allocation3 + $0x59] sm:$0xff]
    %v1349 = vld [vmem:[#allocation3 + $0x61] sm:$0xff]
    %v1350 = vld [vmem:[#allocation3 + $0x69] sm:$0xff]
    %v1351 = vld [vmem:[#allocation3 + $0x71] sm:$0xff]
    %v1352 = vld [vmem:[#allocation3 + $0x79] sm:$0xff]
    %v1353 = vld [vmem:[#allocation3 + $0x81] sm:$0xff]
    %v1354 = vld [vmem:[#allocation3 + $0x89] sm:$0xff]
    %v1355 = vld [vmem:[#allocation3 + $0x91] sm:$0xff]
    %v1356 = vld [vmem:[#allocation3 + $0x99] sm:$0xff]
    %v1357 = vld [vmem:[#allocation3 + $0xa1] sm:$0xff]
    %v1358 = vld [vmem:[#allocation3 + $0xa9] sm:$0xff]
    %v1359 = vld [vmem:[#allocation3 + $0xb1] sm:$0xff]
    %v1360 = vld [vmem:[#allocation3 + $0xb9] sm:$0xff]
    %v1361 = vld [vmem:[#allocation3 + $0xc1] sm:$0xff]
    %v1362 = vpack.c.bf16 %v1338, %v1337
    %v1363 = vpack.c.bf16 %v1340, %v1339
    %v1364 = vpack.c.bf16 %v1342, %v1341
    %v1365 = vpack.c.bf16 %v1344, %v1343
    %v1366 = vpack.c.bf16 %v1346, %v1345
    %v1367 = vpack.c.bf16 %v1348, %v1347
    %v1368 = vpack.c.bf16 %v1350, %v1349
    %v1369 = vpack.c.bf16 %v1352, %v1351
    %v1370 = vpack.c.bf16 %v1354, %v1353
    %v1371 = vpack.c.bf16 %v1356, %v1355
    %v1372 = vpack.c.bf16 %v1358, %v1357
    %v1373 = vpack.c.bf16 %v1360, %v1359
    %v1374 = vpack.c.bf16 %v1361, %v1361
    %v1375 = vld [vmem:[%s3 + $0x8] sm:$0xf]
    %v1376 = vld [vmem:[%s3 + $0xc] sm:$0xf]
    %v1379 = vunpack.c.l.b16 %v1375
    %v1380 = vunpack.c.l.b16 %v1376
    %v1381 = vpack.c.b16 %v1380, %v1379
    %v1384 = vsel %vm359, %v1362, 0
    %v1387 = vsel %vm359, %v1363, 0
    %v1390 = vsel %vm359, %v1364, 0
    %v1393 = vsel %vm359, %v1365, 0
    %v1396 = vsel %vm359, %v1366, 0
    %v1399 = vsel %vm359, %v1367, 0
    %v1402 = vsel %vm359, %v1368, 0
    %v1405 = vsel %vm359, %v1369, 0
    %v1408 = vsel %vm359, %v1370, 0
    %v1411 = vsel %vm359, %v1371, 0
    %v1414 = vsel %vm359, %v1372, 0
    %v1417 = vsel %vm359, %v1373, 0
    %v1420 = vsel %vm359, %v1374, 0
    %1422 = vmatprep.subr.bf16.mxu0 0
    %1423 = vmatpush1.bf16.msra.mxu0 0
    %1424 = vmatprep.subr.bf16.mxu0 0
    %1425 = vmatpush1.bf16.msra.mxu0 0
    %1426 = vmatprep.subr.bf16.mxu0 0
    %1427 = vmatpush1.bf16.msra.mxu0 0
    %1428 = vmatprep.subr.bf16.mxu0 0
    %1429 = vmatpush1.bf16.msra.mxu0 0
    %1430 = vmatprep.subr.bf16.mxu0 0
    %1431 = vmatpush1.bf16.msra.mxu0 0
    %1432 = vmatprep.subr.bf16.mxu0 0
    %1433 = vmatpush1.bf16.msra.mxu0 0
    %1434 = vmatprep.subr.bf16.mxu0 0
    %1435 = vmatpush1.bf16.msra.mxu0 0
    %1436 = vmatprep.subr.bf16.mxu0 0
    %1437 = vmatpush1.bf16.msra.mxu0 %v1381
    %1438 = vmatprep.subr.bf16.mxu0 0
    %1439 = vmatpush2.bf16.msra.mxu0 0
    %1440 = vmatprep.subr.bf16.mxu0 0
    %1441 = vmatpush2.bf16.msra.mxu0 0
    %1442 = vmatprep.subr.bf16.mxu0 0
    %1443 = vmatpush2.bf16.msra.mxu0 0
    %1444 = vmatprep.subr.bf16.mxu0 0
    %1445 = vmatpush2.bf16.msra.mxu0 0
    %1446 = vmatprep.subr.bf16.mxu0 0
    %1447 = vmatpush2.bf16.msra.mxu0 0
    %1448 = vmatprep.subr.bf16.mxu0 0
    %1449 = vmatpush2.bf16.msra.mxu0 0
    %1450 = vmatprep.subr.bf16.mxu0 0
    %1451 = vmatpush2.bf16.msra.mxu0 0
    %1452 = vmatprep.subr.bf16.mxu0 0
    %1453 = vmatpush2.bf16.msra.mxu0 0
    %1454 = vmatprep.mubr.bf16.mxu0 0
    %1455 = vmatmul.mubr.bf16.gmra.mxu0 %v1384
    %v1456 = vpop.f32.mrf.mxu0
    %v1457 = vadd.f32 0.0, %v1456
    %v1458 = vpop.f32.mrf.mxu0
    %v1459 = vpop.f32.mrf.mxu0
    %v1460 = vadd.f32 0.0, %v1459
    %v1461 = vpop.f32.mrf.mxu0
    %1462 = vmatprep.mubr.bf16.mxu0 0
    %1463 = vmatmul.mubr.bf16.gmra.mxu0 %v1387
    %v1464 = vpop.f32.mrf.mxu0
    %v1465 = vadd.f32 0.0, %v1464
    %v1466 = vpop.f32.mrf.mxu0
    %v1467 = vpop.f32.mrf.mxu0
    %v1468 = vadd.f32 0.0, %v1467
    %v1469 = vpop.f32.mrf.mxu0
    %1470 = vmatprep.mubr.bf16.mxu0 0
    %1471 = vmatmul.mubr.bf16.gmra.mxu0 %v1390
    %v1472 = vpop.f32.mrf.mxu0
    %v1473 = vadd.f32 0.0, %v1472
    %v1474 = vpop.f32.mrf.mxu0
    %v1475 = vpop.f32.mrf.mxu0
    %v1476 = vadd.f32 0.0, %v1475
    %v1477 = vpop.f32.mrf.mxu0
    %1478 = vmatprep.mubr.bf16.mxu0 0
    %1479 = vmatmul.mubr.bf16.gmra.mxu0 %v1393
    %v1480 = vpop.f32.mrf.mxu0
    %v1481 = vadd.f32 0.0, %v1480
    %v1482 = vpop.f32.mrf.mxu0
    %v1483 = vpop.f32.mrf.mxu0
    %v1484 = vadd.f32 0.0, %v1483
    %v1485 = vpop.f32.mrf.mxu0
    %1486 = vmatprep.mubr.bf16.mxu0 0
    %1487 = vmatmul.mubr.bf16.gmra.mxu0 %v1396
    %v1488 = vpop.f32.mrf.mxu0
    %v1489 = vadd.f32 0.0, %v1488
    %v1490 = vpop.f32.mrf.mxu0
    %v1491 = vpop.f32.mrf.mxu0
    %v1492 = vadd.f32 0.0, %v1491
    %v1493 = vpop.f32.mrf.mxu0
    %1494 = vmatprep.mubr.bf16.mxu0 0
    %1495 = vmatmul.mubr.bf16.gmra.mxu0 %v1399
    %v1496 = vpop.f32.mrf.mxu0
    %v1497 = vadd.f32 0.0, %v1496
    %v1498 = vpop.f32.mrf.mxu0
    %v1499 = vpop.f32.mrf.mxu0
    %v1500 = vadd.f32 0.0, %v1499
    %v1501 = vpop.f32.mrf.mxu0
    %1502 = vmatprep.mubr.bf16.mxu0 0
    %1503 = vmatmul.mubr.bf16.gmra.mxu0 %v1402
    %v1504 = vpop.f32.mrf.mxu0
    %v1505 = vadd.f32 0.0, %v1504
    %v1506 = vpop.f32.mrf.mxu0
    %v1507 = vpop.f32.mrf.mxu0
    %v1508 = vadd.f32 0.0, %v1507
    %v1509 = vpop.f32.mrf.mxu0
    %1510 = vmatprep.mubr.bf16.mxu0 0
    %1511 = vmatmul.mubr.bf16.gmra.mxu0 %v1405
    %v1512 = vpop.f32.mrf.mxu0
    %v1513 = vadd.f32 0.0, %v1512
    %v1514 = vpop.f32.mrf.mxu0
    %v1515 = vpop.f32.mrf.mxu0
    %v1516 = vadd.f32 0.0, %v1515
    %v1517 = vpop.f32.mrf.mxu0
    %1518 = vmatprep.mubr.bf16.mxu0 0
    %1519 = vmatmul.mubr.bf16.gmra.mxu0 %v1408
    %v1520 = vpop.f32.mrf.mxu0
    %v1521 = vadd.f32 0.0, %v1520
    %v1522 = vpop.f32.mrf.mxu0
    %v1523 = vpop.f32.mrf.mxu0
    %v1524 = vadd.f32 0.0, %v1523
    %v1525 = vpop.f32.mrf.mxu0
    %1526 = vmatprep.mubr.bf16.mxu0 0
    %1527 = vmatmul.mubr.bf16.gmra.mxu0 %v1411
    %v1528 = vpop.f32.mrf.mxu0
    %v1529 = vadd.f32 0.0, %v1528
    %v1530 = vpop.f32.mrf.mxu0
    %v1531 = vpop.f32.mrf.mxu0
    %v1532 = vadd.f32 0.0, %v1531
    %v1533 = vpop.f32.mrf.mxu0
    %1534 = vmatprep.mubr.bf16.mxu0 0
    %1535 = vmatmul.mubr.bf16.gmra.mxu0 %v1414
    %v1536 = vpop.f32.mrf.mxu0
    %v1537 = vadd.f32 0.0, %v1536
    %v1538 = vpop.f32.mrf.mxu0
    %v1539 = vpop.f32.mrf.mxu0
    %v1540 = vadd.f32 0.0, %v1539
    %v1541 = vpop.f32.mrf.mxu0
    %1542 = vmatprep.mubr.bf16.mxu0 0
    %1543 = vmatmul.mubr.bf16.gmra.mxu0 %v1417
    %v1544 = vpop.f32.mrf.mxu0
    %v1545 = vadd.f32 0.0, %v1544
    %v1546 = vpop.f32.mrf.mxu0
    %v1547 = vpop.f32.mrf.mxu0
    %v1548 = vadd.f32 0.0, %v1547
    %v1549 = vpop.f32.mrf.mxu0
    %1550 = vmatprep.mubr.bf16.mxu0 0
    %1551 = vmatmul.mubr.bf16.gmra.mxu0 %v1420
    %v1552 = vpop.f32.mrf.mxu0
    %v1553 = vadd.f32 0.0, %v1552
    %v1554 = vpop.f32.mrf.mxu0
    %v1555 = vpop.f32.mrf.mxu0
    %v1556 = vpop.f32.mrf.mxu0
    %1557 = vdwg.mxu0
    %v1560 = vunpack.c.l.b16 %v1335
    %v1561 = vunpack.c.l.b16 %v1336
    %v1562 = vpack.c.b16 %v1561, %v1560
    %v1565 = vsel %vm359, %v1322, 0
    %v1568 = vsel %vm359, %v1323, 0
    %v1571 = vsel %vm359, %v1324, 0
    %v1574 = vsel %vm359, %v1325, 0
    %v1577 = vsel %vm359, %v1326, 0
    %v1580 = vsel %vm359, %v1327, 0
    %v1583 = vsel %vm359, %v1328, 0
    %v1586 = vsel %vm359, %v1329, 0
    %v1589 = vsel %vm359, %v1330, 0
    %v1592 = vsel %vm359, %v1331, 0
    %v1595 = vsel %vm359, %v1332, 0
    %v1598 = vsel %vm359, %v1333, 0
    %v1601 = vsel %vm359, %v1334, 0
    %1603 = vmatprep.subr.bf16.mxu0 0
    %1604 = vmatpush1.bf16.msra.mxu0 0
    %1605 = vmatprep.subr.bf16.mxu0 0
    %1606 = vmatpush1.bf16.msra.mxu0 0
    %1607 = vmatprep.subr.bf16.mxu0 0
    %1608 = vmatpush1.bf16.msra.mxu0 0
    %1609 = vmatprep.subr.bf16.mxu0 0
    %1610 = vmatpush1.bf16.msra.mxu0 0
    %1611 = vmatprep.subr.bf16.mxu0 0
    %1612 = vmatpush1.bf16.msra.mxu0 0
    %1613 = vmatprep.subr.bf16.mxu0 0
    %1614 = vmatpush1.bf16.msra.mxu0 0
    %1615 = vmatprep.subr.bf16.mxu0 0
    %1616 = vmatpush1.bf16.msra.mxu0 0
    %1617 = vmatprep.subr.bf16.mxu0 0
    %1618 = vmatpush1.bf16.msra.mxu0 %v1562
    %1619 = vmatprep.subr.bf16.mxu0 0
    %1620 = vmatpush2.bf16.msra.mxu0 0
    %1621 = vmatprep.subr.bf16.mxu0 0
    %1622 = vmatpush2.bf16.msra.mxu0 0
    %1623 = vmatprep.subr.bf16.mxu0 0
    %1624 = vmatpush2.bf16.msra.mxu0 0
    %1625 = vmatprep.subr.bf16.mxu0 0
    %1626 = vmatpush2.bf16.msra.mxu0 0
    %1627 = vmatprep.subr.bf16.mxu0 0
    %1628 = vmatpush2.bf16.msra.mxu0 0
    %1629 = vmatprep.subr.bf16.mxu0 0
    %1630 = vmatpush2.bf16.msra.mxu0 0
    %1631 = vmatprep.subr.bf16.mxu0 0
    %1632 = vmatpush2.bf16.msra.mxu0 0
    %1633 = vmatprep.subr.bf16.mxu0 0
    %1634 = vmatpush2.bf16.msra.mxu0 0
    %1635 = vmatprep.mubr.bf16.mxu0 0
    %1636 = vmatmul.mubr.bf16.gmra.mxu0 %v1565
    %v1637 = vpop.f32.mrf.mxu0
    %v1638 = vadd.f32 %v1457, %v1637
    %v1639 = vpop.f32.mrf.mxu0
    %v1640 = vpop.f32.mrf.mxu0
    %v1641 = vadd.f32 %v1460, %v1640
    %v1642 = vpop.f32.mrf.mxu0
    %1643 = vmatprep.mubr.bf16.mxu0 0
    %1644 = vmatmul.mubr.bf16.gmra.mxu0 %v1568
    %v1645 = vpop.f32.mrf.mxu0
    %v1646 = vadd.f32 %v1465, %v1645
    %v1647 = vpop.f32.mrf.mxu0
    %v1648 = vpop.f32.mrf.mxu0
    %v1649 = vadd.f32 %v1468, %v1648
    %v1650 = vpop.f32.mrf.mxu0
    %1651 = vmatprep.mubr.bf16.mxu0 0
    %1652 = vmatmul.mubr.bf16.gmra.mxu0 %v1571
    %v1653 = vpop.f32.mrf.mxu0
    %v1654 = vadd.f32 %v1473, %v1653
    %v1655 = vpop.f32.mrf.mxu0
    %v1656 = vpop.f32.mrf.mxu0
    %v1657 = vadd.f32 %v1476, %v1656
    %v1658 = vpop.f32.mrf.mxu0
    %1659 = vmatprep.mubr.bf16.mxu0 0
    %1660 = vmatmul.mubr.bf16.gmra.mxu0 %v1574
    %v1661 = vpop.f32.mrf.mxu0
    %v1662 = vadd.f32 %v1481, %v1661
    %v1663 = vpop.f32.mrf.mxu0
    %v1664 = vpop.f32.mrf.mxu0
    %v1665 = vadd.f32 %v1484, %v1664
    %v1666 = vpop.f32.mrf.mxu0
    %1667 = vmatprep.mubr.bf16.mxu0 0
    %1668 = vmatmul.mubr.bf16.gmra.mxu0 %v1577
    %v1669 = vpop.f32.mrf.mxu0
    %v1670 = vadd.f32 %v1489, %v1669
    %v1671 = vpop.f32.mrf.mxu0
    %v1672 = vpop.f32.mrf.mxu0
    %v1673 = vadd.f32 %v1492, %v1672
    %v1674 = vpop.f32.mrf.mxu0
    %1675 = vmatprep.mubr.bf16.mxu0 0
    %1676 = vmatmul.mubr.bf16.gmra.mxu0 %v1580
    %v1677 = vpop.f32.mrf.mxu0
    %v1678 = vadd.f32 %v1497, %v1677
    %v1679 = vpop.f32.mrf.mxu0
    %v1680 = vpop.f32.mrf.mxu0
    %v1681 = vadd.f32 %v1500, %v1680
    %v1682 = vpop.f32.mrf.mxu0
    %1683 = vmatprep.mubr.bf16.mxu0 0
    %1684 = vmatmul.mubr.bf16.gmra.mxu0 %v1583
    %v1685 = vpop.f32.mrf.mxu0
    %v1686 = vadd.f32 %v1505, %v1685
    %v1687 = vpop.f32.mrf.mxu0
    %v1688 = vpop.f32.mrf.mxu0
    %v1689 = vadd.f32 %v1508, %v1688
    %v1690 = vpop.f32.mrf.mxu0
    %1691 = vmatprep.mubr.bf16.mxu0 0
    %1692 = vmatmul.mubr.bf16.gmra.mxu0 %v1586
    %v1693 = vpop.f32.mrf.mxu0
    %v1694 = vadd.f32 %v1513, %v1693
    %v1695 = vpop.f32.mrf.mxu0
    %v1696 = vpop.f32.mrf.mxu0
    %v1697 = vadd.f32 %v1516, %v1696
    %v1698 = vpop.f32.mrf.mxu0
    %1699 = vmatprep.mubr.bf16.mxu0 0
    %1700 = vmatmul.mubr.bf16.gmra.mxu0 %v1589
    %v1701 = vpop.f32.mrf.mxu0
    %v1702 = vadd.f32 %v1521, %v1701
    %v1703 = vpop.f32.mrf.mxu0
    %v1704 = vpop.f32.mrf.mxu0
    %v1705 = vadd.f32 %v1524, %v1704
    %v1706 = vpop.f32.mrf.mxu0
    %1707 = vmatprep.mubr.bf16.mxu0 0
    %1708 = vmatmul.mubr.bf16.gmra.mxu0 %v1592
    %v1709 = vpop.f32.mrf.mxu0
    %v1710 = vadd.f32 %v1529, %v1709
    %v1711 = vpop.f32.mrf.mxu0
    %v1712 = vpop.f32.mrf.mxu0
    %v1713 = vadd.f32 %v1532, %v1712
    %v1714 = vpop.f32.mrf.mxu0
    %1715 = vmatprep.mubr.bf16.mxu0 0
    %1716 = vmatmul.mubr.bf16.gmra.mxu0 %v1595
    %v1717 = vpop.f32.mrf.mxu0
    %v1718 = vadd.f32 %v1537, %v1717
    %v1719 = vpop.f32.mrf.mxu0
    %v1720 = vpop.f32.mrf.mxu0
    %v1721 = vadd.f32 %v1540, %v1720
    %v1722 = vpop.f32.mrf.mxu0
    %1723 = vmatprep.mubr.bf16.mxu0 0
    %1724 = vmatmul.mubr.bf16.gmra.mxu0 %v1598
    %v1725 = vpop.f32.mrf.mxu0
    %v1726 = vadd.f32 %v1545, %v1725
    %v1727 = vpop.f32.mrf.mxu0
    %v1728 = vpop.f32.mrf.mxu0
    %v1729 = vadd.f32 %v1548, %v1728
    %v1730 = vpop.f32.mrf.mxu0
    %1731 = vmatprep.mubr.bf16.mxu0 0
    %1732 = vmatmul.mubr.bf16.gmra.mxu0 %v1601
    %v1733 = vpop.f32.mrf.mxu0
    %v1734 = vadd.f32 %v1553, %v1733
    %v1735 = vpop.f32.mrf.mxu0
    %v1736 = vpop.f32.mrf.mxu0
    %v1737 = vpop.f32.mrf.mxu0
    %1738 = vdwg.mxu0
    %v1739 = vld [vmem:[#allocation3 + $0x2] sm:$0xff]
    %v1740 = vld [vmem:[#allocation3 + $0xa] sm:$0xff]
    %v1741 = vld [vmem:[#allocation3 + $0x12] sm:$0xff]
    %v1742 = vld [vmem:[#allocation3 + $0x1a] sm:$0xff]
    %v1743 = vld [vmem:[#allocation3 + $0x22] sm:$0xff]
    %v1744 = vld [vmem:[#allocation3 + $0x2a] sm:$0xff]
    %v1745 = vld [vmem:[#allocation3 + $0x32] sm:$0xff]
    %v1746 = vld [vmem:[#allocation3 + $0x3a] sm:$0xff]
    %v1747 = vld [vmem:[#allocation3 + $0x42] sm:$0xff]
    %v1748 = vld [vmem:[#allocation3 + $0x4a] sm:$0xff]
    %v1749 = vld [vmem:[#allocation3 + $0x52] sm:$0xff]
    %v1750 = vld [vmem:[#allocation3 + $0x5a] sm:$0xff]
    %v1751 = vld [vmem:[#allocation3 + $0x62] sm:$0xff]
    %v1752 = vld [vmem:[#allocation3 + $0x6a] sm:$0xff]
    %v1753 = vld [vmem:[#allocation3 + $0x72] sm:$0xff]
    %v1754 = vld [vmem:[#allocation3 + $0x7a] sm:$0xff]
    %v1755 = vld [vmem:[#allocation3 + $0x82] sm:$0xff]
    %v1756 = vld [vmem:[#allocation3 + $0x8a] sm:$0xff]
    %v1757 = vld [vmem:[#allocation3 + $0x92] sm:$0xff]
    %v1758 = vld [vmem:[#allocation3 + $0x9a] sm:$0xff]
    %v1759 = vld [vmem:[#allocation3 + $0xa2] sm:$0xff]
    %v1760 = vld [vmem:[#allocation3 + $0xaa] sm:$0xff]
    %v1761 = vld [vmem:[#allocation3 + $0xb2] sm:$0xff]
    %v1762 = vld [vmem:[#allocation3 + $0xba] sm:$0xff]
    %v1763 = vld [vmem:[#allocation3 + $0xc2] sm:$0xff]
    %v1764 = vpack.c.bf16 %v1740, %v1739
    %v1765 = vpack.c.bf16 %v1742, %v1741
    %v1766 = vpack.c.bf16 %v1744, %v1743
    %v1767 = vpack.c.bf16 %v1746, %v1745
    %v1768 = vpack.c.bf16 %v1748, %v1747
    %v1769 = vpack.c.bf16 %v1750, %v1749
    %v1770 = vpack.c.bf16 %v1752, %v1751
    %v1771 = vpack.c.bf16 %v1754, %v1753
    %v1772 = vpack.c.bf16 %v1756, %v1755
    %v1773 = vpack.c.bf16 %v1758, %v1757
    %v1774 = vpack.c.bf16 %v1760, %v1759
    %v1775 = vpack.c.bf16 %v1762, %v1761
    %v1776 = vpack.c.bf16 %v1763, %v1763
    %v1777 = vld [vmem:[%s3 + $0x10] sm:$0xf]
    %v1778 = vld [vmem:[%s3 + $0x14] sm:$0xf]
    %v1781 = vunpack.c.l.b16 %v1777
    %v1782 = vunpack.c.l.b16 %v1778
    %v1783 = vpack.c.b16 %v1782, %v1781
    %v1786 = vsel %vm359, %v1764, 0
    %v1789 = vsel %vm359, %v1765, 0
    %v1792 = vsel %vm359, %v1766, 0
    %v1795 = vsel %vm359, %v1767, 0
    %v1798 = vsel %vm359, %v1768, 0
    %v1801 = vsel %vm359, %v1769, 0
    %v1804 = vsel %vm359, %v1770, 0
    %v1807 = vsel %vm359, %v1771, 0
    %v1810 = vsel %vm359, %v1772, 0
    %v1813 = vsel %vm359, %v1773, 0
    %v1816 = vsel %vm359, %v1774, 0
    %v1819 = vsel %vm359, %v1775, 0
    %v1822 = vsel %vm359, %v1776, 0
    %1824 = vmatprep.subr.bf16.mxu0 0
    %1825 = vmatpush1.bf16.msra.mxu0 0
    %1826 = vmatprep.subr.bf16.mxu0 0
    %1827 = vmatpush1.bf16.msra.mxu0 0
    %1828 = vmatprep.subr.bf16.mxu0 0
    %1829 = vmatpush1.bf16.msra.mxu0 0
    %1830 = vmatprep.subr.bf16.mxu0 0
    %1831 = vmatpush1.bf16.msra.mxu0 0
    %1832 = vmatprep.subr.bf16.mxu0 0
    %1833 = vmatpush1.bf16.msra.mxu0 0
    %1834 = vmatprep.subr.bf16.mxu0 0
    %1835 = vmatpush1.bf16.msra.mxu0 0
    %1836 = vmatprep.subr.bf16.mxu0 0
    %1837 = vmatpush1.bf16.msra.mxu0 0
    %1838 = vmatprep.subr.bf16.mxu0 0
    %1839 = vmatpush1.bf16.msra.mxu0 %v1783
    %1840 = vmatprep.subr.bf16.mxu0 0
    %1841 = vmatpush2.bf16.msra.mxu0 0
    %1842 = vmatprep.subr.bf16.mxu0 0
    %1843 = vmatpush2.bf16.msra.mxu0 0
    %1844 = vmatprep.subr.bf16.mxu0 0
    %1845 = vmatpush2.bf16.msra.mxu0 0
    %1846 = vmatprep.subr.bf16.mxu0 0
    %1847 = vmatpush2.bf16.msra.mxu0 0
    %1848 = vmatprep.subr.bf16.mxu0 0
    %1849 = vmatpush2.bf16.msra.mxu0 0
    %1850 = vmatprep.subr.bf16.mxu0 0
    %1851 = vmatpush2.bf16.msra.mxu0 0
    %1852 = vmatprep.subr.bf16.mxu0 0
    %1853 = vmatpush2.bf16.msra.mxu0 0
    %1854 = vmatprep.subr.bf16.mxu0 0
    %1855 = vmatpush2.bf16.msra.mxu0 0
    %1856 = vmatprep.mubr.bf16.mxu0 0
    %1857 = vmatmul.mubr.bf16.gmra.mxu0 %v1786
    %v1858 = vpop.f32.mrf.mxu0
    %v1859 = vadd.f32 0.0, %v1858
    %v1860 = vpop.f32.mrf.mxu0
    %v1861 = vpop.f32.mrf.mxu0
    %v1862 = vadd.f32 0.0, %v1861
    %v1863 = vpop.f32.mrf.mxu0
    %1864 = vmatprep.mubr.bf16.mxu0 0
    %1865 = vmatmul.mubr.bf16.gmra.mxu0 %v1789
    %v1866 = vpop.f32.mrf.mxu0
    %v1867 = vadd.f32 0.0, %v1866
    %v1868 = vpop.f32.mrf.mxu0
    %v1869 = vpop.f32.mrf.mxu0
    %v1870 = vadd.f32 0.0, %v1869
    %v1871 = vpop.f32.mrf.mxu0
    %1872 = vmatprep.mubr.bf16.mxu0 0
    %1873 = vmatmul.mubr.bf16.gmra.mxu0 %v1792
    %v1874 = vpop.f32.mrf.mxu0
    %v1875 = vadd.f32 0.0, %v1874
    %v1876 = vpop.f32.mrf.mxu0
    %v1877 = vpop.f32.mrf.mxu0
    %v1878 = vadd.f32 0.0, %v1877
    %v1879 = vpop.f32.mrf.mxu0
    %1880 = vmatprep.mubr.bf16.mxu0 0
    %1881 = vmatmul.mubr.bf16.gmra.mxu0 %v1795
    %v1882 = vpop.f32.mrf.mxu0
    %v1883 = vadd.f32 0.0, %v1882
    %v1884 = vpop.f32.mrf.mxu0
    %v1885 = vpop.f32.mrf.mxu0
    %v1886 = vadd.f32 0.0, %v1885
    %v1887 = vpop.f32.mrf.mxu0
    %1888 = vmatprep.mubr.bf16.mxu0 0
    %1889 = vmatmul.mubr.bf16.gmra.mxu0 %v1798
    %v1890 = vpop.f32.mrf.mxu0
    %v1891 = vadd.f32 0.0, %v1890
    %v1892 = vpop.f32.mrf.mxu0
    %v1893 = vpop.f32.mrf.mxu0
    %v1894 = vadd.f32 0.0, %v1893
    %v1895 = vpop.f32.mrf.mxu0
    %1896 = vmatprep.mubr.bf16.mxu0 0
    %1897 = vmatmul.mubr.bf16.gmra.mxu0 %v1801
    %v1898 = vpop.f32.mrf.mxu0
    %v1899 = vadd.f32 0.0, %v1898
    %v1900 = vpop.f32.mrf.mxu0
    %v1901 = vpop.f32.mrf.mxu0
    %v1902 = vadd.f32 0.0, %v1901
    %v1903 = vpop.f32.mrf.mxu0
    %1904 = vmatprep.mubr.bf16.mxu0 0
    %1905 = vmatmul.mubr.bf16.gmra.mxu0 %v1804
    %v1906 = vpop.f32.mrf.mxu0
    %v1907 = vadd.f32 0.0, %v1906
    %v1908 = vpop.f32.mrf.mxu0
    %v1909 = vpop.f32.mrf.mxu0
    %v1910 = vadd.f32 0.0, %v1909
    %v1911 = vpop.f32.mrf.mxu0
    %1912 = vmatprep.mubr.bf16.mxu0 0
    %1913 = vmatmul.mubr.bf16.gmra.mxu0 %v1807
    %v1914 = vpop.f32.mrf.mxu0
    %v1915 = vadd.f32 0.0, %v1914
    %v1916 = vpop.f32.mrf.mxu0
    %v1917 = vpop.f32.mrf.mxu0
    %v1918 = vadd.f32 0.0, %v1917
    %v1919 = vpop.f32.mrf.mxu0
    %1920 = vmatprep.mubr.bf16.mxu0 0
    %1921 = vmatmul.mubr.bf16.gmra.mxu0 %v1810
    %v1922 = vpop.f32.mrf.mxu0
    %v1923 = vadd.f32 0.0, %v1922
    %v1924 = vpop.f32.mrf.mxu0
    %v1925 = vpop.f32.mrf.mxu0
    %v1926 = vadd.f32 0.0, %v1925
    %v1927 = vpop.f32.mrf.mxu0
    %1928 = vmatprep.mubr.bf16.mxu0 0
    %1929 = vmatmul.mubr.bf16.gmra.mxu0 %v1813
    %v1930 = vpop.f32.mrf.mxu0
    %v1931 = vadd.f32 0.0, %v1930
    %v1932 = vpop.f32.mrf.mxu0
    %v1933 = vpop.f32.mrf.mxu0
    %v1934 = vadd.f32 0.0, %v1933
    %v1935 = vpop.f32.mrf.mxu0
    %1936 = vmatprep.mubr.bf16.mxu0 0
    %1937 = vmatmul.mubr.bf16.gmra.mxu0 %v1816
    %v1938 = vpop.f32.mrf.mxu0
    %v1939 = vadd.f32 0.0, %v1938
    %v1940 = vpop.f32.mrf.mxu0
    %v1941 = vpop.f32.mrf.mxu0
    %v1942 = vadd.f32 0.0, %v1941
    %v1943 = vpop.f32.mrf.mxu0
    %1944 = vmatprep.mubr.bf16.mxu0 0
    %1945 = vmatmul.mubr.bf16.gmra.mxu0 %v1819
    %v1946 = vpop.f32.mrf.mxu0
    %v1947 = vadd.f32 0.0, %v1946
    %v1948 = vpop.f32.mrf.mxu0
    %v1949 = vpop.f32.mrf.mxu0
    %v1950 = vadd.f32 0.0, %v1949
    %v1951 = vpop.f32.mrf.mxu0
    %1952 = vmatprep.mubr.bf16.mxu0 0
    %1953 = vmatmul.mubr.bf16.gmra.mxu0 %v1822
    %v1954 = vpop.f32.mrf.mxu0
    %v1955 = vadd.f32 0.0, %v1954
    %v1956 = vpop.f32.mrf.mxu0
    %v1957 = vpop.f32.mrf.mxu0
    %v1958 = vpop.f32.mrf.mxu0
    %1959 = vdwg.mxu0
    %v1960 = vadd.f32 %v1638, %v1859
    %v1961 = vadd.f32 %v1641, %v1862
    %v1962 = vadd.f32 %v1646, %v1867
    %v1963 = vadd.f32 %v1649, %v1870
    %v1964 = vadd.f32 %v1654, %v1875
    %v1965 = vadd.f32 %v1657, %v1878
    %v1966 = vadd.f32 %v1662, %v1883
    %v1967 = vadd.f32 %v1665, %v1886
    %v1968 = vadd.f32 %v1670, %v1891
    %v1969 = vadd.f32 %v1673, %v1894
    %v1970 = vadd.f32 %v1678, %v1899
    %v1971 = vadd.f32 %v1681, %v1902
    %v1972 = vadd.f32 %v1686, %v1907
    %v1973 = vadd.f32 %v1689, %v1910
    %v1974 = vadd.f32 %v1694, %v1915
    %v1975 = vadd.f32 %v1697, %v1918
    %v1976 = vadd.f32 %v1702, %v1923
    %v1977 = vadd.f32 %v1705, %v1926
    %v1978 = vadd.f32 %v1710, %v1931
    %v1979 = vadd.f32 %v1713, %v1934
    %v1980 = vadd.f32 %v1718, %v1939
    %v1981 = vadd.f32 %v1721, %v1942
    %v1982 = vadd.f32 %v1726, %v1947
    %v1983 = vadd.f32 %v1729, %v1950
    %v1984 = vadd.f32 %v1734, %v1955
    %v1985 = vld [vmem:[#allocation3 + $0xa] sm:$0xff]
    %v1986 = vld [vmem:[#allocation3 + $0x12] sm:$0xff]
    %v1987 = vld [vmem:[#allocation3 + $0x1a] sm:$0xff]
    %v1988 = vld [vmem:[#allocation3 + $0x22] sm:$0xff]
    %v1989 = vld [vmem:[#allocation3 + $0x2a] sm:$0xff]
    %v1990 = vld [vmem:[#allocation3 + $0x32] sm:$0xff]
    %v1991 = vld [vmem:[#allocation3 + $0x3a] sm:$0xff]
    %v1992 = vld [vmem:[#allocation3 + $0x42] sm:$0xff]
    %v1993 = vld [vmem:[#allocation3 + $0x4a] sm:$0xff]
    %v1994 = vld [vmem:[#allocation3 + $0x52] sm:$0xff]
    %v1995 = vld [vmem:[#allocation3 + $0x5a] sm:$0xff]
    %v1996 = vld [vmem:[#allocation3 + $0x62] sm:$0xff]
    %v1997 = vld [vmem:[#allocation3 + $0x6a] sm:$0xff]
    %v1998 = vld [vmem:[#allocation3 + $0x72] sm:$0xff]
    %v1999 = vld [vmem:[#allocation3 + $0x7a] sm:$0xff]
    %v2000 = vld [vmem:[#allocation3 + $0x82] sm:$0xff]
    %v2001 = vld [vmem:[#allocation3 + $0x8a] sm:$0xff]
    %v2002 = vld [vmem:[#allocation3 + $0x92] sm:$0xff]
    %v2003 = vld [vmem:[#allocation3 + $0x9a] sm:$0xff]
    %v2004 = vld [vmem:[#allocation3 + $0xa2] sm:$0xff]
    %v2005 = vld [vmem:[#allocation3 + $0xaa] sm:$0xff]
    %v2006 = vld [vmem:[#allocation3 + $0xb2] sm:$0xff]
    %v2007 = vld [vmem:[#allocation3 + $0xba] sm:$0xff]
    %v2008 = vld [vmem:[#allocation3 + $0xc2] sm:$0xff]
    %v2009 = vld [vmem:[#allocation3 + $0xca] sm:$0xff]
    %v2010 = vpack.c.bf16 %v1986, %v1985
    %v2011 = vpack.c.bf16 %v1988, %v1987
    %v2012 = vpack.c.bf16 %v1990, %v1989
    %v2013 = vpack.c.bf16 %v1992, %v1991
    %v2014 = vpack.c.bf16 %v1994, %v1993
    %v2015 = vpack.c.bf16 %v1996, %v1995
    %v2016 = vpack.c.bf16 %v1998, %v1997
    %v2017 = vpack.c.bf16 %v2000, %v1999
    %v2018 = vpack.c.bf16 %v2002, %v2001
    %v2019 = vpack.c.bf16 %v2004, %v2003
    %v2020 = vpack.c.bf16 %v2006, %v2005
    %v2021 = vpack.c.bf16 %v2008, %v2007
    %v2022 = vpack.c.bf16 %v2009, %v2009
    %v2023 = vld [vmem:[%s3 + $0x18] sm:$0xf]
    %v2024 = vld [vmem:[%s3 + $0x1c] sm:$0xf]
    %v2027 = vunpack.c.l.b16 %v2023
    %v2028 = vunpack.c.l.b16 %v2024
    %v2029 = vpack.c.b16 %v2028, %v2027
    %v2032 = vsel %vm359, %v2010, 0
    %v2035 = vsel %vm359, %v2011, 0
    %v2038 = vsel %vm359, %v2012, 0
    %v2041 = vsel %vm359, %v2013, 0
    %v2044 = vsel %vm359, %v2014, 0
    %v2047 = vsel %vm359, %v2015, 0
    %v2050 = vsel %vm359, %v2016, 0
    %v2053 = vsel %vm359, %v2017, 0
    %v2056 = vsel %vm359, %v2018, 0
    %v2059 = vsel %vm359, %v2019, 0
    %v2062 = vsel %vm359, %v2020, 0
    %v2065 = vsel %vm359, %v2021, 0
    %v2068 = vsel %vm359, %v2022, 0
    %2070 = vmatprep.subr.bf16.mxu0 0
    %2071 = vmatpush1.bf16.msra.mxu0 0
    %2072 = vmatprep.subr.bf16.mxu0 0
    %2073 = vmatpush1.bf16.msra.mxu0 0
    %2074 = vmatprep.subr.bf16.mxu0 0
    %2075 = vmatpush1.bf16.msra.mxu0 0
    %2076 = vmatprep.subr.bf16.mxu0 0
    %2077 = vmatpush1.bf16.msra.mxu0 0
    %2078 = vmatprep.subr.bf16.mxu0 0
    %2079 = vmatpush1.bf16.msra.mxu0 0
    %2080 = vmatprep.subr.bf16.mxu0 0
    %2081 = vmatpush1.bf16.msra.mxu0 0
    %2082 = vmatprep.subr.bf16.mxu0 0
    %2083 = vmatpush1.bf16.msra.mxu0 0
    %2084 = vmatprep.subr.bf16.mxu0 0
    %2085 = vmatpush1.bf16.msra.mxu0 %v2029
    %2086 = vmatprep.subr.bf16.mxu0 0
    %2087 = vmatpush2.bf16.msra.mxu0 0
    %2088 = vmatprep.subr.bf16.mxu0 0
    %2089 = vmatpush2.bf16.msra.mxu0 0
    %2090 = vmatprep.subr.bf16.mxu0 0
    %2091 = vmatpush2.bf16.msra.mxu0 0
    %2092 = vmatprep.subr.bf16.mxu0 0
    %2093 = vmatpush2.bf16.msra.mxu0 0
    %2094 = vmatprep.subr.bf16.mxu0 0
    %2095 = vmatpush2.bf16.msra.mxu0 0
    %2096 = vmatprep.subr.bf16.mxu0 0
    %2097 = vmatpush2.bf16.msra.mxu0 0
    %2098 = vmatprep.subr.bf16.mxu0 0
    %2099 = vmatpush2.bf16.msra.mxu0 0
    %2100 = vmatprep.subr.bf16.mxu0 0
    %2101 = vmatpush2.bf16.msra.mxu0 0
    %2102 = vmatprep.mubr.bf16.mxu0 0
    %2103 = vmatmul.mubr.bf16.gmra.mxu0 %v2032
    %v2104 = vpop.f32.mrf.mxu0
    %v2105 = vadd.f32 0.0, %v2104
    %v2106 = vpop.f32.mrf.mxu0
    %v2107 = vpop.f32.mrf.mxu0
    %v2108 = vadd.f32 0.0, %v2107
    %v2109 = vpop.f32.mrf.mxu0
    %2110 = vmatprep.mubr.bf16.mxu0 0
    %2111 = vmatmul.mubr.bf16.gmra.mxu0 %v2035
    %v2112 = vpop.f32.mrf.mxu0
    %v2113 = vadd.f32 0.0, %v2112
    %v2114 = vpop.f32.mrf.mxu0
    %v2115 = vpop.f32.mrf.mxu0
    %v2116 = vadd.f32 0.0, %v2115
    %v2117 = vpop.f32.mrf.mxu0
    %2118 = vmatprep.mubr.bf16.mxu0 0
    %2119 = vmatmul.mubr.bf16.gmra.mxu0 %v2038
    %v2120 = vpop.f32.mrf.mxu0
    %v2121 = vadd.f32 0.0, %v2120
    %v2122 = vpop.f32.mrf.mxu0
    %v2123 = vpop.f32.mrf.mxu0
    %v2124 = vadd.f32 0.0, %v2123
    %v2125 = vpop.f32.mrf.mxu0
    %2126 = vmatprep.mubr.bf16.mxu0 0
    %2127 = vmatmul.mubr.bf16.gmra.mxu0 %v2041
    %v2128 = vpop.f32.mrf.mxu0
    %v2129 = vadd.f32 0.0, %v2128
    %v2130 = vpop.f32.mrf.mxu0
    %v2131 = vpop.f32.mrf.mxu0
    %v2132 = vadd.f32 0.0, %v2131
    %v2133 = vpop.f32.mrf.mxu0
    %2134 = vmatprep.mubr.bf16.mxu0 0
    %2135 = vmatmul.mubr.bf16.gmra.mxu0 %v2044
    %v2136 = vpop.f32.mrf.mxu0
    %v2137 = vadd.f32 0.0, %v2136
    %v2138 = vpop.f32.mrf.mxu0
    %v2139 = vpop.f32.mrf.mxu0
    %v2140 = vadd.f32 0.0, %v2139
    %v2141 = vpop.f32.mrf.mxu0
    %2142 = vmatprep.mubr.bf16.mxu0 0
    %2143 = vmatmul.mubr.bf16.gmra.mxu0 %v2047
    %v2144 = vpop.f32.mrf.mxu0
    %v2145 = vadd.f32 0.0, %v2144
    %v2146 = vpop.f32.mrf.mxu0
    %v2147 = vpop.f32.mrf.mxu0
    %v2148 = vadd.f32 0.0, %v2147
    %v2149 = vpop.f32.mrf.mxu0
    %2150 = vmatprep.mubr.bf16.mxu0 0
    %2151 = vmatmul.mubr.bf16.gmra.mxu0 %v2050
    %v2152 = vpop.f32.mrf.mxu0
    %v2153 = vadd.f32 0.0, %v2152
    %v2154 = vpop.f32.mrf.mxu0
    %v2155 = vpop.f32.mrf.mxu0
    %v2156 = vadd.f32 0.0, %v2155
    %v2157 = vpop.f32.mrf.mxu0
    %2158 = vmatprep.mubr.bf16.mxu0 0
    %2159 = vmatmul.mubr.bf16.gmra.mxu0 %v2053
    %v2160 = vpop.f32.mrf.mxu0
    %v2161 = vadd.f32 0.0, %v2160
    %v2162 = vpop.f32.mrf.mxu0
    %v2163 = vpop.f32.mrf.mxu0
    %v2164 = vadd.f32 0.0, %v2163
    %v2165 = vpop.f32.mrf.mxu0
    %2166 = vmatprep.mubr.bf16.mxu0 0
    %2167 = vmatmul.mubr.bf16.gmra.mxu0 %v2056
    %v2168 = vpop.f32.mrf.mxu0
    %v2169 = vadd.f32 0.0, %v2168
    %v2170 = vpop.f32.mrf.mxu0
    %v2171 = vpop.f32.mrf.mxu0
    %v2172 = vadd.f32 0.0, %v2171
    %v2173 = vpop.f32.mrf.mxu0
    %2174 = vmatprep.mubr.bf16.mxu0 0
    %2175 = vmatmul.mubr.bf16.gmra.mxu0 %v2059
    %v2176 = vpop.f32.mrf.mxu0
    %v2177 = vadd.f32 0.0, %v2176
    %v2178 = vpop.f32.mrf.mxu0
    %v2179 = vpop.f32.mrf.mxu0
    %v2180 = vadd.f32 0.0, %v2179
    %v2181 = vpop.f32.mrf.mxu0
    %2182 = vmatprep.mubr.bf16.mxu0 0
    %2183 = vmatmul.mubr.bf16.gmra.mxu0 %v2062
    %v2184 = vpop.f32.mrf.mxu0
    %v2185 = vadd.f32 0.0, %v2184
    %v2186 = vpop.f32.mrf.mxu0
    %v2187 = vpop.f32.mrf.mxu0
    %v2188 = vadd.f32 0.0, %v2187
    %v2189 = vpop.f32.mrf.mxu0
    %2190 = vmatprep.mubr.bf16.mxu0 0
    %2191 = vmatmul.mubr.bf16.gmra.mxu0 %v2065
    %v2192 = vpop.f32.mrf.mxu0
    %v2193 = vadd.f32 0.0, %v2192
    %v2194 = vpop.f32.mrf.mxu0
    %v2195 = vpop.f32.mrf.mxu0
    %v2196 = vadd.f32 0.0, %v2195
    %v2197 = vpop.f32.mrf.mxu0
    %2198 = vmatprep.mubr.bf16.mxu0 0
    %2199 = vmatmul.mubr.bf16.gmra.mxu0 %v2068
    %v2200 = vpop.f32.mrf.mxu0
    %v2201 = vadd.f32 0.0, %v2200
    %v2202 = vpop.f32.mrf.mxu0
    %v2203 = vpop.f32.mrf.mxu0
    %v2204 = vpop.f32.mrf.mxu0
    %2205 = vdwg.mxu0
    %v2206 = vadd.f32 %v1960, %v2105
    %v2207 = vadd.f32 %v1961, %v2108
    %v2208 = vadd.f32 %v1962, %v2113
    %v2209 = vadd.f32 %v1963, %v2116
    %v2210 = vadd.f32 %v1964, %v2121
    %v2211 = vadd.f32 %v1965, %v2124
    %v2212 = vadd.f32 %v1966, %v2129
    %v2213 = vadd.f32 %v1967, %v2132
    %v2214 = vadd.f32 %v1968, %v2137
    %v2215 = vadd.f32 %v1969, %v2140
    %v2216 = vadd.f32 %v1970, %v2145
    %v2217 = vadd.f32 %v1971, %v2148
    %v2218 = vadd.f32 %v1972, %v2153
    %v2219 = vadd.f32 %v1973, %v2156
    %v2220 = vadd.f32 %v1974, %v2161
    %v2221 = vadd.f32 %v1975, %v2164
    %v2222 = vadd.f32 %v1976, %v2169
    %v2223 = vadd.f32 %v1977, %v2172
    %v2224 = vadd.f32 %v1978, %v2177
    %v2225 = vadd.f32 %v1979, %v2180
    %v2226 = vadd.f32 %v1980, %v2185
    %v2227 = vadd.f32 %v1981, %v2188
    %v2228 = vadd.f32 %v1982, %v2193
    %v2229 = vadd.f32 %v1983, %v2196
    %v2230 = vadd.f32 %v1984, %v2201
    %v2231 = vld [vmem:[#allocation3 + $0xb] sm:$0xff]
    %v2232 = vld [vmem:[#allocation3 + $0x13] sm:$0xff]
    %v2233 = vld [vmem:[#allocation3 + $0x1b] sm:$0xff]
    %v2234 = vld [vmem:[#allocation3 + $0x23] sm:$0xff]
    %v2235 = vld [vmem:[#allocation3 + $0x2b] sm:$0xff]
    %v2236 = vld [vmem:[#allocation3 + $0x33] sm:$0xff]
    %v2237 = vld [vmem:[#allocation3 + $0x3b] sm:$0xff]
    %v2238 = vld [vmem:[#allocation3 + $0x43] sm:$0xff]
    %v2239 = vld [vmem:[#allocation3 + $0x4b] sm:$0xff]
    %v2240 = vld [vmem:[#allocation3 + $0x53] sm:$0xff]
    %v2241 = vld [vmem:[#allocation3 + $0x5b] sm:$0xff]
    %v2242 = vld [vmem:[#allocation3 + $0x63] sm:$0xff]
    %v2243 = vld [vmem:[#allocation3 + $0x6b] sm:$0xff]
    %v2244 = vld [vmem:[#allocation3 + $0x73] sm:$0xff]
    %v2245 = vld [vmem:[#allocation3 + $0x7b] sm:$0xff]
    %v2246 = vld [vmem:[#allocation3 + $0x83] sm:$0xff]
    %v2247 = vld [vmem:[#allocation3 + $0x8b] sm:$0xff]
    %v2248 = vld [vmem:[#allocation3 + $0x93] sm:$0xff]
    %v2249 = vld [vmem:[#allocation3 + $0x9b] sm:$0xff]
    %v2250 = vld [vmem:[#allocation3 + $0xa3] sm:$0xff]
    %v2251 = vld [vmem:[#allocation3 + $0xab] sm:$0xff]
    %v2252 = vld [vmem:[#allocation3 + $0xb3] sm:$0xff]
    %v2253 = vld [vmem:[#allocation3 + $0xbb] sm:$0xff]
    %v2254 = vld [vmem:[#allocation3 + $0xc3] sm:$0xff]
    %v2255 = vld [vmem:[#allocation3 + $0xcb] sm:$0xff]
    %v2256 = vpack.c.bf16 %v2232, %v2231
    %v2257 = vpack.c.bf16 %v2234, %v2233
    %v2258 = vpack.c.bf16 %v2236, %v2235
    %v2259 = vpack.c.bf16 %v2238, %v2237
    %v2260 = vpack.c.bf16 %v2240, %v2239
    %v2261 = vpack.c.bf16 %v2242, %v2241
    %v2262 = vpack.c.bf16 %v2244, %v2243
    %v2263 = vpack.c.bf16 %v2246, %v2245
    %v2264 = vpack.c.bf16 %v2248, %v2247
    %v2265 = vpack.c.bf16 %v2250, %v2249
    %v2266 = vpack.c.bf16 %v2252, %v2251
    %v2267 = vpack.c.bf16 %v2254, %v2253
    %v2268 = vpack.c.bf16 %v2255, %v2255
    %v2269 = vld [vmem:[%s3 + $0x20] sm:$0xf]
    %v2270 = vld [vmem:[%s3 + $0x24] sm:$0xf]
    %v2273 = vunpack.c.l.b16 %v2269
    %v2274 = vunpack.c.l.b16 %v2270
    %v2275 = vpack.c.b16 %v2274, %v2273
    %v2278 = vsel %vm359, %v2256, 0
    %v2281 = vsel %vm359, %v2257, 0
    %v2284 = vsel %vm359, %v2258, 0
    %v2287 = vsel %vm359, %v2259, 0
    %v2290 = vsel %vm359, %v2260, 0
    %v2293 = vsel %vm359, %v2261, 0
    %v2296 = vsel %vm359, %v2262, 0
    %v2299 = vsel %vm359, %v2263, 0
    %v2302 = vsel %vm359, %v2264, 0
    %v2305 = vsel %vm359, %v2265, 0
    %v2308 = vsel %vm359, %v2266, 0
    %v2311 = vsel %vm359, %v2267, 0
    %v2314 = vsel %vm359, %v2268, 0
    %2316 = vmatprep.subr.bf16.mxu0 0
    %2317 = vmatpush1.bf16.msra.mxu0 0
    %2318 = vmatprep.subr.bf16.mxu0 0
    %2319 = vmatpush1.bf16.msra.mxu0 0
    %2320 = vmatprep.subr.bf16.mxu0 0
    %2321 = vmatpush1.bf16.msra.mxu0 0
    %2322 = vmatprep.subr.bf16.mxu0 0
    %2323 = vmatpush1.bf16.msra.mxu0 0
    %2324 = vmatprep.subr.bf16.mxu0 0
    %2325 = vmatpush1.bf16.msra.mxu0 0
    %2326 = vmatprep.subr.bf16.mxu0 0
    %2327 = vmatpush1.bf16.msra.mxu0 0
    %2328 = vmatprep.subr.bf16.mxu0 0
    %2329 = vmatpush1.bf16.msra.mxu0 0
    %2330 = vmatprep.subr.bf16.mxu0 0
    %2331 = vmatpush1.bf16.msra.mxu0 %v2275
    %2332 = vmatprep.subr.bf16.mxu0 0
    %2333 = vmatpush2.bf16.msra.mxu0 0
    %2334 = vmatprep.subr.bf16.mxu0 0
    %2335 = vmatpush2.bf16.msra.mxu0 0
    %2336 = vmatprep.subr.bf16.mxu0 0
    %2337 = vmatpush2.bf16.msra.mxu0 0
    %2338 = vmatprep.subr.bf16.mxu0 0
    %2339 = vmatpush2.bf16.msra.mxu0 0
    %2340 = vmatprep.subr.bf16.mxu0 0
    %2341 = vmatpush2.bf16.msra.mxu0 0
    %2342 = vmatprep.subr.bf16.mxu0 0
    %2343 = vmatpush2.bf16.msra.mxu0 0
    %2344 = vmatprep.subr.bf16.mxu0 0
    %2345 = vmatpush2.bf16.msra.mxu0 0
    %2346 = vmatprep.subr.bf16.mxu0 0
    %2347 = vmatpush2.bf16.msra.mxu0 0
    %2348 = vmatprep.mubr.bf16.mxu0 0
    %2349 = vmatmul.mubr.bf16.gmra.mxu0 %v2278
    %v2350 = vpop.f32.mrf.mxu0
    %v2351 = vadd.f32 0.0, %v2350
    %v2352 = vpop.f32.mrf.mxu0
    %v2353 = vpop.f32.mrf.mxu0
    %v2354 = vadd.f32 0.0, %v2353
    %v2355 = vpop.f32.mrf.mxu0
    %2356 = vmatprep.mubr.bf16.mxu0 0
    %2357 = vmatmul.mubr.bf16.gmra.mxu0 %v2281
    %v2358 = vpop.f32.mrf.mxu0
    %v2359 = vadd.f32 0.0, %v2358
    %v2360 = vpop.f32.mrf.mxu0
    %v2361 = vpop.f32.mrf.mxu0
    %v2362 = vadd.f32 0.0, %v2361
    %v2363 = vpop.f32.mrf.mxu0
    %2364 = vmatprep.mubr.bf16.mxu0 0
    %2365 = vmatmul.mubr.bf16.gmra.mxu0 %v2284
    %v2366 = vpop.f32.mrf.mxu0
    %v2367 = vadd.f32 0.0, %v2366
    %v2368 = vpop.f32.mrf.mxu0
    %v2369 = vpop.f32.mrf.mxu0
    %v2370 = vadd.f32 0.0, %v2369
    %v2371 = vpop.f32.mrf.mxu0
    %2372 = vmatprep.mubr.bf16.mxu0 0
    %2373 = vmatmul.mubr.bf16.gmra.mxu0 %v2287
    %v2374 = vpop.f32.mrf.mxu0
    %v2375 = vadd.f32 0.0, %v2374
    %v2376 = vpop.f32.mrf.mxu0
    %v2377 = vpop.f32.mrf.mxu0
    %v2378 = vadd.f32 0.0, %v2377
    %v2379 = vpop.f32.mrf.mxu0
    %2380 = vmatprep.mubr.bf16.mxu0 0
    %2381 = vmatmul.mubr.bf16.gmra.mxu0 %v2290
    %v2382 = vpop.f32.mrf.mxu0
    %v2383 = vadd.f32 0.0, %v2382
    %v2384 = vpop.f32.mrf.mxu0
    %v2385 = vpop.f32.mrf.mxu0
    %v2386 = vadd.f32 0.0, %v2385
    %v2387 = vpop.f32.mrf.mxu0
    %2388 = vmatprep.mubr.bf16.mxu0 0
    %2389 = vmatmul.mubr.bf16.gmra.mxu0 %v2293
    %v2390 = vpop.f32.mrf.mxu0
    %v2391 = vadd.f32 0.0, %v2390
    %v2392 = vpop.f32.mrf.mxu0
    %v2393 = vpop.f32.mrf.mxu0
    %v2394 = vadd.f32 0.0, %v2393
    %v2395 = vpop.f32.mrf.mxu0
    %2396 = vmatprep.mubr.bf16.mxu0 0
    %2397 = vmatmul.mubr.bf16.gmra.mxu0 %v2296
    %v2398 = vpop.f32.mrf.mxu0
    %v2399 = vadd.f32 0.0, %v2398
    %v2400 = vpop.f32.mrf.mxu0
    %v2401 = vpop.f32.mrf.mxu0
    %v2402 = vadd.f32 0.0, %v2401
    %v2403 = vpop.f32.mrf.mxu0
    %2404 = vmatprep.mubr.bf16.mxu0 0
    %2405 = vmatmul.mubr.bf16.gmra.mxu0 %v2299
    %v2406 = vpop.f32.mrf.mxu0
    %v2407 = vadd.f32 0.0, %v2406
    %v2408 = vpop.f32.mrf.mxu0
    %v2409 = vpop.f32.mrf.mxu0
    %v2410 = vadd.f32 0.0, %v2409
    %v2411 = vpop.f32.mrf.mxu0
    %2412 = vmatprep.mubr.bf16.mxu0 0
    %2413 = vmatmul.mubr.bf16.gmra.mxu0 %v2302
    %v2414 = vpop.f32.mrf.mxu0
    %v2415 = vadd.f32 0.0, %v2414
    %v2416 = vpop.f32.mrf.mxu0
    %v2417 = vpop.f32.mrf.mxu0
    %v2418 = vadd.f32 0.0, %v2417
    %v2419 = vpop.f32.mrf.mxu0
    %2420 = vmatprep.mubr.bf16.mxu0 0
    %2421 = vmatmul.mubr.bf16.gmra.mxu0 %v2305
    %v2422 = vpop.f32.mrf.mxu0
    %v2423 = vadd.f32 0.0, %v2422
    %v2424 = vpop.f32.mrf.mxu0
    %v2425 = vpop.f32.mrf.mxu0
    %v2426 = vadd.f32 0.0, %v2425
    %v2427 = vpop.f32.mrf.mxu0
    %2428 = vmatprep.mubr.bf16.mxu0 0
    %2429 = vmatmul.mubr.bf16.gmra.mxu0 %v2308
    %v2430 = vpop.f32.mrf.mxu0
    %v2431 = vadd.f32 0.0, %v2430
    %v2432 = vpop.f32.mrf.mxu0
    %v2433 = vpop.f32.mrf.mxu0
    %v2434 = vadd.f32 0.0, %v2433
    %v2435 = vpop.f32.mrf.mxu0
    %2436 = vmatprep.mubr.bf16.mxu0 0
    %2437 = vmatmul.mubr.bf16.gmra.mxu0 %v2311
    %v2438 = vpop.f32.mrf.mxu0
    %v2439 = vadd.f32 0.0, %v2438
    %v2440 = vpop.f32.mrf.mxu0
    %v2441 = vpop.f32.mrf.mxu0
    %v2442 = vadd.f32 0.0, %v2441
    %v2443 = vpop.f32.mrf.mxu0
    %2444 = vmatprep.mubr.bf16.mxu0 0
    %2445 = vmatmul.mubr.bf16.gmra.mxu0 %v2314
    %v2446 = vpop.f32.mrf.mxu0
    %v2447 = vadd.f32 0.0, %v2446
    %v2448 = vpop.f32.mrf.mxu0
    %v2449 = vpop.f32.mrf.mxu0
    %v2450 = vpop.f32.mrf.mxu0
    %2451 = vdwg.mxu0
    %v2452 = vadd.f32 %v2206, %v2351
    %v2453 = vadd.f32 %v2207, %v2354
    %v2454 = vadd.f32 %v2208, %v2359
    %v2455 = vadd.f32 %v2209, %v2362
    %v2456 = vadd.f32 %v2210, %v2367
    %v2457 = vadd.f32 %v2211, %v2370
    %v2458 = vadd.f32 %v2212, %v2375
    %v2459 = vadd.f32 %v2213, %v2378
    %v2460 = vadd.f32 %v2214, %v2383
    %v2461 = vadd.f32 %v2215, %v2386
    %v2462 = vadd.f32 %v2216, %v2391
    %v2463 = vadd.f32 %v2217, %v2394
    %v2464 = vadd.f32 %v2218, %v2399
    %v2465 = vadd.f32 %v2219, %v2402
    %v2466 = vadd.f32 %v2220, %v2407
    %v2467 = vadd.f32 %v2221, %v2410
    %v2468 = vadd.f32 %v2222, %v2415
    %v2469 = vadd.f32 %v2223, %v2418
    %v2470 = vadd.f32 %v2224, %v2423
    %v2471 = vadd.f32 %v2225, %v2426
    %v2472 = vadd.f32 %v2226, %v2431
    %v2473 = vadd.f32 %v2227, %v2434
    %v2474 = vadd.f32 %v2228, %v2439
    %v2475 = vadd.f32 %v2229, %v2442
    %v2476 = vadd.f32 %v2230, %v2447
    %v2477 = vld [vmem:[#allocation3 + $0xc] sm:$0xff]
    %v2478 = vld [vmem:[#allocation3 + $0x14] sm:$0xff]
    %v2479 = vld [vmem:[#allocation3 + $0x1c] sm:$0xff]
    %v2480 = vld [vmem:[#allocation3 + $0x24] sm:$0xff]
    %v2481 = vld [vmem:[#allocation3 + $0x2c] sm:$0xff]
    %v2482 = vld [vmem:[#allocation3 + $0x34] sm:$0xff]
    %v2483 = vld [vmem:[#allocation3 + $0x3c] sm:$0xff]
    %v2484 = vld [vmem:[#allocation3 + $0x44] sm:$0xff]
    %v2485 = vld [vmem:[#allocation3 + $0x4c] sm:$0xff]
    %v2486 = vld [vmem:[#allocation3 + $0x54] sm:$0xff]
    %v2487 = vld [vmem:[#allocation3 + $0x5c] sm:$0xff]
    %v2488 = vld [vmem:[#allocation3 + $0x64] sm:$0xff]
    %v2489 = vld [vmem:[#allocation3 + $0x6c] sm:$0xff]
    %v2490 = vld [vmem:[#allocation3 + $0x74] sm:$0xff]
    %v2491 = vld [vmem:[#allocation3 + $0x7c] sm:$0xff]
    %v2492 = vld [vmem:[#allocation3 + $0x84] sm:$0xff]
    %v2493 = vld [vmem:[#allocation3 + $0x8c] sm:$0xff]
    %v2494 = vld [vmem:[#allocation3 + $0x94] sm:$0xff]
    %v2495 = vld [vmem:[#allocation3 + $0x9c] sm:$0xff]
    %v2496 = vld [vmem:[#allocation3 + $0xa4] sm:$0xff]
    %v2497 = vld [vmem:[#allocation3 + $0xac] sm:$0xff]
    %v2498 = vld [vmem:[#allocation3 + $0xb4] sm:$0xff]
    %v2499 = vld [vmem:[#allocation3 + $0xbc] sm:$0xff]
    %v2500 = vld [vmem:[#allocation3 + $0xc4] sm:$0xff]
    %v2501 = vld [vmem:[#allocation3 + $0xcc] sm:$0xff]
    %v2502 = vpack.c.bf16 %v2478, %v2477
    %v2503 = vpack.c.bf16 %v2480, %v2479
    %v2504 = vpack.c.bf16 %v2482, %v2481
    %v2505 = vpack.c.bf16 %v2484, %v2483
    %v2506 = vpack.c.bf16 %v2486, %v2485
    %v2507 = vpack.c.bf16 %v2488, %v2487
    %v2508 = vpack.c.bf16 %v2490, %v2489
    %v2509 = vpack.c.bf16 %v2492, %v2491
    %v2510 = vpack.c.bf16 %v2494, %v2493
    %v2511 = vpack.c.bf16 %v2496, %v2495
    %v2512 = vpack.c.bf16 %v2498, %v2497
    %v2513 = vpack.c.bf16 %v2500, %v2499
    %v2514 = vpack.c.bf16 %v2501, %v2501
    %v2515 = vld [vmem:[%s3 + $0x28] sm:$0xf]
    %v2516 = vld [vmem:[%s3 + $0x2c] sm:$0xf]
    %v2519 = vunpack.c.l.b16 %v2515
    %v2520 = vunpack.c.l.b16 %v2516
    %v2521 = vpack.c.b16 %v2520, %v2519
    %v2524 = vsel %vm359, %v2502, 0
    %v2527 = vsel %vm359, %v2503, 0
    %v2530 = vsel %vm359, %v2504, 0
    %v2533 = vsel %vm359, %v2505, 0
    %v2536 = vsel %vm359, %v2506, 0
    %v2539 = vsel %vm359, %v2507, 0
    %v2542 = vsel %vm359, %v2508, 0
    %v2545 = vsel %vm359, %v2509, 0
    %v2548 = vsel %vm359, %v2510, 0
    %v2551 = vsel %vm359, %v2511, 0
    %v2554 = vsel %vm359, %v2512, 0
    %v2557 = vsel %vm359, %v2513, 0
    %v2560 = vsel %vm359, %v2514, 0
    %2562 = vmatprep.subr.bf16.mxu0 0
    %2563 = vmatpush1.bf16.msra.mxu0 0
    %2564 = vmatprep.subr.bf16.mxu0 0
    %2565 = vmatpush1.bf16.msra.mxu0 0
    %2566 = vmatprep.subr.bf16.mxu0 0
    %2567 = vmatpush1.bf16.msra.mxu0 0
    %2568 = vmatprep.subr.bf16.mxu0 0
    %2569 = vmatpush1.bf16.msra.mxu0 0
    %2570 = vmatprep.subr.bf16.mxu0 0
    %2571 = vmatpush1.bf16.msra.mxu0 0
    %2572 = vmatprep.subr.bf16.mxu0 0
    %2573 = vmatpush1.bf16.msra.mxu0 0
    %2574 = vmatprep.subr.bf16.mxu0 0
    %2575 = vmatpush1.bf16.msra.mxu0 0
    %2576 = vmatprep.subr.bf16.mxu0 0
    %2577 = vmatpush1.bf16.msra.mxu0 %v2521
    %2578 = vmatprep.subr.bf16.mxu0 0
    %2579 = vmatpush2.bf16.msra.mxu0 0
    %2580 = vmatprep.subr.bf16.mxu0 0
    %2581 = vmatpush2.bf16.msra.mxu0 0
    %2582 = vmatprep.subr.bf16.mxu0 0
    %2583 = vmatpush2.bf16.msra.mxu0 0
    %2584 = vmatprep.subr.bf16.mxu0 0
    %2585 = vmatpush2.bf16.msra.mxu0 0
    %2586 = vmatprep.subr.bf16.mxu0 0
    %2587 = vmatpush2.bf16.msra.mxu0 0
    %2588 = vmatprep.subr.bf16.mxu0 0
    %2589 = vmatpush2.bf16.msra.mxu0 0
    %2590 = vmatprep.subr.bf16.mxu0 0
    %2591 = vmatpush2.bf16.msra.mxu0 0
    %2592 = vmatprep.subr.bf16.mxu0 0
    %2593 = vmatpush2.bf16.msra.mxu0 0
    %2594 = vmatprep.mubr.bf16.mxu0 0
    %2595 = vmatmul.mubr.bf16.gmra.mxu0 %v2524
    %v2596 = vpop.f32.mrf.mxu0
    %v2597 = vadd.f32 0.0, %v2596
    %v2598 = vpop.f32.mrf.mxu0
    %v2599 = vpop.f32.mrf.mxu0
    %v2600 = vadd.f32 0.0, %v2599
    %v2601 = vpop.f32.mrf.mxu0
    %2602 = vmatprep.mubr.bf16.mxu0 0
    %2603 = vmatmul.mubr.bf16.gmra.mxu0 %v2527
    %v2604 = vpop.f32.mrf.mxu0
    %v2605 = vadd.f32 0.0, %v2604
    %v2606 = vpop.f32.mrf.mxu0
    %v2607 = vpop.f32.mrf.mxu0
    %v2608 = vadd.f32 0.0, %v2607
    %v2609 = vpop.f32.mrf.mxu0
    %2610 = vmatprep.mubr.bf16.mxu0 0
    %2611 = vmatmul.mubr.bf16.gmra.mxu0 %v2530
    %v2612 = vpop.f32.mrf.mxu0
    %v2613 = vadd.f32 0.0, %v2612
    %v2614 = vpop.f32.mrf.mxu0
    %v2615 = vpop.f32.mrf.mxu0
    %v2616 = vadd.f32 0.0, %v2615
    %v2617 = vpop.f32.mrf.mxu0
    %2618 = vmatprep.mubr.bf16.mxu0 0
    %2619 = vmatmul.mubr.bf16.gmra.mxu0 %v2533
    %v2620 = vpop.f32.mrf.mxu0
    %v2621 = vadd.f32 0.0, %v2620
    %v2622 = vpop.f32.mrf.mxu0
    %v2623 = vpop.f32.mrf.mxu0
    %v2624 = vadd.f32 0.0, %v2623
    %v2625 = vpop.f32.mrf.mxu0
    %2626 = vmatprep.mubr.bf16.mxu0 0
    %2627 = vmatmul.mubr.bf16.gmra.mxu0 %v2536
    %v2628 = vpop.f32.mrf.mxu0
    %v2629 = vadd.f32 0.0, %v2628
    %v2630 = vpop.f32.mrf.mxu0
    %v2631 = vpop.f32.mrf.mxu0
    %v2632 = vadd.f32 0.0, %v2631
    %v2633 = vpop.f32.mrf.mxu0
    %2634 = vmatprep.mubr.bf16.mxu0 0
    %2635 = vmatmul.mubr.bf16.gmra.mxu0 %v2539
    %v2636 = vpop.f32.mrf.mxu0
    %v2637 = vadd.f32 0.0, %v2636
    %v2638 = vpop.f32.mrf.mxu0
    %v2639 = vpop.f32.mrf.mxu0
    %v2640 = vadd.f32 0.0, %v2639
    %v2641 = vpop.f32.mrf.mxu0
    %2642 = vmatprep.mubr.bf16.mxu0 0
    %2643 = vmatmul.mubr.bf16.gmra.mxu0 %v2542
    %v2644 = vpop.f32.mrf.mxu0
    %v2645 = vadd.f32 0.0, %v2644
    %v2646 = vpop.f32.mrf.mxu0
    %v2647 = vpop.f32.mrf.mxu0
    %v2648 = vadd.f32 0.0, %v2647
    %v2649 = vpop.f32.mrf.mxu0
    %2650 = vmatprep.mubr.bf16.mxu0 0
    %2651 = vmatmul.mubr.bf16.gmra.mxu0 %v2545
    %v2652 = vpop.f32.mrf.mxu0
    %v2653 = vadd.f32 0.0, %v2652
    %v2654 = vpop.f32.mrf.mxu0
    %v2655 = vpop.f32.mrf.mxu0
    %v2656 = vadd.f32 0.0, %v2655
    %v2657 = vpop.f32.mrf.mxu0
    %2658 = vmatprep.mubr.bf16.mxu0 0
    %2659 = vmatmul.mubr.bf16.gmra.mxu0 %v2548
    %v2660 = vpop.f32.mrf.mxu0
    %v2661 = vadd.f32 0.0, %v2660
    %v2662 = vpop.f32.mrf.mxu0
    %v2663 = vpop.f32.mrf.mxu0
    %v2664 = vadd.f32 0.0, %v2663
    %v2665 = vpop.f32.mrf.mxu0
    %2666 = vmatprep.mubr.bf16.mxu0 0
    %2667 = vmatmul.mubr.bf16.gmra.mxu0 %v2551
    %v2668 = vpop.f32.mrf.mxu0
    %v2669 = vadd.f32 0.0, %v2668
    %v2670 = vpop.f32.mrf.mxu0
    %v2671 = vpop.f32.mrf.mxu0
    %v2672 = vadd.f32 0.0, %v2671
    %v2673 = vpop.f32.mrf.mxu0
    %2674 = vmatprep.mubr.bf16.mxu0 0
    %2675 = vmatmul.mubr.bf16.gmra.mxu0 %v2554
    %v2676 = vpop.f32.mrf.mxu0
    %v2677 = vadd.f32 0.0, %v2676
    %v2678 = vpop.f32.mrf.mxu0
    %v2679 = vpop.f32.mrf.mxu0
    %v2680 = vadd.f32 0.0, %v2679
    %v2681 = vpop.f32.mrf.mxu0
    %2682 = vmatprep.mubr.bf16.mxu0 0
    %2683 = vmatmul.mubr.bf16.gmra.mxu0 %v2557
    %v2684 = vpop.f32.mrf.mxu0
    %v2685 = vadd.f32 0.0, %v2684
    %v2686 = vpop.f32.mrf.mxu0
    %v2687 = vpop.f32.mrf.mxu0
    %v2688 = vadd.f32 0.0, %v2687
    %v2689 = vpop.f32.mrf.mxu0
    %2690 = vmatprep.mubr.bf16.mxu0 0
    %2691 = vmatmul.mubr.bf16.gmra.mxu0 %v2560
    %v2692 = vpop.f32.mrf.mxu0
    %v2693 = vadd.f32 0.0, %v2692
    %v2694 = vpop.f32.mrf.mxu0
    %v2695 = vpop.f32.mrf.mxu0
    %v2696 = vpop.f32.mrf.mxu0
    %2697 = vdwg.mxu0
    %v2698 = vadd.f32 %v2452, %v2597
    %v2699 = vadd.f32 %v2453, %v2600
    %v2700 = vadd.f32 %v2454, %v2605
    %v2701 = vadd.f32 %v2455, %v2608
    %v2702 = vadd.f32 %v2456, %v2613
    %v2703 = vadd.f32 %v2457, %v2616
    %v2704 = vadd.f32 %v2458, %v2621
    %v2705 = vadd.f32 %v2459, %v2624
    %v2706 = vadd.f32 %v2460, %v2629
    %v2707 = vadd.f32 %v2461, %v2632
    %v2708 = vadd.f32 %v2462, %v2637
    %v2709 = vadd.f32 %v2463, %v2640
    %v2710 = vadd.f32 %v2464, %v2645
    %v2711 = vadd.f32 %v2465, %v2648
    %v2712 = vadd.f32 %v2466, %v2653
    %v2713 = vadd.f32 %v2467, %v2656
    %v2714 = vadd.f32 %v2468, %v2661
    %v2715 = vadd.f32 %v2469, %v2664
    %v2716 = vadd.f32 %v2470, %v2669
    %v2717 = vadd.f32 %v2471, %v2672
    %v2718 = vadd.f32 %v2472, %v2677
    %v2719 = vadd.f32 %v2473, %v2680
    %v2720 = vadd.f32 %v2474, %v2685
    %v2721 = vadd.f32 %v2475, %v2688
    %v2722 = vadd.f32 %v2476, %v2693
    %v2723 = vld [vmem:[#allocation3 + $0x14] sm:$0xff]
    %v2724 = vld [vmem:[#allocation3 + $0x1c] sm:$0xff]
    %v2725 = vld [vmem:[#allocation3 + $0x24] sm:$0xff]
    %v2726 = vld [vmem:[#allocation3 + $0x2c] sm:$0xff]
    %v2727 = vld [vmem:[#allocation3 + $0x34] sm:$0xff]
    %v2728 = vld [vmem:[#allocation3 + $0x3c] sm:$0xff]
    %v2729 = vld [vmem:[#allocation3 + $0x44] sm:$0xff]
    %v2730 = vld [vmem:[#allocation3 + $0x4c] sm:$0xff]
    %v2731 = vld [vmem:[#allocation3 + $0x54] sm:$0xff]
    %v2732 = vld [vmem:[#allocation3 + $0x5c] sm:$0xff]
    %v2733 = vld [vmem:[#allocation3 + $0x64] sm:$0xff]
    %v2734 = vld [vmem:[#allocation3 + $0x6c] sm:$0xff]
    %v2735 = vld [vmem:[#allocation3 + $0x74] sm:$0xff]
    %v2736 = vld [vmem:[#allocation3 + $0x7c] sm:$0xff]
    %v2737 = vld [vmem:[#allocation3 + $0x84] sm:$0xff]
    %v2738 = vld [vmem:[#allocation3 + $0x8c] sm:$0xff]
    %v2739 = vld [vmem:[#allocation3 + $0x94] sm:$0xff]
    %v2740 = vld [vmem:[#allocation3 + $0x9c] sm:$0xff]
    %v2741 = vld [vmem:[#allocation3 + $0xa4] sm:$0xff]
    %v2742 = vld [vmem:[#allocation3 + $0xac] sm:$0xff]
    %v2743 = vld [vmem:[#allocation3 + $0xb4] sm:$0xff]
    %v2744 = vld [vmem:[#allocation3 + $0xbc] sm:$0xff]
    %v2745 = vld [vmem:[#allocation3 + $0xc4] sm:$0xff]
    %v2746 = vld [vmem:[#allocation3 + $0xcc] sm:$0xff]
    %v2747 = vld [vmem:[#allocation3 + $0xd4] sm:$0xff]
    %v2748 = vpack.c.bf16 %v2724, %v2723
    %v2749 = vpack.c.bf16 %v2726, %v2725
    %v2750 = vpack.c.bf16 %v2728, %v2727
    %v2751 = vpack.c.bf16 %v2730, %v2729
    %v2752 = vpack.c.bf16 %v2732, %v2731
    %v2753 = vpack.c.bf16 %v2734, %v2733
    %v2754 = vpack.c.bf16 %v2736, %v2735
    %v2755 = vpack.c.bf16 %v2738, %v2737
    %v2756 = vpack.c.bf16 %v2740, %v2739
    %v2757 = vpack.c.bf16 %v2742, %v2741
    %v2758 = vpack.c.bf16 %v2744, %v2743
    %v2759 = vpack.c.bf16 %v2746, %v2745
    %v2760 = vpack.c.bf16 %v2747, %v2747
    %v2761 = vld [vmem:[%s3 + $0x30] sm:$0xf]
    %v2762 = vld [vmem:[%s3 + $0x34] sm:$0xf]
    %v2765 = vunpack.c.l.b16 %v2761
    %v2766 = vunpack.c.l.b16 %v2762
    %v2767 = vpack.c.b16 %v2766, %v2765
    %v2770 = vsel %vm359, %v2748, 0
    %v2773 = vsel %vm359, %v2749, 0
    %v2776 = vsel %vm359, %v2750, 0
    %v2779 = vsel %vm359, %v2751, 0
    %v2782 = vsel %vm359, %v2752, 0
    %v2785 = vsel %vm359, %v2753, 0
    %v2788 = vsel %vm359, %v2754, 0
    %v2791 = vsel %vm359, %v2755, 0
    %v2794 = vsel %vm359, %v2756, 0
    %v2797 = vsel %vm359, %v2757, 0
    %v2800 = vsel %vm359, %v2758, 0
    %v2803 = vsel %vm359, %v2759, 0
    %v2806 = vsel %vm359, %v2760, 0
    %2808 = vmatprep.subr.bf16.mxu0 0
    %2809 = vmatpush1.bf16.msra.mxu0 0
    %2810 = vmatprep.subr.bf16.mxu0 0
    %2811 = vmatpush1.bf16.msra.mxu0 0
    %2812 = vmatprep.subr.bf16.mxu0 0
    %2813 = vmatpush1.bf16.msra.mxu0 0
    %2814 = vmatprep.subr.bf16.mxu0 0
    %2815 = vmatpush1.bf16.msra.mxu0 0
    %2816 = vmatprep.subr.bf16.mxu0 0
    %2817 = vmatpush1.bf16.msra.mxu0 0
    %2818 = vmatprep.subr.bf16.mxu0 0
    %2819 = vmatpush1.bf16.msra.mxu0 0
    %2820 = vmatprep.subr.bf16.mxu0 0
    %2821 = vmatpush1.bf16.msra.mxu0 0
    %2822 = vmatprep.subr.bf16.mxu0 0
    %2823 = vmatpush1.bf16.msra.mxu0 %v2767
    %2824 = vmatprep.subr.bf16.mxu0 0
    %2825 = vmatpush2.bf16.msra.mxu0 0
    %2826 = vmatprep.subr.bf16.mxu0 0
    %2827 = vmatpush2.bf16.msra.mxu0 0
    %2828 = vmatprep.subr.bf16.mxu0 0
    %2829 = vmatpush2.bf16.msra.mxu0 0
    %2830 = vmatprep.subr.bf16.mxu0 0
    %2831 = vmatpush2.bf16.msra.mxu0 0
    %2832 = vmatprep.subr.bf16.mxu0 0
    %2833 = vmatpush2.bf16.msra.mxu0 0
    %2834 = vmatprep.subr.bf16.mxu0 0
    %2835 = vmatpush2.bf16.msra.mxu0 0
    %2836 = vmatprep.subr.bf16.mxu0 0
    %2837 = vmatpush2.bf16.msra.mxu0 0
    %2838 = vmatprep.subr.bf16.mxu0 0
    %2839 = vmatpush2.bf16.msra.mxu0 0
    %2840 = vmatprep.mubr.bf16.mxu0 0
    %2841 = vmatmul.mubr.bf16.gmra.mxu0 %v2770
    %v2842 = vpop.f32.mrf.mxu0
    %v2843 = vadd.f32 0.0, %v2842
    %v2844 = vpop.f32.mrf.mxu0
    %v2845 = vpop.f32.mrf.mxu0
    %v2846 = vadd.f32 0.0, %v2845
    %v2847 = vpop.f32.mrf.mxu0
    %2848 = vmatprep.mubr.bf16.mxu0 0
    %2849 = vmatmul.mubr.bf16.gmra.mxu0 %v2773
    %v2850 = vpop.f32.mrf.mxu0
    %v2851 = vadd.f32 0.0, %v2850
    %v2852 = vpop.f32.mrf.mxu0
    %v2853 = vpop.f32.mrf.mxu0
    %v2854 = vadd.f32 0.0, %v2853
    %v2855 = vpop.f32.mrf.mxu0
    %2856 = vmatprep.mubr.bf16.mxu0 0
    %2857 = vmatmul.mubr.bf16.gmra.mxu0 %v2776
    %v2858 = vpop.f32.mrf.mxu0
    %v2859 = vadd.f32 0.0, %v2858
    %v2860 = vpop.f32.mrf.mxu0
    %v2861 = vpop.f32.mrf.mxu0
    %v2862 = vadd.f32 0.0, %v2861
    %v2863 = vpop.f32.mrf.mxu0
    %2864 = vmatprep.mubr.bf16.mxu0 0
    %2865 = vmatmul.mubr.bf16.gmra.mxu0 %v2779
    %v2866 = vpop.f32.mrf.mxu0
    %v2867 = vadd.f32 0.0, %v2866
    %v2868 = vpop.f32.mrf.mxu0
    %v2869 = vpop.f32.mrf.mxu0
    %v2870 = vadd.f32 0.0, %v2869
    %v2871 = vpop.f32.mrf.mxu0
    %2872 = vmatprep.mubr.bf16.mxu0 0
    %2873 = vmatmul.mubr.bf16.gmra.mxu0 %v2782
    %v2874 = vpop.f32.mrf.mxu0
    %v2875 = vadd.f32 0.0, %v2874
    %v2876 = vpop.f32.mrf.mxu0
    %v2877 = vpop.f32.mrf.mxu0
    %v2878 = vadd.f32 0.0, %v2877
    %v2879 = vpop.f32.mrf.mxu0
    %2880 = vmatprep.mubr.bf16.mxu0 0
    %2881 = vmatmul.mubr.bf16.gmra.mxu0 %v2785
    %v2882 = vpop.f32.mrf.mxu0
    %v2883 = vadd.f32 0.0, %v2882
    %v2884 = vpop.f32.mrf.mxu0
    %v2885 = vpop.f32.mrf.mxu0
    %v2886 = vadd.f32 0.0, %v2885
    %v2887 = vpop.f32.mrf.mxu0
    %2888 = vmatprep.mubr.bf16.mxu0 0
    %2889 = vmatmul.mubr.bf16.gmra.mxu0 %v2788
    %v2890 = vpop.f32.mrf.mxu0
    %v2891 = vadd.f32 0.0, %v2890
    %v2892 = vpop.f32.mrf.mxu0
    %v2893 = vpop.f32.mrf.mxu0
    %v2894 = vadd.f32 0.0, %v2893
    %v2895 = vpop.f32.mrf.mxu0
    %2896 = vmatprep.mubr.bf16.mxu0 0
    %2897 = vmatmul.mubr.bf16.gmra.mxu0 %v2791
    %v2898 = vpop.f32.mrf.mxu0
    %v2899 = vadd.f32 0.0, %v2898
    %v2900 = vpop.f32.mrf.mxu0
    %v2901 = vpop.f32.mrf.mxu0
    %v2902 = vadd.f32 0.0, %v2901
    %v2903 = vpop.f32.mrf.mxu0
    %2904 = vmatprep.mubr.bf16.mxu0 0
    %2905 = vmatmul.mubr.bf16.gmra.mxu0 %v2794
    %v2906 = vpop.f32.mrf.mxu0
    %v2907 = vadd.f32 0.0, %v2906
    %v2908 = vpop.f32.mrf.mxu0
    %v2909 = vpop.f32.mrf.mxu0
    %v2910 = vadd.f32 0.0, %v2909
    %v2911 = vpop.f32.mrf.mxu0
    %2912 = vmatprep.mubr.bf16.mxu0 0
    %2913 = vmatmul.mubr.bf16.gmra.mxu0 %v2797
    %v2914 = vpop.f32.mrf.mxu0
    %v2915 = vadd.f32 0.0, %v2914
    %v2916 = vpop.f32.mrf.mxu0
    %v2917 = vpop.f32.mrf.mxu0
    %v2918 = vadd.f32 0.0, %v2917
    %v2919 = vpop.f32.mrf.mxu0
    %2920 = vmatprep.mubr.bf16.mxu0 0
    %2921 = vmatmul.mubr.bf16.gmra.mxu0 %v2800
    %v2922 = vpop.f32.mrf.mxu0
    %v2923 = vadd.f32 0.0, %v2922
    %v2924 = vpop.f32.mrf.mxu0
    %v2925 = vpop.f32.mrf.mxu0
    %v2926 = vadd.f32 0.0, %v2925
    %v2927 = vpop.f32.mrf.mxu0
    %2928 = vmatprep.mubr.bf16.mxu0 0
    %2929 = vmatmul.mubr.bf16.gmra.mxu0 %v2803
    %v2930 = vpop.f32.mrf.mxu0
    %v2931 = vadd.f32 0.0, %v2930
    %v2932 = vpop.f32.mrf.mxu0
    %v2933 = vpop.f32.mrf.mxu0
    %v2934 = vadd.f32 0.0, %v2933
    %v2935 = vpop.f32.mrf.mxu0
    %2936 = vmatprep.mubr.bf16.mxu0 0
    %2937 = vmatmul.mubr.bf16.gmra.mxu0 %v2806
    %v2938 = vpop.f32.mrf.mxu0
    %v2939 = vadd.f32 0.0, %v2938
    %v2940 = vpop.f32.mrf.mxu0
    %v2941 = vpop.f32.mrf.mxu0
    %v2942 = vpop.f32.mrf.mxu0
    %2943 = vdwg.mxu0
    %v2944 = vadd.f32 %v2698, %v2843
    %v2945 = vadd.f32 %v2699, %v2846
    %v2946 = vadd.f32 %v2700, %v2851
    %v2947 = vadd.f32 %v2701, %v2854
    %v2948 = vadd.f32 %v2702, %v2859
    %v2949 = vadd.f32 %v2703, %v2862
    %v2950 = vadd.f32 %v2704, %v2867
    %v2951 = vadd.f32 %v2705, %v2870
    %v2952 = vadd.f32 %v2706, %v2875
    %v2953 = vadd.f32 %v2707, %v2878
    %v2954 = vadd.f32 %v2708, %v2883
    %v2955 = vadd.f32 %v2709, %v2886
    %v2956 = vadd.f32 %v2710, %v2891
    %v2957 = vadd.f32 %v2711, %v2894
    %v2958 = vadd.f32 %v2712, %v2899
    %v2959 = vadd.f32 %v2713, %v2902
    %v2960 = vadd.f32 %v2714, %v2907
    %v2961 = vadd.f32 %v2715, %v2910
    %v2962 = vadd.f32 %v2716, %v2915
    %v2963 = vadd.f32 %v2717, %v2918
    %v2964 = vadd.f32 %v2718, %v2923
    %v2965 = vadd.f32 %v2719, %v2926
    %v2966 = vadd.f32 %v2720, %v2931
    %v2967 = vadd.f32 %v2721, %v2934
    %v2968 = vadd.f32 %v2722, %v2939
    %v2969 = vld [vmem:[#allocation3 + $0x15] sm:$0xff]
    %v2970 = vld [vmem:[#allocation3 + $0x1d] sm:$0xff]
    %v2971 = vld [vmem:[#allocation3 + $0x25] sm:$0xff]
    %v2972 = vld [vmem:[#allocation3 + $0x2d] sm:$0xff]
    %v2973 = vld [vmem:[#allocation3 + $0x35] sm:$0xff]
    %v2974 = vld [vmem:[#allocation3 + $0x3d] sm:$0xff]
    %v2975 = vld [vmem:[#allocation3 + $0x45] sm:$0xff]
    %v2976 = vld [vmem:[#allocation3 + $0x4d] sm:$0xff]
    %v2977 = vld [vmem:[#allocation3 + $0x55] sm:$0xff]
    %v2978 = vld [vmem:[#allocation3 + $0x5d] sm:$0xff]
    %v2979 = vld [vmem:[#allocation3 + $0x65] sm:$0xff]
    %v2980 = vld [vmem:[#allocation3 + $0x6d] sm:$0xff]
    %v2981 = vld [vmem:[#allocation3 + $0x75] sm:$0xff]
    %v2982 = vld [vmem:[#allocation3 + $0x7d] sm:$0xff]
    %v2983 = vld [vmem:[#allocation3 + $0x85] sm:$0xff]
    %v2984 = vld [vmem:[#allocation3 + $0x8d] sm:$0xff]
    %v2985 = vld [vmem:[#allocation3 + $0x95] sm:$0xff]
    %v2986 = vld [vmem:[#allocation3 + $0x9d] sm:$0xff]
    %v2987 = vld [vmem:[#allocation3 + $0xa5] sm:$0xff]
    %v2988 = vld [vmem:[#allocation3 + $0xad] sm:$0xff]
    %v2989 = vld [vmem:[#allocation3 + $0xb5] sm:$0xff]
    %v2990 = vld [vmem:[#allocation3 + $0xbd] sm:$0xff]
    %v2991 = vld [vmem:[#allocation3 + $0xc5] sm:$0xff]
    %v2992 = vld [vmem:[#allocation3 + $0xcd] sm:$0xff]
    %v2993 = vld [vmem:[#allocation3 + $0xd5] sm:$0xff]
    %v2994 = vpack.c.bf16 %v2970, %v2969
    %v2995 = vpack.c.bf16 %v2972, %v2971
    %v2996 = vpack.c.bf16 %v2974, %v2973
    %v2997 = vpack.c.bf16 %v2976, %v2975
    %v2998 = vpack.c.bf16 %v2978, %v2977
    %v2999 = vpack.c.bf16 %v2980, %v2979
    %v3000 = vpack.c.bf16 %v2982, %v2981
    %v3001 = vpack.c.bf16 %v2984, %v2983
    %v3002 = vpack.c.bf16 %v2986, %v2985
    %v3003 = vpack.c.bf16 %v2988, %v2987
    %v3004 = vpack.c.bf16 %v2990, %v2989
    %v3005 = vpack.c.bf16 %v2992, %v2991
    %v3006 = vpack.c.bf16 %v2993, %v2993
    %v3007 = vld [vmem:[%s3 + $0x38] sm:$0xf]
    %v3008 = vld [vmem:[%s3 + $0x3c] sm:$0xf]
    %v3011 = vunpack.c.l.b16 %v3007
    %v3012 = vunpack.c.l.b16 %v3008
    %v3013 = vpack.c.b16 %v3012, %v3011
    %v3016 = vsel %vm359, %v2994, 0
    %v3019 = vsel %vm359, %v2995, 0
    %v3022 = vsel %vm359, %v2996, 0
    %v3025 = vsel %vm359, %v2997, 0
    %v3028 = vsel %vm359, %v2998, 0
    %v3031 = vsel %vm359, %v2999, 0
    %v3034 = vsel %vm359, %v3000, 0
    %v3037 = vsel %vm359, %v3001, 0
    %v3040 = vsel %vm359, %v3002, 0
    %v3043 = vsel %vm359, %v3003, 0
    %v3046 = vsel %vm359, %v3004, 0
    %v3049 = vsel %vm359, %v3005, 0
    %v3052 = vsel %vm359, %v3006, 0
    %3054 = vmatprep.subr.bf16.mxu0 0
    %3055 = vmatpush1.bf16.msra.mxu0 0
    %3056 = vmatprep.subr.bf16.mxu0 0
    %3057 = vmatpush1.bf16.msra.mxu0 0
    %3058 = vmatprep.subr.bf16.mxu0 0
    %3059 = vmatpush1.bf16.msra.mxu0 0
    %3060 = vmatprep.subr.bf16.mxu0 0
    %3061 = vmatpush1.bf16.msra.mxu0 0
    %3062 = vmatprep.subr.bf16.mxu0 0
    %3063 = vmatpush1.bf16.msra.mxu0 0
    %3064 = vmatprep.subr.bf16.mxu0 0
    %3065 = vmatpush1.bf16.msra.mxu0 0
    %3066 = vmatprep.subr.bf16.mxu0 0
    %3067 = vmatpush1.bf16.msra.mxu0 0
    %3068 = vmatprep.subr.bf16.mxu0 0
    %3069 = vmatpush1.bf16.msra.mxu0 %v3013
    %3070 = vmatprep.subr.bf16.mxu0 0
    %3071 = vmatpush2.bf16.msra.mxu0 0
    %3072 = vmatprep.subr.bf16.mxu0 0
    %3073 = vmatpush2.bf16.msra.mxu0 0
    %3074 = vmatprep.subr.bf16.mxu0 0
    %3075 = vmatpush2.bf16.msra.mxu0 0
    %3076 = vmatprep.subr.bf16.mxu0 0
    %3077 = vmatpush2.bf16.msra.mxu0 0
    %3078 = vmatprep.subr.bf16.mxu0 0
    %3079 = vmatpush2.bf16.msra.mxu0 0
    %3080 = vmatprep.subr.bf16.mxu0 0
    %3081 = vmatpush2.bf16.msra.mxu0 0
    %3082 = vmatprep.subr.bf16.mxu0 0
    %3083 = vmatpush2.bf16.msra.mxu0 0
    %3084 = vmatprep.subr.bf16.mxu0 0
    %3085 = vmatpush2.bf16.msra.mxu0 0
    %3086 = vmatprep.mubr.bf16.mxu0 0
    %3087 = vmatmul.mubr.bf16.gmra.mxu0 %v3016
    %v3088 = vpop.f32.mrf.mxu0
    %v3089 = vadd.f32 0.0, %v3088
    %v3090 = vpop.f32.mrf.mxu0
    %v3091 = vpop.f32.mrf.mxu0
    %v3092 = vadd.f32 0.0, %v3091
    %v3093 = vpop.f32.mrf.mxu0
    %3094 = vmatprep.mubr.bf16.mxu0 0
    %3095 = vmatmul.mubr.bf16.gmra.mxu0 %v3019
    %v3096 = vpop.f32.mrf.mxu0
    %v3097 = vadd.f32 0.0, %v3096
    %v3098 = vpop.f32.mrf.mxu0
    %v3099 = vpop.f32.mrf.mxu0
    %v3100 = vadd.f32 0.0, %v3099
    %v3101 = vpop.f32.mrf.mxu0
    %3102 = vmatprep.mubr.bf16.mxu0 0
    %3103 = vmatmul.mubr.bf16.gmra.mxu0 %v3022
    %v3104 = vpop.f32.mrf.mxu0
    %v3105 = vadd.f32 0.0, %v3104
    %v3106 = vpop.f32.mrf.mxu0
    %v3107 = vpop.f32.mrf.mxu0
    %v3108 = vadd.f32 0.0, %v3107
    %v3109 = vpop.f32.mrf.mxu0
    %3110 = vmatprep.mubr.bf16.mxu0 0
    %3111 = vmatmul.mubr.bf16.gmra.mxu0 %v3025
    %v3112 = vpop.f32.mrf.mxu0
    %v3113 = vadd.f32 0.0, %v3112
    %v3114 = vpop.f32.mrf.mxu0
    %v3115 = vpop.f32.mrf.mxu0
    %v3116 = vadd.f32 0.0, %v3115
    %v3117 = vpop.f32.mrf.mxu0
    %3118 = vmatprep.mubr.bf16.mxu0 0
    %3119 = vmatmul.mubr.bf16.gmra.mxu0 %v3028
    %v3120 = vpop.f32.mrf.mxu0
    %v3121 = vadd.f32 0.0, %v3120
    %v3122 = vpop.f32.mrf.mxu0
    %v3123 = vpop.f32.mrf.mxu0
    %v3124 = vadd.f32 0.0, %v3123
    %v3125 = vpop.f32.mrf.mxu0
    %3126 = vmatprep.mubr.bf16.mxu0 0
    %3127 = vmatmul.mubr.bf16.gmra.mxu0 %v3031
    %v3128 = vpop.f32.mrf.mxu0
    %v3129 = vadd.f32 0.0, %v3128
    %v3130 = vpop.f32.mrf.mxu0
    %v3131 = vpop.f32.mrf.mxu0
    %v3132 = vadd.f32 0.0, %v3131
    %v3133 = vpop.f32.mrf.mxu0
    %3134 = vmatprep.mubr.bf16.mxu0 0
    %3135 = vmatmul.mubr.bf16.gmra.mxu0 %v3034
    %v3136 = vpop.f32.mrf.mxu0
    %v3137 = vadd.f32 0.0, %v3136
    %v3138 = vpop.f32.mrf.mxu0
    %v3139 = vpop.f32.mrf.mxu0
    %v3140 = vadd.f32 0.0, %v3139
    %v3141 = vpop.f32.mrf.mxu0
    %3142 = vmatprep.mubr.bf16.mxu0 0
    %3143 = vmatmul.mubr.bf16.gmra.mxu0 %v3037
    %v3144 = vpop.f32.mrf.mxu0
    %v3145 = vadd.f32 0.0, %v3144
    %v3146 = vpop.f32.mrf.mxu0
    %v3147 = vpop.f32.mrf.mxu0
    %v3148 = vadd.f32 0.0, %v3147
    %v3149 = vpop.f32.mrf.mxu0
    %3150 = vmatprep.mubr.bf16.mxu0 0
    %3151 = vmatmul.mubr.bf16.gmra.mxu0 %v3040
    %v3152 = vpop.f32.mrf.mxu0
    %v3153 = vadd.f32 0.0, %v3152
    %v3154 = vpop.f32.mrf.mxu0
    %v3155 = vpop.f32.mrf.mxu0
    %v3156 = vadd.f32 0.0, %v3155
    %v3157 = vpop.f32.mrf.mxu0
    %3158 = vmatprep.mubr.bf16.mxu0 0
    %3159 = vmatmul.mubr.bf16.gmra.mxu0 %v3043
    %v3160 = vpop.f32.mrf.mxu0
    %v3161 = vadd.f32 0.0, %v3160
    %v3162 = vpop.f32.mrf.mxu0
    %v3163 = vpop.f32.mrf.mxu0
    %v3164 = vadd.f32 0.0, %v3163
    %v3165 = vpop.f32.mrf.mxu0
    %3166 = vmatprep.mubr.bf16.mxu0 0
    %3167 = vmatmul.mubr.bf16.gmra.mxu0 %v3046
    %v3168 = vpop.f32.mrf.mxu0
    %v3169 = vadd.f32 0.0, %v3168
    %v3170 = vpop.f32.mrf.mxu0
    %v3171 = vpop.f32.mrf.mxu0
    %v3172 = vadd.f32 0.0, %v3171
    %v3173 = vpop.f32.mrf.mxu0
    %3174 = vmatprep.mubr.bf16.mxu0 0
    %3175 = vmatmul.mubr.bf16.gmra.mxu0 %v3049
    %v3176 = vpop.f32.mrf.mxu0
    %v3177 = vadd.f32 0.0, %v3176
    %v3178 = vpop.f32.mrf.mxu0
    %v3179 = vpop.f32.mrf.mxu0
    %v3180 = vadd.f32 0.0, %v3179
    %v3181 = vpop.f32.mrf.mxu0
    %3182 = vmatprep.mubr.bf16.mxu0 0
    %3183 = vmatmul.mubr.bf16.gmra.mxu0 %v3052
    %v3184 = vpop.f32.mrf.mxu0
    %v3185 = vadd.f32 0.0, %v3184
    %v3186 = vpop.f32.mrf.mxu0
    %v3187 = vpop.f32.mrf.mxu0
    %v3188 = vpop.f32.mrf.mxu0
    %3189 = vdwg.mxu0
    %v3190 = vadd.f32 %v2944, %v3089
    %v3191 = vadd.f32 %v2945, %v3092
    %v3192 = vadd.f32 %v2946, %v3097
    %v3193 = vadd.f32 %v2947, %v3100
    %v3194 = vadd.f32 %v2948, %v3105
    %v3195 = vadd.f32 %v2949, %v3108
    %v3196 = vadd.f32 %v2950, %v3113
    %v3197 = vadd.f32 %v2951, %v3116
    %v3198 = vadd.f32 %v2952, %v3121
    %v3199 = vadd.f32 %v2953, %v3124
    %v3200 = vadd.f32 %v2954, %v3129
    %v3201 = vadd.f32 %v2955, %v3132
    %v3202 = vadd.f32 %v2956, %v3137
    %v3203 = vadd.f32 %v2957, %v3140
    %v3204 = vadd.f32 %v2958, %v3145
    %v3205 = vadd.f32 %v2959, %v3148
    %v3206 = vadd.f32 %v2960, %v3153
    %v3207 = vadd.f32 %v2961, %v3156
    %v3208 = vadd.f32 %v2962, %v3161
    %v3209 = vadd.f32 %v2963, %v3164
    %v3210 = vadd.f32 %v2964, %v3169
    %v3211 = vadd.f32 %v2965, %v3172
    %v3212 = vadd.f32 %v2966, %v3177
    %v3213 = vadd.f32 %v2967, %v3180
    %v3214 = vadd.f32 %v2968, %v3185
    %v3215 = vld [vmem:[#allocation3 + $0x16] sm:$0xff]
    %v3216 = vld [vmem:[#allocation3 + $0x1e] sm:$0xff]
    %v3217 = vld [vmem:[#allocation3 + $0x26] sm:$0xff]
    %v3218 = vld [vmem:[#allocation3 + $0x2e] sm:$0xff]
    %v3219 = vld [vmem:[#allocation3 + $0x36] sm:$0xff]
    %v3220 = vld [vmem:[#allocation3 + $0x3e] sm:$0xff]
    %v3221 = vld [vmem:[#allocation3 + $0x46] sm:$0xff]
    %v3222 = vld [vmem:[#allocation3 + $0x4e] sm:$0xff]
    %v3223 = vld [vmem:[#allocation3 + $0x56] sm:$0xff]
    %v3224 = vld [vmem:[#allocation3 + $0x5e] sm:$0xff]
    %v3225 = vld [vmem:[#allocation3 + $0x66] sm:$0xff]
    %v3226 = vld [vmem:[#allocation3 + $0x6e] sm:$0xff]
    %v3227 = vld [vmem:[#allocation3 + $0x76] sm:$0xff]
    %v3228 = vld [vmem:[#allocation3 + $0x7e] sm:$0xff]
    %v3229 = vld [vmem:[#allocation3 + $0x86] sm:$0xff]
    %v3230 = vld [vmem:[#allocation3 + $0x8e] sm:$0xff]
    %v3231 = vld [vmem:[#allocation3 + $0x96] sm:$0xff]
    %v3232 = vld [vmem:[#allocation3 + $0x9e] sm:$0xff]
    %v3233 = vld [vmem:[#allocation3 + $0xa6] sm:$0xff]
    %v3234 = vld [vmem:[#allocation3 + $0xae] sm:$0xff]
    %v3235 = vld [vmem:[#allocation3 + $0xb6] sm:$0xff]
    %v3236 = vld [vmem:[#allocation3 + $0xbe] sm:$0xff]
    %v3237 = vld [vmem:[#allocation3 + $0xc6] sm:$0xff]
    %v3238 = vld [vmem:[#allocation3 + $0xce] sm:$0xff]
    %v3239 = vld [vmem:[#allocation3 + $0xd6] sm:$0xff]
    %v3240 = vpack.c.bf16 %v3216, %v3215
    %v3241 = vpack.c.bf16 %v3218, %v3217
    %v3242 = vpack.c.bf16 %v3220, %v3219
    %v3243 = vpack.c.bf16 %v3222, %v3221
    %v3244 = vpack.c.bf16 %v3224, %v3223
    %v3245 = vpack.c.bf16 %v3226, %v3225
    %v3246 = vpack.c.bf16 %v3228, %v3227
    %v3247 = vpack.c.bf16 %v3230, %v3229
    %v3248 = vpack.c.bf16 %v3232, %v3231
    %v3249 = vpack.c.bf16 %v3234, %v3233
    %v3250 = vpack.c.bf16 %v3236, %v3235
    %v3251 = vpack.c.bf16 %v3238, %v3237
    %v3252 = vpack.c.bf16 %v3239, %v3239
    %v3253 = vld [vmem:[%s3 + $0x40] sm:$0xf]
    %v3254 = vld [vmem:[%s3 + $0x44] sm:$0xf]
    %v3257 = vunpack.c.l.b16 %v3253
    %v3258 = vunpack.c.l.b16 %v3254
    %v3259 = vpack.c.b16 %v3258, %v3257
    %v3262 = vsel %vm359, %v3240, 0
    %v3265 = vsel %vm359, %v3241, 0
    %v3268 = vsel %vm359, %v3242, 0
    %v3271 = vsel %vm359, %v3243, 0
    %v3274 = vsel %vm359, %v3244, 0
    %v3277 = vsel %vm359, %v3245, 0
    %v3280 = vsel %vm359, %v3246, 0
    %v3283 = vsel %vm359, %v3247, 0
    %v3286 = vsel %vm359, %v3248, 0
    %v3289 = vsel %vm359, %v3249, 0
    %v3292 = vsel %vm359, %v3250, 0
    %v3295 = vsel %vm359, %v3251, 0
    %v3298 = vsel %vm359, %v3252, 0
    %3300 = vmatprep.subr.bf16.mxu0 0
    %3301 = vmatpush1.bf16.msra.mxu0 0
    %3302 = vmatprep.subr.bf16.mxu0 0
    %3303 = vmatpush1.bf16.msra.mxu0 0
    %3304 = vmatprep.subr.bf16.mxu0 0
    %3305 = vmatpush1.bf16.msra.mxu0 0
    %3306 = vmatprep.subr.bf16.mxu0 0
    %3307 = vmatpush1.bf16.msra.mxu0 0
    %3308 = vmatprep.subr.bf16.mxu0 0
    %3309 = vmatpush1.bf16.msra.mxu0 0
    %3310 = vmatprep.subr.bf16.mxu0 0
    %3311 = vmatpush1.bf16.msra.mxu0 0
    %3312 = vmatprep.subr.bf16.mxu0 0
    %3313 = vmatpush1.bf16.msra.mxu0 0
    %3314 = vmatprep.subr.bf16.mxu0 0
    %3315 = vmatpush1.bf16.msra.mxu0 %v3259
    %3316 = vmatprep.subr.bf16.mxu0 0
    %3317 = vmatpush2.bf16.msra.mxu0 0
    %3318 = vmatprep.subr.bf16.mxu0 0
    %3319 = vmatpush2.bf16.msra.mxu0 0
    %3320 = vmatprep.subr.bf16.mxu0 0
    %3321 = vmatpush2.bf16.msra.mxu0 0
    %3322 = vmatprep.subr.bf16.mxu0 0
    %3323 = vmatpush2.bf16.msra.mxu0 0
    %3324 = vmatprep.subr.bf16.mxu0 0
    %3325 = vmatpush2.bf16.msra.mxu0 0
    %3326 = vmatprep.subr.bf16.mxu0 0
    %3327 = vmatpush2.bf16.msra.mxu0 0
    %3328 = vmatprep.subr.bf16.mxu0 0
    %3329 = vmatpush2.bf16.msra.mxu0 0
    %3330 = vmatprep.subr.bf16.mxu0 0
    %3331 = vmatpush2.bf16.msra.mxu0 0
    %3332 = vmatprep.mubr.bf16.mxu0 0
    %3333 = vmatmul.mubr.bf16.gmra.mxu0 %v3262
    %v3334 = vpop.f32.mrf.mxu0
    %v3335 = vadd.f32 0.0, %v3334
    %v3336 = vpop.f32.mrf.mxu0
    %v3337 = vpop.f32.mrf.mxu0
    %v3338 = vadd.f32 0.0, %v3337
    %v3339 = vpop.f32.mrf.mxu0
    %3340 = vmatprep.mubr.bf16.mxu0 0
    %3341 = vmatmul.mubr.bf16.gmra.mxu0 %v3265
    %v3342 = vpop.f32.mrf.mxu0
    %v3343 = vadd.f32 0.0, %v3342
    %v3344 = vpop.f32.mrf.mxu0
    %v3345 = vpop.f32.mrf.mxu0
    %v3346 = vadd.f32 0.0, %v3345
    %v3347 = vpop.f32.mrf.mxu0
    %3348 = vmatprep.mubr.bf16.mxu0 0
    %3349 = vmatmul.mubr.bf16.gmra.mxu0 %v3268
    %v3350 = vpop.f32.mrf.mxu0
    %v3351 = vadd.f32 0.0, %v3350
    %v3352 = vpop.f32.mrf.mxu0
    %v3353 = vpop.f32.mrf.mxu0
    %v3354 = vadd.f32 0.0, %v3353
    %v3355 = vpop.f32.mrf.mxu0
    %3356 = vmatprep.mubr.bf16.mxu0 0
    %3357 = vmatmul.mubr.bf16.gmra.mxu0 %v3271
    %v3358 = vpop.f32.mrf.mxu0
    %v3359 = vadd.f32 0.0, %v3358
    %v3360 = vpop.f32.mrf.mxu0
    %v3361 = vpop.f32.mrf.mxu0
    %v3362 = vadd.f32 0.0, %v3361
    %v3363 = vpop.f32.mrf.mxu0
    %3364 = vmatprep.mubr.bf16.mxu0 0
    %3365 = vmatmul.mubr.bf16.gmra.mxu0 %v3274
    %v3366 = vpop.f32.mrf.mxu0
    %v3367 = vadd.f32 0.0, %v3366
    %v3368 = vpop.f32.mrf.mxu0
    %v3369 = vpop.f32.mrf.mxu0
    %v3370 = vadd.f32 0.0, %v3369
    %v3371 = vpop.f32.mrf.mxu0
    %3372 = vmatprep.mubr.bf16.mxu0 0
    %3373 = vmatmul.mubr.bf16.gmra.mxu0 %v3277
    %v3374 = vpop.f32.mrf.mxu0
    %v3375 = vadd.f32 0.0, %v3374
    %v3376 = vpop.f32.mrf.mxu0
    %v3377 = vpop.f32.mrf.mxu0
    %v3378 = vadd.f32 0.0, %v3377
    %v3379 = vpop.f32.mrf.mxu0
    %3380 = vmatprep.mubr.bf16.mxu0 0
    %3381 = vmatmul.mubr.bf16.gmra.mxu0 %v3280
    %v3382 = vpop.f32.mrf.mxu0
    %v3383 = vadd.f32 0.0, %v3382
    %v3384 = vpop.f32.mrf.mxu0
    %v3385 = vpop.f32.mrf.mxu0
    %v3386 = vadd.f32 0.0, %v3385
    %v3387 = vpop.f32.mrf.mxu0
    %3388 = vmatprep.mubr.bf16.mxu0 0
    %3389 = vmatmul.mubr.bf16.gmra.mxu0 %v3283
    %v3390 = vpop.f32.mrf.mxu0
    %v3391 = vadd.f32 0.0, %v3390
    %v3392 = vpop.f32.mrf.mxu0
    %v3393 = vpop.f32.mrf.mxu0
    %v3394 = vadd.f32 0.0, %v3393
    %v3395 = vpop.f32.mrf.mxu0
    %3396 = vmatprep.mubr.bf16.mxu0 0
    %3397 = vmatmul.mubr.bf16.gmra.mxu0 %v3286
    %v3398 = vpop.f32.mrf.mxu0
    %v3399 = vadd.f32 0.0, %v3398
    %v3400 = vpop.f32.mrf.mxu0
    %v3401 = vpop.f32.mrf.mxu0
    %v3402 = vadd.f32 0.0, %v3401
    %v3403 = vpop.f32.mrf.mxu0
    %3404 = vmatprep.mubr.bf16.mxu0 0
    %3405 = vmatmul.mubr.bf16.gmra.mxu0 %v3289
    %v3406 = vpop.f32.mrf.mxu0
    %v3407 = vadd.f32 0.0, %v3406
    %v3408 = vpop.f32.mrf.mxu0
    %v3409 = vpop.f32.mrf.mxu0
    %v3410 = vadd.f32 0.0, %v3409
    %v3411 = vpop.f32.mrf.mxu0
    %3412 = vmatprep.mubr.bf16.mxu0 0
    %3413 = vmatmul.mubr.bf16.gmra.mxu0 %v3292
    %v3414 = vpop.f32.mrf.mxu0
    %v3415 = vadd.f32 0.0, %v3414
    %v3416 = vpop.f32.mrf.mxu0
    %v3417 = vpop.f32.mrf.mxu0
    %v3418 = vadd.f32 0.0, %v3417
    %v3419 = vpop.f32.mrf.mxu0
    %3420 = vmatprep.mubr.bf16.mxu0 0
    %3421 = vmatmul.mubr.bf16.gmra.mxu0 %v3295
    %v3422 = vpop.f32.mrf.mxu0
    %v3423 = vadd.f32 0.0, %v3422
    %v3424 = vpop.f32.mrf.mxu0
    %v3425 = vpop.f32.mrf.mxu0
    %v3426 = vadd.f32 0.0, %v3425
    %v3427 = vpop.f32.mrf.mxu0
    %3428 = vmatprep.mubr.bf16.mxu0 0
    %3429 = vmatmul.mubr.bf16.gmra.mxu0 %v3298
    %v3430 = vpop.f32.mrf.mxu0
    %v3431 = vadd.f32 0.0, %v3430
    %v3432 = vpop.f32.mrf.mxu0
    %v3433 = vpop.f32.mrf.mxu0
    %v3434 = vpop.f32.mrf.mxu0
    %3435 = vdwg.mxu0
    %v3436 = vadd.f32 %v3190, %v3335
    %v3437 = vadd.f32 %v3191, %v3338
    %v3438 = vadd.f32 %v3192, %v3343
    %v3439 = vadd.f32 %v3193, %v3346
    %v3440 = vadd.f32 %v3194, %v3351
    %v3441 = vadd.f32 %v3195, %v3354
    %v3442 = vadd.f32 %v3196, %v3359
    %v3443 = vadd.f32 %v3197, %v3362
    %v3444 = vadd.f32 %v3198, %v3367
    %v3445 = vadd.f32 %v3199, %v3370
    %v3446 = vadd.f32 %v3200, %v3375
    %v3447 = vadd.f32 %v3201, %v3378
    %v3448 = vadd.f32 %v3202, %v3383
    %v3449 = vadd.f32 %v3203, %v3386
    %v3450 = vadd.f32 %v3204, %v3391
    %v3451 = vadd.f32 %v3205, %v3394
    %v3452 = vadd.f32 %v3206, %v3399
    %v3453 = vadd.f32 %v3207, %v3402
    %v3454 = vadd.f32 %v3208, %v3407
    %v3455 = vadd.f32 %v3209, %v3410
    %v3456 = vadd.f32 %v3210, %v3415
    %v3457 = vadd.f32 %v3211, %v3418
    %v3458 = vadd.f32 %v3212, %v3423
    %v3459 = vadd.f32 %v3213, %v3426
    %v3460 = vadd.f32 %v3214, %v3431
    %v3461 = vld [vmem:[%s4] sm:$0x1]
    %v3463 = vlaneseq
    %v3464 = vshrl.u32 %v3463, 7
    %v3465 = vsub.s32 0, %v3464
    %v3466 = vrot.slane %v3461, %v3465
    %v3468 = vadd.f32 %v3436, %v3466
    %v3469 = vadd.f32 %v3437, %v3466
    %v3470 = vadd.f32 %v3438, %v3466
    %v3471 = vadd.f32 %v3439, %v3466
    %v3472 = vadd.f32 %v3440, %v3466
    %v3473 = vadd.f32 %v3441, %v3466
    %v3474 = vadd.f32 %v3442, %v3466
    %v3475 = vadd.f32 %v3443, %v3466
    %v3476 = vadd.f32 %v3444, %v3466
    %v3477 = vadd.f32 %v3445, %v3466
    %v3478 = vadd.f32 %v3446, %v3466
    %v3479 = vadd.f32 %v3447, %v3466
    %v3480 = vadd.f32 %v3448, %v3466
    %v3481 = vadd.f32 %v3449, %v3466
    %v3482 = vadd.f32 %v3450, %v3466
    %v3483 = vadd.f32 %v3451, %v3466
    %v3484 = vadd.f32 %v3452, %v3466
    %v3485 = vadd.f32 %v3453, %v3466
    %v3486 = vadd.f32 %v3454, %v3466
    %v3487 = vadd.f32 %v3455, %v3466
    %v3488 = vadd.f32 %v3456, %v3466
    %v3489 = vadd.f32 %v3457, %v3466
    %v3490 = vadd.f32 %v3458, %v3466
    %v3491 = vadd.f32 %v3459, %v3466
    %v3492 = vadd.f32 %v3460, %v3466
    %v3493 = vmax.f32 %v3468, 0.0
    %v3494 = vmax.f32 %v3469, 0.0
    %v3495 = vmax.f32 %v3470, 0.0
    %v3496 = vmax.f32 %v3471, 0.0
    %v3497 = vmax.f32 %v3472, 0.0
    %v3498 = vmax.f32 %v3473, 0.0
    %v3499 = vmax.f32 %v3474, 0.0
    %v3500 = vmax.f32 %v3475, 0.0
    %v3501 = vmax.f32 %v3476, 0.0
    %v3502 = vmax.f32 %v3477, 0.0
    %v3503 = vmax.f32 %v3478, 0.0
    %v3504 = vmax.f32 %v3479, 0.0
    %v3505 = vmax.f32 %v3480, 0.0
    %v3506 = vmax.f32 %v3481, 0.0
    %v3507 = vmax.f32 %v3482, 0.0
    %v3508 = vmax.f32 %v3483, 0.0
    %v3509 = vmax.f32 %v3484, 0.0
    %v3510 = vmax.f32 %v3485, 0.0
    %v3511 = vmax.f32 %v3486, 0.0
    %v3512 = vmax.f32 %v3487, 0.0
    %v3513 = vmax.f32 %v3488, 0.0
    %v3514 = vmax.f32 %v3489, 0.0
    %v3515 = vmax.f32 %v3490, 0.0
    %v3516 = vmax.f32 %v3491, 0.0
    %v3517 = vmax.f32 %v3492, 0.0
    %3518 = vst.msk [vmem:[#allocation4] sm:$0xff] %vm389, %v3493
    %3519 = vst.msk [vmem:[#allocation4 + $0x8] sm:$0xff] %vm389, %v3494
    %3520 = vst.msk [vmem:[#allocation4 + $0x10] sm:$0xff] %vm389, %v3495
    %3521 = vst.msk [vmem:[#allocation4 + $0x18] sm:$0xff] %vm389, %v3496
    %3522 = vst.msk [vmem:[#allocation4 + $0x20] sm:$0xff] %vm389, %v3497
    %3523 = vst.msk [vmem:[#allocation4 + $0x28] sm:$0xff] %vm389, %v3498
    %3524 = vst.msk [vmem:[#allocation4 + $0x30] sm:$0xff] %vm389, %v3499
    %3525 = vst.msk [vmem:[#allocation4 + $0x38] sm:$0xff] %vm389, %v3500
    %3526 = vst.msk [vmem:[#allocation4 + $0x40] sm:$0xff] %vm389, %v3501
    %3527 = vst.msk [vmem:[#allocation4 + $0x48] sm:$0xff] %vm389, %v3502
    %3528 = vst.msk [vmem:[#allocation4 + $0x50] sm:$0xff] %vm389, %v3503
    %3529 = vst.msk [vmem:[#allocation4 + $0x58] sm:$0xff] %vm389, %v3504
    %3530 = vst.msk [vmem:[#allocation4 + $0x60] sm:$0xff] %vm389, %v3505
    %3531 = vst.msk [vmem:[#allocation4 + $0x68] sm:$0xff] %vm389, %v3506
    %3532 = vst.msk [vmem:[#allocation4 + $0x70] sm:$0xff] %vm389, %v3507
    %3533 = vst.msk [vmem:[#allocation4 + $0x78] sm:$0xff] %vm389, %v3508
    %3534 = vst.msk [vmem:[#allocation4 + $0x80] sm:$0xff] %vm389, %v3509
    %3535 = vst.msk [vmem:[#allocation4 + $0x88] sm:$0xff] %vm389, %v3510
    %3536 = vst.msk [vmem:[#allocation4 + $0x90] sm:$0xff] %vm389, %v3511
    %3537 = vst.msk [vmem:[#allocation4 + $0x98] sm:$0xff] %vm389, %v3512
    %3538 = vst.msk [vmem:[#allocation4 + $0xa0] sm:$0xff] %vm389, %v3513
    %3539 = vst.msk [vmem:[#allocation4 + $0xa8] sm:$0xff] %vm389, %v3514
    %3540 = vst.msk [vmem:[#allocation4 + $0xb0] sm:$0xff] %vm389, %v3515
    %3541 = vst.msk [vmem:[#allocation4 + $0xb8] sm:$0xff] %vm389, %v3516
    %3542 = vst.msk [vmem:[#allocation4 + $0xc0] sm:$0xff] %vm389, %v3517
    %v3543 = vld [vmem:[#allocation4 + $0xb] sm:$0xff]
    %v3544 = vld [vmem:[#allocation4 + $0x15] sm:$0xff]
    %v3545 = vmax.f32 %v3543, %v3544
    %v3547 = vrot.slane %v3545, 1
    %v3549 = vmax.f32 %v3545, %v3547
    %vm3550 = vcmask 253952
    %3551 = vst.msk [vmem:[#allocation5 + $0xe] sm:$0x1] %vm3550, %v3549
    %vm3552 = vcmask 256002
    %3553 = vst.msk [vmem:[#allocation5 + $0xd] sm:$0x4] %vm3552, %v3549
    %vm3554 = vcmask 258052
    %3555 = vst.msk [vmem:[#allocation5 + $0xc] sm:$0x10] %vm3554, %v3549
    %vm3556 = vcmask 260102
    %3557 = vst.msk [vmem:[#allocation5 + $0xb] sm:$0x40] %vm3556, %v3549
    %v3558 = vld [vmem:[#allocation4 + $0x1f] sm:$0xff]
    %v3559 = vld [vmem:[#allocation4 + $0x29] sm:$0xff]
    %v3560 = vmax.f32 %v3558, %v3559
    %v3562 = vrot.slane %v3560, 1
    %v3564 = vmax.f32 %v3560, %v3562
    %3565 = vst.msk [vmem:[#allocation5 + $0x14] sm:$0x1] %vm3550, %v3564
    %3566 = vst.msk [vmem:[#allocation5 + $0x13] sm:$0x4] %vm3552, %v3564
    %3567 = vst.msk [vmem:[#allocation5 + $0x12] sm:$0x10] %vm3554, %v3564
    %3568 = vst.msk [vmem:[#allocation5 + $0x11] sm:$0x40] %vm3556, %v3564
    %v3569 = vld [vmem:[#allocation4 + $0x33] sm:$0xff]
    %v3570 = vld [vmem:[#allocation4 + $0x3d] sm:$0xff]
    %v3571 = vmax.f32 %v3569, %v3570
    %v3573 = vrot.slane %v3571, 1
    %v3575 = vmax.f32 %v3571, %v3573
    %3576 = vst.msk [vmem:[#allocation5 + $0x1a] sm:$0x1] %vm3550, %v3575
    %3577 = vst.msk [vmem:[#allocation5 + $0x19] sm:$0x4] %vm3552, %v3575
    %3578 = vst.msk [vmem:[#allocation5 + $0x18] sm:$0x10] %vm3554, %v3575
    %3579 = vst.msk [vmem:[#allocation5 + $0x17] sm:$0x40] %vm3556, %v3575
    %v3580 = vld [vmem:[#allocation4 + $0x47] sm:$0xff]
    %v3581 = vld [vmem:[#allocation4 + $0x51] sm:$0xff]
    %v3582 = vmax.f32 %v3580, %v3581
    %v3584 = vrot.slane %v3582, 1
    %v3586 = vmax.f32 %v3582, %v3584
    %3587 = vst.msk [vmem:[#allocation5 + $0x20] sm:$0x1] %vm3550, %v3586
    %3588 = vst.msk [vmem:[#allocation5 + $0x1f] sm:$0x4] %vm3552, %v3586
    %3589 = vst.msk [vmem:[#allocation5 + $0x1e] sm:$0x10] %vm3554, %v3586
    %3590 = vst.msk [vmem:[#allocation5 + $0x1d] sm:$0x40] %vm3556, %v3586
    %v3591 = vld [vmem:[#allocation4 + $0x6f] sm:$0xff]
    %v3592 = vld [vmem:[#allocation4 + $0x79] sm:$0xff]
    %v3593 = vmax.f32 %v3591, %v3592
    %v3595 = vrot.slane %v3593, 1
    %v3597 = vmax.f32 %v3593, %v3595
    %3598 = vst.msk [vmem:[#allocation5 + $0x32] sm:$0x1] %vm3550, %v3597
    %3599 = vst.msk [vmem:[#allocation5 + $0x31] sm:$0x4] %vm3552, %v3597
    %3600 = vst.msk [vmem:[#allocation5 + $0x30] sm:$0x10] %vm3554, %v3597
    %3601 = vst.msk [vmem:[#allocation5 + $0x2f] sm:$0x40] %vm3556, %v3597
    %v3602 = vld [vmem:[#allocation4 + $0x83] sm:$0xff]
    %v3603 = vld [vmem:[#allocation4 + $0x8d] sm:$0xff]
    %v3604 = vmax.f32 %v3602, %v3603
    %v3606 = vrot.slane %v3604, 1
    %v3608 = vmax.f32 %v3604, %v3606
    %3609 = vst.msk [vmem:[#allocation5 + $0x38] sm:$0x1] %vm3550, %v3608
    %3610 = vst.msk [vmem:[#allocation5 + $0x37] sm:$0x4] %vm3552, %v3608
    %3611 = vst.msk [vmem:[#allocation5 + $0x36] sm:$0x10] %vm3554, %v3608
    %3612 = vst.msk [vmem:[#allocation5 + $0x35] sm:$0x40] %vm3556, %v3608
    %v3613 = vld [vmem:[#allocation4 + $0x97] sm:$0xff]
    %v3614 = vld [vmem:[#allocation4 + $0xa1] sm:$0xff]
    %v3615 = vmax.f32 %v3613, %v3614
    %v3617 = vrot.slane %v3615, 1
    %v3619 = vmax.f32 %v3615, %v3617
    %3620 = vst.msk [vmem:[#allocation5 + $0x3e] sm:$0x1] %vm3550, %v3619
    %3621 = vst.msk [vmem:[#allocation5 + $0x3d] sm:$0x4] %vm3552, %v3619
    %3622 = vst.msk [vmem:[#allocation5 + $0x3c] sm:$0x10] %vm3554, %v3619
    %3623 = vst.msk [vmem:[#allocation5 + $0x3b] sm:$0x40] %vm3556, %v3619
    %v3624 = vld [vmem:[#allocation4 + $0xab] sm:$0xff]
    %v3625 = vld [vmem:[#allocation4 + $0xb5] sm:$0xff]
    %v3626 = vmax.f32 %v3624, %v3625
    %v3628 = vrot.slane %v3626, 1
    %v3630 = vmax.f32 %v3626, %v3628
    %3631 = vst.msk [vmem:[#allocation5 + $0x44] sm:$0x1] %vm3550, %v3630
    %3632 = vst.msk [vmem:[#allocation5 + $0x43] sm:$0x4] %vm3552, %v3630
    %3633 = vst.msk [vmem:[#allocation5 + $0x42] sm:$0x10] %vm3554, %v3630
    %3634 = vst.msk [vmem:[#allocation5 + $0x41] sm:$0x40] %vm3556, %v3630
    %v3635 = vld [vmem:[#allocation5] sm:$0xff]
    %v3636 = vld [vmem:[#allocation5 + $0x8] sm:$0xff]
    %v3637 = vld [vmem:[#allocation5 + $0x10] sm:$0xff]
    %v3638 = vld [vmem:[#allocation5 + $0x18] sm:$0xff]
    %v3639 = vld [vmem:[#allocation5 + $0x20] sm:$0xff]
    %v3640 = vld [vmem:[#allocation5 + $0x28] sm:$0xff]
    %v3641 = vld [vmem:[#allocation5 + $0x30] sm:$0xff]
    %v3642 = vld [vmem:[#allocation5 + $0x38] sm:$0xff]
    %v3643 = vld [vmem:[#allocation5 + $0x40] sm:$0xff]
    %v3644 = vpack.c.bf16 %v3636, %v3635
    %v3645 = vpack.c.bf16 %v3638, %v3637
    %v3646 = vpack.c.bf16 %v3640, %v3639
    %v3647 = vpack.c.bf16 %v3642, %v3641
    %v3648 = vpack.c.bf16 %v3643, %v3643
    %v3649 = vld [vmem:[%s5] sm:$0xf]
    %v3650 = vld [vmem:[%s5 + $0x4] sm:$0xf]
    %v3651 = vld [vmem:[%s5 + $0x8] sm:$0xf]
    %v3652 = vld [vmem:[%s5 + $0xc] sm:$0xf]
    %v3653 = vld [vmem:[#allocation5 + $0x1] sm:$0xff]
    %v3654 = vld [vmem:[#allocation5 + $0x9] sm:$0xff]
    %v3655 = vld [vmem:[#allocation5 + $0x11] sm:$0xff]
    %v3656 = vld [vmem:[#allocation5 + $0x19] sm:$0xff]
    %v3657 = vld [vmem:[#allocation5 + $0x21] sm:$0xff]
    %v3658 = vld [vmem:[#allocation5 + $0x29] sm:$0xff]
    %v3659 = vld [vmem:[#allocation5 + $0x31] sm:$0xff]
    %v3660 = vld [vmem:[#allocation5 + $0x39] sm:$0xff]
    %v3661 = vld [vmem:[#allocation5 + $0x41] sm:$0xff]
    %v3662 = vpack.c.bf16 %v3654, %v3653
    %v3663 = vpack.c.bf16 %v3656, %v3655
    %v3664 = vpack.c.bf16 %v3658, %v3657
    %v3665 = vpack.c.bf16 %v3660, %v3659
    %v3666 = vpack.c.bf16 %v3661, %v3661
    %v3667 = vld [vmem:[%s5 + $0x10] sm:$0xf]
    %v3668 = vld [vmem:[%s5 + $0x14] sm:$0xf]
    %v3669 = vld [vmem:[%s5 + $0x18] sm:$0xf]
    %v3670 = vld [vmem:[%s5 + $0x1c] sm:$0xf]
    %v3675 = vunpack.c.l.b16 %v3667
    %v3676 = vunpack.c.l.b16 %v3668
    %v3677 = vunpack.c.l.b16 %v3669
    %v3678 = vunpack.c.l.b16 %v3670
    %v3679 = vpack.c.b16 %v3676, %v3675
    %v3680 = vpack.c.b16 %v3678, %v3677
    %v3684 = vsel %vm389, %v3662, 0
    %v3687 = vsel %vm389, %v3663, 0
    %v3690 = vsel %vm389, %v3664, 0
    %v3693 = vsel %vm389, %v3665, 0
    %v3696 = vsel %vm389, %v3666, 0
    %3698 = vmatprep.subr.bf16.mxu0 0
    %3699 = vmatpush1.bf16.msra.mxu0 0
    %3700 = vmatprep.subr.bf16.mxu0 0
    %3701 = vmatpush1.bf16.msra.mxu0 0
    %3702 = vmatprep.subr.bf16.mxu0 0
    %3703 = vmatpush1.bf16.msra.mxu0 0
    %3704 = vmatprep.subr.bf16.mxu0 0
    %3705 = vmatpush1.bf16.msra.mxu0 0
    %3706 = vmatprep.subr.bf16.mxu0 0
    %3707 = vmatpush1.bf16.msra.mxu0 0
    %3708 = vmatprep.subr.bf16.mxu0 0
    %3709 = vmatpush1.bf16.msra.mxu0 0
    %3710 = vmatprep.subr.bf16.mxu0 0
    %3711 = vmatpush1.bf16.msra.mxu0 %v3680
    %3712 = vmatprep.subr.bf16.mxu0 0
    %3713 = vmatpush1.bf16.msra.mxu0 %v3679
    %3714 = vmatprep.subr.bf16.mxu0 0
    %3715 = vmatpush2.bf16.msra.mxu0 0
    %3716 = vmatprep.subr.bf16.mxu0 0
    %3717 = vmatpush2.bf16.msra.mxu0 0
    %3718 = vmatprep.subr.bf16.mxu0 0
    %3719 = vmatpush2.bf16.msra.mxu0 0
    %3720 = vmatprep.subr.bf16.mxu0 0
    %3721 = vmatpush2.bf16.msra.mxu0 0
    %3722 = vmatprep.subr.bf16.mxu0 0
    %3723 = vmatpush2.bf16.msra.mxu0 0
    %3724 = vmatprep.subr.bf16.mxu0 0
    %3725 = vmatpush2.bf16.msra.mxu0 0
    %3726 = vmatprep.subr.bf16.mxu0 0
    %3727 = vmatpush2.bf16.msra.mxu0 0
    %3728 = vmatprep.subr.bf16.mxu0 0
    %3729 = vmatpush2.bf16.msra.mxu0 0
    %3730 = vmatprep.mubr.bf16.mxu0 0
    %3731 = vmatmul.mubr.bf16.gmra.mxu0 %v3684
    %v3732 = vpop.f32.mrf.mxu0
    %v3733 = vadd.f32 0.0, %v3732
    %v3734 = vpop.f32.mrf.mxu0
    %v3735 = vpop.f32.mrf.mxu0
    %v3736 = vadd.f32 0.0, %v3735
    %v3737 = vpop.f32.mrf.mxu0
    %3738 = vmatprep.mubr.bf16.mxu0 0
    %3739 = vmatmul.mubr.bf16.gmra.mxu0 %v3687
    %v3740 = vpop.f32.mrf.mxu0
    %v3741 = vadd.f32 0.0, %v3740
    %v3742 = vpop.f32.mrf.mxu0
    %v3743 = vpop.f32.mrf.mxu0
    %v3744 = vadd.f32 0.0, %v3743
    %v3745 = vpop.f32.mrf.mxu0
    %3746 = vmatprep.mubr.bf16.mxu0 0
    %3747 = vmatmul.mubr.bf16.gmra.mxu0 %v3690
    %v3748 = vpop.f32.mrf.mxu0
    %v3749 = vadd.f32 0.0, %v3748
    %v3750 = vpop.f32.mrf.mxu0
    %v3751 = vpop.f32.mrf.mxu0
    %v3752 = vadd.f32 0.0, %v3751
    %v3753 = vpop.f32.mrf.mxu0
    %3754 = vmatprep.mubr.bf16.mxu0 0
    %3755 = vmatmul.mubr.bf16.gmra.mxu0 %v3693
    %v3756 = vpop.f32.mrf.mxu0
    %v3757 = vadd.f32 0.0, %v3756
    %v3758 = vpop.f32.mrf.mxu0
    %v3759 = vpop.f32.mrf.mxu0
    %v3760 = vadd.f32 0.0, %v3759
    %v3761 = vpop.f32.mrf.mxu0
    %3762 = vmatprep.mubr.bf16.mxu0 0
    %3763 = vmatmul.mubr.bf16.gmra.mxu0 %v3696
    %v3764 = vpop.f32.mrf.mxu0
    %v3765 = vadd.f32 0.0, %v3764
    %v3766 = vpop.f32.mrf.mxu0
    %v3767 = vpop.f32.mrf.mxu0
    %v3768 = vpop.f32.mrf.mxu0
    %3769 = vdwg.mxu0
    %v3774 = vunpack.c.l.b16 %v3649
    %v3775 = vunpack.c.l.b16 %v3650
    %v3776 = vunpack.c.l.b16 %v3651
    %v3777 = vunpack.c.l.b16 %v3652
    %v3778 = vpack.c.b16 %v3775, %v3774
    %v3779 = vpack.c.b16 %v3777, %v3776
    %v3783 = vsel %vm389, %v3644, 0
    %v3786 = vsel %vm389, %v3645, 0
    %v3789 = vsel %vm389, %v3646, 0
    %v3792 = vsel %vm389, %v3647, 0
    %v3795 = vsel %vm389, %v3648, 0
    %3797 = vmatprep.subr.bf16.mxu0 0
    %3798 = vmatpush1.bf16.msra.mxu0 0
    %3799 = vmatprep.subr.bf16.mxu0 0
    %3800 = vmatpush1.bf16.msra.mxu0 0
    %3801 = vmatprep.subr.bf16.mxu0 0
    %3802 = vmatpush1.bf16.msra.mxu0 0
    %3803 = vmatprep.subr.bf16.mxu0 0
    %3804 = vmatpush1.bf16.msra.mxu0 0
    %3805 = vmatprep.subr.bf16.mxu0 0
    %3806 = vmatpush1.bf16.msra.mxu0 0
    %3807 = vmatprep.subr.bf16.mxu0 0
    %3808 = vmatpush1.bf16.msra.mxu0 0
    %3809 = vmatprep.subr.bf16.mxu0 0
    %3810 = vmatpush1.bf16.msra.mxu0 %v3779
    %3811 = vmatprep.subr.bf16.mxu0 0
    %3812 = vmatpush1.bf16.msra.mxu0 %v3778
    %3813 = vmatprep.subr.bf16.mxu0 0
    %3814 = vmatpush2.bf16.msra.mxu0 0
    %3815 = vmatprep.subr.bf16.mxu0 0
    %3816 = vmatpush2.bf16.msra.mxu0 0
    %3817 = vmatprep.subr.bf16.mxu0 0
    %3818 = vmatpush2.bf16.msra.mxu0 0
    %3819 = vmatprep.subr.bf16.mxu0 0
    %3820 = vmatpush2.bf16.msra.mxu0 0
    %3821 = vmatprep.subr.bf16.mxu0 0
    %3822 = vmatpush2.bf16.msra.mxu0 0
    %3823 = vmatprep.subr.bf16.mxu0 0
    %3824 = vmatpush2.bf16.msra.mxu0 0
    %3825 = vmatprep.subr.bf16.mxu0 0
    %3826 = vmatpush2.bf16.msra.mxu0 0
    %3827 = vmatprep.subr.bf16.mxu0 0
    %3828 = vmatpush2.bf16.msra.mxu0 0
    %3829 = vmatprep.mubr.bf16.mxu0 0
    %3830 = vmatmul.mubr.bf16.gmra.mxu0 %v3783
    %v3831 = vpop.f32.mrf.mxu0
    %v3832 = vadd.f32 %v3733, %v3831
    %v3833 = vpop.f32.mrf.mxu0
    %v3834 = vpop.f32.mrf.mxu0
    %v3835 = vadd.f32 %v3736, %v3834
    %v3836 = vpop.f32.mrf.mxu0
    %3837 = vmatprep.mubr.bf16.mxu0 0
    %3838 = vmatmul.mubr.bf16.gmra.mxu0 %v3786
    %v3839 = vpop.f32.mrf.mxu0
    %v3840 = vadd.f32 %v3741, %v3839
    %v3841 = vpop.f32.mrf.mxu0
    %v3842 = vpop.f32.mrf.mxu0
    %v3843 = vadd.f32 %v3744, %v3842
    %v3844 = vpop.f32.mrf.mxu0
    %3845 = vmatprep.mubr.bf16.mxu0 0
    %3846 = vmatmul.mubr.bf16.gmra.mxu0 %v3789
    %v3847 = vpop.f32.mrf.mxu0
    %v3848 = vadd.f32 %v3749, %v3847
    %v3849 = vpop.f32.mrf.mxu0
    %v3850 = vpop.f32.mrf.mxu0
    %v3851 = vadd.f32 %v3752, %v3850
    %v3852 = vpop.f32.mrf.mxu0
    %3853 = vmatprep.mubr.bf16.mxu0 0
    %3854 = vmatmul.mubr.bf16.gmra.mxu0 %v3792
    %v3855 = vpop.f32.mrf.mxu0
    %v3856 = vadd.f32 %v3757, %v3855
    %v3857 = vpop.f32.mrf.mxu0
    %v3858 = vpop.f32.mrf.mxu0
    %v3859 = vadd.f32 %v3760, %v3858
    %v3860 = vpop.f32.mrf.mxu0
    %3861 = vmatprep.mubr.bf16.mxu0 0
    %3862 = vmatmul.mubr.bf16.gmra.mxu0 %v3795
    %v3863 = vpop.f32.mrf.mxu0
    %v3864 = vadd.f32 %v3765, %v3863
    %v3865 = vpop.f32.mrf.mxu0
    %v3866 = vpop.f32.mrf.mxu0
    %v3867 = vpop.f32.mrf.mxu0
    %3868 = vdwg.mxu0
    %v3869 = vld [vmem:[#allocation5 + $0x2] sm:$0xff]
    %v3870 = vld [vmem:[#allocation5 + $0xa] sm:$0xff]
    %v3871 = vld [vmem:[#allocation5 + $0x12] sm:$0xff]
    %v3872 = vld [vmem:[#allocation5 + $0x1a] sm:$0xff]
    %v3873 = vld [vmem:[#allocation5 + $0x22] sm:$0xff]
    %v3874 = vld [vmem:[#allocation5 + $0x2a] sm:$0xff]
    %v3875 = vld [vmem:[#allocation5 + $0x32] sm:$0xff]
    %v3876 = vld [vmem:[#allocation5 + $0x3a] sm:$0xff]
    %v3877 = vld [vmem:[#allocation5 + $0x42] sm:$0xff]
    %v3878 = vpack.c.bf16 %v3870, %v3869
    %v3879 = vpack.c.bf16 %v3872, %v3871
    %v3880 = vpack.c.bf16 %v3874, %v3873
    %v3881 = vpack.c.bf16 %v3876, %v3875
    %v3882 = vpack.c.bf16 %v3877, %v3877
    %v3883 = vld [vmem:[%s5 + $0x20] sm:$0xf]
    %v3884 = vld [vmem:[%s5 + $0x24] sm:$0xf]
    %v3885 = vld [vmem:[%s5 + $0x28] sm:$0xf]
    %v3886 = vld [vmem:[%s5 + $0x2c] sm:$0xf]
    %v3891 = vunpack.c.l.b16 %v3883
    %v3892 = vunpack.c.l.b16 %v3884
    %v3893 = vunpack.c.l.b16 %v3885
    %v3894 = vunpack.c.l.b16 %v3886
    %v3895 = vpack.c.b16 %v3892, %v3891
    %v3896 = vpack.c.b16 %v3894, %v3893
    %v3900 = vsel %vm389, %v3878, 0
    %v3903 = vsel %vm389, %v3879, 0
    %v3906 = vsel %vm389, %v3880, 0
    %v3909 = vsel %vm389, %v3881, 0
    %v3912 = vsel %vm389, %v3882, 0
    %3914 = vmatprep.subr.bf16.mxu0 0
    %3915 = vmatpush1.bf16.msra.mxu0 0
    %3916 = vmatprep.subr.bf16.mxu0 0
    %3917 = vmatpush1.bf16.msra.mxu0 0
    %3918 = vmatprep.subr.bf16.mxu0 0
    %3919 = vmatpush1.bf16.msra.mxu0 0
    %3920 = vmatprep.subr.bf16.mxu0 0
    %3921 = vmatpush1.bf16.msra.mxu0 0
    %3922 = vmatprep.subr.bf16.mxu0 0
    %3923 = vmatpush1.bf16.msra.mxu0 0
    %3924 = vmatprep.subr.bf16.mxu0 0
    %3925 = vmatpush1.bf16.msra.mxu0 0
    %3926 = vmatprep.subr.bf16.mxu0 0
    %3927 = vmatpush1.bf16.msra.mxu0 %v3896
    %3928 = vmatprep.subr.bf16.mxu0 0
    %3929 = vmatpush1.bf16.msra.mxu0 %v3895
    %3930 = vmatprep.subr.bf16.mxu0 0
    %3931 = vmatpush2.bf16.msra.mxu0 0
    %3932 = vmatprep.subr.bf16.mxu0 0
    %3933 = vmatpush2.bf16.msra.mxu0 0
    %3934 = vmatprep.subr.bf16.mxu0 0
    %3935 = vmatpush2.bf16.msra.mxu0 0
    %3936 = vmatprep.subr.bf16.mxu0 0
    %3937 = vmatpush2.bf16.msra.mxu0 0
    %3938 = vmatprep.subr.bf16.mxu0 0
    %3939 = vmatpush2.bf16.msra.mxu0 0
    %3940 = vmatprep.subr.bf16.mxu0 0
    %3941 = vmatpush2.bf16.msra.mxu0 0
    %3942 = vmatprep.subr.bf16.mxu0 0
    %3943 = vmatpush2.bf16.msra.mxu0 0
    %3944 = vmatprep.subr.bf16.mxu0 0
    %3945 = vmatpush2.bf16.msra.mxu0 0
    %3946 = vmatprep.mubr.bf16.mxu0 0
    %3947 = vmatmul.mubr.bf16.gmra.mxu0 %v3900
    %v3948 = vpop.f32.mrf.mxu0
    %v3949 = vadd.f32 0.0, %v3948
    %v3950 = vpop.f32.mrf.mxu0
    %v3951 = vpop.f32.mrf.mxu0
    %v3952 = vadd.f32 0.0, %v3951
    %v3953 = vpop.f32.mrf.mxu0
    %3954 = vmatprep.mubr.bf16.mxu0 0
    %3955 = vmatmul.mubr.bf16.gmra.mxu0 %v3903
    %v3956 = vpop.f32.mrf.mxu0
    %v3957 = vadd.f32 0.0, %v3956
    %v3958 = vpop.f32.mrf.mxu0
    %v3959 = vpop.f32.mrf.mxu0
    %v3960 = vadd.f32 0.0, %v3959
    %v3961 = vpop.f32.mrf.mxu0
    %3962 = vmatprep.mubr.bf16.mxu0 0
    %3963 = vmatmul.mubr.bf16.gmra.mxu0 %v3906
    %v3964 = vpop.f32.mrf.mxu0
    %v3965 = vadd.f32 0.0, %v3964
    %v3966 = vpop.f32.mrf.mxu0
    %v3967 = vpop.f32.mrf.mxu0
    %v3968 = vadd.f32 0.0, %v3967
    %v3969 = vpop.f32.mrf.mxu0
    %3970 = vmatprep.mubr.bf16.mxu0 0
    %3971 = vmatmul.mubr.bf16.gmra.mxu0 %v3909
    %v3972 = vpop.f32.mrf.mxu0
    %v3973 = vadd.f32 0.0, %v3972
    %v3974 = vpop.f32.mrf.mxu0
    %v3975 = vpop.f32.mrf.mxu0
    %v3976 = vadd.f32 0.0, %v3975
    %v3977 = vpop.f32.mrf.mxu0
    %3978 = vmatprep.mubr.bf16.mxu0 0
    %3979 = vmatmul.mubr.bf16.gmra.mxu0 %v3912
    %v3980 = vpop.f32.mrf.mxu0
    %v3981 = vadd.f32 0.0, %v3980
    %v3982 = vpop.f32.mrf.mxu0
    %v3983 = vpop.f32.mrf.mxu0
    %v3984 = vpop.f32.mrf.mxu0
    %3985 = vdwg.mxu0
    %v3986 = vadd.f32 %v3832, %v3949
    %v3987 = vadd.f32 %v3835, %v3952
    %v3988 = vadd.f32 %v3840, %v3957
    %v3989 = vadd.f32 %v3843, %v3960
    %v3990 = vadd.f32 %v3848, %v3965
    %v3991 = vadd.f32 %v3851, %v3968
    %v3992 = vadd.f32 %v3856, %v3973
    %v3993 = vadd.f32 %v3859, %v3976
    %v3994 = vadd.f32 %v3864, %v3981
    %v3995 = vld [vmem:[#allocation5 + $0x6] sm:$0xff]
    %v3996 = vld [vmem:[#allocation5 + $0xe] sm:$0xff]
    %v3997 = vld [vmem:[#allocation5 + $0x16] sm:$0xff]
    %v3998 = vld [vmem:[#allocation5 + $0x1e] sm:$0xff]
    %v3999 = vld [vmem:[#allocation5 + $0x26] sm:$0xff]
    %v4000 = vld [vmem:[#allocation5 + $0x2e] sm:$0xff]
    %v4001 = vld [vmem:[#allocation5 + $0x36] sm:$0xff]
    %v4002 = vld [vmem:[#allocation5 + $0x3e] sm:$0xff]
    %v4003 = vld [vmem:[#allocation5 + $0x46] sm:$0xff]
    %v4004 = vpack.c.bf16 %v3996, %v3995
    %v4005 = vpack.c.bf16 %v3998, %v3997
    %v4006 = vpack.c.bf16 %v4000, %v3999
    %v4007 = vpack.c.bf16 %v4002, %v4001
    %v4008 = vpack.c.bf16 %v4003, %v4003
    %v4009 = vld [vmem:[%s5 + $0x30] sm:$0xf]
    %v4010 = vld [vmem:[%s5 + $0x34] sm:$0xf]
    %v4011 = vld [vmem:[%s5 + $0x38] sm:$0xf]
    %v4012 = vld [vmem:[%s5 + $0x3c] sm:$0xf]
    %v4017 = vunpack.c.l.b16 %v4009
    %v4018 = vunpack.c.l.b16 %v4010
    %v4019 = vunpack.c.l.b16 %v4011
    %v4020 = vunpack.c.l.b16 %v4012
    %v4021 = vpack.c.b16 %v4018, %v4017
    %v4022 = vpack.c.b16 %v4020, %v4019
    %v4026 = vsel %vm389, %v4004, 0
    %v4029 = vsel %vm389, %v4005, 0
    %v4032 = vsel %vm389, %v4006, 0
    %v4035 = vsel %vm389, %v4007, 0
    %v4038 = vsel %vm389, %v4008, 0
    %4040 = vmatprep.subr.bf16.mxu0 0
    %4041 = vmatpush1.bf16.msra.mxu0 0
    %4042 = vmatprep.subr.bf16.mxu0 0
    %4043 = vmatpush1.bf16.msra.mxu0 0
    %4044 = vmatprep.subr.bf16.mxu0 0
    %4045 = vmatpush1.bf16.msra.mxu0 0
    %4046 = vmatprep.subr.bf16.mxu0 0
    %4047 = vmatpush1.bf16.msra.mxu0 0
    %4048 = vmatprep.subr.bf16.mxu0 0
    %4049 = vmatpush1.bf16.msra.mxu0 0
    %4050 = vmatprep.subr.bf16.mxu0 0
    %4051 = vmatpush1.bf16.msra.mxu0 0
    %4052 = vmatprep.subr.bf16.mxu0 0
    %4053 = vmatpush1.bf16.msra.mxu0 %v4022
    %4054 = vmatprep.subr.bf16.mxu0 0
    %4055 = vmatpush1.bf16.msra.mxu0 %v4021
    %4056 = vmatprep.subr.bf16.mxu0 0
    %4057 = vmatpush2.bf16.msra.mxu0 0
    %4058 = vmatprep.subr.bf16.mxu0 0
    %4059 = vmatpush2.bf16.msra.mxu0 0
    %4060 = vmatprep.subr.bf16.mxu0 0
    %4061 = vmatpush2.bf16.msra.mxu0 0
    %4062 = vmatprep.subr.bf16.mxu0 0
    %4063 = vmatpush2.bf16.msra.mxu0 0
    %4064 = vmatprep.subr.bf16.mxu0 0
    %4065 = vmatpush2.bf16.msra.mxu0 0
    %4066 = vmatprep.subr.bf16.mxu0 0
    %4067 = vmatpush2.bf16.msra.mxu0 0
    %4068 = vmatprep.subr.bf16.mxu0 0
    %4069 = vmatpush2.bf16.msra.mxu0 0
    %4070 = vmatprep.subr.bf16.mxu0 0
    %4071 = vmatpush2.bf16.msra.mxu0 0
    %4072 = vmatprep.mubr.bf16.mxu0 0
    %4073 = vmatmul.mubr.bf16.gmra.mxu0 %v4026
    %v4074 = vpop.f32.mrf.mxu0
    %v4075 = vadd.f32 0.0, %v4074
    %v4076 = vpop.f32.mrf.mxu0
    %v4077 = vpop.f32.mrf.mxu0
    %v4078 = vadd.f32 0.0, %v4077
    %v4079 = vpop.f32.mrf.mxu0
    %4080 = vmatprep.mubr.bf16.mxu0 0
    %4081 = vmatmul.mubr.bf16.gmra.mxu0 %v4029
    %v4082 = vpop.f32.mrf.mxu0
    %v4083 = vadd.f32 0.0, %v4082
    %v4084 = vpop.f32.mrf.mxu0
    %v4085 = vpop.f32.mrf.mxu0
    %v4086 = vadd.f32 0.0, %v4085
    %v4087 = vpop.f32.mrf.mxu0
    %4088 = vmatprep.mubr.bf16.mxu0 0
    %4089 = vmatmul.mubr.bf16.gmra.mxu0 %v4032
    %v4090 = vpop.f32.mrf.mxu0
    %v4091 = vadd.f32 0.0, %v4090
    %v4092 = vpop.f32.mrf.mxu0
    %v4093 = vpop.f32.mrf.mxu0
    %v4094 = vadd.f32 0.0, %v4093
    %v4095 = vpop.f32.mrf.mxu0
    %4096 = vmatprep.mubr.bf16.mxu0 0
    %4097 = vmatmul.mubr.bf16.gmra.mxu0 %v4035
    %v4098 = vpop.f32.mrf.mxu0
    %v4099 = vadd.f32 0.0, %v4098
    %v4100 = vpop.f32.mrf.mxu0
    %v4101 = vpop.f32.mrf.mxu0
    %v4102 = vadd.f32 0.0, %v4101
    %v4103 = vpop.f32.mrf.mxu0
    %4104 = vmatprep.mubr.bf16.mxu0 0
    %4105 = vmatmul.mubr.bf16.gmra.mxu0 %v4038
    %v4106 = vpop.f32.mrf.mxu0
    %v4107 = vadd.f32 0.0, %v4106
    %v4108 = vpop.f32.mrf.mxu0
    %v4109 = vpop.f32.mrf.mxu0
    %v4110 = vpop.f32.mrf.mxu0
    %4111 = vdwg.mxu0
    %v4112 = vadd.f32 %v3986, %v4075
    %v4113 = vadd.f32 %v3987, %v4078
    %v4114 = vadd.f32 %v3988, %v4083
    %v4115 = vadd.f32 %v3989, %v4086
    %v4116 = vadd.f32 %v3990, %v4091
    %v4117 = vadd.f32 %v3991, %v4094
    %v4118 = vadd.f32 %v3992, %v4099
    %v4119 = vadd.f32 %v3993, %v4102
    %v4120 = vadd.f32 %v3994, %v4107
    %v4121 = vld [vmem:[#allocation5 + $0x7] sm:$0xff]
    %v4122 = vld [vmem:[#allocation5 + $0xf] sm:$0xff]
    %v4123 = vld [vmem:[#allocation5 + $0x17] sm:$0xff]
    %v4124 = vld [vmem:[#allocation5 + $0x1f] sm:$0xff]
    %v4125 = vld [vmem:[#allocation5 + $0x27] sm:$0xff]
    %v4126 = vld [vmem:[#allocation5 + $0x2f] sm:$0xff]
    %v4127 = vld [vmem:[#allocation5 + $0x37] sm:$0xff]
    %v4128 = vld [vmem:[#allocation5 + $0x3f] sm:$0xff]
    %v4129 = vld [vmem:[#allocation5 + $0x47] sm:$0xff]
    %v4130 = vpack.c.bf16 %v4122, %v4121
    %v4131 = vpack.c.bf16 %v4124, %v4123
    %v4132 = vpack.c.bf16 %v4126, %v4125
    %v4133 = vpack.c.bf16 %v4128, %v4127
    %v4134 = vpack.c.bf16 %v4129, %v4129
    %v4135 = vld [vmem:[%s5 + $0x40] sm:$0xf]
    %v4136 = vld [vmem:[%s5 + $0x44] sm:$0xf]
    %v4137 = vld [vmem:[%s5 + $0x48] sm:$0xf]
    %v4138 = vld [vmem:[%s5 + $0x4c] sm:$0xf]
    %v4143 = vunpack.c.l.b16 %v4135
    %v4144 = vunpack.c.l.b16 %v4136
    %v4145 = vunpack.c.l.b16 %v4137
    %v4146 = vunpack.c.l.b16 %v4138
    %v4147 = vpack.c.b16 %v4144, %v4143
    %v4148 = vpack.c.b16 %v4146, %v4145
    %v4152 = vsel %vm389, %v4130, 0
    %v4155 = vsel %vm389, %v4131, 0
    %v4158 = vsel %vm389, %v4132, 0
    %v4161 = vsel %vm389, %v4133, 0
    %v4164 = vsel %vm389, %v4134, 0
    %4166 = vmatprep.subr.bf16.mxu0 0
    %4167 = vmatpush1.bf16.msra.mxu0 0
    %4168 = vmatprep.subr.bf16.mxu0 0
    %4169 = vmatpush1.bf16.msra.mxu0 0
    %4170 = vmatprep.subr.bf16.mxu0 0
    %4171 = vmatpush1.bf16.msra.mxu0 0
    %4172 = vmatprep.subr.bf16.mxu0 0
    %4173 = vmatpush1.bf16.msra.mxu0 0
    %4174 = vmatprep.subr.bf16.mxu0 0
    %4175 = vmatpush1.bf16.msra.mxu0 0
    %4176 = vmatprep.subr.bf16.mxu0 0
    %4177 = vmatpush1.bf16.msra.mxu0 0
    %4178 = vmatprep.subr.bf16.mxu0 0
    %4179 = vmatpush1.bf16.msra.mxu0 %v4148
    %4180 = vmatprep.subr.bf16.mxu0 0
    %4181 = vmatpush1.bf16.msra.mxu0 %v4147
    %4182 = vmatprep.subr.bf16.mxu0 0
    %4183 = vmatpush2.bf16.msra.mxu0 0
    %4184 = vmatprep.subr.bf16.mxu0 0
    %4185 = vmatpush2.bf16.msra.mxu0 0
    %4186 = vmatprep.subr.bf16.mxu0 0
    %4187 = vmatpush2.bf16.msra.mxu0 0
    %4188 = vmatprep.subr.bf16.mxu0 0
    %4189 = vmatpush2.bf16.msra.mxu0 0
    %4190 = vmatprep.subr.bf16.mxu0 0
    %4191 = vmatpush2.bf16.msra.mxu0 0
    %4192 = vmatprep.subr.bf16.mxu0 0
    %4193 = vmatpush2.bf16.msra.mxu0 0
    %4194 = vmatprep.subr.bf16.mxu0 0
    %4195 = vmatpush2.bf16.msra.mxu0 0
    %4196 = vmatprep.subr.bf16.mxu0 0
    %4197 = vmatpush2.bf16.msra.mxu0 0
    %4198 = vmatprep.mubr.bf16.mxu0 0
    %4199 = vmatmul.mubr.bf16.gmra.mxu0 %v4152
    %v4200 = vpop.f32.mrf.mxu0
    %v4201 = vadd.f32 0.0, %v4200
    %v4202 = vpop.f32.mrf.mxu0
    %v4203 = vpop.f32.mrf.mxu0
    %v4204 = vadd.f32 0.0, %v4203
    %v4205 = vpop.f32.mrf.mxu0
    %4206 = vmatprep.mubr.bf16.mxu0 0
    %4207 = vmatmul.mubr.bf16.gmra.mxu0 %v4155
    %v4208 = vpop.f32.mrf.mxu0
    %v4209 = vadd.f32 0.0, %v4208
    %v4210 = vpop.f32.mrf.mxu0
    %v4211 = vpop.f32.mrf.mxu0
    %v4212 = vadd.f32 0.0, %v4211
    %v4213 = vpop.f32.mrf.mxu0
    %4214 = vmatprep.mubr.bf16.mxu0 0
    %4215 = vmatmul.mubr.bf16.gmra.mxu0 %v4158
    %v4216 = vpop.f32.mrf.mxu0
    %v4217 = vadd.f32 0.0, %v4216
    %v4218 = vpop.f32.mrf.mxu0
    %v4219 = vpop.f32.mrf.mxu0
    %v4220 = vadd.f32 0.0, %v4219
    %v4221 = vpop.f32.mrf.mxu0
    %4222 = vmatprep.mubr.bf16.mxu0 0
    %4223 = vmatmul.mubr.bf16.gmra.mxu0 %v4161
    %v4224 = vpop.f32.mrf.mxu0
    %v4225 = vadd.f32 0.0, %v4224
    %v4226 = vpop.f32.mrf.mxu0
    %v4227 = vpop.f32.mrf.mxu0
    %v4228 = vadd.f32 0.0, %v4227
    %v4229 = vpop.f32.mrf.mxu0
    %4230 = vmatprep.mubr.bf16.mxu0 0
    %4231 = vmatmul.mubr.bf16.gmra.mxu0 %v4164
    %v4232 = vpop.f32.mrf.mxu0
    %v4233 = vadd.f32 0.0, %v4232
    %v4234 = vpop.f32.mrf.mxu0
    %v4235 = vpop.f32.mrf.mxu0
    %v4236 = vpop.f32.mrf.mxu0
    %4237 = vdwg.mxu0
    %v4238 = vadd.f32 %v4112, %v4201
    %v4239 = vadd.f32 %v4113, %v4204
    %v4240 = vadd.f32 %v4114, %v4209
    %v4241 = vadd.f32 %v4115, %v4212
    %v4242 = vadd.f32 %v4116, %v4217
    %v4243 = vadd.f32 %v4117, %v4220
    %v4244 = vadd.f32 %v4118, %v4225
    %v4245 = vadd.f32 %v4119, %v4228
    %v4246 = vadd.f32 %v4120, %v4233
    %v4247 = vld [vmem:[#allocation5 + $0x8] sm:$0xff]
    %v4248 = vld [vmem:[#allocation5 + $0x10] sm:$0xff]
    %v4249 = vld [vmem:[#allocation5 + $0x18] sm:$0xff]
    %v4250 = vld [vmem:[#allocation5 + $0x20] sm:$0xff]
    %v4251 = vld [vmem:[#allocation5 + $0x28] sm:$0xff]
    %v4252 = vld [vmem:[#allocation5 + $0x30] sm:$0xff]
    %v4253 = vld [vmem:[#allocation5 + $0x38] sm:$0xff]
    %v4254 = vld [vmem:[#allocation5 + $0x40] sm:$0xff]
    %v4255 = vld [vmem:[#allocation5 + $0x48] sm:$0xff]
    %v4256 = vpack.c.bf16 %v4248, %v4247
    %v4257 = vpack.c.bf16 %v4250, %v4249
    %v4258 = vpack.c.bf16 %v4252, %v4251
    %v4259 = vpack.c.bf16 %v4254, %v4253
    %v4260 = vpack.c.bf16 %v4255, %v4255
    %v4261 = vld [vmem:[%s5 + $0x50] sm:$0xf]
    %v4262 = vld [vmem:[%s5 + $0x54] sm:$0xf]
    %v4263 = vld [vmem:[%s5 + $0x58] sm:$0xf]
    %v4264 = vld [vmem:[%s5 + $0x5c] sm:$0xf]
    %v4269 = vunpack.c.l.b16 %v4261
    %v4270 = vunpack.c.l.b16 %v4262
    %v4271 = vunpack.c.l.b16 %v4263
    %v4272 = vunpack.c.l.b16 %v4264
    %v4273 = vpack.c.b16 %v4270, %v4269
    %v4274 = vpack.c.b16 %v4272, %v4271
    %v4278 = vsel %vm389, %v4256, 0
    %v4281 = vsel %vm389, %v4257, 0
    %v4284 = vsel %vm389, %v4258, 0
    %v4287 = vsel %vm389, %v4259, 0
    %v4290 = vsel %vm389, %v4260, 0
    %4292 = vmatprep.subr.bf16.mxu0 0
    %4293 = vmatpush1.bf16.msra.mxu0 0
    %4294 = vmatprep.subr.bf16.mxu0 0
    %4295 = vmatpush1.bf16.msra.mxu0 0
    %4296 = vmatprep.subr.bf16.mxu0 0
    %4297 = vmatpush1.bf16.msra.mxu0 0
    %4298 = vmatprep.subr.bf16.mxu0 0
    %4299 = vmatpush1.bf16.msra.mxu0 0
    %4300 = vmatprep.subr.bf16.mxu0 0
    %4301 = vmatpush1.bf16.msra.mxu0 0
    %4302 = vmatprep.subr.bf16.mxu0 0
    %4303 = vmatpush1.bf16.msra.mxu0 0
    %4304 = vmatprep.subr.bf16.mxu0 0
    %4305 = vmatpush1.bf16.msra.mxu0 %v4274
    %4306 = vmatprep.subr.bf16.mxu0 0
    %4307 = vmatpush1.bf16.msra.mxu0 %v4273
    %4308 = vmatprep.subr.bf16.mxu0 0
    %4309 = vmatpush2.bf16.msra.mxu0 0
    %4310 = vmatprep.subr.bf16.mxu0 0
    %4311 = vmatpush2.bf16.msra.mxu0 0
    %4312 = vmatprep.subr.bf16.mxu0 0
    %4313 = vmatpush2.bf16.msra.mxu0 0
    %4314 = vmatprep.subr.bf16.mxu0 0
    %4315 = vmatpush2.bf16.msra.mxu0 0
    %4316 = vmatprep.subr.bf16.mxu0 0
    %4317 = vmatpush2.bf16.msra.mxu0 0
    %4318 = vmatprep.subr.bf16.mxu0 0
    %4319 = vmatpush2.bf16.msra.mxu0 0
    %4320 = vmatprep.subr.bf16.mxu0 0
    %4321 = vmatpush2.bf16.msra.mxu0 0
    %4322 = vmatprep.subr.bf16.mxu0 0
    %4323 = vmatpush2.bf16.msra.mxu0 0
    %4324 = vmatprep.mubr.bf16.mxu0 0
    %4325 = vmatmul.mubr.bf16.gmra.mxu0 %v4278
    %v4326 = vpop.f32.mrf.mxu0
    %v4327 = vadd.f32 0.0, %v4326
    %v4328 = vpop.f32.mrf.mxu0
    %v4329 = vpop.f32.mrf.mxu0
    %v4330 = vadd.f32 0.0, %v4329
    %v4331 = vpop.f32.mrf.mxu0
    %4332 = vmatprep.mubr.bf16.mxu0 0
    %4333 = vmatmul.mubr.bf16.gmra.mxu0 %v4281
    %v4334 = vpop.f32.mrf.mxu0
    %v4335 = vadd.f32 0.0, %v4334
    %v4336 = vpop.f32.mrf.mxu0
    %v4337 = vpop.f32.mrf.mxu0
    %v4338 = vadd.f32 0.0, %v4337
    %v4339 = vpop.f32.mrf.mxu0
    %4340 = vmatprep.mubr.bf16.mxu0 0
    %4341 = vmatmul.mubr.bf16.gmra.mxu0 %v4284
    %v4342 = vpop.f32.mrf.mxu0
    %v4343 = vadd.f32 0.0, %v4342
    %v4344 = vpop.f32.mrf.mxu0
    %v4345 = vpop.f32.mrf.mxu0
    %v4346 = vadd.f32 0.0, %v4345
    %v4347 = vpop.f32.mrf.mxu0
    %4348 = vmatprep.mubr.bf16.mxu0 0
    %4349 = vmatmul.mubr.bf16.gmra.mxu0 %v4287
    %v4350 = vpop.f32.mrf.mxu0
    %v4351 = vadd.f32 0.0, %v4350
    %v4352 = vpop.f32.mrf.mxu0
    %v4353 = vpop.f32.mrf.mxu0
    %v4354 = vadd.f32 0.0, %v4353
    %v4355 = vpop.f32.mrf.mxu0
    %4356 = vmatprep.mubr.bf16.mxu0 0
    %4357 = vmatmul.mubr.bf16.gmra.mxu0 %v4290
    %v4358 = vpop.f32.mrf.mxu0
    %v4359 = vadd.f32 0.0, %v4358
    %v4360 = vpop.f32.mrf.mxu0
    %v4361 = vpop.f32.mrf.mxu0
    %v4362 = vpop.f32.mrf.mxu0
    %4363 = vdwg.mxu0
    %v4364 = vadd.f32 %v4238, %v4327
    %v4365 = vadd.f32 %v4239, %v4330
    %v4366 = vadd.f32 %v4240, %v4335
    %v4367 = vadd.f32 %v4241, %v4338
    %v4368 = vadd.f32 %v4242, %v4343
    %v4369 = vadd.f32 %v4243, %v4346
    %v4370 = vadd.f32 %v4244, %v4351
    %v4371 = vadd.f32 %v4245, %v4354
    %v4372 = vadd.f32 %v4246, %v4359
    %v4373 = vld [vmem:[#allocation5 + $0xc] sm:$0xff]
    %v4374 = vld [vmem:[#allocation5 + $0x14] sm:$0xff]
    %v4375 = vld [vmem:[#allocation5 + $0x1c] sm:$0xff]
    %v4376 = vld [vmem:[#allocation5 + $0x24] sm:$0xff]
    %v4377 = vld [vmem:[#allocation5 + $0x2c] sm:$0xff]
    %v4378 = vld [vmem:[#allocation5 + $0x34] sm:$0xff]
    %v4379 = vld [vmem:[#allocation5 + $0x3c] sm:$0xff]
    %v4380 = vld [vmem:[#allocation5 + $0x44] sm:$0xff]
    %v4381 = vld [vmem:[#allocation5 + $0x4c] sm:$0xff]
    %v4382 = vpack.c.bf16 %v4374, %v4373
    %v4383 = vpack.c.bf16 %v4376, %v4375
    %v4384 = vpack.c.bf16 %v4378, %v4377
    %v4385 = vpack.c.bf16 %v4380, %v4379
    %v4386 = vpack.c.bf16 %v4381, %v4381
    %v4387 = vld [vmem:[%s5 + $0x60] sm:$0xf]
    %v4388 = vld [vmem:[%s5 + $0x64] sm:$0xf]
    %v4389 = vld [vmem:[%s5 + $0x68] sm:$0xf]
    %v4390 = vld [vmem:[%s5 + $0x6c] sm:$0xf]
    %v4395 = vunpack.c.l.b16 %v4387
    %v4396 = vunpack.c.l.b16 %v4388
    %v4397 = vunpack.c.l.b16 %v4389
    %v4398 = vunpack.c.l.b16 %v4390
    %v4399 = vpack.c.b16 %v4396, %v4395
    %v4400 = vpack.c.b16 %v4398, %v4397
    %v4404 = vsel %vm389, %v4382, 0
    %v4407 = vsel %vm389, %v4383, 0
    %v4410 = vsel %vm389, %v4384, 0
    %v4413 = vsel %vm389, %v4385, 0
    %v4416 = vsel %vm389, %v4386, 0
    %4418 = vmatprep.subr.bf16.mxu0 0
    %4419 = vmatpush1.bf16.msra.mxu0 0
    %4420 = vmatprep.subr.bf16.mxu0 0
    %4421 = vmatpush1.bf16.msra.mxu0 0
    %4422 = vmatprep.subr.bf16.mxu0 0
    %4423 = vmatpush1.bf16.msra.mxu0 0
    %4424 = vmatprep.subr.bf16.mxu0 0
    %4425 = vmatpush1.bf16.msra.mxu0 0
    %4426 = vmatprep.subr.bf16.mxu0 0
    %4427 = vmatpush1.bf16.msra.mxu0 0
    %4428 = vmatprep.subr.bf16.mxu0 0
    %4429 = vmatpush1.bf16.msra.mxu0 0
    %4430 = vmatprep.subr.bf16.mxu0 0
    %4431 = vmatpush1.bf16.msra.mxu0 %v4400
    %4432 = vmatprep.subr.bf16.mxu0 0
    %4433 = vmatpush1.bf16.msra.mxu0 %v4399
    %4434 = vmatprep.subr.bf16.mxu0 0
    %4435 = vmatpush2.bf16.msra.mxu0 0
    %4436 = vmatprep.subr.bf16.mxu0 0
    %4437 = vmatpush2.bf16.msra.mxu0 0
    %4438 = vmatprep.subr.bf16.mxu0 0
    %4439 = vmatpush2.bf16.msra.mxu0 0
    %4440 = vmatprep.subr.bf16.mxu0 0
    %4441 = vmatpush2.bf16.msra.mxu0 0
    %4442 = vmatprep.subr.bf16.mxu0 0
    %4443 = vmatpush2.bf16.msra.mxu0 0
    %4444 = vmatprep.subr.bf16.mxu0 0
    %4445 = vmatpush2.bf16.msra.mxu0 0
    %4446 = vmatprep.subr.bf16.mxu0 0
    %4447 = vmatpush2.bf16.msra.mxu0 0
    %4448 = vmatprep.subr.bf16.mxu0 0
    %4449 = vmatpush2.bf16.msra.mxu0 0
    %4450 = vmatprep.mubr.bf16.mxu0 0
    %4451 = vmatmul.mubr.bf16.gmra.mxu0 %v4404
    %v4452 = vpop.f32.mrf.mxu0
    %v4453 = vadd.f32 0.0, %v4452
    %v4454 = vpop.f32.mrf.mxu0
    %v4455 = vpop.f32.mrf.mxu0
    %v4456 = vadd.f32 0.0, %v4455
    %v4457 = vpop.f32.mrf.mxu0
    %4458 = vmatprep.mubr.bf16.mxu0 0
    %4459 = vmatmul.mubr.bf16.gmra.mxu0 %v4407
    %v4460 = vpop.f32.mrf.mxu0
    %v4461 = vadd.f32 0.0, %v4460
    %v4462 = vpop.f32.mrf.mxu0
    %v4463 = vpop.f32.mrf.mxu0
    %v4464 = vadd.f32 0.0, %v4463
    %v4465 = vpop.f32.mrf.mxu0
    %4466 = vmatprep.mubr.bf16.mxu0 0
    %4467 = vmatmul.mubr.bf16.gmra.mxu0 %v4410
    %v4468 = vpop.f32.mrf.mxu0
    %v4469 = vadd.f32 0.0, %v4468
    %v4470 = vpop.f32.mrf.mxu0
    %v4471 = vpop.f32.mrf.mxu0
    %v4472 = vadd.f32 0.0, %v4471
    %v4473 = vpop.f32.mrf.mxu0
    %4474 = vmatprep.mubr.bf16.mxu0 0
    %4475 = vmatmul.mubr.bf16.gmra.mxu0 %v4413
    %v4476 = vpop.f32.mrf.mxu0
    %v4477 = vadd.f32 0.0, %v4476
    %v4478 = vpop.f32.mrf.mxu0
    %v4479 = vpop.f32.mrf.mxu0
    %v4480 = vadd.f32 0.0, %v4479
    %v4481 = vpop.f32.mrf.mxu0
    %4482 = vmatprep.mubr.bf16.mxu0 0
    %4483 = vmatmul.mubr.bf16.gmra.mxu0 %v4416
    %v4484 = vpop.f32.mrf.mxu0
    %v4485 = vadd.f32 0.0, %v4484
    %v4486 = vpop.f32.mrf.mxu0
    %v4487 = vpop.f32.mrf.mxu0
    %v4488 = vpop.f32.mrf.mxu0
    %4489 = vdwg.mxu0
    %v4490 = vadd.f32 %v4364, %v4453
    %v4491 = vadd.f32 %v4365, %v4456
    %v4492 = vadd.f32 %v4366, %v4461
    %v4493 = vadd.f32 %v4367, %v4464
    %v4494 = vadd.f32 %v4368, %v4469
    %v4495 = vadd.f32 %v4369, %v4472
    %v4496 = vadd.f32 %v4370, %v4477
    %v4497 = vadd.f32 %v4371, %v4480
    %v4498 = vadd.f32 %v4372, %v4485
    %v4499 = vld [vmem:[#allocation5 + $0xd] sm:$0xff]
    %v4500 = vld [vmem:[#allocation5 + $0x15] sm:$0xff]
    %v4501 = vld [vmem:[#allocation5 + $0x1d] sm:$0xff]
    %v4502 = vld [vmem:[#allocation5 + $0x25] sm:$0xff]
    %v4503 = vld [vmem:[#allocation5 + $0x2d] sm:$0xff]
    %v4504 = vld [vmem:[#allocation5 + $0x35] sm:$0xff]
    %v4505 = vld [vmem:[#allocation5 + $0x3d] sm:$0xff]
    %v4506 = vld [vmem:[#allocation5 + $0x45] sm:$0xff]
    %v4507 = vld [vmem:[#allocation5 + $0x4d] sm:$0xff]
    %v4508 = vpack.c.bf16 %v4500, %v4499
    %v4509 = vpack.c.bf16 %v4502, %v4501
    %v4510 = vpack.c.bf16 %v4504, %v4503
    %v4511 = vpack.c.bf16 %v4506, %v4505
    %v4512 = vpack.c.bf16 %v4507, %v4507
    %v4513 = vld [vmem:[%s5 + $0x70] sm:$0xf]
    %v4514 = vld [vmem:[%s5 + $0x74] sm:$0xf]
    %v4515 = vld [vmem:[%s5 + $0x78] sm:$0xf]
    %v4516 = vld [vmem:[%s5 + $0x7c] sm:$0xf]
    %v4521 = vunpack.c.l.b16 %v4513
    %v4522 = vunpack.c.l.b16 %v4514
    %v4523 = vunpack.c.l.b16 %v4515
    %v4524 = vunpack.c.l.b16 %v4516
    %v4525 = vpack.c.b16 %v4522, %v4521
    %v4526 = vpack.c.b16 %v4524, %v4523
    %v4530 = vsel %vm389, %v4508, 0
    %v4533 = vsel %vm389, %v4509, 0
    %v4536 = vsel %vm389, %v4510, 0
    %v4539 = vsel %vm389, %v4511, 0
    %v4542 = vsel %vm389, %v4512, 0
    %4544 = vmatprep.subr.bf16.mxu0 0
    %4545 = vmatpush1.bf16.msra.mxu0 0
    %4546 = vmatprep.subr.bf16.mxu0 0
    %4547 = vmatpush1.bf16.msra.mxu0 0
    %4548 = vmatprep.subr.bf16.mxu0 0
    %4549 = vmatpush1.bf16.msra.mxu0 0
    %4550 = vmatprep.subr.bf16.mxu0 0
    %4551 = vmatpush1.bf16.msra.mxu0 0
    %4552 = vmatprep.subr.bf16.mxu0 0
    %4553 = vmatpush1.bf16.msra.mxu0 0
    %4554 = vmatprep.subr.bf16.mxu0 0
    %4555 = vmatpush1.bf16.msra.mxu0 0
    %4556 = vmatprep.subr.bf16.mxu0 0
    %4557 = vmatpush1.bf16.msra.mxu0 %v4526
    %4558 = vmatprep.subr.bf16.mxu0 0
    %4559 = vmatpush1.bf16.msra.mxu0 %v4525
    %4560 = vmatprep.subr.bf16.mxu0 0
    %4561 = vmatpush2.bf16.msra.mxu0 0
    %4562 = vmatprep.subr.bf16.mxu0 0
    %4563 = vmatpush2.bf16.msra.mxu0 0
    %4564 = vmatprep.subr.bf16.mxu0 0
    %4565 = vmatpush2.bf16.msra.mxu0 0
    %4566 = vmatprep.subr.bf16.mxu0 0
    %4567 = vmatpush2.bf16.msra.mxu0 0
    %4568 = vmatprep.subr.bf16.mxu0 0
    %4569 = vmatpush2.bf16.msra.mxu0 0
    %4570 = vmatprep.subr.bf16.mxu0 0
    %4571 = vmatpush2.bf16.msra.mxu0 0
    %4572 = vmatprep.subr.bf16.mxu0 0
    %4573 = vmatpush2.bf16.msra.mxu0 0
    %4574 = vmatprep.subr.bf16.mxu0 0
    %4575 = vmatpush2.bf16.msra.mxu0 0
    %4576 = vmatprep.mubr.bf16.mxu0 0
    %4577 = vmatmul.mubr.bf16.gmra.mxu0 %v4530
    %v4578 = vpop.f32.mrf.mxu0
    %v4579 = vadd.f32 0.0, %v4578
    %v4580 = vpop.f32.mrf.mxu0
    %v4581 = vpop.f32.mrf.mxu0
    %v4582 = vadd.f32 0.0, %v4581
    %v4583 = vpop.f32.mrf.mxu0
    %4584 = vmatprep.mubr.bf16.mxu0 0
    %4585 = vmatmul.mubr.bf16.gmra.mxu0 %v4533
    %v4586 = vpop.f32.mrf.mxu0
    %v4587 = vadd.f32 0.0, %v4586
    %v4588 = vpop.f32.mrf.mxu0
    %v4589 = vpop.f32.mrf.mxu0
    %v4590 = vadd.f32 0.0, %v4589
    %v4591 = vpop.f32.mrf.mxu0
    %4592 = vmatprep.mubr.bf16.mxu0 0
    %4593 = vmatmul.mubr.bf16.gmra.mxu0 %v4536
    %v4594 = vpop.f32.mrf.mxu0
    %v4595 = vadd.f32 0.0, %v4594
    %v4596 = vpop.f32.mrf.mxu0
    %v4597 = vpop.f32.mrf.mxu0
    %v4598 = vadd.f32 0.0, %v4597
    %v4599 = vpop.f32.mrf.mxu0
    %4600 = vmatprep.mubr.bf16.mxu0 0
    %4601 = vmatmul.mubr.bf16.gmra.mxu0 %v4539
    %v4602 = vpop.f32.mrf.mxu0
    %v4603 = vadd.f32 0.0, %v4602
    %v4604 = vpop.f32.mrf.mxu0
    %v4605 = vpop.f32.mrf.mxu0
    %v4606 = vadd.f32 0.0, %v4605
    %v4607 = vpop.f32.mrf.mxu0
    %4608 = vmatprep.mubr.bf16.mxu0 0
    %4609 = vmatmul.mubr.bf16.gmra.mxu0 %v4542
    %v4610 = vpop.f32.mrf.mxu0
    %v4611 = vadd.f32 0.0, %v4610
    %v4612 = vpop.f32.mrf.mxu0
    %v4613 = vpop.f32.mrf.mxu0
    %v4614 = vpop.f32.mrf.mxu0
    %4615 = vdwg.mxu0
    %v4616 = vadd.f32 %v4490, %v4579
    %v4617 = vadd.f32 %v4491, %v4582
    %v4618 = vadd.f32 %v4492, %v4587
    %v4619 = vadd.f32 %v4493, %v4590
    %v4620 = vadd.f32 %v4494, %v4595
    %v4621 = vadd.f32 %v4495, %v4598
    %v4622 = vadd.f32 %v4496, %v4603
    %v4623 = vadd.f32 %v4497, %v4606
    %v4624 = vadd.f32 %v4498, %v4611
    %v4625 = vld [vmem:[#allocation5 + $0xe] sm:$0xff]
    %v4626 = vld [vmem:[#allocation5 + $0x16] sm:$0xff]
    %v4627 = vld [vmem:[#allocation5 + $0x1e] sm:$0xff]
    %v4628 = vld [vmem:[#allocation5 + $0x26] sm:$0xff]
    %v4629 = vld [vmem:[#allocation5 + $0x2e] sm:$0xff]
    %v4630 = vld [vmem:[#allocation5 + $0x36] sm:$0xff]
    %v4631 = vld [vmem:[#allocation5 + $0x3e] sm:$0xff]
    %v4632 = vld [vmem:[#allocation5 + $0x46] sm:$0xff]
    %v4633 = vld [vmem:[#allocation5 + $0x4e] sm:$0xff]
    %v4634 = vpack.c.bf16 %v4626, %v4625
    %v4635 = vpack.c.bf16 %v4628, %v4627
    %v4636 = vpack.c.bf16 %v4630, %v4629
    %v4637 = vpack.c.bf16 %v4632, %v4631
    %v4638 = vpack.c.bf16 %v4633, %v4633
    %v4639 = vld [vmem:[%s5 + $0x80] sm:$0xf]
    %v4640 = vld [vmem:[%s5 + $0x84] sm:$0xf]
    %v4641 = vld [vmem:[%s5 + $0x88] sm:$0xf]
    %v4642 = vld [vmem:[%s5 + $0x8c] sm:$0xf]
    %v4647 = vunpack.c.l.b16 %v4639
    %v4648 = vunpack.c.l.b16 %v4640
    %v4649 = vunpack.c.l.b16 %v4641
    %v4650 = vunpack.c.l.b16 %v4642
    %v4651 = vpack.c.b16 %v4648, %v4647
    %v4652 = vpack.c.b16 %v4650, %v4649
    %v4656 = vsel %vm389, %v4634, 0
    %v4659 = vsel %vm389, %v4635, 0
    %v4662 = vsel %vm389, %v4636, 0
    %v4665 = vsel %vm389, %v4637, 0
    %v4668 = vsel %vm389, %v4638, 0
    %4670 = vmatprep.subr.bf16.mxu0 0
    %4671 = vmatpush1.bf16.msra.mxu0 0
    %4672 = vmatprep.subr.bf16.mxu0 0
    %4673 = vmatpush1.bf16.msra.mxu0 0
    %4674 = vmatprep.subr.bf16.mxu0 0
    %4675 = vmatpush1.bf16.msra.mxu0 0
    %4676 = vmatprep.subr.bf16.mxu0 0
    %4677 = vmatpush1.bf16.msra.mxu0 0
    %4678 = vmatprep.subr.bf16.mxu0 0
    %4679 = vmatpush1.bf16.msra.mxu0 0
    %4680 = vmatprep.subr.bf16.mxu0 0
    %4681 = vmatpush1.bf16.msra.mxu0 0
    %4682 = vmatprep.subr.bf16.mxu0 0
    %4683 = vmatpush1.bf16.msra.mxu0 %v4652
    %4684 = vmatprep.subr.bf16.mxu0 0
    %4685 = vmatpush1.bf16.msra.mxu0 %v4651
    %4686 = vmatprep.subr.bf16.mxu0 0
    %4687 = vmatpush2.bf16.msra.mxu0 0
    %4688 = vmatprep.subr.bf16.mxu0 0
    %4689 = vmatpush2.bf16.msra.mxu0 0
    %4690 = vmatprep.subr.bf16.mxu0 0
    %4691 = vmatpush2.bf16.msra.mxu0 0
    %4692 = vmatprep.subr.bf16.mxu0 0
    %4693 = vmatpush2.bf16.msra.mxu0 0
    %4694 = vmatprep.subr.bf16.mxu0 0
    %4695 = vmatpush2.bf16.msra.mxu0 0
    %4696 = vmatprep.subr.bf16.mxu0 0
    %4697 = vmatpush2.bf16.msra.mxu0 0
    %4698 = vmatprep.subr.bf16.mxu0 0
    %4699 = vmatpush2.bf16.msra.mxu0 0
    %4700 = vmatprep.subr.bf16.mxu0 0
    %4701 = vmatpush2.bf16.msra.mxu0 0
    %4702 = vmatprep.mubr.bf16.mxu0 0
    %4703 = vmatmul.mubr.bf16.gmra.mxu0 %v4656
    %v4704 = vpop.f32.mrf.mxu0
    %v4705 = vadd.f32 0.0, %v4704
    %v4706 = vpop.f32.mrf.mxu0
    %v4707 = vpop.f32.mrf.mxu0
    %v4708 = vadd.f32 0.0, %v4707
    %v4709 = vpop.f32.mrf.mxu0
    %4710 = vmatprep.mubr.bf16.mxu0 0
    %4711 = vmatmul.mubr.bf16.gmra.mxu0 %v4659
    %v4712 = vpop.f32.mrf.mxu0
    %v4713 = vadd.f32 0.0, %v4712
    %v4714 = vpop.f32.mrf.mxu0
    %v4715 = vpop.f32.mrf.mxu0
    %v4716 = vadd.f32 0.0, %v4715
    %v4717 = vpop.f32.mrf.mxu0
    %4718 = vmatprep.mubr.bf16.mxu0 0
    %4719 = vmatmul.mubr.bf16.gmra.mxu0 %v4662
    %v4720 = vpop.f32.mrf.mxu0
    %v4721 = vadd.f32 0.0, %v4720
    %v4722 = vpop.f32.mrf.mxu0
    %v4723 = vpop.f32.mrf.mxu0
    %v4724 = vadd.f32 0.0, %v4723
    %v4725 = vpop.f32.mrf.mxu0
    %4726 = vmatprep.mubr.bf16.mxu0 0
    %4727 = vmatmul.mubr.bf16.gmra.mxu0 %v4665
    %v4728 = vpop.f32.mrf.mxu0
    %v4729 = vadd.f32 0.0, %v4728
    %v4730 = vpop.f32.mrf.mxu0
    %v4731 = vpop.f32.mrf.mxu0
    %v4732 = vadd.f32 0.0, %v4731
    %v4733 = vpop.f32.mrf.mxu0
    %4734 = vmatprep.mubr.bf16.mxu0 0
    %4735 = vmatmul.mubr.bf16.gmra.mxu0 %v4668
    %v4736 = vpop.f32.mrf.mxu0
    %v4737 = vadd.f32 0.0, %v4736
    %v4738 = vpop.f32.mrf.mxu0
    %v4739 = vpop.f32.mrf.mxu0
    %v4740 = vpop.f32.mrf.mxu0
    %4741 = vdwg.mxu0
    %v4742 = vadd.f32 %v4616, %v4705
    %v4743 = vadd.f32 %v4617, %v4708
    %v4744 = vadd.f32 %v4618, %v4713
    %v4745 = vadd.f32 %v4619, %v4716
    %v4746 = vadd.f32 %v4620, %v4721
    %v4747 = vadd.f32 %v4621, %v4724
    %v4748 = vadd.f32 %v4622, %v4729
    %v4749 = vadd.f32 %v4623, %v4732
    %v4750 = vadd.f32 %v4624, %v4737
    %v4751 = vld [vmem:[%s6] sm:$0x1]
    %v4753 = vlaneseq
    %v4754 = vshrl.u32 %v4753, 7
    %v4755 = vsub.s32 0, %v4754
    %v4756 = vrot.slane %v4751, %v4755
    %v4758 = vadd.f32 %v4742, %v4756
    %v4759 = vadd.f32 %v4743, %v4756
    %v4760 = vadd.f32 %v4744, %v4756
    %v4761 = vadd.f32 %v4745, %v4756
    %v4762 = vadd.f32 %v4746, %v4756
    %v4763 = vadd.f32 %v4747, %v4756
    %v4764 = vadd.f32 %v4748, %v4756
    %v4765 = vadd.f32 %v4749, %v4756
    %v4766 = vadd.f32 %v4750, %v4756
    %v4767 = vmax.f32 %v4758, 0.0
    %v4768 = vmax.f32 %v4759, 0.0
    %v4769 = vmax.f32 %v4760, 0.0
    %v4770 = vmax.f32 %v4761, 0.0
    %v4771 = vmax.f32 %v4762, 0.0
    %v4772 = vmax.f32 %v4763, 0.0
    %v4773 = vmax.f32 %v4764, 0.0
    %v4774 = vmax.f32 %v4765, 0.0
    %v4775 = vmax.f32 %v4766, 0.0
    %v4776 = vld [vmem:[%s7] sm:$0xff]
    %v4777 = vld [vmem:[%s7 + $0x8] sm:$0xff]
    %v4778 = vld [vmem:[%s7 + $0x10] sm:$0xff]
    %v4779 = vld [vmem:[%s7 + $0x18] sm:$0xff]
    %vm4780 = vcmask 588800
    %v4782 = vsel %vm4780, %v4776, 0
    %v4785 = vsel %vm4780, %v4777, 0
    %v4788 = vsel %vm4780, %v4778, 0
    %v4791 = vsel %vm4780, %v4779, 0
    %4793 = vmatprep.subr.mxu0 0.0
    %4794 = vmatpush1.msra.mxu0 0.0
    %4795 = vmatprep.subr.mxu0 0.0
    %4796 = vmatpush1.msra.mxu0 0.0
    %4797 = vmatprep.subr.mxu0 0.0
    %4798 = vmatpush1.msra.mxu0 0.0
    %4799 = vmatprep.subr.mxu0 0.0
    %4800 = vmatpush1.msra.mxu0 0.0
    %4801 = vmatprep.subr.mxu0 0.0
    %4802 = vmatpush1.msra.mxu0 0.0
    %4803 = vmatprep.subr.mxu0 0.0
    %4804 = vmatpush1.msra.mxu0 0.0
    %4805 = vmatprep.subr.mxu0 0.0
    %4806 = vmatpush1.msra.mxu0 0.0
    %4807 = vmatprep.subr.mxu0 0.0
    %4808 = vmatpush1.msra.mxu0 %v4775
    %4809 = vmatprep.subr.mxu0 0.0
    %4810 = vmatpush1.msra.mxu0 %v4774
    %4811 = vmatprep.subr.mxu0 0.0
    %4812 = vmatpush1.msra.mxu0 %v4773
    %4813 = vmatprep.subr.mxu0 0.0
    %4814 = vmatpush1.msra.mxu0 %v4772
    %4815 = vmatprep.subr.mxu0 0.0
    %4816 = vmatpush1.msra.mxu0 %v4771
    %4817 = vmatprep.subr.mxu0 0.0
    %4818 = vmatpush1.msra.mxu0 %v4770
    %4819 = vmatprep.subr.mxu0 0.0
    %4820 = vmatpush1.msra.mxu0 %v4769
    %4821 = vmatprep.subr.mxu0 0.0
    %4822 = vmatpush1.msra.mxu0 %v4768
    %4823 = vmatprep.subr.mxu0 0.0
    %4824 = vmatpush1.msra.mxu0 %v4767
    %4825 = vmatprep.subr.mxu0 0.0
    %4826 = vmatpush2.msra.mxu0 0.0
    %4827 = vmatprep.subr.mxu0 0.0
    %4828 = vmatpush2.msra.mxu0 0.0
    %4829 = vmatprep.subr.mxu0 0.0
    %4830 = vmatpush2.msra.mxu0 0.0
    %4831 = vmatprep.subr.mxu0 0.0
    %4832 = vmatpush2.msra.mxu0 0.0
    %4833 = vmatprep.subr.mxu0 0.0
    %4834 = vmatpush2.msra.mxu0 0.0
    %4835 = vmatprep.subr.mxu0 0.0
    %4836 = vmatpush2.msra.mxu0 0.0
    %4837 = vmatprep.subr.mxu0 0.0
    %4838 = vmatpush2.msra.mxu0 0.0
    %4839 = vmatprep.subr.mxu0 0.0
    %4840 = vmatpush2.msra.mxu0 0.0
    %4841 = vmatprep.subr.mxu0 0.0
    %4842 = vmatpush2.msra.mxu0 0.0
    %4843 = vmatprep.subr.mxu0 0.0
    %4844 = vmatpush2.msra.mxu0 0.0
    %4845 = vmatprep.subr.mxu0 0.0
    %4846 = vmatpush2.msra.mxu0 0.0
    %4847 = vmatprep.subr.mxu0 0.0
    %4848 = vmatpush2.msra.mxu0 0.0
    %4849 = vmatprep.subr.mxu0 0.0
    %4850 = vmatpush2.msra.mxu0 0.0
    %4851 = vmatprep.subr.mxu0 0.0
    %4852 = vmatpush2.msra.mxu0 0.0
    %4853 = vmatprep.subr.mxu0 0.0
    %4854 = vmatpush2.msra.mxu0 0.0
    %4855 = vmatprep.subr.mxu0 0.0
    %4856 = vmatpush2.msra.mxu0 0.0
    %4857 = vmatprep.mubr.f32.mxu0 0.0
    %4858 = vmatmul.mubr.f32.gmra.mxu0 %v4782
    %v4859 = vpop.f32.mrf.mxu0
    %v4860 = vadd.f32 0.0, %v4859
    %v4861 = vpop.f32.mrf.mxu0
    %4862 = vmatprep.mubr.f32.mxu0 0.0
    %4863 = vmatmul.mubr.f32.gmra.mxu0 %v4785
    %v4864 = vpop.f32.mrf.mxu0
    %v4865 = vadd.f32 0.0, %v4864
    %v4866 = vpop.f32.mrf.mxu0
    %4867 = vmatprep.mubr.f32.mxu0 0.0
    %4868 = vmatmul.mubr.f32.gmra.mxu0 %v4788
    %v4869 = vpop.f32.mrf.mxu0
    %v4870 = vadd.f32 0.0, %v4869
    %v4871 = vpop.f32.mrf.mxu0
    %4872 = vmatprep.mubr.f32.mxu0 0.0
    %4873 = vmatmul.mubr.f32.gmra.mxu0 %v4791
    %v4874 = vpop.f32.mrf.mxu0
    %v4875 = vadd.f32 0.0, %v4874
    %v4876 = vpop.f32.mrf.mxu0
    %4877 = vdwg.mxu0
    %vm4878 = vcmask 517120
    %4879 = vst.msk [vmem:[#allocation6] sm:$0x3] %vm4878, %v4860
    %v4882 = vunpack.c.l.s4 1983009808
    %v4883 = vunpack.c.0.s8 %v4882
    %v4884 = vlaneseq
    %v4885 = vshrl.u32 %v4884, 7
    %v4886 = vsub.s32 %v4883, %v4885
    %v4887 = vrot.slane %v4860, %v4886
    %v4888 = vcombine.high %v4887, %v4887
    %4889 = vrot.lane.b32.xlu0 %v4888, 64
    %v4890 = vpop.permute.xlu0 %4889
    %vm4892 = vcmask 1041920
    %4893 = vst.msk [vmem:[#allocation6] sm:$0x3] %vm4892, %v4890
    %v4894 = vcombine.high %v4860, %v4860
    %v4896 = vunpack.c.l.s4 1983009808
    %v4897 = vunpack.c.0.s8 %v4896
    %v4898 = vlaneseq
    %v4899 = vshrl.u32 %v4898, 7
    %v4900 = vsub.s32 %v4897, %v4899
    %v4901 = vrot.slane %v4894, %v4900
    %4903 = vst.msk [vmem:[#allocation6 + $0x2] sm:$0x3] %vm4878, %v4901
    %v4904 = vcombine.high %v4901, %v4901
    %4905 = vrot.lane.b32.xlu0 %v4904, 64
    %v4906 = vpop.permute.xlu0 %4905
    %4908 = vst.msk [vmem:[#allocation6 + $0x2] sm:$0x3] %vm4892, %v4906
    %4909 = vst.msk [vmem:[#allocation6 + $0x4] sm:$0x3] %vm4878, %v4865
    %v4912 = vunpack.c.l.s4 1983009808
    %v4913 = vunpack.c.0.s8 %v4912
    %v4914 = vlaneseq
    %v4915 = vshrl.u32 %v4914, 7
    %v4916 = vsub.s32 %v4913, %v4915
    %v4917 = vrot.slane %v4865, %v4916
    %v4918 = vcombine.high %v4917, %v4917
    %4919 = vrot.lane.b32.xlu0 %v4918, 64
    %v4920 = vpop.permute.xlu0 %4919
    %4922 = vst.msk [vmem:[#allocation6 + $0x4] sm:$0x3] %vm4892, %v4920
    %v4923 = vcombine.high %v4865, %v4865
    %v4925 = vunpack.c.l.s4 1983009808
    %v4926 = vunpack.c.0.s8 %v4925
    %v4927 = vlaneseq
    %v4928 = vshrl.u32 %v4927, 7
    %v4929 = vsub.s32 %v4926, %v4928
    %v4930 = vrot.slane %v4923, %v4929
    %4932 = vst.msk [vmem:[#allocation6 + $0x6] sm:$0x3] %vm4878, %v4930
    %v4933 = vcombine.high %v4930, %v4930
    %4934 = vrot.lane.b32.xlu0 %v4933, 64
    %v4935 = vpop.permute.xlu0 %4934
    %4937 = vst.msk [vmem:[#allocation6 + $0x6] sm:$0x3] %vm4892, %v4935
    %4938 = vst.msk [vmem:[#allocation6 + $0x8] sm:$0x3] %vm4878, %v4870
    %v4941 = vunpack.c.l.s4 1983009808
    %v4942 = vunpack.c.0.s8 %v4941
    %v4943 = vlaneseq
    %v4944 = vshrl.u32 %v4943, 7
    %v4945 = vsub.s32 %v4942, %v4944
    %v4946 = vrot.slane %v4870, %v4945
    %v4947 = vcombine.high %v4946, %v4946
    %4948 = vrot.lane.b32.xlu0 %v4947, 64
    %v4949 = vpop.permute.xlu0 %4948
    %4951 = vst.msk [vmem:[#allocation6 + $0x8] sm:$0x3] %vm4892, %v4949
    %v4952 = vcombine.high %v4870, %v4870
    %v4954 = vunpack.c.l.s4 1983009808
    %v4955 = vunpack.c.0.s8 %v4954
    %v4956 = vlaneseq
    %v4957 = vshrl.u32 %v4956, 7
    %v4958 = vsub.s32 %v4955, %v4957
    %v4959 = vrot.slane %v4952, %v4958
    %4961 = vst.msk [vmem:[#allocation6 + $0xa] sm:$0x3] %vm4878, %v4959
    %v4962 = vcombine.high %v4959, %v4959
    %4963 = vrot.lane.b32.xlu0 %v4962, 64
    %v4964 = vpop.permute.xlu0 %4963
    %4966 = vst.msk [vmem:[#allocation6 + $0xa] sm:$0x3] %vm4892, %v4964
    %4967 = vst.msk [vmem:[#allocation6 + $0xc] sm:$0x3] %vm4878, %v4875
    %v4970 = vunpack.c.l.s4 1983009808
    %v4971 = vunpack.c.0.s8 %v4970
    %v4972 = vlaneseq
    %v4973 = vshrl.u32 %v4972, 7
    %v4974 = vsub.s32 %v4971, %v4973
    %v4975 = vrot.slane %v4875, %v4974
    %v4976 = vcombine.high %v4975, %v4975
    %4977 = vrot.lane.b32.xlu0 %v4976, 64
    %v4978 = vpop.permute.xlu0 %4977
    %4980 = vst.msk [vmem:[#allocation6 + $0xc] sm:$0x3] %vm4892, %v4978
    %v4981 = vcombine.high %v4875, %v4875
    %v4983 = vunpack.c.l.s4 1983009808
    %v4984 = vunpack.c.0.s8 %v4983
    %v4985 = vlaneseq
    %v4986 = vshrl.u32 %v4985, 7
    %v4987 = vsub.s32 %v4984, %v4986
    %v4988 = vrot.slane %v4981, %v4987
    %4990 = vst.msk [vmem:[#allocation6 + $0xe] sm:$0x3] %vm4878, %v4988
    %v4991 = vcombine.high %v4988, %v4988
    %4992 = vrot.lane.b32.xlu0 %v4991, 64
    %v4993 = vpop.permute.xlu0 %4992
    %4995 = vst.msk [vmem:[#allocation6 + $0xe] sm:$0x3] %vm4892, %v4993
    %s4996 = smul.u32 4, 128
    %s4997 = smul.u32 %s4996, 2
    %s4998 = sshll.u32 %s4997, 4
    %4999 = dma.done [#allocation8], %s4998
    %v5000 = vld [vmem:[#allocation6] sm:$0xff]
    %v5001 = vld [vmem:[#allocation6 + $0x8] sm:$0xff]
    %v5004 = vcombine.high %v5000, %v5000
    %v5006 = vunpack.c.l.s4 1983009808
    %v5007 = vunpack.c.0.s8 %v5006
    %v5008 = vlaneseq
    %v5009 = vshrl.u32 %v5008, 7
    %v5010 = vsub.s32 %v5007, %v5009
    %v5011 = vrot.slane %v5000, %v5010
    %v5013 = vunpack.c.l.s4 1983009808
    %v5014 = vunpack.c.0.s8 %v5013
    %v5015 = vlaneseq
    %v5016 = vshrl.u32 %v5015, 7
    %v5017 = vsub.s32 %v5014, %v5016
    %v5018 = vrot.slane %v5004, %v5017
    %v5019 = vcombine.high %v5011, %v5011
    %v5020 = vcombine.high %v5018, %v5018
    %v5021 = vcombine.high %v5001, %v5001
    %v5023 = vunpack.c.l.s4 1983009808
    %v5024 = vunpack.c.0.s8 %v5023
    %v5025 = vlaneseq
    %v5026 = vshrl.u32 %v5025, 7
    %v5027 = vsub.s32 %v5024, %v5026
    %v5028 = vrot.slane %v5001, %v5027
    %v5030 = vunpack.c.l.s4 1983009808
    %v5031 = vunpack.c.0.s8 %v5030
    %v5032 = vlaneseq
    %v5033 = vshrl.u32 %v5032, 7
    %v5034 = vsub.s32 %v5031, %v5033
    %v5035 = vrot.slane %v5021, %v5034
    %v5036 = vcombine.high %v5028, %v5028
    %v5037 = vcombine.high %v5035, %v5035
    %v5046 = vpack.c.bf16 %v5011, %v5011
    %v5047 = vpack.c.bf16 %v5019, %v5019
    %v5048 = vpack.c.bf16 %v5018, %v5018
    %v5049 = vpack.c.bf16 %v5020, %v5020
    %v5050 = vpack.c.bf16 %v5028, %v5028
    %v5051 = vpack.c.bf16 %v5036, %v5036
    %v5052 = vpack.c.bf16 %v5035, %v5035
    %v5053 = vpack.c.bf16 %v5037, %v5037
    %v5054 = vld [vmem:[#allocation7] sm:$0xff]
    %v5055 = vld [vmem:[#allocation7 + $0x8] sm:$0xff]
    %v5056 = vld [vmem:[#allocation7 + $0x10] sm:$0xff]
    %v5057 = vld [vmem:[#allocation7 + $0x18] sm:$0xff]
    %v5058 = vld [vmem:[#allocation7 + $0x20] sm:$0xff]
    %v5059 = vld [vmem:[#allocation7 + $0x28] sm:$0xff]
    %v5060 = vld [vmem:[#allocation7 + $0x30] sm:$0xff]
    %v5061 = vld [vmem:[#allocation7 + $0x38] sm:$0xff]
    %v5062 = vld [vmem:[#allocation7 + $0x40] sm:$0xff]
    %v5063 = vld [vmem:[#allocation7 + $0x48] sm:$0xff]
    %v5064 = vld [vmem:[#allocation7 + $0x50] sm:$0xff]
    %v5065 = vld [vmem:[#allocation7 + $0x58] sm:$0xff]
    %v5066 = vld [vmem:[#allocation7 + $0x60] sm:$0xff]
    %v5067 = vld [vmem:[#allocation7 + $0x68] sm:$0xff]
    %v5068 = vld [vmem:[#allocation7 + $0x70] sm:$0xff]
    %v5069 = vld [vmem:[#allocation7 + $0x78] sm:$0xff]
    %v5070 = vld [vmem:[#allocation7 + $0x80] sm:$0xff]
    %v5071 = vld [vmem:[#allocation7 + $0x88] sm:$0xff]
    %v5072 = vld [vmem:[#allocation7 + $0x90] sm:$0xff]
    %v5073 = vld [vmem:[#allocation7 + $0x98] sm:$0xff]
    %v5074 = vld [vmem:[#allocation7 + $0xa0] sm:$0xff]
    %v5075 = vld [vmem:[#allocation7 + $0xa8] sm:$0xff]
    %v5076 = vld [vmem:[#allocation7 + $0xb0] sm:$0xff]
    %v5077 = vld [vmem:[#allocation7 + $0xb8] sm:$0xff]
    %v5078 = vld [vmem:[#allocation7 + $0xc0] sm:$0xff]
    %v5079 = vld [vmem:[#allocation7 + $0xc8] sm:$0xff]
    %v5080 = vld [vmem:[#allocation7 + $0xd0] sm:$0xff]
    %v5081 = vld [vmem:[#allocation7 + $0xd8] sm:$0xff]
    %v5082 = vld [vmem:[#allocation7 + $0xe0] sm:$0xff]
    %v5083 = vld [vmem:[#allocation7 + $0xe8] sm:$0xff]
    %v5084 = vld [vmem:[#allocation7 + $0xf0] sm:$0xff]
    %v5085 = vld [vmem:[#allocation7 + $0xf8] sm:$0xff]
    %v5086 = vld [vmem:[#allocation7 + $0x100] sm:$0xff]
    %v5087 = vld [vmem:[#allocation7 + $0x108] sm:$0xff]
    %v5088 = vld [vmem:[#allocation7 + $0x110] sm:$0xff]
    %v5089 = vld [vmem:[#allocation7 + $0x118] sm:$0xff]
    %v5090 = vld [vmem:[#allocation7 + $0x120] sm:$0xff]
    %v5091 = vld [vmem:[#allocation7 + $0x128] sm:$0xff]
    %v5092 = vld [vmem:[#allocation7 + $0x130] sm:$0xff]
    %v5093 = vld [vmem:[#allocation7 + $0x138] sm:$0xff]
    %v5094 = vld [vmem:[#allocation7 + $0x140] sm:$0xff]
    %v5095 = vld [vmem:[#allocation7 + $0x148] sm:$0xff]
    %v5096 = vld [vmem:[#allocation7 + $0x150] sm:$0xff]
    %v5097 = vld [vmem:[#allocation7 + $0x158] sm:$0xff]
    %v5098 = vld [vmem:[#allocation7 + $0x160] sm:$0xff]
    %v5099 = vld [vmem:[#allocation7 + $0x168] sm:$0xff]
    %v5100 = vld [vmem:[#allocation7 + $0x170] sm:$0xff]
    %v5101 = vld [vmem:[#allocation7 + $0x178] sm:$0xff]
    %v5102 = vld [vmem:[#allocation7 + $0x180] sm:$0xff]
    %v5103 = vld [vmem:[#allocation7 + $0x188] sm:$0xff]
    %v5104 = vld [vmem:[#allocation7 + $0x190] sm:$0xff]
    %v5105 = vld [vmem:[#allocation7 + $0x198] sm:$0xff]
    %v5106 = vld [vmem:[#allocation7 + $0x1a0] sm:$0xff]
    %v5107 = vld [vmem:[#allocation7 + $0x1a8] sm:$0xff]
    %v5108 = vld [vmem:[#allocation7 + $0x1b0] sm:$0xff]
    %v5109 = vld [vmem:[#allocation7 + $0x1b8] sm:$0xff]
    %v5110 = vld [vmem:[#allocation7 + $0x1c0] sm:$0xff]
    %v5111 = vld [vmem:[#allocation7 + $0x1c8] sm:$0xff]
    %v5112 = vld [vmem:[#allocation7 + $0x1d0] sm:$0xff]
    %v5113 = vld [vmem:[#allocation7 + $0x1d8] sm:$0xff]
    %v5114 = vld [vmem:[#allocation7 + $0x1e0] sm:$0xff]
    %v5115 = vld [vmem:[#allocation7 + $0x1e8] sm:$0xff]
    %v5116 = vld [vmem:[#allocation7 + $0x1f0] sm:$0xff]
    %v5117 = vld [vmem:[#allocation7 + $0x1f8] sm:$0xff]
    %v5118 = vld [vmem:[#allocation7 + $0x200] sm:$0xff]
    %v5119 = vld [vmem:[#allocation7 + $0x208] sm:$0xff]
    %v5120 = vld [vmem:[#allocation7 + $0x210] sm:$0xff]
    %v5121 = vld [vmem:[#allocation7 + $0x218] sm:$0xff]
    %v5122 = vld [vmem:[#allocation7 + $0x220] sm:$0xff]
    %v5123 = vld [vmem:[#allocation7 + $0x228] sm:$0xff]
    %v5124 = vld [vmem:[#allocation7 + $0x230] sm:$0xff]
    %v5125 = vld [vmem:[#allocation7 + $0x238] sm:$0xff]
    %v5126 = vld [vmem:[#allocation7 + $0x240] sm:$0xff]
    %v5127 = vld [vmem:[#allocation7 + $0x248] sm:$0xff]
    %v5128 = vld [vmem:[#allocation7 + $0x250] sm:$0xff]
    %v5129 = vld [vmem:[#allocation7 + $0x258] sm:$0xff]
    %v5130 = vld [vmem:[#allocation7 + $0x260] sm:$0xff]
    %v5131 = vld [vmem:[#allocation7 + $0x268] sm:$0xff]
    %v5132 = vld [vmem:[#allocation7 + $0x270] sm:$0xff]
    %v5133 = vld [vmem:[#allocation7 + $0x278] sm:$0xff]
    %v5134 = vld [vmem:[#allocation7 + $0x280] sm:$0xff]
    %v5135 = vld [vmem:[#allocation7 + $0x288] sm:$0xff]
    %v5136 = vld [vmem:[#allocation7 + $0x290] sm:$0xff]
    %v5137 = vld [vmem:[#allocation7 + $0x298] sm:$0xff]
    %v5138 = vld [vmem:[#allocation7 + $0x2a0] sm:$0xff]
    %v5139 = vld [vmem:[#allocation7 + $0x2a8] sm:$0xff]
    %v5140 = vld [vmem:[#allocation7 + $0x2b0] sm:$0xff]
    %v5141 = vld [vmem:[#allocation7 + $0x2b8] sm:$0xff]
    %v5142 = vld [vmem:[#allocation7 + $0x2c0] sm:$0xff]
    %v5143 = vld [vmem:[#allocation7 + $0x2c8] sm:$0xff]
    %v5144 = vld [vmem:[#allocation7 + $0x2d0] sm:$0xff]
    %v5145 = vld [vmem:[#allocation7 + $0x2d8] sm:$0xff]
    %v5146 = vld [vmem:[#allocation7 + $0x2e0] sm:$0xff]
    %v5147 = vld [vmem:[#allocation7 + $0x2e8] sm:$0xff]
    %v5148 = vld [vmem:[#allocation7 + $0x2f0] sm:$0xff]
    %v5149 = vld [vmem:[#allocation7 + $0x2f8] sm:$0xff]
    %v5150 = vld [vmem:[#allocation7 + $0x300] sm:$0xff]
    %v5151 = vld [vmem:[#allocation7 + $0x308] sm:$0xff]
    %v5152 = vld [vmem:[#allocation7 + $0x310] sm:$0xff]
    %v5153 = vld [vmem:[#allocation7 + $0x318] sm:$0xff]
    %v5154 = vld [vmem:[#allocation7 + $0x320] sm:$0xff]
    %v5155 = vld [vmem:[#allocation7 + $0x328] sm:$0xff]
    %v5156 = vld [vmem:[#allocation7 + $0x330] sm:$0xff]
    %v5157 = vld [vmem:[#allocation7 + $0x338] sm:$0xff]
    %v5158 = vld [vmem:[#allocation7 + $0x340] sm:$0xff]
    %v5159 = vld [vmem:[#allocation7 + $0x348] sm:$0xff]
    %v5160 = vld [vmem:[#allocation7 + $0x350] sm:$0xff]
    %v5161 = vld [vmem:[#allocation7 + $0x358] sm:$0xff]
    %v5162 = vld [vmem:[#allocation7 + $0x360] sm:$0xff]
    %v5163 = vld [vmem:[#allocation7 + $0x368] sm:$0xff]
    %v5164 = vld [vmem:[#allocation7 + $0x370] sm:$0xff]
    %v5165 = vld [vmem:[#allocation7 + $0x378] sm:$0xff]
    %v5166 = vld [vmem:[#allocation7 + $0x380] sm:$0xff]
    %v5167 = vld [vmem:[#allocation7 + $0x388] sm:$0xff]
    %v5168 = vld [vmem:[#allocation7 + $0x390] sm:$0xff]
    %v5169 = vld [vmem:[#allocation7 + $0x398] sm:$0xff]
    %v5170 = vld [vmem:[#allocation7 + $0x3a0] sm:$0xff]
    %v5171 = vld [vmem:[#allocation7 + $0x3a8] sm:$0xff]
    %v5172 = vld [vmem:[#allocation7 + $0x3b0] sm:$0xff]
    %v5173 = vld [vmem:[#allocation7 + $0x3b8] sm:$0xff]
    %v5174 = vld [vmem:[#allocation7 + $0x3c0] sm:$0xff]
    %v5175 = vld [vmem:[#allocation7 + $0x3c8] sm:$0xff]
    %v5176 = vld [vmem:[#allocation7 + $0x3d0] sm:$0xff]
    %v5177 = vld [vmem:[#allocation7 + $0x3d8] sm:$0xff]
    %v5178 = vld [vmem:[#allocation7 + $0x3e0] sm:$0xff]
    %v5179 = vld [vmem:[#allocation7 + $0x3e8] sm:$0xff]
    %v5180 = vld [vmem:[#allocation7 + $0x3f0] sm:$0xff]
    %v5181 = vld [vmem:[#allocation7 + $0x3f8] sm:$0xff]
    %v5182 = vld [vmem:[%s9] sm:$0x3]
    %v5184 = vlaneseq
    %v5185 = vshrl.u32 %v5184, 7
    %v5186 = vsub.s32 0, %v5185
    %v5187 = vrot.slane %v5182, %v5186
    %v5188 = vlaneseq
    %v5189 = vshrl.u32 %v5188, 7
    %v5190 = vsub.s32 1, %v5189
    %v5191 = vrot.slane %v5182, %v5190
    %v5322 = vunpack.c.l.b16 %v5054
    %v5323 = vunpack.c.h.b16 %v5054
    %v5324 = vunpack.c.l.b16 %v5055
    %v5325 = vunpack.c.h.b16 %v5055
    %v5326 = vunpack.c.l.b16 %v5056
    %v5327 = vunpack.c.h.b16 %v5056
    %v5328 = vunpack.c.l.b16 %v5057
    %v5329 = vunpack.c.h.b16 %v5057
    %v5330 = vunpack.c.l.b16 %v5058
    %v5331 = vunpack.c.h.b16 %v5058
    %v5332 = vunpack.c.l.b16 %v5059
    %v5333 = vunpack.c.h.b16 %v5059
    %v5334 = vunpack.c.l.b16 %v5060
    %v5335 = vunpack.c.h.b16 %v5060
    %v5336 = vunpack.c.l.b16 %v5061
    %v5337 = vunpack.c.h.b16 %v5061
    %v5338 = vunpack.c.l.b16 %v5062
    %v5339 = vunpack.c.h.b16 %v5062
    %v5340 = vunpack.c.l.b16 %v5063
    %v5341 = vunpack.c.h.b16 %v5063
    %v5342 = vunpack.c.l.b16 %v5064
    %v5343 = vunpack.c.h.b16 %v5064
    %v5344 = vunpack.c.l.b16 %v5065
    %v5345 = vunpack.c.h.b16 %v5065
    %v5346 = vunpack.c.l.b16 %v5066
    %v5347 = vunpack.c.h.b16 %v5066
    %v5348 = vunpack.c.l.b16 %v5067
    %v5349 = vunpack.c.h.b16 %v5067
    %v5350 = vunpack.c.l.b16 %v5068
    %v5351 = vunpack.c.h.b16 %v5068
    %v5352 = vunpack.c.l.b16 %v5069
    %v5353 = vunpack.c.h.b16 %v5069
    %v5354 = vunpack.c.l.b16 %v5070
    %v5355 = vunpack.c.h.b16 %v5070
    %v5356 = vunpack.c.l.b16 %v5071
    %v5357 = vunpack.c.h.b16 %v5071
    %v5358 = vunpack.c.l.b16 %v5072
    %v5359 = vunpack.c.h.b16 %v5072
    %v5360 = vunpack.c.l.b16 %v5073
    %v5361 = vunpack.c.h.b16 %v5073
    %v5362 = vunpack.c.l.b16 %v5074
    %v5363 = vunpack.c.h.b16 %v5074
    %v5364 = vunpack.c.l.b16 %v5075
    %v5365 = vunpack.c.h.b16 %v5075
    %v5366 = vunpack.c.l.b16 %v5076
    %v5367 = vunpack.c.h.b16 %v5076
    %v5368 = vunpack.c.l.b16 %v5077
    %v5369 = vunpack.c.h.b16 %v5077
    %v5370 = vunpack.c.l.b16 %v5078
    %v5371 = vunpack.c.h.b16 %v5078
    %v5372 = vunpack.c.l.b16 %v5079
    %v5373 = vunpack.c.h.b16 %v5079
    %v5374 = vunpack.c.l.b16 %v5080
    %v5375 = vunpack.c.h.b16 %v5080
    %v5376 = vunpack.c.l.b16 %v5081
    %v5377 = vunpack.c.h.b16 %v5081
    %v5378 = vunpack.c.l.b16 %v5082
    %v5379 = vunpack.c.h.b16 %v5082
    %v5380 = vunpack.c.l.b16 %v5083
    %v5381 = vunpack.c.h.b16 %v5083
    %v5382 = vunpack.c.l.b16 %v5084
    %v5383 = vunpack.c.h.b16 %v5084
    %v5384 = vunpack.c.l.b16 %v5085
    %v5385 = vunpack.c.h.b16 %v5085
    %v5386 = vunpack.c.l.b16 %v5086
    %v5387 = vunpack.c.h.b16 %v5086
    %v5388 = vunpack.c.l.b16 %v5087
    %v5389 = vunpack.c.h.b16 %v5087
    %v5390 = vunpack.c.l.b16 %v5088
    %v5391 = vunpack.c.h.b16 %v5088
    %v5392 = vunpack.c.l.b16 %v5089
    %v5393 = vunpack.c.h.b16 %v5089
    %v5394 = vunpack.c.l.b16 %v5090
    %v5395 = vunpack.c.h.b16 %v5090
    %v5396 = vunpack.c.l.b16 %v5091
    %v5397 = vunpack.c.h.b16 %v5091
    %v5398 = vunpack.c.l.b16 %v5092
    %v5399 = vunpack.c.h.b16 %v5092
    %v5400 = vunpack.c.l.b16 %v5093
    %v5401 = vunpack.c.h.b16 %v5093
    %v5402 = vunpack.c.l.b16 %v5094
    %v5403 = vunpack.c.h.b16 %v5094
    %v5404 = vunpack.c.l.b16 %v5095
    %v5405 = vunpack.c.h.b16 %v5095
    %v5406 = vunpack.c.l.b16 %v5096
    %v5407 = vunpack.c.h.b16 %v5096
    %v5408 = vunpack.c.l.b16 %v5097
    %v5409 = vunpack.c.h.b16 %v5097
    %v5410 = vunpack.c.l.b16 %v5098
    %v5411 = vunpack.c.h.b16 %v5098
    %v5412 = vunpack.c.l.b16 %v5099
    %v5413 = vunpack.c.h.b16 %v5099
    %v5414 = vunpack.c.l.b16 %v5100
    %v5415 = vunpack.c.h.b16 %v5100
    %v5416 = vunpack.c.l.b16 %v5101
    %v5417 = vunpack.c.h.b16 %v5101
    %v5418 = vunpack.c.l.b16 %v5102
    %v5419 = vunpack.c.h.b16 %v5102
    %v5420 = vunpack.c.l.b16 %v5103
    %v5421 = vunpack.c.h.b16 %v5103
    %v5422 = vunpack.c.l.b16 %v5104
    %v5423 = vunpack.c.h.b16 %v5104
    %v5424 = vunpack.c.l.b16 %v5105
    %v5425 = vunpack.c.h.b16 %v5105
    %v5426 = vunpack.c.l.b16 %v5106
    %v5427 = vunpack.c.h.b16 %v5106
    %v5428 = vunpack.c.l.b16 %v5107
    %v5429 = vunpack.c.h.b16 %v5107
    %v5430 = vunpack.c.l.b16 %v5108
    %v5431 = vunpack.c.h.b16 %v5108
    %v5432 = vunpack.c.l.b16 %v5109
    %v5433 = vunpack.c.h.b16 %v5109
    %v5434 = vunpack.c.l.b16 %v5110
    %v5435 = vunpack.c.h.b16 %v5110
    %v5436 = vunpack.c.l.b16 %v5111
    %v5437 = vunpack.c.h.b16 %v5111
    %v5438 = vunpack.c.l.b16 %v5112
    %v5439 = vunpack.c.h.b16 %v5112
    %v5440 = vunpack.c.l.b16 %v5113
    %v5441 = vunpack.c.h.b16 %v5113
    %v5442 = vunpack.c.l.b16 %v5114
    %v5443 = vunpack.c.h.b16 %v5114
    %v5444 = vunpack.c.l.b16 %v5115
    %v5445 = vunpack.c.h.b16 %v5115
    %v5446 = vunpack.c.l.b16 %v5116
    %v5447 = vunpack.c.h.b16 %v5116
    %v5448 = vunpack.c.l.b16 %v5117
    %v5449 = vunpack.c.h.b16 %v5117
    %v5450 = vunpack.c.l.b16 %v5118
    %v5451 = vunpack.c.h.b16 %v5118
    %v5452 = vunpack.c.l.b16 %v5119
    %v5453 = vunpack.c.h.b16 %v5119
    %v5454 = vunpack.c.l.b16 %v5120
    %v5455 = vunpack.c.h.b16 %v5120
    %v5456 = vunpack.c.l.b16 %v5121
    %v5457 = vunpack.c.h.b16 %v5121
    %v5458 = vunpack.c.l.b16 %v5122
    %v5459 = vunpack.c.h.b16 %v5122
    %v5460 = vunpack.c.l.b16 %v5123
    %v5461 = vunpack.c.h.b16 %v5123
    %v5462 = vunpack.c.l.b16 %v5124
    %v5463 = vunpack.c.h.b16 %v5124
    %v5464 = vunpack.c.l.b16 %v5125
    %v5465 = vunpack.c.h.b16 %v5125
    %v5466 = vunpack.c.l.b16 %v5126
    %v5467 = vunpack.c.h.b16 %v5126
    %v5468 = vunpack.c.l.b16 %v5127
    %v5469 = vunpack.c.h.b16 %v5127
    %v5470 = vunpack.c.l.b16 %v5128
    %v5471 = vunpack.c.h.b16 %v5128
    %v5472 = vunpack.c.l.b16 %v5129
    %v5473 = vunpack.c.h.b16 %v5129
    %v5474 = vunpack.c.l.b16 %v5130
    %v5475 = vunpack.c.h.b16 %v5130
    %v5476 = vunpack.c.l.b16 %v5131
    %v5477 = vunpack.c.h.b16 %v5131
    %v5478 = vunpack.c.l.b16 %v5132
    %v5479 = vunpack.c.h.b16 %v5132
    %v5480 = vunpack.c.l.b16 %v5133
    %v5481 = vunpack.c.h.b16 %v5133
    %v5482 = vunpack.c.l.b16 %v5134
    %v5483 = vunpack.c.h.b16 %v5134
    %v5484 = vunpack.c.l.b16 %v5135
    %v5485 = vunpack.c.h.b16 %v5135
    %v5486 = vunpack.c.l.b16 %v5136
    %v5487 = vunpack.c.h.b16 %v5136
    %v5488 = vunpack.c.l.b16 %v5137
    %v5489 = vunpack.c.h.b16 %v5137
    %v5490 = vunpack.c.l.b16 %v5138
    %v5491 = vunpack.c.h.b16 %v5138
    %v5492 = vunpack.c.l.b16 %v5139
    %v5493 = vunpack.c.h.b16 %v5139
    %v5494 = vunpack.c.l.b16 %v5140
    %v5495 = vunpack.c.h.b16 %v5140
    %v5496 = vunpack.c.l.b16 %v5141
    %v5497 = vunpack.c.h.b16 %v5141
    %v5498 = vunpack.c.l.b16 %v5142
    %v5499 = vunpack.c.h.b16 %v5142
    %v5500 = vunpack.c.l.b16 %v5143
    %v5501 = vunpack.c.h.b16 %v5143
    %v5502 = vunpack.c.l.b16 %v5144
    %v5503 = vunpack.c.h.b16 %v5144
    %v5504 = vunpack.c.l.b16 %v5145
    %v5505 = vunpack.c.h.b16 %v5145
    %v5506 = vunpack.c.l.b16 %v5146
    %v5507 = vunpack.c.h.b16 %v5146
    %v5508 = vunpack.c.l.b16 %v5147
    %v5509 = vunpack.c.h.b16 %v5147
    %v5510 = vunpack.c.l.b16 %v5148
    %v5511 = vunpack.c.h.b16 %v5148
    %v5512 = vunpack.c.l.b16 %v5149
    %v5513 = vunpack.c.h.b16 %v5149
    %v5514 = vunpack.c.l.b16 %v5150
    %v5515 = vunpack.c.h.b16 %v5150
    %v5516 = vunpack.c.l.b16 %v5151
    %v5517 = vunpack.c.h.b16 %v5151
    %v5518 = vunpack.c.l.b16 %v5152
    %v5519 = vunpack.c.h.b16 %v5152
    %v5520 = vunpack.c.l.b16 %v5153
    %v5521 = vunpack.c.h.b16 %v5153
    %v5522 = vunpack.c.l.b16 %v5154
    %v5523 = vunpack.c.h.b16 %v5154
    %v5524 = vunpack.c.l.b16 %v5155
    %v5525 = vunpack.c.h.b16 %v5155
    %v5526 = vunpack.c.l.b16 %v5156
    %v5527 = vunpack.c.h.b16 %v5156
    %v5528 = vunpack.c.l.b16 %v5157
    %v5529 = vunpack.c.h.b16 %v5157
    %v5530 = vunpack.c.l.b16 %v5158
    %v5531 = vunpack.c.h.b16 %v5158
    %v5532 = vunpack.c.l.b16 %v5159
    %v5533 = vunpack.c.h.b16 %v5159
    %v5534 = vunpack.c.l.b16 %v5160
    %v5535 = vunpack.c.h.b16 %v5160
    %v5536 = vunpack.c.l.b16 %v5161
    %v5537 = vunpack.c.h.b16 %v5161
    %v5538 = vunpack.c.l.b16 %v5162
    %v5539 = vunpack.c.h.b16 %v5162
    %v5540 = vunpack.c.l.b16 %v5163
    %v5541 = vunpack.c.h.b16 %v5163
    %v5542 = vunpack.c.l.b16 %v5164
    %v5543 = vunpack.c.h.b16 %v5164
    %v5544 = vunpack.c.l.b16 %v5165
    %v5545 = vunpack.c.h.b16 %v5165
    %v5546 = vunpack.c.l.b16 %v5166
    %v5547 = vunpack.c.h.b16 %v5166
    %v5548 = vunpack.c.l.b16 %v5167
    %v5549 = vunpack.c.h.b16 %v5167
    %v5550 = vunpack.c.l.b16 %v5168
    %v5551 = vunpack.c.h.b16 %v5168
    %v5552 = vunpack.c.l.b16 %v5169
    %v5553 = vunpack.c.h.b16 %v5169
    %v5554 = vunpack.c.l.b16 %v5170
    %v5555 = vunpack.c.h.b16 %v5170
    %v5556 = vunpack.c.l.b16 %v5171
    %v5557 = vunpack.c.h.b16 %v5171
    %v5558 = vunpack.c.l.b16 %v5172
    %v5559 = vunpack.c.h.b16 %v5172
    %v5560 = vunpack.c.l.b16 %v5173
    %v5561 = vunpack.c.h.b16 %v5173
    %v5562 = vunpack.c.l.b16 %v5174
    %v5563 = vunpack.c.h.b16 %v5174
    %v5564 = vunpack.c.l.b16 %v5175
    %v5565 = vunpack.c.h.b16 %v5175
    %v5566 = vunpack.c.l.b16 %v5176
    %v5567 = vunpack.c.h.b16 %v5176
    %v5568 = vunpack.c.l.b16 %v5177
    %v5569 = vunpack.c.h.b16 %v5177
    %v5570 = vunpack.c.l.b16 %v5178
    %v5571 = vunpack.c.h.b16 %v5178
    %v5572 = vunpack.c.l.b16 %v5179
    %v5573 = vunpack.c.h.b16 %v5179
    %v5574 = vunpack.c.l.b16 %v5180
    %v5575 = vunpack.c.h.b16 %v5180
    %v5576 = vunpack.c.l.b16 %v5181
    %v5577 = vunpack.c.h.b16 %v5181
    %v5578 = vpack.c.b16 %v5324, %v5322
    %v5579 = vpack.c.b16 %v5325, %v5323
    %v5580 = vpack.c.b16 %v5328, %v5326
    %v5581 = vpack.c.b16 %v5329, %v5327
    %v5582 = vpack.c.b16 %v5332, %v5330
    %v5583 = vpack.c.b16 %v5333, %v5331
    %v5584 = vpack.c.b16 %v5336, %v5334
    %v5585 = vpack.c.b16 %v5337, %v5335
    %v5586 = vpack.c.b16 %v5340, %v5338
    %v5587 = vpack.c.b16 %v5341, %v5339
    %v5588 = vpack.c.b16 %v5344, %v5342
    %v5589 = vpack.c.b16 %v5345, %v5343
    %v5590 = vpack.c.b16 %v5348, %v5346
    %v5591 = vpack.c.b16 %v5349, %v5347
    %v5592 = vpack.c.b16 %v5352, %v5350
    %v5593 = vpack.c.b16 %v5353, %v5351
    %v5594 = vpack.c.b16 %v5356, %v5354
    %v5595 = vpack.c.b16 %v5357, %v5355
    %v5596 = vpack.c.b16 %v5360, %v5358
    %v5597 = vpack.c.b16 %v5361, %v5359
    %v5598 = vpack.c.b16 %v5364, %v5362
    %v5599 = vpack.c.b16 %v5365, %v5363
    %v5600 = vpack.c.b16 %v5368, %v5366
    %v5601 = vpack.c.b16 %v5369, %v5367
    %v5602 = vpack.c.b16 %v5372, %v5370
    %v5603 = vpack.c.b16 %v5373, %v5371
    %v5604 = vpack.c.b16 %v5376, %v5374
    %v5605 = vpack.c.b16 %v5377, %v5375
    %v5606 = vpack.c.b16 %v5380, %v5378
    %v5607 = vpack.c.b16 %v5381, %v5379
    %v5608 = vpack.c.b16 %v5384, %v5382
    %v5609 = vpack.c.b16 %v5385, %v5383
    %v5610 = vpack.c.b16 %v5388, %v5386
    %v5611 = vpack.c.b16 %v5389, %v5387
    %v5612 = vpack.c.b16 %v5392, %v5390
    %v5613 = vpack.c.b16 %v5393, %v5391
    %v5614 = vpack.c.b16 %v5396, %v5394
    %v5615 = vpack.c.b16 %v5397, %v5395
    %v5616 = vpack.c.b16 %v5400, %v5398
    %v5617 = vpack.c.b16 %v5401, %v5399
    %v5618 = vpack.c.b16 %v5404, %v5402
    %v5619 = vpack.c.b16 %v5405, %v5403
    %v5620 = vpack.c.b16 %v5408, %v5406
    %v5621 = vpack.c.b16 %v5409, %v5407
    %v5622 = vpack.c.b16 %v5412, %v5410
    %v5623 = vpack.c.b16 %v5413, %v5411
    %v5624 = vpack.c.b16 %v5416, %v5414
    %v5625 = vpack.c.b16 %v5417, %v5415
    %v5626 = vpack.c.b16 %v5420, %v5418
    %v5627 = vpack.c.b16 %v5421, %v5419
    %v5628 = vpack.c.b16 %v5424, %v5422
    %v5629 = vpack.c.b16 %v5425, %v5423
    %v5630 = vpack.c.b16 %v5428, %v5426
    %v5631 = vpack.c.b16 %v5429, %v5427
    %v5632 = vpack.c.b16 %v5432, %v5430
    %v5633 = vpack.c.b16 %v5433, %v5431
    %v5634 = vpack.c.b16 %v5436, %v5434
    %v5635 = vpack.c.b16 %v5437, %v5435
    %v5636 = vpack.c.b16 %v5440, %v5438
    %v5637 = vpack.c.b16 %v5441, %v5439
    %v5638 = vpack.c.b16 %v5444, %v5442
    %v5639 = vpack.c.b16 %v5445, %v5443
    %v5640 = vpack.c.b16 %v5448, %v5446
    %v5641 = vpack.c.b16 %v5449, %v5447
    %v5642 = vpack.c.b16 %v5452, %v5450
    %v5643 = vpack.c.b16 %v5453, %v5451
    %v5644 = vpack.c.b16 %v5456, %v5454
    %v5645 = vpack.c.b16 %v5457, %v5455
    %v5646 = vpack.c.b16 %v5460, %v5458
    %v5647 = vpack.c.b16 %v5461, %v5459
    %v5648 = vpack.c.b16 %v5464, %v5462
    %v5649 = vpack.c.b16 %v5465, %v5463
    %v5650 = vpack.c.b16 %v5468, %v5466
    %v5651 = vpack.c.b16 %v5469, %v5467
    %v5652 = vpack.c.b16 %v5472, %v5470
    %v5653 = vpack.c.b16 %v5473, %v5471
    %v5654 = vpack.c.b16 %v5476, %v5474
    %v5655 = vpack.c.b16 %v5477, %v5475
    %v5656 = vpack.c.b16 %v5480, %v5478
    %v5657 = vpack.c.b16 %v5481, %v5479
    %v5658 = vpack.c.b16 %v5484, %v5482
    %v5659 = vpack.c.b16 %v5485, %v5483
    %v5660 = vpack.c.b16 %v5488, %v5486
    %v5661 = vpack.c.b16 %v5489, %v5487
    %v5662 = vpack.c.b16 %v5492, %v5490
    %v5663 = vpack.c.b16 %v5493, %v5491
    %v5664 = vpack.c.b16 %v5496, %v5494
    %v5665 = vpack.c.b16 %v5497, %v5495
    %v5666 = vpack.c.b16 %v5500, %v5498
    %v5667 = vpack.c.b16 %v5501, %v5499
    %v5668 = vpack.c.b16 %v5504, %v5502
    %v5669 = vpack.c.b16 %v5505, %v5503
    %v5670 = vpack.c.b16 %v5508, %v5506
    %v5671 = vpack.c.b16 %v5509, %v5507
    %v5672 = vpack.c.b16 %v5512, %v5510
    %v5673 = vpack.c.b16 %v5513, %v5511
    %v5674 = vpack.c.b16 %v5516, %v5514
    %v5675 = vpack.c.b16 %v5517, %v5515
    %v5676 = vpack.c.b16 %v5520, %v5518
    %v5677 = vpack.c.b16 %v5521, %v5519
    %v5678 = vpack.c.b16 %v5524, %v5522
    %v5679 = vpack.c.b16 %v5525, %v5523
    %v5680 = vpack.c.b16 %v5528, %v5526
    %v5681 = vpack.c.b16 %v5529, %v5527
    %v5682 = vpack.c.b16 %v5532, %v5530
    %v5683 = vpack.c.b16 %v5533, %v5531
    %v5684 = vpack.c.b16 %v5536, %v5534
    %v5685 = vpack.c.b16 %v5537, %v5535
    %v5686 = vpack.c.b16 %v5540, %v5538
    %v5687 = vpack.c.b16 %v5541, %v5539
    %v5688 = vpack.c.b16 %v5544, %v5542
    %v5689 = vpack.c.b16 %v5545, %v5543
    %v5690 = vpack.c.b16 %v5548, %v5546
    %v5691 = vpack.c.b16 %v5549, %v5547
    %v5692 = vpack.c.b16 %v5552, %v5550
    %v5693 = vpack.c.b16 %v5553, %v5551
    %v5694 = vpack.c.b16 %v5556, %v5554
    %v5695 = vpack.c.b16 %v5557, %v5555
    %v5696 = vpack.c.b16 %v5560, %v5558
    %v5697 = vpack.c.b16 %v5561, %v5559
    %v5698 = vpack.c.b16 %v5564, %v5562
    %v5699 = vpack.c.b16 %v5565, %v5563
    %v5700 = vpack.c.b16 %v5568, %v5566
    %v5701 = vpack.c.b16 %v5569, %v5567
    %v5702 = vpack.c.b16 %v5572, %v5570
    %v5703 = vpack.c.b16 %v5573, %v5571
    %v5704 = vpack.c.b16 %v5576, %v5574
    %v5705 = vpack.c.b16 %v5577, %v5575
    %5834 = vmatprep.subr.bf16.mxu0 %v5593
    %5835 = vmatpush1.bf16.msra.mxu0 %v5592
    %5836 = vmatprep.subr.bf16.mxu0 %v5591
    %5837 = vmatpush1.bf16.msra.mxu0 %v5590
    %5838 = vmatprep.subr.bf16.mxu0 %v5589
    %5839 = vmatpush1.bf16.msra.mxu0 %v5588
    %5840 = vmatprep.subr.bf16.mxu0 %v5587
    %5841 = vmatpush1.bf16.msra.mxu0 %v5586
    %5842 = vmatprep.subr.bf16.mxu0 %v5585
    %5843 = vmatpush1.bf16.msra.mxu0 %v5584
    %5844 = vmatprep.subr.bf16.mxu0 %v5583
    %5845 = vmatpush1.bf16.msra.mxu0 %v5582
    %5846 = vmatprep.subr.bf16.mxu0 %v5581
    %5847 = vmatpush1.bf16.msra.mxu0 %v5580
    %5848 = vmatprep.subr.bf16.mxu0 %v5579
    %5849 = vmatpush1.bf16.msra.mxu0 %v5578
    %5850 = vmatprep.subr.bf16.mxu0 %v5609
    %5851 = vmatpush2.bf16.msra.mxu0 %v5608
    %5852 = vmatprep.subr.bf16.mxu0 %v5607
    %5853 = vmatpush2.bf16.msra.mxu0 %v5606
    %5854 = vmatprep.subr.bf16.mxu0 %v5605
    %5855 = vmatpush2.bf16.msra.mxu0 %v5604
    %5856 = vmatprep.subr.bf16.mxu0 %v5603
    %5857 = vmatpush2.bf16.msra.mxu0 %v5602
    %5858 = vmatprep.subr.bf16.mxu0 %v5601
    %5859 = vmatpush2.bf16.msra.mxu0 %v5600
    %5860 = vmatprep.subr.bf16.mxu0 %v5599
    %5861 = vmatpush2.bf16.msra.mxu0 %v5598
    %5862 = vmatprep.subr.bf16.mxu0 %v5597
    %5863 = vmatpush2.bf16.msra.mxu0 %v5596
    %5864 = vmatprep.subr.bf16.mxu0 %v5595
    %5865 = vmatpush2.bf16.msra.mxu0 %v5594
    %5866 = vmatprep.mubr.bf16.mxu0 %v5047
    %5867 = vmatmul.mubr.bf16.gmra.mxu0 %v5046
    %v5868 = vpop.f32.mrf.mxu0
    %v5869 = vadd.f32 %v5187, %v5868
    %v5870 = vpop.f32.mrf.mxu0
    %v5871 = vadd.f32 %v5191, %v5870
    %v5872 = vpop.f32.mrf.mxu0
    %v5873 = vpop.f32.mrf.mxu0
    %5874 = vdwg.mxu0
    %5875 = vmatprep.subr.bf16.mxu0 %v5625
    %5876 = vmatpush1.bf16.msra.mxu0 %v5624
    %5877 = vmatprep.subr.bf16.mxu0 %v5623
    %5878 = vmatpush1.bf16.msra.mxu0 %v5622
    %5879 = vmatprep.subr.bf16.mxu0 %v5621
    %5880 = vmatpush1.bf16.msra.mxu0 %v5620
    %5881 = vmatprep.subr.bf16.mxu0 %v5619
    %5882 = vmatpush1.bf16.msra.mxu0 %v5618
    %5883 = vmatprep.subr.bf16.mxu0 %v5617
    %5884 = vmatpush1.bf16.msra.mxu0 %v5616
    %5885 = vmatprep.subr.bf16.mxu0 %v5615
    %5886 = vmatpush1.bf16.msra.mxu0 %v5614
    %5887 = vmatprep.subr.bf16.mxu0 %v5613
    %5888 = vmatpush1.bf16.msra.mxu0 %v5612
    %5889 = vmatprep.subr.bf16.mxu0 %v5611
    %5890 = vmatpush1.bf16.msra.mxu0 %v5610
    %5891 = vmatprep.subr.bf16.mxu0 %v5641
    %5892 = vmatpush2.bf16.msra.mxu0 %v5640
    %5893 = vmatprep.subr.bf16.mxu0 %v5639
    %5894 = vmatpush2.bf16.msra.mxu0 %v5638
    %5895 = vmatprep.subr.bf16.mxu0 %v5637
    %5896 = vmatpush2.bf16.msra.mxu0 %v5636
    %5897 = vmatprep.subr.bf16.mxu0 %v5635
    %5898 = vmatpush2.bf16.msra.mxu0 %v5634
    %5899 = vmatprep.subr.bf16.mxu0 %v5633
    %5900 = vmatpush2.bf16.msra.mxu0 %v5632
    %5901 = vmatprep.subr.bf16.mxu0 %v5631
    %5902 = vmatpush2.bf16.msra.mxu0 %v5630
    %5903 = vmatprep.subr.bf16.mxu0 %v5629
    %5904 = vmatpush2.bf16.msra.mxu0 %v5628
    %5905 = vmatprep.subr.bf16.mxu0 %v5627
    %5906 = vmatpush2.bf16.msra.mxu0 %v5626
    %5907 = vmatprep.mubr.bf16.mxu0 %v5049
    %5908 = vmatmul.mubr.bf16.gmra.mxu0 %v5048
    %v5909 = vpop.f32.mrf.mxu0
    %v5910 = vadd.f32 %v5869, %v5909
    %v5911 = vpop.f32.mrf.mxu0
    %v5912 = vadd.f32 %v5871, %v5911
    %v5913 = vpop.f32.mrf.mxu0
    %v5914 = vpop.f32.mrf.mxu0
    %5915 = vdwg.mxu0
    %5916 = vmatprep.subr.bf16.mxu0 %v5657
    %5917 = vmatpush1.bf16.msra.mxu0 %v5656
    %5918 = vmatprep.subr.bf16.mxu0 %v5655
    %5919 = vmatpush1.bf16.msra.mxu0 %v5654
    %5920 = vmatprep.subr.bf16.mxu0 %v5653
    %5921 = vmatpush1.bf16.msra.mxu0 %v5652
    %5922 = vmatprep.subr.bf16.mxu0 %v5651
    %5923 = vmatpush1.bf16.msra.mxu0 %v5650
    %5924 = vmatprep.subr.bf16.mxu0 %v5649
    %5925 = vmatpush1.bf16.msra.mxu0 %v5648
    %5926 = vmatprep.subr.bf16.mxu0 %v5647
    %5927 = vmatpush1.bf16.msra.mxu0 %v5646
    %5928 = vmatprep.subr.bf16.mxu0 %v5645
    %5929 = vmatpush1.bf16.msra.mxu0 %v5644
    %5930 = vmatprep.subr.bf16.mxu0 %v5643
    %5931 = vmatpush1.bf16.msra.mxu0 %v5642
    %5932 = vmatprep.subr.bf16.mxu0 %v5673
    %5933 = vmatpush2.bf16.msra.mxu0 %v5672
    %5934 = vmatprep.subr.bf16.mxu0 %v5671
    %5935 = vmatpush2.bf16.msra.mxu0 %v5670
    %5936 = vmatprep.subr.bf16.mxu0 %v5669
    %5937 = vmatpush2.bf16.msra.mxu0 %v5668
    %5938 = vmatprep.subr.bf16.mxu0 %v5667
    %5939 = vmatpush2.bf16.msra.mxu0 %v5666
    %5940 = vmatprep.subr.bf16.mxu0 %v5665
    %5941 = vmatpush2.bf16.msra.mxu0 %v5664
    %5942 = vmatprep.subr.bf16.mxu0 %v5663
    %5943 = vmatpush2.bf16.msra.mxu0 %v5662
    %5944 = vmatprep.subr.bf16.mxu0 %v5661
    %5945 = vmatpush2.bf16.msra.mxu0 %v5660
    %5946 = vmatprep.subr.bf16.mxu0 %v5659
    %5947 = vmatpush2.bf16.msra.mxu0 %v5658
    %5948 = vmatprep.mubr.bf16.mxu0 %v5051
    %5949 = vmatmul.mubr.bf16.gmra.mxu0 %v5050
    %v5950 = vpop.f32.mrf.mxu0
    %v5951 = vadd.f32 %v5910, %v5950
    %v5952 = vpop.f32.mrf.mxu0
    %v5953 = vadd.f32 %v5912, %v5952
    %v5954 = vpop.f32.mrf.mxu0
    %v5955 = vpop.f32.mrf.mxu0
    %5956 = vdwg.mxu0
    %5957 = vmatprep.subr.bf16.mxu0 %v5689
    %5958 = vmatpush1.bf16.msra.mxu0 %v5688
    %5959 = vmatprep.subr.bf16.mxu0 %v5687
    %5960 = vmatpush1.bf16.msra.mxu0 %v5686
    %5961 = vmatprep.subr.bf16.mxu0 %v5685
    %5962 = vmatpush1.bf16.msra.mxu0 %v5684
    %5963 = vmatprep.subr.bf16.mxu0 %v5683
    %5964 = vmatpush1.bf16.msra.mxu0 %v5682
    %5965 = vmatprep.subr.bf16.mxu0 %v5681
    %5966 = vmatpush1.bf16.msra.mxu0 %v5680
    %5967 = vmatprep.subr.bf16.mxu0 %v5679
    %5968 = vmatpush1.bf16.msra.mxu0 %v5678
    %5969 = vmatprep.subr.bf16.mxu0 %v5677
    %5970 = vmatpush1.bf16.msra.mxu0 %v5676
    %5971 = vmatprep.subr.bf16.mxu0 %v5675
    %5972 = vmatpush1.bf16.msra.mxu0 %v5674
    %5973 = vmatprep.subr.bf16.mxu0 %v5705
    %5974 = vmatpush2.bf16.msra.mxu0 %v5704
    %5975 = vmatprep.subr.bf16.mxu0 %v5703
    %5976 = vmatpush2.bf16.msra.mxu0 %v5702
    %5977 = vmatprep.subr.bf16.mxu0 %v5701
    %5978 = vmatpush2.bf16.msra.mxu0 %v5700
    %5979 = vmatprep.subr.bf16.mxu0 %v5699
    %5980 = vmatpush2.bf16.msra.mxu0 %v5698
    %5981 = vmatprep.subr.bf16.mxu0 %v5697
    %5982 = vmatpush2.bf16.msra.mxu0 %v5696
    %5983 = vmatprep.subr.bf16.mxu0 %v5695
    %5984 = vmatpush2.bf16.msra.mxu0 %v5694
    %5985 = vmatprep.subr.bf16.mxu0 %v5693
    %5986 = vmatpush2.bf16.msra.mxu0 %v5692
    %5987 = vmatprep.subr.bf16.mxu0 %v5691
    %5988 = vmatpush2.bf16.msra.mxu0 %v5690
    %5989 = vmatprep.mubr.bf16.mxu0 %v5053
    %5990 = vmatmul.mubr.bf16.gmra.mxu0 %v5052
    %v5991 = vpop.f32.mrf.mxu0
    %v5992 = vadd.f32 %v5951, %v5991
    %v5993 = vpop.f32.mrf.mxu0
    %v5994 = vadd.f32 %v5953, %v5993
    %v5995 = vpop.f32.mrf.mxu0
    %v5996 = vpop.f32.mrf.mxu0
    %5997 = vdwg.mxu0
    %v5998 = vmax.f32 %v5992, 0.0
    %v5999 = vmax.f32 %v5994, 0.0
    %v6000 = vpack.c.bf16 %v5998, %v5998
    %v6001 = vpack.c.bf16 %v5999, %v5999
    %v6002 = vld [vmem:[%s10] sm:$0xf]
    %v6003 = vld [vmem:[%s10 + $0x4] sm:$0xf]
    %v6004 = vld [vmem:[%s10 + $0x8] sm:$0xf]
    %v6005 = vld [vmem:[%s10 + $0xc] sm:$0xf]
    %v6006 = vld [vmem:[%s10 + $0x10] sm:$0xf]
    %v6007 = vld [vmem:[%s10 + $0x14] sm:$0xf]
    %v6008 = vld [vmem:[%s10 + $0x18] sm:$0xf]
    %v6009 = vld [vmem:[%s10 + $0x1c] sm:$0xf]
    %v6010 = vld [vmem:[%s10 + $0x20] sm:$0xf]
    %v6011 = vld [vmem:[%s10 + $0x24] sm:$0xf]
    %v6012 = vld [vmem:[%s10 + $0x28] sm:$0xf]
    %v6013 = vld [vmem:[%s10 + $0x2c] sm:$0xf]
    %v6014 = vld [vmem:[%s10 + $0x30] sm:$0xf]
    %v6015 = vld [vmem:[%s10 + $0x34] sm:$0xf]
    %v6016 = vld [vmem:[%s10 + $0x38] sm:$0xf]
    %v6017 = vld [vmem:[%s10 + $0x3c] sm:$0xf]
    %v6018 = vld [vmem:[%s10 + $0x40] sm:$0xf]
    %v6019 = vld [vmem:[%s10 + $0x44] sm:$0xf]
    %v6020 = vld [vmem:[%s10 + $0x48] sm:$0xf]
    %v6021 = vld [vmem:[%s10 + $0x4c] sm:$0xf]
    %v6022 = vld [vmem:[%s10 + $0x50] sm:$0xf]
    %v6023 = vld [vmem:[%s10 + $0x54] sm:$0xf]
    %v6024 = vld [vmem:[%s10 + $0x58] sm:$0xf]
    %v6025 = vld [vmem:[%s10 + $0x5c] sm:$0xf]
    %v6026 = vld [vmem:[%s10 + $0x60] sm:$0xf]
    %v6027 = vld [vmem:[%s10 + $0x64] sm:$0xf]
    %v6028 = vld [vmem:[%s10 + $0x68] sm:$0xf]
    %v6029 = vld [vmem:[%s10 + $0x6c] sm:$0xf]
    %v6030 = vld [vmem:[%s10 + $0x70] sm:$0xf]
    %v6031 = vld [vmem:[%s10 + $0x74] sm:$0xf]
    %v6032 = vld [vmem:[%s10 + $0x78] sm:$0xf]
    %v6033 = vld [vmem:[%s10 + $0x7c] sm:$0xf]
    %v6034 = vld [vmem:[%s11] sm:$0x1]
    %v6036 = vlaneseq
    %v6037 = vshrl.u32 %v6036, 7
    %v6038 = vsub.s32 0, %v6037
    %v6039 = vrot.slane %v6034, %v6038
    %v6073 = vunpack.c.l.b16 %v6002
    %v6074 = vunpack.c.l.b16 %v6003
    %v6075 = vunpack.c.l.b16 %v6004
    %v6076 = vunpack.c.l.b16 %v6005
    %v6077 = vunpack.c.l.b16 %v6006
    %v6078 = vunpack.c.l.b16 %v6007
    %v6079 = vunpack.c.l.b16 %v6008
    %v6080 = vunpack.c.l.b16 %v6009
    %v6081 = vunpack.c.l.b16 %v6010
    %v6082 = vunpack.c.l.b16 %v6011
    %v6083 = vunpack.c.l.b16 %v6012
    %v6084 = vunpack.c.l.b16 %v6013
    %v6085 = vunpack.c.l.b16 %v6014
    %v6086 = vunpack.c.l.b16 %v6015
    %v6087 = vunpack.c.l.b16 %v6016
    %v6088 = vunpack.c.l.b16 %v6017
    %v6089 = vunpack.c.l.b16 %v6018
    %v6090 = vunpack.c.l.b16 %v6019
    %v6091 = vunpack.c.l.b16 %v6020
    %v6092 = vunpack.c.l.b16 %v6021
    %v6093 = vunpack.c.l.b16 %v6022
    %v6094 = vunpack.c.l.b16 %v6023
    %v6095 = vunpack.c.l.b16 %v6024
    %v6096 = vunpack.c.l.b16 %v6025
    %v6097 = vunpack.c.l.b16 %v6026
    %v6098 = vunpack.c.l.b16 %v6027
    %v6099 = vunpack.c.l.b16 %v6028
    %v6100 = vunpack.c.l.b16 %v6029
    %v6101 = vunpack.c.l.b16 %v6030
    %v6102 = vunpack.c.l.b16 %v6031
    %v6103 = vunpack.c.l.b16 %v6032
    %v6104 = vunpack.c.l.b16 %v6033
    %v6105 = vpack.c.b16 %v6074, %v6073
    %v6106 = vpack.c.b16 %v6076, %v6075
    %v6107 = vpack.c.b16 %v6078, %v6077
    %v6108 = vpack.c.b16 %v6080, %v6079
    %v6109 = vpack.c.b16 %v6082, %v6081
    %v6110 = vpack.c.b16 %v6084, %v6083
    %v6111 = vpack.c.b16 %v6086, %v6085
    %v6112 = vpack.c.b16 %v6088, %v6087
    %v6113 = vpack.c.b16 %v6090, %v6089
    %v6114 = vpack.c.b16 %v6092, %v6091
    %v6115 = vpack.c.b16 %v6094, %v6093
    %v6116 = vpack.c.b16 %v6096, %v6095
    %v6117 = vpack.c.b16 %v6098, %v6097
    %v6118 = vpack.c.b16 %v6100, %v6099
    %v6119 = vpack.c.b16 %v6102, %v6101
    %v6120 = vpack.c.b16 %v6104, %v6103
    %6137 = vmatprep.subr.bf16.mxu0 0
    %6138 = vmatpush1.bf16.msra.mxu0 %v6112
    %6139 = vmatprep.subr.bf16.mxu0 0
    %6140 = vmatpush1.bf16.msra.mxu0 %v6111
    %6141 = vmatprep.subr.bf16.mxu0 0
    %6142 = vmatpush1.bf16.msra.mxu0 %v6110
    %6143 = vmatprep.subr.bf16.mxu0 0
    %6144 = vmatpush1.bf16.msra.mxu0 %v6109
    %6145 = vmatprep.subr.bf16.mxu0 0
    %6146 = vmatpush1.bf16.msra.mxu0 %v6108
    %6147 = vmatprep.subr.bf16.mxu0 0
    %6148 = vmatpush1.bf16.msra.mxu0 %v6107
    %6149 = vmatprep.subr.bf16.mxu0 0
    %6150 = vmatpush1.bf16.msra.mxu0 %v6106
    %6151 = vmatprep.subr.bf16.mxu0 0
    %6152 = vmatpush1.bf16.msra.mxu0 %v6105
    %6153 = vmatprep.subr.bf16.mxu0 0
    %6154 = vmatpush2.bf16.msra.mxu0 %v6120
    %6155 = vmatprep.subr.bf16.mxu0 0
    %6156 = vmatpush2.bf16.msra.mxu0 %v6119
    %6157 = vmatprep.subr.bf16.mxu0 0
    %6158 = vmatpush2.bf16.msra.mxu0 %v6118
    %6159 = vmatprep.subr.bf16.mxu0 0
    %6160 = vmatpush2.bf16.msra.mxu0 %v6117
    %6161 = vmatprep.subr.bf16.mxu0 0
    %6162 = vmatpush2.bf16.msra.mxu0 %v6116
    %6163 = vmatprep.subr.bf16.mxu0 0
    %6164 = vmatpush2.bf16.msra.mxu0 %v6115
    %6165 = vmatprep.subr.bf16.mxu0 0
    %6166 = vmatpush2.bf16.msra.mxu0 %v6114
    %6167 = vmatprep.subr.bf16.mxu0 0
    %6168 = vmatpush2.bf16.msra.mxu0 %v6113
    %6169 = vmatprep.mubr.bf16.mxu0 %v6001
    %6170 = vmatmul.mubr.bf16.gmra.mxu0 %v6000
    %v6171 = vpop.f32.mrf.mxu0
    %v6172 = vadd.f32 %v6039, %v6171
    %v6173 = vpop.f32.mrf.mxu0
    %v6174 = vpop.f32.mrf.mxu0
    %v6175 = vpop.f32.mrf.mxu0
    %6176 = vdwg.mxu0
    %v6177 = vmax.f32 %v6172, 0.0
    %v6178 = vld [vmem:[%s12] sm:$0xff]
    %v6179 = vld [vmem:[%s12 + $0x8] sm:$0xff]
    %v6180 = vld [vmem:[%s12 + $0x10] sm:$0xff]
    %v6181 = vld [vmem:[%s12 + $0x18] sm:$0xff]
    %v6182 = vld [vmem:[%s12 + $0x20] sm:$0xff]
    %v6183 = vld [vmem:[%s12 + $0x28] sm:$0xff]
    %v6184 = vld [vmem:[%s12 + $0x30] sm:$0xff]
    %v6185 = vld [vmem:[%s12 + $0x38] sm:$0xff]
    %v6186 = vld [vmem:[%s13] sm:$0x1]
    %v6188 = vlaneseq
    %v6189 = vshrl.u32 %v6188, 7
    %v6190 = vsub.s32 0, %v6189
    %v6191 = vrot.slane %v6186, %v6190
    %vm6193 = vcmask 523264
    %v6195 = vsel %vm6193, %v6177, 0
    %6197 = vmatprep.subr.mxu0 0.0
    %6198 = vmatpush1.msra.mxu0 0.0
    %6199 = vmatprep.subr.mxu0 0.0
    %6200 = vmatpush1.msra.mxu0 0.0
    %6201 = vmatprep.subr.mxu0 0.0
    %6202 = vmatpush1.msra.mxu0 0.0
    %6203 = vmatprep.subr.mxu0 0.0
    %6204 = vmatpush1.msra.mxu0 0.0
    %6205 = vmatprep.subr.mxu0 0.0
    %6206 = vmatpush1.msra.mxu0 0.0
    %6207 = vmatprep.subr.mxu0 0.0
    %6208 = vmatpush1.msra.mxu0 0.0
    %6209 = vmatprep.subr.mxu0 0.0
    %6210 = vmatpush1.msra.mxu0 0.0
    %6211 = vmatprep.subr.mxu0 0.0
    %6212 = vmatpush1.msra.mxu0 0.0
    %6213 = vmatprep.subr.mxu0 0.0
    %6214 = vmatpush1.msra.mxu0 %v6185
    %6215 = vmatprep.subr.mxu0 0.0
    %6216 = vmatpush1.msra.mxu0 %v6184
    %6217 = vmatprep.subr.mxu0 0.0
    %6218 = vmatpush1.msra.mxu0 %v6183
    %6219 = vmatprep.subr.mxu0 0.0
    %6220 = vmatpush1.msra.mxu0 %v6182
    %6221 = vmatprep.subr.mxu0 0.0
    %6222 = vmatpush1.msra.mxu0 %v6181
    %6223 = vmatprep.subr.mxu0 0.0
    %6224 = vmatpush1.msra.mxu0 %v6180
    %6225 = vmatprep.subr.mxu0 0.0
    %6226 = vmatpush1.msra.mxu0 %v6179
    %6227 = vmatprep.subr.mxu0 0.0
    %6228 = vmatpush1.msra.mxu0 %v6178
    %6229 = vmatprep.subr.mxu0 0.0
    %6230 = vmatpush2.msra.mxu0 0.0
    %6231 = vmatprep.subr.mxu0 0.0
    %6232 = vmatpush2.msra.mxu0 0.0
    %6233 = vmatprep.subr.mxu0 0.0
    %6234 = vmatpush2.msra.mxu0 0.0
    %6235 = vmatprep.subr.mxu0 0.0
    %6236 = vmatpush2.msra.mxu0 0.0
    %6237 = vmatprep.subr.mxu0 0.0
    %6238 = vmatpush2.msra.mxu0 0.0
    %6239 = vmatprep.subr.mxu0 0.0
    %6240 = vmatpush2.msra.mxu0 0.0
    %6241 = vmatprep.subr.mxu0 0.0
    %6242 = vmatpush2.msra.mxu0 0.0
    %6243 = vmatprep.subr.mxu0 0.0
    %6244 = vmatpush2.msra.mxu0 0.0
    %6245 = vmatprep.subr.mxu0 0.0
    %6246 = vmatpush2.msra.mxu0 0.0
    %6247 = vmatprep.subr.mxu0 0.0
    %6248 = vmatpush2.msra.mxu0 0.0
    %6249 = vmatprep.subr.mxu0 0.0
    %6250 = vmatpush2.msra.mxu0 0.0
    %6251 = vmatprep.subr.mxu0 0.0
    %6252 = vmatpush2.msra.mxu0 0.0
    %6253 = vmatprep.subr.mxu0 0.0
    %6254 = vmatpush2.msra.mxu0 0.0
    %6255 = vmatprep.subr.mxu0 0.0
    %6256 = vmatpush2.msra.mxu0 0.0
    %6257 = vmatprep.subr.mxu0 0.0
    %6258 = vmatpush2.msra.mxu0 0.0
    %6259 = vmatprep.subr.mxu0 0.0
    %6260 = vmatpush2.msra.mxu0 0.0
    %6261 = vmatprep.mubr.f32.mxu0 0.0
    %6262 = vmatmul.mubr.f32.gmra.mxu0 %v6195
    %v6263 = vpop.f32.mrf.mxu0
    %v6264 = vadd.f32 %v6191, %v6263
    %v6265 = vpop.f32.mrf.mxu0
    %6266 = vdwg.mxu0
    %v6267 = vmul.f32 %v6264, 0.5
    %v6268 = vand.u32 2147483647, %v6267
    %vm6269 = vcmp.le.f32.partialorder %v6268, 0.7853982
    %vm6270 = vcmp.lt.s32.totalorder %v6267, 0
    %v6271 = vand.u32 %v6267, 2139095040
    %v6272 = vshrl.u32 %v6271, 23
    %v6273 = vsub.s32 %v6272, 127
    %v6274 = vand.u32 2147483647, %v6267
    %v6275 = vand.u32 %v6274, 8388607
    %v6276 = vor.u32 %v6275, 8388608
    %v6277 = vsub.s32 0, %v6276
    %v6278 = vadd.s32 %v6273, 1
    %vm6279 = vcmp.gt.s32.totalorder %v6278, 0
    %v6280 = vsel %vm6279, %v6278, 0
    %v6281 = vshrl.u32 %v6280, 5
    %v6282 = vand.u32 %v6280, 31
    %v6283 = vsub.s32 32, %v6282
    %v6284 = vshrl.u32 683565275, %v6283
    %v6285 = vshll.u32 683565275, %v6282
    %v6286 = vshrl.u32 2475754826, %v6283
    %v6287 = vor.u32 %v6285, %v6286
    %v6288 = vshll.u32 2475754826, %v6282
    %v6289 = vshrl.u32 2131351028, %v6283
    %v6290 = vor.u32 %v6288, %v6289
    %v6291 = vshll.u32 2131351028, %v6282
    %v6292 = vshrl.u32 2102212464, %v6283
    %v6293 = vor.u32 %v6291, %v6292
    %v6294 = vshll.u32 2102212464, %v6282
    %v6295 = vshrl.u32 920167782, %v6283
    %v6296 = vor.u32 %v6294, %v6295
    %v6297 = vshll.u32 920167782, %v6282
    %v6298 = vshrl.u32 1326507024, %v6283
    %v6299 = vor.u32 %v6297, %v6298
    %vm6300 = vcmp.lt.s32.totalorder %v6281, 1
    %vm6301 = vcmp.lt.s32.totalorder %v6281, 2
    %vm6302 = vcmp.lt.s32.totalorder %v6281, 3
    %vm6303 = vcmp.lt.s32.totalorder %v6281, 4
    %v6304 = vsel %vm6300, %v6284, %v6287
    %v6305 = vsel %vm6303, %v6293, 2102212464
    %v6306 = vsel %vm6302, %v6290, %v6305
    %v6307 = vsel %vm6301, %v6304, %v6306
    %v6308 = vsel %vm6300, %v6287, %v6290
    %v6309 = vsel %vm6303, %v6296, 920167782
    %v6310 = vsel %vm6302, %v6293, %v6309
    %v6311 = vsel %vm6301, %v6308, %v6310
    %v6312 = vsel %vm6300, %v6290, %v6293
    %v6313 = vsel %vm6303, %v6299, 1326507024
    %v6314 = vsel %vm6302, %v6296, %v6313
    %v6315 = vsel %vm6301, %v6312, %v6314
    %v6316 = vshll.u32 %v6276, 8
    %v6317 = vmul.u32.u64.compose %v6316, %v6315
    %v6318 = vextract.low.u32 %v6317
    %v6319 = vextract.high.u32 %v6317
    %v6320 = vmul.u32.u64.compose %v6316, %v6311
    %v6321 = vextract.low.u32 %v6320
    %v6322 = vextract.high.u32 %v6320
    %v6323 = vmul.u32 %v6316, %v6307
    %v6324 = vadd.s32 %v6319, %v6321
    %vm6325 = vc.u32 %v6319, %v6321
    %v6326 = vadd.s32 %v6322, 1
    %v6327 = vsel %vm6325, %v6326, %v6322
    %v6328 = vadd.s32 %v6323, %v6327
    %v6329 = vadd.s32 %v6328, 536870912
    %v6330 = vshrl.u32 %v6329, 30
    %v6331 = vshll.u32 %v6330, 30
    %v6332 = vsub.s32 %v6328, %v6331
    %vm6333 = vcmp.lt.s32.totalorder %v6332, 0
    %v6334 = vsub.s32 0, %v6332
    %v6335 = vsel %vm6333, %v6334, %v6332
    %v6336 = vclz %v6335
    %v6337 = vsub.s32 %v6336, 2
    %vm6338 = vcmp.gt.s32.totalorder 0, %v6337
    %v6339 = vsel %vm6338, 0, %v6337
    %v6340 = vsub.s32 32, %v6339
    %v6341 = vshll.u32 %v6332, %v6339
    %v6342 = vshrl.u32 %v6324, %v6340
    %v6343 = vor.u32 %v6341, %v6342
    %v6344 = vsub.s32 4294967266, %v6339
    %v6345 = vadd.s32 %v6344, 127
    %v6346 = vshll.u32 %v6345, 23
    %v6347 = vor.u32 4788187, %v6346
    %v6348 = vand.u32 2147483647, %v6347
    %v6350 = vcvt.s32.f32 %v6343
    %v6351 = vmul.f32 %v6350, %v6348
    %v6352 = vxor.u32 %v6351, 2147483648
    %v6353 = vsel %vm6270, %v6352, %v6351
    %v6354 = vsub.s32 4, %v6330
    %v6355 = vsel %vm6270, %v6354, %v6330
    %v6356 = vsel %vm6269, %v6267, %v6353
    %v6357 = vsel %vm6269, 0, %v6355
    %v6358 = vcosq.f32.pop %v6356
    %v6359 = vsinq.f32.pop %v6356
    %vm6360 = vweird.f32 %v6267
    %v6361 = vand.u32 %v6357, 3
    %vm6362 = vcmp.lt.s32.totalorder %v6361, 2
    %vm6363 = vcmp.eq.s32.totalorder %v6361, 0
    %v6364 = vxor.u32 %v6359, 2147483648
    %v6365 = vsel %vm6363, %v6358, %v6364
    %vm6366 = vcmp.eq.s32.totalorder %v6361, 2
    %v6367 = vxor.u32 %v6358, 2147483648
    %v6368 = vsel %vm6366, %v6367, %v6359
    %v6369 = vsel %vm6362, %v6365, %v6368
    %v6370 = vsel %vm6360, nan, %v6369
    %v6371 = vand.u32 2147483647, %v6267
    %vm6372 = vcmp.le.f32.partialorder %v6371, 0.7853982
    %vm6373 = vcmp.lt.s32.totalorder %v6267, 0
    %v6374 = vand.u32 %v6267, 2139095040
    %v6375 = vshrl.u32 %v6374, 23
    %v6376 = vsub.s32 %v6375, 127
    %v6377 = vand.u32 2147483647, %v6267
    %v6378 = vand.u32 %v6377, 8388607
    %v6379 = vor.u32 %v6378, 8388608
    %v6380 = vsub.s32 0, %v6379
    %v6381 = vadd.s32 %v6376, 1
    %vm6382 = vcmp.gt.s32.totalorder %v6381, 0
    %v6383 = vsel %vm6382, %v6381, 0
    %v6384 = vshrl.u32 %v6383, 5
    %v6385 = vand.u32 %v6383, 31
    %v6386 = vsub.s32 32, %v6385
    %v6387 = vshrl.u32 683565275, %v6386
    %v6388 = vshll.u32 683565275, %v6385
    %v6389 = vshrl.u32 2475754826, %v6386
    %v6390 = vor.u32 %v6388, %v6389
    %v6391 = vshll.u32 2475754826, %v6385
    %v6392 = vshrl.u32 2131351028, %v6386
    %v6393 = vor.u32 %v6391, %v6392
    %v6394 = vshll.u32 2131351028, %v6385
    %v6395 = vshrl.u32 2102212464, %v6386
    %v6396 = vor.u32 %v6394, %v6395
    %v6397 = vshll.u32 2102212464, %v6385
    %v6398 = vshrl.u32 920167782, %v6386
    %v6399 = vor.u32 %v6397, %v6398
    %v6400 = vshll.u32 920167782, %v6385
    %v6401 = vshrl.u32 1326507024, %v6386
    %v6402 = vor.u32 %v6400, %v6401
    %vm6403 = vcmp.lt.s32.totalorder %v6384, 1
    %vm6404 = vcmp.lt.s32.totalorder %v6384, 2
    %vm6405 = vcmp.lt.s32.totalorder %v6384, 3
    %vm6406 = vcmp.lt.s32.totalorder %v6384, 4
    %v6407 = vsel %vm6403, %v6387, %v6390
    %v6408 = vsel %vm6406, %v6396, 2102212464
    %v6409 = vsel %vm6405, %v6393, %v6408
    %v6410 = vsel %vm6404, %v6407, %v6409
    %v6411 = vsel %vm6403, %v6390, %v6393
    %v6412 = vsel %vm6406, %v6399, 920167782
    %v6413 = vsel %vm6405, %v6396, %v6412
    %v6414 = vsel %vm6404, %v6411, %v6413
    %v6415 = vsel %vm6403, %v6393, %v6396
    %v6416 = vsel %vm6406, %v6402, 1326507024
    %v6417 = vsel %vm6405, %v6399, %v6416
    %v6418 = vsel %vm6404, %v6415, %v6417
    %v6419 = vshll.u32 %v6379, 8
    %v6420 = vmul.u32.u64.compose %v6419, %v6418
    %v6421 = vextract.low.u32 %v6420
    %v6422 = vextract.high.u32 %v6420
    %v6423 = vmul.u32.u64.compose %v6419, %v6414
    %v6424 = vextract.low.u32 %v6423
    %v6425 = vextract.high.u32 %v6423
    %v6426 = vmul.u32 %v6419, %v6410
    %v6427 = vadd.s32 %v6422, %v6424
    %vm6428 = vc.u32 %v6422, %v6424
    %v6429 = vadd.s32 %v6425, 1
    %v6430 = vsel %vm6428, %v6429, %v6425
    %v6431 = vadd.s32 %v6426, %v6430
    %v6432 = vadd.s32 %v6431, 536870912
    %v6433 = vshrl.u32 %v6432, 30
    %v6434 = vshll.u32 %v6433, 30
    %v6435 = vsub.s32 %v6431, %v6434
    %vm6436 = vcmp.lt.s32.totalorder %v6435, 0
    %v6437 = vsub.s32 0, %v6435
    %v6438 = vsel %vm6436, %v6437, %v6435
    %v6439 = vclz %v6438
    %v6440 = vsub.s32 %v6439, 2
    %vm6441 = vcmp.gt.s32.totalorder 0, %v6440
    %v6442 = vsel %vm6441, 0, %v6440
    %v6443 = vsub.s32 32, %v6442
    %v6444 = vshll.u32 %v6435, %v6442
    %v6445 = vshrl.u32 %v6427, %v6443
    %v6446 = vor.u32 %v6444, %v6445
    %v6447 = vsub.s32 4294967266, %v6442
    %v6448 = vadd.s32 %v6447, 127
    %v6449 = vshll.u32 %v6448, 23
    %v6450 = vor.u32 4788187, %v6449
    %v6451 = vand.u32 2147483647, %v6450
    %v6453 = vcvt.s32.f32 %v6446
    %v6454 = vmul.f32 %v6453, %v6451
    %v6455 = vxor.u32 %v6454, 2147483648
    %v6456 = vsel %vm6373, %v6455, %v6454
    %v6457 = vsub.s32 4, %v6433
    %v6458 = vsel %vm6373, %v6457, %v6433
    %v6459 = vsel %vm6372, %v6267, %v6456
    %v6460 = vsel %vm6372, 0, %v6458
    %v6461 = vcosq.f32.pop %v6459
    %v6462 = vsinq.f32.pop %v6459
    %vm6463 = vweird.f32 %v6267
    %v6464 = vadd.s32 %v6460, 3
    %v6465 = vand.u32 %v6464, 3
    %vm6466 = vcmp.lt.s32.totalorder %v6465, 2
    %vm6467 = vcmp.eq.s32.totalorder %v6465, 0
    %v6468 = vxor.u32 %v6462, 2147483648
    %v6469 = vsel %vm6467, %v6461, %v6468
    %vm6470 = vcmp.eq.s32.totalorder %v6465, 2
    %v6471 = vxor.u32 %v6461, 2147483648
    %v6472 = vsel %vm6470, %v6471, %v6462
    %v6473 = vsel %vm6466, %v6469, %v6472
    %v6474 = vsel %vm6463, nan, %v6473
    %v6475 = vsub.f32 %v6370, %v6474
    %v6476 = vld [vmem:[%s14] sm:$0xf]
    %6478 = vset.pattern.permute.xlu0 0
    %6479 = vperm.xlu0 %6478, %v6475
    %v6480 = vpop.permute.xlu0 %6479
    %v6482 = vlaneseq
    %v6483 = vshrl.u32 %v6482, 7
    %v6484 = vsub.s32 0, %v6483
    %v6485 = vrot.slane %v6476, %v6484
    %v6486 = vmul.f32 %v6480, %v6485
    %6488 = vset.pattern.permute.xlu0 0
    %6489 = vperm.xlu0 %6488, %v6474
    %v6490 = vpop.permute.xlu0 %6489
    %v6492 = vadd.f32 %v6490, %v6486
    %6493 = vset.pattern.permute.xlu0 1
    %6494 = vperm.xlu0 %6493, %v6475
    %v6495 = vpop.permute.xlu0 %6494
    %v6497 = vlaneseq
    %v6498 = vshrl.u32 %v6497, 7
    %v6499 = vsub.s32 1, %v6498
    %v6500 = vrot.slane %v6476, %v6499
    %v6501 = vmul.f32 %v6495, %v6500
    %6502 = vset.pattern.permute.xlu0 1
    %6503 = vperm.xlu0 %6502, %v6474
    %v6504 = vpop.permute.xlu0 %6503
    %v6506 = vadd.f32 %v6504, %v6501
    %v6507 = vmul.f32 %v6492, %v6506
    %6508 = vset.pattern.permute.xlu0 2
    %6509 = vperm.xlu0 %6508, %v6475
    %v6510 = vpop.permute.xlu0 %6509
    %v6512 = vlaneseq
    %v6513 = vshrl.u32 %v6512, 7
    %v6514 = vsub.s32 2, %v6513
    %v6515 = vrot.slane %v6476, %v6514
    %v6516 = vmul.f32 %v6510, %v6515
    %6517 = vset.pattern.permute.xlu0 2
    %6518 = vperm.xlu0 %6517, %v6474
    %v6519 = vpop.permute.xlu0 %6518
    %v6521 = vadd.f32 %v6519, %v6516
    %v6522 = vmul.f32 %v6507, %v6521
    %6523 = vset.pattern.permute.xlu0 3
    %6524 = vperm.xlu0 %6523, %v6475
    %v6525 = vpop.permute.xlu0 %6524
    %v6527 = vlaneseq
    %v6528 = vshrl.u32 %v6527, 7
    %v6529 = vsub.s32 3, %v6528
    %v6530 = vrot.slane %v6476, %v6529
    %v6531 = vmul.f32 %v6525, %v6530
    %6532 = vset.pattern.permute.xlu0 3
    %6533 = vperm.xlu0 %6532, %v6474
    %v6534 = vpop.permute.xlu0 %6533
    %v6536 = vadd.f32 %v6534, %v6531
    %v6537 = vmul.f32 %v6522, %v6536
    %v6538 = vld [vmem:[%s15] sm:$0xff]
    %v6539 = vld [vmem:[%s15 + $0x8] sm:$0xff]
    %v6541 = vsel %vm359, %v6537, 0
    %6543 = vmatprep.subr.mxu0 0.0
    %6544 = vmatpush1.msra.mxu0 0.0
    %6545 = vmatprep.subr.mxu0 0.0
    %6546 = vmatpush1.msra.mxu0 0.0
    %6547 = vmatprep.subr.mxu0 0.0
    %6548 = vmatpush1.msra.mxu0 0.0
    %6549 = vmatprep.subr.mxu0 0.0
    %6550 = vmatpush1.msra.mxu0 0.0
    %6551 = vmatprep.subr.mxu0 0.0
    %6552 = vmatpush1.msra.mxu0 0.0
    %6553 = vmatprep.subr.mxu0 0.0
    %6554 = vmatpush1.msra.mxu0 0.0
    %6555 = vmatprep.subr.mxu0 0.0
    %6556 = vmatpush1.msra.mxu0 0.0
    %6557 = vmatprep.subr.mxu0 0.0
    %6558 = vmatpush1.msra.mxu0 0.0
    %6559 = vmatprep.subr.mxu0 0.0
    %6560 = vmatpush1.msra.mxu0 0.0
    %6561 = vmatprep.subr.mxu0 0.0
    %6562 = vmatpush1.msra.mxu0 0.0
    %6563 = vmatprep.subr.mxu0 0.0
    %6564 = vmatpush1.msra.mxu0 0.0
    %6565 = vmatprep.subr.mxu0 0.0
    %6566 = vmatpush1.msra.mxu0 0.0
    %6567 = vmatprep.subr.mxu0 0.0
    %6568 = vmatpush1.msra.mxu0 0.0
    %6569 = vmatprep.subr.mxu0 0.0
    %6570 = vmatpush1.msra.mxu0 0.0
    %6571 = vmatprep.subr.mxu0 0.0
    %6572 = vmatpush1.msra.mxu0 %v6539
    %6573 = vmatprep.subr.mxu0 0.0
    %6574 = vmatpush1.msra.mxu0 %v6538
    %6575 = vmatprep.subr.mxu0 0.0
    %6576 = vmatpush2.msra.mxu0 0.0
    %6577 = vmatprep.subr.mxu0 0.0
    %6578 = vmatpush2.msra.mxu0 0.0
    %6579 = vmatprep.subr.mxu0 0.0
    %6580 = vmatpush2.msra.mxu0 0.0
    %6581 = vmatprep.subr.mxu0 0.0
    %6582 = vmatpush2.msra.mxu0 0.0
    %6583 = vmatprep.subr.mxu0 0.0
    %6584 = vmatpush2.msra.mxu0 0.0
    %6585 = vmatprep.subr.mxu0 0.0
    %6586 = vmatpush2.msra.mxu0 0.0
    %6587 = vmatprep.subr.mxu0 0.0
    %6588 = vmatpush2.msra.mxu0 0.0
    %6589 = vmatprep.subr.mxu0 0.0
    %6590 = vmatpush2.msra.mxu0 0.0
    %6591 = vmatprep.subr.mxu0 0.0
    %6592 = vmatpush2.msra.mxu0 0.0
    %6593 = vmatprep.subr.mxu0 0.0
    %6594 = vmatpush2.msra.mxu0 0.0
    %6595 = vmatprep.subr.mxu0 0.0
    %6596 = vmatpush2.msra.mxu0 0.0
    %6597 = vmatprep.subr.mxu0 0.0
    %6598 = vmatpush2.msra.mxu0 0.0
    %6599 = vmatprep.subr.mxu0 0.0
    %6600 = vmatpush2.msra.mxu0 0.0
    %6601 = vmatprep.subr.mxu0 0.0
    %6602 = vmatpush2.msra.mxu0 0.0
    %6603 = vmatprep.subr.mxu0 0.0
    %6604 = vmatpush2.msra.mxu0 0.0
    %6605 = vmatprep.subr.mxu0 0.0
    %6606 = vmatpush2.msra.mxu0 0.0
    %6607 = vmatprep.mubr.f32.mxu0 0.0
    %6608 = vmatmul.mubr.f32.gmra.mxu0 %v6541
    %v6609 = vpop.f32.mrf.mxu0
    %v6610 = vadd.f32 0.0, %v6609
    %v6611 = vpop.f32.mrf.mxu0
    %6612 = vdwg.mxu0
    %v6613 = vmul.f32 %v6610, %v6610
    %v6614 = vld [vmem:[%s16] sm:$0xff]
    %v6615 = vld [vmem:[%s16 + $0x8] sm:$0xff]
    %v6617 = vsel %vm359, %v6613, 0
    %6619 = vmatprep.subr.mxu0 0.0
    %6620 = vmatpush1.msra.mxu0 0.0
    %6621 = vmatprep.subr.mxu0 0.0
    %6622 = vmatpush1.msra.mxu0 0.0
    %6623 = vmatprep.subr.mxu0 0.0
    %6624 = vmatpush1.msra.mxu0 0.0
    %6625 = vmatprep.subr.mxu0 0.0
    %6626 = vmatpush1.msra.mxu0 0.0
    %6627 = vmatprep.subr.mxu0 0.0
    %6628 = vmatpush1.msra.mxu0 0.0
    %6629 = vmatprep.subr.mxu0 0.0
    %6630 = vmatpush1.msra.mxu0 0.0
    %6631 = vmatprep.subr.mxu0 0.0
    %6632 = vmatpush1.msra.mxu0 0.0
    %6633 = vmatprep.subr.mxu0 0.0
    %6634 = vmatpush1.msra.mxu0 0.0
    %6635 = vmatprep.subr.mxu0 0.0
    %6636 = vmatpush1.msra.mxu0 0.0
    %6637 = vmatprep.subr.mxu0 0.0
    %6638 = vmatpush1.msra.mxu0 0.0
    %6639 = vmatprep.subr.mxu0 0.0
    %6640 = vmatpush1.msra.mxu0 0.0
    %6641 = vmatprep.subr.mxu0 0.0
    %6642 = vmatpush1.msra.mxu0 0.0
    %6643 = vmatprep.subr.mxu0 0.0
    %6644 = vmatpush1.msra.mxu0 0.0
    %6645 = vmatprep.subr.mxu0 0.0
    %6646 = vmatpush1.msra.mxu0 0.0
    %6647 = vmatprep.subr.mxu0 0.0
    %6648 = vmatpush1.msra.mxu0 %v6615
    %6649 = vmatprep.subr.mxu0 0.0
    %6650 = vmatpush1.msra.mxu0 %v6614
    %6651 = vmatprep.subr.mxu0 0.0
    %6652 = vmatpush2.msra.mxu0 0.0
    %6653 = vmatprep.subr.mxu0 0.0
    %6654 = vmatpush2.msra.mxu0 0.0
    %6655 = vmatprep.subr.mxu0 0.0
    %6656 = vmatpush2.msra.mxu0 0.0
    %6657 = vmatprep.subr.mxu0 0.0
    %6658 = vmatpush2.msra.mxu0 0.0
    %6659 = vmatprep.subr.mxu0 0.0
    %6660 = vmatpush2.msra.mxu0 0.0
    %6661 = vmatprep.subr.mxu0 0.0
    %6662 = vmatpush2.msra.mxu0 0.0
    %6663 = vmatprep.subr.mxu0 0.0
    %6664 = vmatpush2.msra.mxu0 0.0
    %6665 = vmatprep.subr.mxu0 0.0
    %6666 = vmatpush2.msra.mxu0 0.0
    %6667 = vmatprep.subr.mxu0 0.0
    %6668 = vmatpush2.msra.mxu0 0.0
    %6669 = vmatprep.subr.mxu0 0.0
    %6670 = vmatpush2.msra.mxu0 0.0
    %6671 = vmatprep.subr.mxu0 0.0
    %6672 = vmatpush2.msra.mxu0 0.0
    %6673 = vmatprep.subr.mxu0 0.0
    %6674 = vmatpush2.msra.mxu0 0.0
    %6675 = vmatprep.subr.mxu0 0.0
    %6676 = vmatpush2.msra.mxu0 0.0
    %6677 = vmatprep.subr.mxu0 0.0
    %6678 = vmatpush2.msra.mxu0 0.0
    %6679 = vmatprep.subr.mxu0 0.0
    %6680 = vmatpush2.msra.mxu0 0.0
    %6681 = vmatprep.subr.mxu0 0.0
    %6682 = vmatpush2.msra.mxu0 0.0
    %6683 = vmatprep.mubr.f32.mxu0 0.0
    %6684 = vmatmul.mubr.f32.gmra.mxu0 %v6617
    %v6685 = vpop.f32.mrf.mxu0
    %v6686 = vadd.f32 0.0, %v6685
    %v6687 = vpop.f32.mrf.mxu0
    %6688 = vdwg.mxu0
    %v6689 = vld [vmem:[%s17] sm:$0xf]
    %v6690 = vld [vmem:[%s18] sm:$0x1]
    %v6692 = vlaneseq
    %v6693 = vshrl.u32 %v6692, 7
    %v6694 = vsub.s32 0, %v6693
    %v6695 = vrot.slane %v6690, %v6694
    %vm6697 = vcmask 31744
    %v6699 = vsel %vm6697, %v6686, 0
    %vm6701 = vcmask 1043456
    %v6703 = vsel %vm6701, %v6689, 0
    %6705 = vmatprep.subr.mxu0 0.0
    %6706 = vmatpush1.msra.mxu0 0.0
    %6707 = vmatprep.subr.mxu0 0.0
    %6708 = vmatpush1.msra.mxu0 0.0
    %6709 = vmatprep.subr.mxu0 0.0
    %6710 = vmatpush1.msra.mxu0 0.0
    %6711 = vmatprep.subr.mxu0 0.0
    %6712 = vmatpush1.msra.mxu0 0.0
    %6713 = vmatprep.subr.mxu0 0.0
    %6714 = vmatpush1.msra.mxu0 0.0
    %6715 = vmatprep.subr.mxu0 0.0
    %6716 = vmatpush1.msra.mxu0 0.0
    %6717 = vmatprep.subr.mxu0 0.0
    %6718 = vmatpush1.msra.mxu0 0.0
    %6719 = vmatprep.subr.mxu0 0.0
    %6720 = vmatpush1.msra.mxu0 0.0
    %6721 = vmatprep.subr.mxu0 0.0
    %6722 = vmatpush1.msra.mxu0 0.0
    %6723 = vmatprep.subr.mxu0 0.0
    %6724 = vmatpush1.msra.mxu0 0.0
    %6725 = vmatprep.subr.mxu0 0.0
    %6726 = vmatpush1.msra.mxu0 0.0
    %6727 = vmatprep.subr.mxu0 0.0
    %6728 = vmatpush1.msra.mxu0 0.0
    %6729 = vmatprep.subr.mxu0 0.0
    %6730 = vmatpush1.msra.mxu0 0.0
    %6731 = vmatprep.subr.mxu0 0.0
    %6732 = vmatpush1.msra.mxu0 0.0
    %6733 = vmatprep.subr.mxu0 0.0
    %6734 = vmatpush1.msra.mxu0 0.0
    %6735 = vmatprep.subr.mxu0 0.0
    %6736 = vmatpush1.msra.mxu0 %v6703
    %6737 = vmatprep.subr.mxu0 0.0
    %6738 = vmatpush2.msra.mxu0 0.0
    %6739 = vmatprep.subr.mxu0 0.0
    %6740 = vmatpush2.msra.mxu0 0.0
    %6741 = vmatprep.subr.mxu0 0.0
    %6742 = vmatpush2.msra.mxu0 0.0
    %6743 = vmatprep.subr.mxu0 0.0
    %6744 = vmatpush2.msra.mxu0 0.0
    %6745 = vmatprep.subr.mxu0 0.0
    %6746 = vmatpush2.msra.mxu0 0.0
    %6747 = vmatprep.subr.mxu0 0.0
    %6748 = vmatpush2.msra.mxu0 0.0
    %6749 = vmatprep.subr.mxu0 0.0
    %6750 = vmatpush2.msra.mxu0 0.0
    %6751 = vmatprep.subr.mxu0 0.0
    %6752 = vmatpush2.msra.mxu0 0.0
    %6753 = vmatprep.subr.mxu0 0.0
    %6754 = vmatpush2.msra.mxu0 0.0
    %6755 = vmatprep.subr.mxu0 0.0
    %6756 = vmatpush2.msra.mxu0 0.0
    %6757 = vmatprep.subr.mxu0 0.0
    %6758 = vmatpush2.msra.mxu0 0.0
    %6759 = vmatprep.subr.mxu0 0.0
    %6760 = vmatpush2.msra.mxu0 0.0
    %6761 = vmatprep.subr.mxu0 0.0
    %6762 = vmatpush2.msra.mxu0 0.0
    %6763 = vmatprep.subr.mxu0 0.0
    %6764 = vmatpush2.msra.mxu0 0.0
    %6765 = vmatprep.subr.mxu0 0.0
    %6766 = vmatpush2.msra.mxu0 0.0
    %6767 = vmatprep.subr.mxu0 0.0
    %6768 = vmatpush2.msra.mxu0 0.0
    %6769 = vmatprep.mubr.f32.mxu0 0.0
    %6770 = vmatmul.mubr.f32.gmra.mxu0 %v6699
    %v6771 = vpop.f32.mrf.mxu0
    %v6772 = vadd.f32 %v6695, %v6771
    %v6773 = vpop.f32.mrf.mxu0
    %6774 = vdwg.mxu0
    %vm6775 = vcmask 74752
    %6776 = vst.msk [vmem:[#allocation9] sm:$0x3] %vm6775, %v6772
    // Predicated region
    $region108: #{hybrid_vision_forward.1} parent=1 // pred_check
      _
    $region109: #{hybrid_vision_forward.1} parent=1 // pred_check_branch
      %6778 = sbr.rel (0) target = $region111
    $region110: #{hybrid_vision_forward.1} parent=1 // pred_region
      %s6780 = ssub.s32 32, 32
      %6781 = vsyncadd [#allocation10], %s6780
      %s6783 = sshll.u32 [#allocation9], 4
      %s6784 = int_to_ptr.vmem [resolvable:$true] %s6783
      %6786 = dma.vmem_to_hbm [thread:$0]  %s6784, 32, %s19, [#allocation10]
    $region111: #{hybrid_vision_forward.1} parent=1 // pred_fallthru
      _
    // Predicated region
    $region112: #{hybrid_vision_forward.1} parent=1 // pred_check
      _
    $region113: #{hybrid_vision_forward.1} parent=1 // pred_check_branch
      %6788 = sbr.rel (0) target = $region115
    $region114: #{hybrid_vision_forward.1} parent=1 // pred_region
      %6789 = dma.done [#allocation10], 32
    $region115: #{hybrid_vision_forward.1} parent=1 // pred_fallthru
      _
    %6790 = vsyncpa [#allocation10], 1
  %6791 = vsyncmov [#allocation8]
  %s6792 = vpop.sfrf %6791
  %p6793 = scmp.eq.s32.totalorder %s6792, 0
  %p6794 = pneg %p6793
  %6796 = shalt.err (%p6794)

</llo_original>
